<compile_context>
chip_gen: v6e
topology: v6e:2x2x1
jax: 0.10.0
libtpu: 0.0.40
codegen_flags: <defaults>
</compile_context>

<pallas_src>
import numpy as np
import jax
import jax.numpy as jnp
from jax.experimental import pallas as pl
from jax.experimental.pallas import tpu as pltpu

EPS = 1e-5  # PyTorch BatchNorm2d default


# ----------------------------- fused Pallas kernel -----------------------------

def simple_cnn_kernel(x_ref,
                      m1_ref, sh1_ref, s1e_ref, s1o_ref, e1e_ref, e1o_ref,
                      m2_ref, sh2_ref, s2e_ref, s2o_ref, e2e_ref, e2o_ref,
                      m3_ref, sh3_ref,
                      fw1_ref, fb1_ref, fw2_ref, fb2_ref,
                      out_ref):
    n = x_ref.shape[0]

    def bmm(a, b):
        # Batched-over-images MXU matmul; a rank-2 operand is broadcast across images.
        if a.ndim == 2:
            a = jnp.broadcast_to(a, (n,) + a.shape)
        if b.ndim == 2:
            b = jnp.broadcast_to(b, (n,) + b.shape)
        return jnp.einsum('nij,njk->nik', a, b,
                          preferred_element_type=jnp.float32)

    def conv_bn_relu(a, m_ref, sh_ref):
        # a: (N, H, W*Cin) slab.  m_ref: (kh, W*Cin, OW*Cout) banded weights with the BN
        # scale folded in (implicit im2col).  sh_ref: (1, 1, OW*Cout) fused bias+BN shift.
        kh = m_ref.shape[0]
        oh = a.shape[1] - kh + 1
        acc = bmm(a[:, 0:oh, :], m_ref[0])
        for di in range(1, kh):
            acc = acc + bmm(a[:, di:di + oh, :], m_ref[di])
        return jnp.maximum(acc + sh_ref[...], 0.0)

    def maxpool2(a, se_ref, so_ref, ee_ref, eo_ref):
        # 2x2 stride-2 max pool: 0/1 selection matmuls pick even/odd rows (left) and
        # even/odd column blocks (right, also compacting lanes); max of the 4 candidates.
        r_even = bmm(se_ref[...], a)
        r_odd = bmm(so_ref[...], a)
        c00 = bmm(r_even, ee_ref[...])
        c01 = bmm(r_even, eo_ref[...])
        c10 = bmm(r_odd, ee_ref[...])
        c11 = bmm(r_odd, eo_ref[...])
        return jnp.maximum(jnp.maximum(c00, c01), jnp.maximum(c10, c11))

    x = x_ref[...]                                                 # (N, 40, 40)
    a1 = conv_bn_relu(x, m1_ref, sh1_ref)                          # (N, 32, 32*8=256)
    p1 = maxpool2(a1, s1e_ref, s1o_ref, e1e_ref, e1o_ref)          # (N, 16, 16*8=128)
    a2 = conv_bn_relu(p1, m2_ref, sh2_ref)                         # (N, 12, 12*16=192)
    p2 = maxpool2(a2, s2e_ref, s2o_ref, e2e_ref, e2o_ref)          # (N, 6,  6*16=96)
    a3 = conv_bn_relu(p2, m3_ref, sh3_ref)                         # (N, 4,  4*32=128)

    g = jnp.mean(a3, axis=1)                                       # (N, 128) row mean
    h = jnp.dot(g, fw1_ref[...], preferred_element_type=jnp.float32) + fb1_ref[...]
    h = jnp.maximum(h, 0.0)                                        # (N, 16)
    out_ref[...] = (jnp.dot(h, fw2_ref[...], preferred_element_type=jnp.float32)
                    + fb2_ref[...])                                # (N, 9)


@jax.jit
def simple_cnn_forward(kparams, x_nchw):
    n, _, h, w = x_nchw.shape
    x = x_nchw.reshape(n, h, w)            # Cin == 1: NCHW -> (N, H, W) slab
    vmem = pl.BlockSpec(memory_space=pltpu.MemorySpace.VMEM)
    return pl.pallas_call(
        simple_cnn_kernel,
        out_shape=jax.ShapeDtypeStruct((n, 9), jnp.float32),
        in_specs=[vmem] * (1 + len(kparams)),
        out_specs=vmem,
    )(x, *kparams)


# --------------------- host-side parameter packing (pure numpy) ---------------------

def _banded_conv_mats(w, scale, ow):
    # w: (cout, cin, kh, kw).  Input slab lane layout: lane = cin*col + c (dense NHWC row).
    # Returns (kh, cin*(ow+kw-1), ow*cout) with
    #   M[di][cin*(j+dj)+c, cout*j+co] = scale[co] * w[co, c, di, dj]   (BN scale folded).
    cout, cin, kh, kw = w.shape
    k_in = cin * (ow + kw - 1)
    ws = np.asarray(w, np.float32) * np.asarray(scale, np.float32)[:, None, None, None]
    m = np.zeros((kh, k_in, ow * cout), np.float32)
    for di in range(kh):
        for dj in range(kw):
            blk = ws[:, :, di, dj].T                  # (cin, cout)
            for j in range(ow):
                r0 = cin * (j + dj)
                m[di, r0:r0 + cin, cout * j:cout * (j + 1)] = blk
    return m


def _pool_select_mats(h_in, w_in, c):
    # Row (left) and column-block (right) 0/1 selection matrices for a 2x2/2 max pool on
    # a (N, h_in, w_in*c) slab; the column matrices also compact lanes to (w_in//2)*c.
    hh, wh = h_in // 2, w_in // 2
    s_e = np.zeros((hh, h_in), np.float32)
    s_o = np.zeros((hh, h_in), np.float32)
    s_e[np.arange(hh), 2 * np.arange(hh)] = 1.0
    s_o[np.arange(hh), 2 * np.arange(hh) + 1] = 1.0
    e_e = np.zeros((w_in * c, wh * c), np.float32)
    e_o = np.zeros((w_in * c, wh * c), np.float32)
    rows = np.arange(c)
    for j in range(wh):
        e_e[c * (2 * j) + rows, c * j + rows] = 1.0
        e_o[c * (2 * j + 1) + rows, c * j + rows] = 1.0
    return s_e, s_o, e_e, e_o


def init_raw_params(key):
    # Raw PyTorch-layout parameters (Conv2d (out,in,kh,kw), Linear (out,in), BN stats).
    def conv_block(k, cin, cout, ksz):
        k1, k2, k3, k4, k5, k6 = jax.random.split(k, 6)
        w = jax.random.normal(k1, (cout, cin, ksz, ksz), jnp.float32) * 0.1
        b = jax.random.normal(k2, (cout,), jnp.float32) * 0.1
        gamma = 1.0 + 0.1 * jax.random.normal(k3, (cout,), jnp.float32)
        beta = 0.1 * jax.random.normal(k4, (cout,), jnp.float32)
        rmean = 0.1 * jax.random.normal(k5, (cout,), jnp.float32)
        rvar = 1.0 + 0.1 * jax.random.uniform(k6, (cout,), jnp.float32)
        return (w, b, gamma, beta, rmean, rvar)

    k1, k2, k3, k4, k5, k6, k7 = jax.random.split(key, 7)
    return {
        'c1': conv_block(k1, 1, 8, 9),
        'c2': conv_block(k2, 8, 16, 5),
        'c3': conv_block(k3, 16, 32, 3),
        'fw1': jax.random.normal(k4, (16, 32), jnp.float32) * 0.1,
        'fb1': jax.random.normal(k5, (16,), jnp.float32) * 0.1,
        'fw2': jax.random.normal(k6, (9, 16), jnp.float32) * 0.1,
        'fb2': jax.random.normal(k7, (9,), jnp.float32) * 0.1,
    }


def pack_params(raw):
    def fold_bn(w, b, gamma, beta, rmean, rvar):
        scale = np.asarray(gamma, np.float32) / np.sqrt(np.asarray(rvar, np.float32) + EPS)
        shift = (np.asarray(b, np.float32) - np.asarray(rmean, np.float32)) * scale \
            + np.asarray(beta, np.float32)
        return scale, shift

    sc1, sh1 = fold_bn(*raw['c1'])
    sc2, sh2 = fold_bn(*raw['c2'])
    sc3, sh3 = fold_bn(*raw['c3'])

    m1 = _banded_conv_mats(np.asarray(raw['c1'][0]), sc1, ow=32)   # (9, 40, 256)
    m2 = _banded_conv_mats(np.asarray(raw['c2'][0]), sc2, ow=12)   # (5, 128, 192)
    m3 = _banded_conv_mats(np.asarray(raw['c3'][0]), sc3, ow=4)    # (3, 96, 128)
    sh1t = np.tile(sh1, 32).reshape(1, 1, 256).astype(np.float32)
    sh2t = np.tile(sh2, 12).reshape(1, 1, 192).astype(np.float32)
    sh3t = np.tile(sh3, 4).reshape(1, 1, 128).astype(np.float32)

    s1e, s1o, e1e, e1o = _pool_select_mats(32, 32, 8)     # (16,32), (256,128)
    s2e, s2o, e2e, e2o = _pool_select_mats(12, 12, 16)    # (6,12),  (192,96)

    # Fold the GAP column mean (4 column blocks, x 1/4) into FC1 (lane = 32*col + ch).
    fw1 = np.asarray(raw['fw1'], np.float32)              # (16, 32) torch (out, in)
    fw1_eff = np.tile(fw1.T * 0.25, (4, 1))               # (128, 16)
    fb1 = np.asarray(raw['fb1'], np.float32).reshape(1, 16)
    fw2 = np.asarray(raw['fw2'], np.float32).T            # (16, 9)
    fb2 = np.asarray(raw['fb2'], np.float32).reshape(1, 9)

    mats = (m1, sh1t, s1e, s1o, e1e, e1o,
            m2, sh2t, s2e, s2o, e2e, e2o,
            m3, sh3t, fw1_eff, fb1, fw2, fb2)
    return tuple(jnp.asarray(a) for a in mats)


# ---------------------- plain-JAX reference of the PyTorch module ----------------------

def reference_forward(raw, x_nchw):
    hi = jax.lax.Precision.HIGHEST

    def conv_block(x, w, b, gamma, beta, rmean, rvar):
        y = jax.lax.conv_general_dilated(
            x, w, window_strides=(1, 1), padding='VALID',
            dimension_numbers=('NCHW', 'OIHW', 'NCHW'), precision=hi)
        y = y + b[None, :, None, None]
        y = (y - rmean[None, :, None, None]) * (
            gamma[None, :, None, None] / jnp.sqrt(rvar[None, :, None, None] + EPS))
        y = y + beta[None, :, None, None]
        return jnp.maximum(y, 0.0)

    def maxpool2(x):
        n, c, h, w = x.shape
        return x.reshape(n, c, h // 2, 2, w // 2, 2).max(axis=(3, 5))

    x = conv_block(x_nchw, *raw['c1'])
    x = maxpool2(x)
    x = conv_block(x, *raw['c2'])
    x = maxpool2(x)
    x = conv_block(x, *raw['c3'])
    v = x.mean(axis=(2, 3))                                        # (N, 32)
    h = jnp.maximum(jnp.dot(v, raw['fw1'].T, precision=hi) + raw['fb1'], 0.0)
    return jnp.dot(h, raw['fw2'].T, precision=hi) + raw['fb2']


# --------------------------------------- main ---------------------------------------

if __name__ == "__main__":
    key = jax.random.PRNGKey(0)
    kx, kp = jax.random.split(key)
    # NCHW input as the PyTorch module expects; 40x40 so both pools divide evenly
    # (Conv2d uses PyTorch-default padding=0, i.e. 'valid').
    x = jax.random.normal(kx, (2, 1, 40, 40), jnp.float32)
    raw = init_raw_params(kp)
    kparams = pack_params(raw)

    # TODO(synk): BatchNorm uses eval-mode running stats (train-mode batch statistics
    # would need a batch-reduction pass; not part of inference semantics).
    out = simple_cnn_forward(kparams, x)
    jax.block_until_ready(out)
    assert out.shape == (2, 9) and out.dtype == jnp.float32

    ref = reference_forward(raw, x)
    err = float(jnp.max(jnp.abs(out - ref)))
    assert err < 1e-2, f"kernel/reference mismatch: max abs err = {err}"
    print("KERNEL_OK")
</pallas_src>

<mosaic_0001>
module attributes {stable_mosaic.version = 11 : i64} {
  func.func @simple_cnn_kernel(%arg0: memref<2x40x40xf32, #tpu.memory_space<vmem>>, %arg1: memref<9x40x256xf32, #tpu.memory_space<vmem>>, %arg2: memref<1x1x256xf32, #tpu.memory_space<vmem>>, %arg3: memref<16x32xf32, #tpu.memory_space<vmem>>, %arg4: memref<16x32xf32, #tpu.memory_space<vmem>>, %arg5: memref<256x128xf32, #tpu.memory_space<vmem>>, %arg6: memref<256x128xf32, #tpu.memory_space<vmem>>, %arg7: memref<5x128x192xf32, #tpu.memory_space<vmem>>, %arg8: memref<1x1x192xf32, #tpu.memory_space<vmem>>, %arg9: memref<6x12xf32, #tpu.memory_space<vmem>>, %arg10: memref<6x12xf32, #tpu.memory_space<vmem>>, %arg11: memref<192x96xf32, #tpu.memory_space<vmem>>, %arg12: memref<192x96xf32, #tpu.memory_space<vmem>>, %arg13: memref<3x96x128xf32, #tpu.memory_space<vmem>>, %arg14: memref<1x1x128xf32, #tpu.memory_space<vmem>>, %arg15: memref<128x16xf32, #tpu.memory_space<vmem>>, %arg16: memref<1x16xf32, #tpu.memory_space<vmem>>, %arg17: memref<16x9xf32, #tpu.memory_space<vmem>>, %arg18: memref<1x9xf32, #tpu.memory_space<vmem>>, %arg19: memref<2x9xf32, #tpu.memory_space<vmem>>) attributes {dimension_semantics = [], scalar_prefetch = 0 : i64, scratch_operands = 0 : i64, tpu.core_type = #tpu.core_type<tc>} {
    %c0 = arith.constant 0 : index
    %c0_0 = arith.constant 0 : index
    %c0_1 = arith.constant 0 : index
    %0 = vector.load %arg0[%c0, %c0_0, %c0_1] : memref<2x40x40xf32, #tpu.memory_space<vmem>>, vector<2x40x40xf32>
    %1 = vector.extract_strided_slice %0 {offsets = [0, 0, 0], sizes = [2, 32, 40], strides = [1, 1, 1]} : vector<2x40x40xf32> to vector<2x32x40xf32>
    %c0_2 = arith.constant 0 : index
    %c0_3 = arith.constant 0 : index
    %c0_4 = arith.constant 0 : index
    %2 = vector.load %arg1[%c0_2, %c0_3, %c0_4] : memref<9x40x256xf32, #tpu.memory_space<vmem>>, vector<1x40x256xf32>
    %3 = vector.shape_cast %2 : vector<1x40x256xf32> to vector<40x256xf32>
    %4 = vector.shape_cast %3 : vector<40x256xf32> to vector<1x40x256xf32>
    %5 = vector.broadcast %4 : vector<1x40x256xf32> to vector<2x40x256xf32>
    "tpu.trace_start"() <{level = 10 : i32, message = "nij,njk->nik"}> : () -> ()
    %cst = arith.constant dense<0.000000e+00> : vector<2x32x256xf32>
    %6 = tpu.matmul %1, %5, %cst {dimension_numbers = #tpu.dot_dimension_numbers<[2], [1], [1], [2], [0, 0, 0, 1, 1, 2], [0], [0]>} : vector<2x32x40xf32>, vector<2x40x256xf32>, vector<2x32x256xf32> -> vector<2x32x256xf32>
    "tpu.trace_stop"() : () -> ()
    %7 = vector.extract_strided_slice %0 {offsets = [0, 1, 0], sizes = [2, 32, 40], strides = [1, 1, 1]} : vector<2x40x40xf32> to vector<2x32x40xf32>
    %c1 = arith.constant 1 : index
    %c0_5 = arith.constant 0 : index
    %c0_6 = arith.constant 0 : index
    %8 = vector.load %arg1[%c1, %c0_5, %c0_6] : memref<9x40x256xf32, #tpu.memory_space<vmem>>, vector<1x40x256xf32>
    %9 = vector.shape_cast %8 : vector<1x40x256xf32> to vector<40x256xf32>
    %10 = vector.shape_cast %9 : vector<40x256xf32> to vector<1x40x256xf32>
    %11 = vector.broadcast %10 : vector<1x40x256xf32> to vector<2x40x256xf32>
    "tpu.trace_start"() <{level = 10 : i32, message = "nij,njk->nik"}> : () -> ()
    %cst_7 = arith.constant dense<0.000000e+00> : vector<2x32x256xf32>
    %12 = tpu.matmul %7, %11, %cst_7 {dimension_numbers = #tpu.dot_dimension_numbers<[2], [1], [1], [2], [0, 0, 0, 1, 1, 2], [0], [0]>} : vector<2x32x40xf32>, vector<2x40x256xf32>, vector<2x32x256xf32> -> vector<2x32x256xf32>
    "tpu.trace_stop"() : () -> ()
    %13 = arith.addf %6, %12 : vector<2x32x256xf32>
    %14 = vector.extract_strided_slice %0 {offsets = [0, 2, 0], sizes = [2, 32, 40], strides = [1, 1, 1]} : vector<2x40x40xf32> to vector<2x32x40xf32>
    %c2 = arith.constant 2 : index
    %c0_8 = arith.constant 0 : index
    %c0_9 = arith.constant 0 : index
    %15 = vector.load %arg1[%c2, %c0_8, %c0_9] : memref<9x40x256xf32, #tpu.memory_space<vmem>>, vector<1x40x256xf32>
    %16 = vector.shape_cast %15 : vector<1x40x256xf32> to vector<40x256xf32>
    %17 = vector.shape_cast %16 : vector<40x256xf32> to vector<1x40x256xf32>
    %18 = vector.broadcast %17 : vector<1x40x256xf32> to vector<2x40x256xf32>
    "tpu.trace_start"() <{level = 10 : i32, message = "nij,njk->nik"}> : () -> ()
    %cst_10 = arith.constant dense<0.000000e+00> : vector<2x32x256xf32>
    %19 = tpu.matmul %14, %18, %cst_10 {dimension_numbers = #tpu.dot_dimension_numbers<[2], [1], [1], [2], [0, 0, 0, 1, 1, 2], [0], [0]>} : vector<2x32x40xf32>, vector<2x40x256xf32>, vector<2x32x256xf32> -> vector<2x32x256xf32>
    "tpu.trace_stop"() : () -> ()
    %20 = arith.addf %13, %19 : vector<2x32x256xf32>
    %21 = vector.extract_strided_slice %0 {offsets = [0, 3, 0], sizes = [2, 32, 40], strides = [1, 1, 1]} : vector<2x40x40xf32> to vector<2x32x40xf32>
    %c3 = arith.constant 3 : index
    %c0_11 = arith.constant 0 : index
    %c0_12 = arith.constant 0 : index
    %22 = vector.load %arg1[%c3, %c0_11, %c0_12] : memref<9x40x256xf32, #tpu.memory_space<vmem>>, vector<1x40x256xf32>
    %23 = vector.shape_cast %22 : vector<1x40x256xf32> to vector<40x256xf32>
    %24 = vector.shape_cast %23 : vector<40x256xf32> to vector<1x40x256xf32>
    %25 = vector.broadcast %24 : vector<1x40x256xf32> to vector<2x40x256xf32>
    "tpu.trace_start"() <{level = 10 : i32, message = "nij,njk->nik"}> : () -> ()
    %cst_13 = arith.constant dense<0.000000e+00> : vector<2x32x256xf32>
    %26 = tpu.matmul %21, %25, %cst_13 {dimension_numbers = #tpu.dot_dimension_numbers<[2], [1], [1], [2], [0, 0, 0, 1, 1, 2], [0], [0]>} : vector<2x32x40xf32>, vector<2x40x256xf32>, vector<2x32x256xf32> -> vector<2x32x256xf32>
    "tpu.trace_stop"() : () -> ()
    %27 = arith.addf %20, %26 : vector<2x32x256xf32>
    %28 = vector.extract_strided_slice %0 {offsets = [0, 4, 0], sizes = [2, 32, 40], strides = [1, 1, 1]} : vector<2x40x40xf32> to vector<2x32x40xf32>
    %c4 = arith.constant 4 : index
    %c0_14 = arith.constant 0 : index
    %c0_15 = arith.constant 0 : index
    %29 = vector.load %arg1[%c4, %c0_14, %c0_15] : memref<9x40x256xf32, #tpu.memory_space<vmem>>, vector<1x40x256xf32>
    %30 = vector.shape_cast %29 : vector<1x40x256xf32> to vector<40x256xf32>
    %31 = vector.shape_cast %30 : vector<40x256xf32> to vector<1x40x256xf32>
    %32 = vector.broadcast %31 : vector<1x40x256xf32> to vector<2x40x256xf32>
    "tpu.trace_start"() <{level = 10 : i32, message = "nij,njk->nik"}> : () -> ()
    %cst_16 = arith.constant dense<0.000000e+00> : vector<2x32x256xf32>
    %33 = tpu.matmul %28, %32, %cst_16 {dimension_numbers = #tpu.dot_dimension_numbers<[2], [1], [1], [2], [0, 0, 0, 1, 1, 2], [0], [0]>} : vector<2x32x40xf32>, vector<2x40x256xf32>, vector<2x32x256xf32> -> vector<2x32x256xf32>
    "tpu.trace_stop"() : () -> ()
    %34 = arith.addf %27, %33 : vector<2x32x256xf32>
    %35 = vector.extract_strided_slice %0 {offsets = [0, 5, 0], sizes = [2, 32, 40], strides = [1, 1, 1]} : vector<2x40x40xf32> to vector<2x32x40xf32>
    %c5 = arith.constant 5 : index
    %c0_17 = arith.constant 0 : index
    %c0_18 = arith.constant 0 : index
    %36 = vector.load %arg1[%c5, %c0_17, %c0_18] : memref<9x40x256xf32, #tpu.memory_space<vmem>>, vector<1x40x256xf32>
    %37 = vector.shape_cast %36 : vector<1x40x256xf32> to vector<40x256xf32>
    %38 = vector.shape_cast %37 : vector<40x256xf32> to vector<1x40x256xf32>
    %39 = vector.broadcast %38 : vector<1x40x256xf32> to vector<2x40x256xf32>
    "tpu.trace_start"() <{level = 10 : i32, message = "nij,njk->nik"}> : () -> ()
    %cst_19 = arith.constant dense<0.000000e+00> : vector<2x32x256xf32>
    %40 = tpu.matmul %35, %39, %cst_19 {dimension_numbers = #tpu.dot_dimension_numbers<[2], [1], [1], [2], [0, 0, 0, 1, 1, 2], [0], [0]>} : vector<2x32x40xf32>, vector<2x40x256xf32>, vector<2x32x256xf32> -> vector<2x32x256xf32>
    "tpu.trace_stop"() : () -> ()
    %41 = arith.addf %34, %40 : vector<2x32x256xf32>
    %42 = vector.extract_strided_slice %0 {offsets = [0, 6, 0], sizes = [2, 32, 40], strides = [1, 1, 1]} : vector<2x40x40xf32> to vector<2x32x40xf32>
    %c6 = arith.constant 6 : index
    %c0_20 = arith.constant 0 : index
    %c0_21 = arith.constant 0 : index
    %43 = vector.load %arg1[%c6, %c0_20, %c0_21] : memref<9x40x256xf32, #tpu.memory_space<vmem>>, vector<1x40x256xf32>
    %44 = vector.shape_cast %43 : vector<1x40x256xf32> to vector<40x256xf32>
    %45 = vector.shape_cast %44 : vector<40x256xf32> to vector<1x40x256xf32>
    %46 = vector.broadcast %45 : vector<1x40x256xf32> to vector<2x40x256xf32>
    "tpu.trace_start"() <{level = 10 : i32, message = "nij,njk->nik"}> : () -> ()
    %cst_22 = arith.constant dense<0.000000e+00> : vector<2x32x256xf32>
    %47 = tpu.matmul %42, %46, %cst_22 {dimension_numbers = #tpu.dot_dimension_numbers<[2], [1], [1], [2], [0, 0, 0, 1, 1, 2], [0], [0]>} : vector<2x32x40xf32>, vector<2x40x256xf32>, vector<2x32x256xf32> -> vector<2x32x256xf32>
    "tpu.trace_stop"() : () -> ()
    %48 = arith.addf %41, %47 : vector<2x32x256xf32>
    %49 = vector.extract_strided_slice %0 {offsets = [0, 7, 0], sizes = [2, 32, 40], strides = [1, 1, 1]} : vector<2x40x40xf32> to vector<2x32x40xf32>
    %c7 = arith.constant 7 : index
    %c0_23 = arith.constant 0 : index
    %c0_24 = arith.constant 0 : index
    %50 = vector.load %arg1[%c7, %c0_23, %c0_24] : memref<9x40x256xf32, #tpu.memory_space<vmem>>, vector<1x40x256xf32>
    %51 = vector.shape_cast %50 : vector<1x40x256xf32> to vector<40x256xf32>
    %52 = vector.shape_cast %51 : vector<40x256xf32> to vector<1x40x256xf32>
    %53 = vector.broadcast %52 : vector<1x40x256xf32> to vector<2x40x256xf32>
    "tpu.trace_start"() <{level = 10 : i32, message = "nij,njk->nik"}> : () -> ()
    %cst_25 = arith.constant dense<0.000000e+00> : vector<2x32x256xf32>
    %54 = tpu.matmul %49, %53, %cst_25 {dimension_numbers = #tpu.dot_dimension_numbers<[2], [1], [1], [2], [0, 0, 0, 1, 1, 2], [0], [0]>} : vector<2x32x40xf32>, vector<2x40x256xf32>, vector<2x32x256xf32> -> vector<2x32x256xf32>
    "tpu.trace_stop"() : () -> ()
    %55 = arith.addf %48, %54 : vector<2x32x256xf32>
    %56 = vector.extract_strided_slice %0 {offsets = [0, 8, 0], sizes = [2, 32, 40], strides = [1, 1, 1]} : vector<2x40x40xf32> to vector<2x32x40xf32>
    %c8 = arith.constant 8 : index
    %c0_26 = arith.constant 0 : index
    %c0_27 = arith.constant 0 : index
    %57 = vector.load %arg1[%c8, %c0_26, %c0_27] : memref<9x40x256xf32, #tpu.memory_space<vmem>>, vector<1x40x256xf32>
    %58 = vector.shape_cast %57 : vector<1x40x256xf32> to vector<40x256xf32>
    %59 = vector.shape_cast %58 : vector<40x256xf32> to vector<1x40x256xf32>
    %60 = vector.broadcast %59 : vector<1x40x256xf32> to vector<2x40x256xf32>
    "tpu.trace_start"() <{level = 10 : i32, message = "nij,njk->nik"}> : () -> ()
    %cst_28 = arith.constant dense<0.000000e+00> : vector<2x32x256xf32>
    %61 = tpu.matmul %56, %60, %cst_28 {dimension_numbers = #tpu.dot_dimension_numbers<[2], [1], [1], [2], [0, 0, 0, 1, 1, 2], [0], [0]>} : vector<2x32x40xf32>, vector<2x40x256xf32>, vector<2x32x256xf32> -> vector<2x32x256xf32>
    "tpu.trace_stop"() : () -> ()
    %62 = arith.addf %55, %61 : vector<2x32x256xf32>
    %c0_29 = arith.constant 0 : index
    %c0_30 = arith.constant 0 : index
    %c0_31 = arith.constant 0 : index
    %63 = vector.load %arg2[%c0_29, %c0_30, %c0_31] : memref<1x1x256xf32, #tpu.memory_space<vmem>>, vector<1x1x256xf32>
    %64 = vector.broadcast %63 : vector<1x1x256xf32> to vector<2x32x256xf32>
    %65 = arith.addf %62, %64 : vector<2x32x256xf32>
    %cst_32 = arith.constant 0.000000e+00 : f32
    %66 = vector.broadcast %cst_32 : f32 to vector<2x32x256xf32>
    %67 = arith.maximumf %65, %66 : vector<2x32x256xf32>
    %c0_33 = arith.constant 0 : index
    %c0_34 = arith.constant 0 : index
    %68 = vector.load %arg3[%c0_33, %c0_34] : memref<16x32xf32, #tpu.memory_space<vmem>>, vector<16x32xf32>
    %69 = vector.shape_cast %68 : vector<16x32xf32> to vector<1x16x32xf32>
    %70 = vector.broadcast %69 : vector<1x16x32xf32> to vector<2x16x32xf32>
    "tpu.trace_start"() <{level = 10 : i32, message = "nij,njk->nik"}> : () -> ()
    %cst_35 = arith.constant dense<0.000000e+00> : vector<2x16x256xf32>
    %71 = tpu.matmul %70, %67, %cst_35 {dimension_numbers = #tpu.dot_dimension_numbers<[2], [1], [1], [2], [0, 0, 0, 1, 1, 2], [0], [0]>} : vector<2x16x32xf32>, vector<2x32x256xf32>, vector<2x16x256xf32> -> vector<2x16x256xf32>
    "tpu.trace_stop"() : () -> ()
    %c0_36 = arith.constant 0 : index
    %c0_37 = arith.constant 0 : index
    %72 = vector.load %arg4[%c0_36, %c0_37] : memref<16x32xf32, #tpu.memory_space<vmem>>, vector<16x32xf32>
    %73 = vector.shape_cast %72 : vector<16x32xf32> to vector<1x16x32xf32>
    %74 = vector.broadcast %73 : vector<1x16x32xf32> to vector<2x16x32xf32>
    "tpu.trace_start"() <{level = 10 : i32, message = "nij,njk->nik"}> : () -> ()
    %cst_38 = arith.constant dense<0.000000e+00> : vector<2x16x256xf32>
    %75 = tpu.matmul %74, %67, %cst_38 {dimension_numbers = #tpu.dot_dimension_numbers<[2], [1], [1], [2], [0, 0, 0, 1, 1, 2], [0], [0]>} : vector<2x16x32xf32>, vector<2x32x256xf32>, vector<2x16x256xf32> -> vector<2x16x256xf32>
    "tpu.trace_stop"() : () -> ()
    %c0_39 = arith.constant 0 : index
    %c0_40 = arith.constant 0 : index
    %76 = vector.load %arg5[%c0_39, %c0_40] : memref<256x128xf32, #tpu.memory_space<vmem>>, vector<256x128xf32>
    %77 = vector.shape_cast %76 : vector<256x128xf32> to vector<1x256x128xf32>
    %78 = vector.broadcast %77 : vector<1x256x128xf32> to vector<2x256x128xf32>
    "tpu.trace_start"() <{level = 10 : i32, message = "nij,njk->nik"}> : () -> ()
    %cst_41 = arith.constant dense<0.000000e+00> : vector<2x16x128xf32>
    %79 = tpu.matmul %71, %78, %cst_41 {dimension_numbers = #tpu.dot_dimension_numbers<[2], [1], [1], [2], [0, 0, 0, 1, 1, 2], [0], [0]>} : vector<2x16x256xf32>, vector<2x256x128xf32>, vector<2x16x128xf32> -> vector<2x16x128xf32>
    "tpu.trace_stop"() : () -> ()
    %c0_42 = arith.constant 0 : index
    %c0_43 = arith.constant 0 : index
    %80 = vector.load %arg6[%c0_42, %c0_43] : memref<256x128xf32, #tpu.memory_space<vmem>>, vector<256x128xf32>
    %81 = vector.shape_cast %80 : vector<256x128xf32> to vector<1x256x128xf32>
    %82 = vector.broadcast %81 : vector<1x256x128xf32> to vector<2x256x128xf32>
    "tpu.trace_start"() <{level = 10 : i32, message = "nij,njk->nik"}> : () -> ()
    %cst_44 = arith.constant dense<0.000000e+00> : vector<2x16x128xf32>
    %83 = tpu.matmul %71, %82, %cst_44 {dimension_numbers = #tpu.dot_dimension_numbers<[2], [1], [1], [2], [0, 0, 0, 1, 1, 2], [0], [0]>} : vector<2x16x256xf32>, vector<2x256x128xf32>, vector<2x16x128xf32> -> vector<2x16x128xf32>
    "tpu.trace_stop"() : () -> ()
    %c0_45 = arith.constant 0 : index
    %c0_46 = arith.constant 0 : index
    %84 = vector.load %arg5[%c0_45, %c0_46] : memref<256x128xf32, #tpu.memory_space<vmem>>, vector<256x128xf32>
    %85 = vector.shape_cast %84 : vector<256x128xf32> to vector<1x256x128xf32>
    %86 = vector.broadcast %85 : vector<1x256x128xf32> to vector<2x256x128xf32>
    "tpu.trace_start"() <{level = 10 : i32, message = "nij,njk->nik"}> : () -> ()
    %cst_47 = arith.constant dense<0.000000e+00> : vector<2x16x128xf32>
    %87 = tpu.matmul %75, %86, %cst_47 {dimension_numbers = #tpu.dot_dimension_numbers<[2], [1], [1], [2], [0, 0, 0, 1, 1, 2], [0], [0]>} : vector<2x16x256xf32>, vector<2x256x128xf32>, vector<2x16x128xf32> -> vector<2x16x128xf32>
    "tpu.trace_stop"() : () -> ()
    %c0_48 = arith.constant 0 : index
    %c0_49 = arith.constant 0 : index
    %88 = vector.load %arg6[%c0_48, %c0_49] : memref<256x128xf32, #tpu.memory_space<vmem>>, vector<256x128xf32>
    %89 = vector.shape_cast %88 : vector<256x128xf32> to vector<1x256x128xf32>
    %90 = vector.broadcast %89 : vector<1x256x128xf32> to vector<2x256x128xf32>
    "tpu.trace_start"() <{level = 10 : i32, message = "nij,njk->nik"}> : () -> ()
    %cst_50 = arith.constant dense<0.000000e+00> : vector<2x16x128xf32>
    %91 = tpu.matmul %75, %90, %cst_50 {dimension_numbers = #tpu.dot_dimension_numbers<[2], [1], [1], [2], [0, 0, 0, 1, 1, 2], [0], [0]>} : vector<2x16x256xf32>, vector<2x256x128xf32>, vector<2x16x128xf32> -> vector<2x16x128xf32>
    "tpu.trace_stop"() : () -> ()
    %92 = arith.maximumf %79, %83 : vector<2x16x128xf32>
    %93 = arith.maximumf %87, %91 : vector<2x16x128xf32>
    %94 = arith.maximumf %92, %93 : vector<2x16x128xf32>
    %95 = vector.extract_strided_slice %94 {offsets = [0, 0, 0], sizes = [2, 12, 128], strides = [1, 1, 1]} : vector<2x16x128xf32> to vector<2x12x128xf32>
    %c0_51 = arith.constant 0 : index
    %c0_52 = arith.constant 0 : index
    %c0_53 = arith.constant 0 : index
    %96 = vector.load %arg7[%c0_51, %c0_52, %c0_53] : memref<5x128x192xf32, #tpu.memory_space<vmem>>, vector<1x128x192xf32>
    %97 = vector.shape_cast %96 : vector<1x128x192xf32> to vector<128x192xf32>
    %98 = vector.shape_cast %97 : vector<128x192xf32> to vector<1x128x192xf32>
    %99 = vector.broadcast %98 : vector<1x128x192xf32> to vector<2x128x192xf32>
    "tpu.trace_start"() <{level = 10 : i32, message = "nij,njk->nik"}> : () -> ()
    %cst_54 = arith.constant dense<0.000000e+00> : vector<2x12x192xf32>
    %100 = tpu.matmul %95, %99, %cst_54 {dimension_numbers = #tpu.dot_dimension_numbers<[2], [1], [1], [2], [0, 0, 0, 1, 1, 2], [0], [0]>} : vector<2x12x128xf32>, vector<2x128x192xf32>, vector<2x12x192xf32> -> vector<2x12x192xf32>
    "tpu.trace_stop"() : () -> ()
    %101 = vector.extract_strided_slice %94 {offsets = [0, 1, 0], sizes = [2, 12, 128], strides = [1, 1, 1]} : vector<2x16x128xf32> to vector<2x12x128xf32>
    %c1_55 = arith.constant 1 : index
    %c0_56 = arith.constant 0 : index
    %c0_57 = arith.constant 0 : index
    %102 = vector.load %arg7[%c1_55, %c0_56, %c0_57] : memref<5x128x192xf32, #tpu.memory_space<vmem>>, vector<1x128x192xf32>
    %103 = vector.shape_cast %102 : vector<1x128x192xf32> to vector<128x192xf32>
    %104 = vector.shape_cast %103 : vector<128x192xf32> to vector<1x128x192xf32>
    %105 = vector.broadcast %104 : vector<1x128x192xf32> to vector<2x128x192xf32>
    "tpu.trace_start"() <{level = 10 : i32, message = "nij,njk->nik"}> : () -> ()
    %cst_58 = arith.constant dense<0.000000e+00> : vector<2x12x192xf32>
    %106 = tpu.matmul %101, %105, %cst_58 {dimension_numbers = #tpu.dot_dimension_numbers<[2], [1], [1], [2], [0, 0, 0, 1, 1, 2], [0], [0]>} : vector<2x12x128xf32>, vector<2x128x192xf32>, vector<2x12x192xf32> -> vector<2x12x192xf32>
    "tpu.trace_stop"() : () -> ()
    %107 = arith.addf %100, %106 : vector<2x12x192xf32>
    %108 = vector.extract_strided_slice %94 {offsets = [0, 2, 0], sizes = [2, 12, 128], strides = [1, 1, 1]} : vector<2x16x128xf32> to vector<2x12x128xf32>
    %c2_59 = arith.constant 2 : index
    %c0_60 = arith.constant 0 : index
    %c0_61 = arith.constant 0 : index
    %109 = vector.load %arg7[%c2_59, %c0_60, %c0_61] : memref<5x128x192xf32, #tpu.memory_space<vmem>>, vector<1x128x192xf32>
    %110 = vector.shape_cast %109 : vector<1x128x192xf32> to vector<128x192xf32>
    %111 = vector.shape_cast %110 : vector<128x192xf32> to vector<1x128x192xf32>
    %112 = vector.broadcast %111 : vector<1x128x192xf32> to vector<2x128x192xf32>
    "tpu.trace_start"() <{level = 10 : i32, message = "nij,njk->nik"}> : () -> ()
    %cst_62 = arith.constant dense<0.000000e+00> : vector<2x12x192xf32>
    %113 = tpu.matmul %108, %112, %cst_62 {dimension_numbers = #tpu.dot_dimension_numbers<[2], [1], [1], [2], [0, 0, 0, 1, 1, 2], [0], [0]>} : vector<2x12x128xf32>, vector<2x128x192xf32>, vector<2x12x192xf32> -> vector<2x12x192xf32>
    "tpu.trace_stop"() : () -> ()
    %114 = arith.addf %107, %113 : vector<2x12x192xf32>
    %115 = vector.extract_strided_slice %94 {offsets = [0, 3, 0], sizes = [2, 12, 128], strides = [1, 1, 1]} : vector<2x16x128xf32> to vector<2x12x128xf32>
    %c3_63 = arith.constant 3 : index
    %c0_64 = arith.constant 0 : index
    %c0_65 = arith.constant 0 : index
    %116 = vector.load %arg7[%c3_63, %c0_64, %c0_65] : memref<5x128x192xf32, #tpu.memory_space<vmem>>, vector<1x128x192xf32>
    %117 = vector.shape_cast %116 : vector<1x128x192xf32> to vector<128x192xf32>
    %118 = vector.shape_cast %117 : vector<128x192xf32> to vector<1x128x192xf32>
    %119 = vector.broadcast %118 : vector<1x128x192xf32> to vector<2x128x192xf32>
    "tpu.trace_start"() <{level = 10 : i32, message = "nij,njk->nik"}> : () -> ()
    %cst_66 = arith.constant dense<0.000000e+00> : vector<2x12x192xf32>
    %120 = tpu.matmul %115, %119, %cst_66 {dimension_numbers = #tpu.dot_dimension_numbers<[2], [1], [1], [2], [0, 0, 0, 1, 1, 2], [0], [0]>} : vector<2x12x128xf32>, vector<2x128x192xf32>, vector<2x12x192xf32> -> vector<2x12x192xf32>
    "tpu.trace_stop"() : () -> ()
    %121 = arith.addf %114, %120 : vector<2x12x192xf32>
    %122 = vector.extract_strided_slice %94 {offsets = [0, 4, 0], sizes = [2, 12, 128], strides = [1, 1, 1]} : vector<2x16x128xf32> to vector<2x12x128xf32>
    %c4_67 = arith.constant 4 : index
    %c0_68 = arith.constant 0 : index
    %c0_69 = arith.constant 0 : index
    %123 = vector.load %arg7[%c4_67, %c0_68, %c0_69] : memref<5x128x192xf32, #tpu.memory_space<vmem>>, vector<1x128x192xf32>
    %124 = vector.shape_cast %123 : vector<1x128x192xf32> to vector<128x192xf32>
    %125 = vector.shape_cast %124 : vector<128x192xf32> to vector<1x128x192xf32>
    %126 = vector.broadcast %125 : vector<1x128x192xf32> to vector<2x128x192xf32>
    "tpu.trace_start"() <{level = 10 : i32, message = "nij,njk->nik"}> : () -> ()
    %cst_70 = arith.constant dense<0.000000e+00> : vector<2x12x192xf32>
    %127 = tpu.matmul %122, %126, %cst_70 {dimension_numbers = #tpu.dot_dimension_numbers<[2], [1], [1], [2], [0, 0, 0, 1, 1, 2], [0], [0]>} : vector<2x12x128xf32>, vector<2x128x192xf32>, vector<2x12x192xf32> -> vector<2x12x192xf32>
    "tpu.trace_stop"() : () -> ()
    %128 = arith.addf %121, %127 : vector<2x12x192xf32>
    %c0_71 = arith.constant 0 : index
    %c0_72 = arith.constant 0 : index
    %c0_73 = arith.constant 0 : index
    %129 = vector.load %arg8[%c0_71, %c0_72, %c0_73] : memref<1x1x192xf32, #tpu.memory_space<vmem>>, vector<1x1x192xf32>
    %130 = vector.broadcast %129 : vector<1x1x192xf32> to vector<2x12x192xf32>
    %131 = arith.addf %128, %130 : vector<2x12x192xf32>
    %cst_74 = arith.constant 0.000000e+00 : f32
    %132 = vector.broadcast %cst_74 : f32 to vector<2x12x192xf32>
    %133 = arith.maximumf %131, %132 : vector<2x12x192xf32>
    %c0_75 = arith.constant 0 : index
    %c0_76 = arith.constant 0 : index
    %134 = vector.load %arg9[%c0_75, %c0_76] : memref<6x12xf32, #tpu.memory_space<vmem>>, vector<6x12xf32>
    %135 = vector.shape_cast %134 : vector<6x12xf32> to vector<1x6x12xf32>
    %136 = vector.broadcast %135 : vector<1x6x12xf32> to vector<2x6x12xf32>
    "tpu.trace_start"() <{level = 10 : i32, message = "nij,njk->nik"}> : () -> ()
    %cst_77 = arith.constant dense<0.000000e+00> : vector<2x6x192xf32>
    %137 = tpu.matmul %136, %133, %cst_77 {dimension_numbers = #tpu.dot_dimension_numbers<[2], [1], [1], [2], [0, 0, 0, 1, 1, 2], [0], [0]>} : vector<2x6x12xf32>, vector<2x12x192xf32>, vector<2x6x192xf32> -> vector<2x6x192xf32>
    "tpu.trace_stop"() : () -> ()
    %c0_78 = arith.constant 0 : index
    %c0_79 = arith.constant 0 : index
    %138 = vector.load %arg10[%c0_78, %c0_79] : memref<6x12xf32, #tpu.memory_space<vmem>>, vector<6x12xf32>
    %139 = vector.shape_cast %138 : vector<6x12xf32> to vector<1x6x12xf32>
    %140 = vector.broadcast %139 : vector<1x6x12xf32> to vector<2x6x12xf32>
    "tpu.trace_start"() <{level = 10 : i32, message = "nij,njk->nik"}> : () -> ()
    %cst_80 = arith.constant dense<0.000000e+00> : vector<2x6x192xf32>
    %141 = tpu.matmul %140, %133, %cst_80 {dimension_numbers = #tpu.dot_dimension_numbers<[2], [1], [1], [2], [0, 0, 0, 1, 1, 2], [0], [0]>} : vector<2x6x12xf32>, vector<2x12x192xf32>, vector<2x6x192xf32> -> vector<2x6x192xf32>
    "tpu.trace_stop"() : () -> ()
    %c0_81 = arith.constant 0 : index
    %c0_82 = arith.constant 0 : index
    %142 = vector.load %arg11[%c0_81, %c0_82] : memref<192x96xf32, #tpu.memory_space<vmem>>, vector<192x96xf32>
    %143 = vector.shape_cast %142 : vector<192x96xf32> to vector<1x192x96xf32>
    %144 = vector.broadcast %143 : vector<1x192x96xf32> to vector<2x192x96xf32>
    "tpu.trace_start"() <{level = 10 : i32, message = "nij,njk->nik"}> : () -> ()
    %cst_83 = arith.constant dense<0.000000e+00> : vector<2x6x96xf32>
    %145 = tpu.matmul %137, %144, %cst_83 {dimension_numbers = #tpu.dot_dimension_numbers<[2], [1], [1], [2], [0, 0, 0, 1, 1, 2], [0], [0]>} : vector<2x6x192xf32>, vector<2x192x96xf32>, vector<2x6x96xf32> -> vector<2x6x96xf32>
    "tpu.trace_stop"() : () -> ()
    %c0_84 = arith.constant 0 : index
    %c0_85 = arith.constant 0 : index
    %146 = vector.load %arg12[%c0_84, %c0_85] : memref<192x96xf32, #tpu.memory_space<vmem>>, vector<192x96xf32>
    %147 = vector.shape_cast %146 : vector<192x96xf32> to vector<1x192x96xf32>
    %148 = vector.broadcast %147 : vector<1x192x96xf32> to vector<2x192x96xf32>
    "tpu.trace_start"() <{level = 10 : i32, message = "nij,njk->nik"}> : () -> ()
    %cst_86 = arith.constant dense<0.000000e+00> : vector<2x6x96xf32>
    %149 = tpu.matmul %137, %148, %cst_86 {dimension_numbers = #tpu.dot_dimension_numbers<[2], [1], [1], [2], [0, 0, 0, 1, 1, 2], [0], [0]>} : vector<2x6x192xf32>, vector<2x192x96xf32>, vector<2x6x96xf32> -> vector<2x6x96xf32>
    "tpu.trace_stop"() : () -> ()
    %c0_87 = arith.constant 0 : index
    %c0_88 = arith.constant 0 : index
    %150 = vector.load %arg11[%c0_87, %c0_88] : memref<192x96xf32, #tpu.memory_space<vmem>>, vector<192x96xf32>
    %151 = vector.shape_cast %150 : vector<192x96xf32> to vector<1x192x96xf32>
    %152 = vector.broadcast %151 : vector<1x192x96xf32> to vector<2x192x96xf32>
    "tpu.trace_start"() <{level = 10 : i32, message = "nij,njk->nik"}> : () -> ()
    %cst_89 = arith.constant dense<0.000000e+00> : vector<2x6x96xf32>
    %153 = tpu.matmul %141, %152, %cst_89 {dimension_numbers = #tpu.dot_dimension_numbers<[2], [1], [1], [2], [0, 0, 0, 1, 1, 2], [0], [0]>} : vector<2x6x192xf32>, vector<2x192x96xf32>, vector<2x6x96xf32> -> vector<2x6x96xf32>
    "tpu.trace_stop"() : () -> ()
    %c0_90 = arith.constant 0 : index
    %c0_91 = arith.constant 0 : index
    %154 = vector.load %arg12[%c0_90, %c0_91] : memref<192x96xf32, #tpu.memory_space<vmem>>, vector<192x96xf32>
    %155 = vector.shape_cast %154 : vector<192x96xf32> to vector<1x192x96xf32>
    %156 = vector.broadcast %155 : vector<1x192x96xf32> to vector<2x192x96xf32>
    "tpu.trace_start"() <{level = 10 : i32, message = "nij,njk->nik"}> : () -> ()
    %cst_92 = arith.constant dense<0.000000e+00> : vector<2x6x96xf32>
    %157 = tpu.matmul %141, %156, %cst_92 {dimension_numbers = #tpu.dot_dimension_numbers<[2], [1], [1], [2], [0, 0, 0, 1, 1, 2], [0], [0]>} : vector<2x6x192xf32>, vector<2x192x96xf32>, vector<2x6x96xf32> -> vector<2x6x96xf32>
    "tpu.trace_stop"() : () -> ()
    %158 = arith.maximumf %145, %149 : vector<2x6x96xf32>
    %159 = arith.maximumf %153, %157 : vector<2x6x96xf32>
    %160 = arith.maximumf %158, %159 : vector<2x6x96xf32>
    %161 = vector.extract_strided_slice %160 {offsets = [0, 0, 0], sizes = [2, 4, 96], strides = [1, 1, 1]} : vector<2x6x96xf32> to vector<2x4x96xf32>
    %c0_93 = arith.constant 0 : index
    %c0_94 = arith.constant 0 : index
    %c0_95 = arith.constant 0 : index
    %162 = vector.load %arg13[%c0_93, %c0_94, %c0_95] : memref<3x96x128xf32, #tpu.memory_space<vmem>>, vector<1x96x128xf32>
    %163 = vector.shape_cast %162 : vector<1x96x128xf32> to vector<96x128xf32>
    %164 = vector.shape_cast %163 : vector<96x128xf32> to vector<1x96x128xf32>
    %165 = vector.broadcast %164 : vector<1x96x128xf32> to vector<2x96x128xf32>
    "tpu.trace_start"() <{level = 10 : i32, message = "nij,njk->nik"}> : () -> ()
    %cst_96 = arith.constant dense<0.000000e+00> : vector<2x4x128xf32>
    %166 = tpu.matmul %161, %165, %cst_96 {dimension_numbers = #tpu.dot_dimension_numbers<[2], [1], [1], [2], [0, 0, 0, 1, 1, 2], [0], [0]>} : vector<2x4x96xf32>, vector<2x96x128xf32>, vector<2x4x128xf32> -> vector<2x4x128xf32>
    "tpu.trace_stop"() : () -> ()
    %167 = vector.extract_strided_slice %160 {offsets = [0, 1, 0], sizes = [2, 4, 96], strides = [1, 1, 1]} : vector<2x6x96xf32> to vector<2x4x96xf32>
    %c1_97 = arith.constant 1 : index
    %c0_98 = arith.constant 0 : index
    %c0_99 = arith.constant 0 : index
    %168 = vector.load %arg13[%c1_97, %c0_98, %c0_99] : memref<3x96x128xf32, #tpu.memory_space<vmem>>, vector<1x96x128xf32>
    %169 = vector.shape_cast %168 : vector<1x96x128xf32> to vector<96x128xf32>
    %170 = vector.shape_cast %169 : vector<96x128xf32> to vector<1x96x128xf32>
    %171 = vector.broadcast %170 : vector<1x96x128xf32> to vector<2x96x128xf32>
    "tpu.trace_start"() <{level = 10 : i32, message = "nij,njk->nik"}> : () -> ()
    %cst_100 = arith.constant dense<0.000000e+00> : vector<2x4x128xf32>
    %172 = tpu.matmul %167, %171, %cst_100 {dimension_numbers = #tpu.dot_dimension_numbers<[2], [1], [1], [2], [0, 0, 0, 1, 1, 2], [0], [0]>} : vector<2x4x96xf32>, vector<2x96x128xf32>, vector<2x4x128xf32> -> vector<2x4x128xf32>
    "tpu.trace_stop"() : () -> ()
    %173 = arith.addf %166, %172 : vector<2x4x128xf32>
    %174 = vector.extract_strided_slice %160 {offsets = [0, 2, 0], sizes = [2, 4, 96], strides = [1, 1, 1]} : vector<2x6x96xf32> to vector<2x4x96xf32>
    %c2_101 = arith.constant 2 : index
    %c0_102 = arith.constant 0 : index
    %c0_103 = arith.constant 0 : index
    %175 = vector.load %arg13[%c2_101, %c0_102, %c0_103] : memref<3x96x128xf32, #tpu.memory_space<vmem>>, vector<1x96x128xf32>
    %176 = vector.shape_cast %175 : vector<1x96x128xf32> to vector<96x128xf32>
    %177 = vector.shape_cast %176 : vector<96x128xf32> to vector<1x96x128xf32>
    %178 = vector.broadcast %177 : vector<1x96x128xf32> to vector<2x96x128xf32>
    "tpu.trace_start"() <{level = 10 : i32, message = "nij,njk->nik"}> : () -> ()
    %cst_104 = arith.constant dense<0.000000e+00> : vector<2x4x128xf32>
    %179 = tpu.matmul %174, %178, %cst_104 {dimension_numbers = #tpu.dot_dimension_numbers<[2], [1], [1], [2], [0, 0, 0, 1, 1, 2], [0], [0]>} : vector<2x4x96xf32>, vector<2x96x128xf32>, vector<2x4x128xf32> -> vector<2x4x128xf32>
    "tpu.trace_stop"() : () -> ()
    %180 = arith.addf %173, %179 : vector<2x4x128xf32>
    %c0_105 = arith.constant 0 : index
    %c0_106 = arith.constant 0 : index
    %c0_107 = arith.constant 0 : index
    %181 = vector.load %arg14[%c0_105, %c0_106, %c0_107] : memref<1x1x128xf32, #tpu.memory_space<vmem>>, vector<1x1x128xf32>
    %182 = vector.broadcast %181 : vector<1x1x128xf32> to vector<2x4x128xf32>
    %183 = arith.addf %180, %182 : vector<2x4x128xf32>
    %cst_108 = arith.constant 0.000000e+00 : f32
    %184 = vector.broadcast %cst_108 : f32 to vector<2x4x128xf32>
    %185 = arith.maximumf %183, %184 : vector<2x4x128xf32>
    %cst_109 = arith.constant dense<0.000000e+00> : vector<2x128xf32>
    %186 = vector.multi_reduction <add>, %185, %cst_109 [1] : vector<2x4x128xf32> to vector<2x128xf32>
    %cst_110 = arith.constant 4.000000e+00 : f32
    %187 = vector.broadcast %cst_110 : f32 to vector<2x128xf32>
    %188 = arith.divf %186, %187 : vector<2x128xf32>
    %c0_111 = arith.constant 0 : index
    %c0_112 = arith.constant 0 : index
    %189 = vector.load %arg15[%c0_111, %c0_112] : memref<128x16xf32, #tpu.memory_space<vmem>>, vector<128x16xf32>
    %cst_113 = arith.constant dense<0.000000e+00> : vector<2x16xf32>
    %190 = tpu.matmul %188, %189, %cst_113 {dimension_numbers = #tpu.dot_dimension_numbers<[1], [0], [0], [1], [0, 0, 1, 1], [], []>} : vector<2x128xf32>, vector<128x16xf32>, vector<2x16xf32> -> vector<2x16xf32>
    %c0_114 = arith.constant 0 : index
    %c0_115 = arith.constant 0 : index
    %191 = vector.load %arg16[%c0_114, %c0_115] : memref<1x16xf32, #tpu.memory_space<vmem>>, vector<1x16xf32>
    %192 = vector.broadcast %191 : vector<1x16xf32> to vector<2x16xf32>
    %193 = arith.addf %190, %192 : vector<2x16xf32>
    %cst_116 = arith.constant 0.000000e+00 : f32
    %194 = vector.broadcast %cst_116 : f32 to vector<2x16xf32>
    %195 = arith.maximumf %193, %194 : vector<2x16xf32>
    %c0_117 = arith.constant 0 : index
    %c0_118 = arith.constant 0 : index
    %196 = vector.load %arg17[%c0_117, %c0_118] : memref<16x9xf32, #tpu.memory_space<vmem>>, vector<16x9xf32>
    %cst_119 = arith.constant dense<0.000000e+00> : vector<2x9xf32>
    %197 = tpu.matmul %195, %196, %cst_119 {dimension_numbers = #tpu.dot_dimension_numbers<[1], [0], [0], [1], [0, 0, 1, 1], [], []>} : vector<2x16xf32>, vector<16x9xf32>, vector<2x9xf32> -> vector<2x9xf32>
    %c0_120 = arith.constant 0 : index
    %c0_121 = arith.constant 0 : index
    %198 = vector.load %arg18[%c0_120, %c0_121] : memref<1x9xf32, #tpu.memory_space<vmem>>, vector<1x9xf32>
    %199 = vector.broadcast %198 : vector<1x9xf32> to vector<2x9xf32>
    %200 = arith.addf %197, %199 : vector<2x9xf32>
    %c0_122 = arith.constant 0 : index
    %c0_123 = arith.constant 0 : index
    %201 = vector.load %arg19[%c0_122, %c0_123] : memref<2x9xf32, #tpu.memory_space<vmem>>, vector<2x9xf32>
    tpu.vector_store %arg19[%c0_122, %c0_123], %200 {strides = array<i32>} : memref<2x9xf32, #tpu.memory_space<vmem>>, vector<2x9xf32>,
    return
  }
}

</mosaic_0001>

<llo_original>
// kernel: simple_cnn_forward.1
$region0: #{simple_cnn_forward.1}
  #allocation0 [shape = 'u32[]', space=smem, size = 0x4, offset = 0x4, fixed_abs, tag = 'smem constant byte address 0x4 - core index']
  #allocation1 [shape = 'u32[144,128]{1,0:T(1,128)}', space=vmem, size = 0x12000, scoped, tag = 'internal scratch']
  %s0 = inlined_call_operand.vmem [shape: f32[2,40,40], index: 0, kind: input, shape index: {}]
  %s1 = inlined_call_operand.vmem [shape: f32[9,40,256], index: 1, kind: input, shape index: {}]
  %s2 = inlined_call_operand.vmem [shape: f32[1,1,256], index: 2, kind: input, shape index: {}]
  %s3 = inlined_call_operand.vmem [shape: f32[16,32], index: 3, kind: input, shape index: {}]
  %s4 = inlined_call_operand.vmem [shape: f32[16,32], index: 4, kind: input, shape index: {}]
  %s5 = inlined_call_operand.vmem [shape: f32[256,128], index: 5, kind: input, shape index: {}]
  %s6 = inlined_call_operand.vmem [shape: f32[256,128], index: 6, kind: input, shape index: {}]
  %s7 = inlined_call_operand.vmem [shape: f32[5,128,192], index: 7, kind: input, shape index: {}]
  %s8 = inlined_call_operand.vmem [shape: f32[1,1,192], index: 8, kind: input, shape index: {}]
  %s9 = inlined_call_operand.vmem [shape: f32[6,12], index: 9, kind: input, shape index: {}]
  %s10 = inlined_call_operand.vmem [shape: f32[6,12], index: 10, kind: input, shape index: {}]
  %s11 = inlined_call_operand.vmem [shape: f32[192,96], index: 11, kind: input, shape index: {}]
  %s12 = inlined_call_operand.vmem [shape: f32[192,96], index: 12, kind: input, shape index: {}]
  %s13 = inlined_call_operand.vmem [shape: f32[3,96,128], index: 13, kind: input, shape index: {}]
  %s14 = inlined_call_operand.vmem [shape: f32[1,1,128], index: 14, kind: input, shape index: {}]
  %s15 = inlined_call_operand.vmem [shape: f32[128,16], index: 15, kind: input, shape index: {}]
  %s16 = inlined_call_operand.vmem [shape: f32[1,16], index: 16, kind: input, shape index: {}]
  %s17 = inlined_call_operand.vmem [shape: f32[16,9], index: 17, kind: input, shape index: {}]
  %s18 = inlined_call_operand.vmem [shape: f32[1,9], index: 18, kind: input, shape index: {}]
  %s19 = inlined_call_operand.hbm [shape: f32[2,9], index: 19, kind: output, shape index: {}]
  %s20 = sld [smem:[#allocation0]]
  $region86: #{simple_cnn_forward.1} parent=0
    _
  %s22 = ssub.s32 1, %s20
  %s23 = scalar_select 0, %s22, %s20
  $region1: #{simple_cnn_forward.1} parent=0
    #allocation2 [shape = 'u8[1024]{0}', space=vmem, size = 0x400, scoped, tag = 'output window, operand 0, single buffered']
    #allocation3 [shape = 's32[1]{0}', space=sflag, size = 0x4, scoped, tag = 'scoped memory for simple_cnn_forward.1']
    %24 = vsyncpa [#allocation3], 0
    // Predicated region
    $region2: #{simple_cnn_forward.1} parent=1 // pred_check
      _
    $region3: #{simple_cnn_forward.1} parent=1 // pred_check_branch
      %26 = sbr.rel (0) target = $region5
    $region4: #{simple_cnn_forward.1} parent=1 // pred_region
      _
    $region5: #{simple_cnn_forward.1} parent=1 // pred_fallthru
      _
    // Predicated region
    $region6: #{simple_cnn_forward.1} parent=1 // pred_check
      _
    $region7: #{simple_cnn_forward.1} parent=1 // pred_check_branch
      %28 = sbr.rel (0) target = $region9
    $region8: #{simple_cnn_forward.1} parent=1 // pred_region
      _
    $region9: #{simple_cnn_forward.1} parent=1 // pred_fallthru
      _
    // Predicated region
    $region10: #{simple_cnn_forward.1} parent=1 // pred_check
      _
    $region11: #{simple_cnn_forward.1} parent=1 // pred_check_branch
      %30 = sbr.rel (0) target = $region13
    $region12: #{simple_cnn_forward.1} parent=1 // pred_region
      _
    $region13: #{simple_cnn_forward.1} parent=1 // pred_fallthru
      _
    // Predicated region
    $region14: #{simple_cnn_forward.1} parent=1 // pred_check
      _
    $region15: #{simple_cnn_forward.1} parent=1 // pred_check_branch
      %32 = sbr.rel (0) target = $region17
    $region16: #{simple_cnn_forward.1} parent=1 // pred_region
      _
    $region17: #{simple_cnn_forward.1} parent=1 // pred_fallthru
      _
    // Predicated region
    $region18: #{simple_cnn_forward.1} parent=1 // pred_check
      _
    $region19: #{simple_cnn_forward.1} parent=1 // pred_check_branch
      %34 = sbr.rel (0) target = $region21
    $region20: #{simple_cnn_forward.1} parent=1 // pred_region
      _
    $region21: #{simple_cnn_forward.1} parent=1 // pred_fallthru
      _
    // Predicated region
    $region22: #{simple_cnn_forward.1} parent=1 // pred_check
      _
    $region23: #{simple_cnn_forward.1} parent=1 // pred_check_branch
      %36 = sbr.rel (0) target = $region25
    $region24: #{simple_cnn_forward.1} parent=1 // pred_region
      _
    $region25: #{simple_cnn_forward.1} parent=1 // pred_fallthru
      _
    // Predicated region
    $region26: #{simple_cnn_forward.1} parent=1 // pred_check
      _
    $region27: #{simple_cnn_forward.1} parent=1 // pred_check_branch
      %38 = sbr.rel (0) target = $region29
    $region28: #{simple_cnn_forward.1} parent=1 // pred_region
      _
    $region29: #{simple_cnn_forward.1} parent=1 // pred_fallthru
      _
    // Predicated region
    $region30: #{simple_cnn_forward.1} parent=1 // pred_check
      _
    $region31: #{simple_cnn_forward.1} parent=1 // pred_check_branch
      %40 = sbr.rel (0) target = $region33
    $region32: #{simple_cnn_forward.1} parent=1 // pred_region
      _
    $region33: #{simple_cnn_forward.1} parent=1 // pred_fallthru
      _
    // Predicated region
    $region34: #{simple_cnn_forward.1} parent=1 // pred_check
      _
    $region35: #{simple_cnn_forward.1} parent=1 // pred_check_branch
      %42 = sbr.rel (0) target = $region37
    $region36: #{simple_cnn_forward.1} parent=1 // pred_region
      _
    $region37: #{simple_cnn_forward.1} parent=1 // pred_fallthru
      _
    // Predicated region
    $region38: #{simple_cnn_forward.1} parent=1 // pred_check
      _
    $region39: #{simple_cnn_forward.1} parent=1 // pred_check_branch
      %44 = sbr.rel (0) target = $region41
    $region40: #{simple_cnn_forward.1} parent=1 // pred_region
      _
    $region41: #{simple_cnn_forward.1} parent=1 // pred_fallthru
      _
    // Predicated region
    $region42: #{simple_cnn_forward.1} parent=1 // pred_check
      _
    $region43: #{simple_cnn_forward.1} parent=1 // pred_check_branch
      %46 = sbr.rel (0) target = $region45
    $region44: #{simple_cnn_forward.1} parent=1 // pred_region
      _
    $region45: #{simple_cnn_forward.1} parent=1 // pred_fallthru
      _
    // Predicated region
    $region46: #{simple_cnn_forward.1} parent=1 // pred_check
      _
    $region47: #{simple_cnn_forward.1} parent=1 // pred_check_branch
      %48 = sbr.rel (0) target = $region49
    $region48: #{simple_cnn_forward.1} parent=1 // pred_region
      _
    $region49: #{simple_cnn_forward.1} parent=1 // pred_fallthru
      _
    // Predicated region
    $region50: #{simple_cnn_forward.1} parent=1 // pred_check
      _
    $region51: #{simple_cnn_forward.1} parent=1 // pred_check_branch
      %50 = sbr.rel (0) target = $region53
    $region52: #{simple_cnn_forward.1} parent=1 // pred_region
      _
    $region53: #{simple_cnn_forward.1} parent=1 // pred_fallthru
      _
    // Predicated region
    $region54: #{simple_cnn_forward.1} parent=1 // pred_check
      _
    $region55: #{simple_cnn_forward.1} parent=1 // pred_check_branch
      %52 = sbr.rel (0) target = $region57
    $region56: #{simple_cnn_forward.1} parent=1 // pred_region
      _
    $region57: #{simple_cnn_forward.1} parent=1 // pred_fallthru
      _
    // Predicated region
    $region58: #{simple_cnn_forward.1} parent=1 // pred_check
      _
    $region59: #{simple_cnn_forward.1} parent=1 // pred_check_branch
      %54 = sbr.rel (0) target = $region61
    $region60: #{simple_cnn_forward.1} parent=1 // pred_region
      _
    $region61: #{simple_cnn_forward.1} parent=1 // pred_fallthru
      _
    // Predicated region
    $region62: #{simple_cnn_forward.1} parent=1 // pred_check
      _
    $region63: #{simple_cnn_forward.1} parent=1 // pred_check_branch
      %56 = sbr.rel (0) target = $region65
    $region64: #{simple_cnn_forward.1} parent=1 // pred_region
      _
    $region65: #{simple_cnn_forward.1} parent=1 // pred_fallthru
      _
    // Predicated region
    $region66: #{simple_cnn_forward.1} parent=1 // pred_check
      _
    $region67: #{simple_cnn_forward.1} parent=1 // pred_check_branch
      %58 = sbr.rel (0) target = $region69
    $region68: #{simple_cnn_forward.1} parent=1 // pred_region
      _
    $region69: #{simple_cnn_forward.1} parent=1 // pred_fallthru
      _
    // Predicated region
    $region70: #{simple_cnn_forward.1} parent=1 // pred_check
      _
    $region71: #{simple_cnn_forward.1} parent=1 // pred_check_branch
      %60 = sbr.rel (0) target = $region73
    $region72: #{simple_cnn_forward.1} parent=1 // pred_region
      _
    $region73: #{simple_cnn_forward.1} parent=1 // pred_fallthru
      _
    // Predicated region
    $region74: #{simple_cnn_forward.1} parent=1 // pred_check
      _
    $region75: #{simple_cnn_forward.1} parent=1 // pred_check_branch
      %62 = sbr.rel (0) target = $region77
    $region76: #{simple_cnn_forward.1} parent=1 // pred_region
      _
    $region77: #{simple_cnn_forward.1} parent=1 // pred_fallthru
      _
    %v63 = vld [vmem:[%s0] sm:$0xff]
    %v64 = vld [vmem:[%s0 + $0x8] sm:$0xff]
    %v65 = vld [vmem:[%s0 + $0x10] sm:$0xff]
    %v66 = vld [vmem:[%s0 + $0x18] sm:$0xff]
    %v67 = vld [vmem:[%s0 + $0x20] sm:$0xff]
    %v68 = vld [vmem:[%s0 + $0x28] sm:$0xff]
    %v69 = vld [vmem:[%s0 + $0x30] sm:$0xff]
    %v70 = vld [vmem:[%s0 + $0x38] sm:$0xff]
    %v71 = vld [vmem:[%s0 + $0x40] sm:$0xff]
    %v72 = vld [vmem:[%s0 + $0x48] sm:$0xff]
    %v73 = vld [vmem:[%s1] sm:$0xff]
    %v74 = vld [vmem:[%s1 + $0x8] sm:$0xff]
    %v75 = vld [vmem:[%s1 + $0x10] sm:$0xff]
    %v76 = vld [vmem:[%s1 + $0x18] sm:$0xff]
    %v77 = vld [vmem:[%s1 + $0x20] sm:$0xff]
    %v78 = vld [vmem:[%s1 + $0x28] sm:$0xff]
    %v79 = vld [vmem:[%s1 + $0x30] sm:$0xff]
    %v80 = vld [vmem:[%s1 + $0x38] sm:$0xff]
    %v81 = vld [vmem:[%s1 + $0x40] sm:$0xff]
    %v82 = vld [vmem:[%s1 + $0x48] sm:$0xff]
    %s83 = scalar_lea.vmem %s1, 80
    %v84 = vld [vmem:[%s83] sm:$0xff]
    %v85 = vld [vmem:[%s83 + $0x8] sm:$0xff]
    %v86 = vld [vmem:[%s83 + $0x10] sm:$0xff]
    %v87 = vld [vmem:[%s83 + $0x18] sm:$0xff]
    %v88 = vld [vmem:[%s83 + $0x20] sm:$0xff]
    %v89 = vld [vmem:[%s83 + $0x28] sm:$0xff]
    %v90 = vld [vmem:[%s83 + $0x30] sm:$0xff]
    %v91 = vld [vmem:[%s83 + $0x38] sm:$0xff]
    %v92 = vld [vmem:[%s83 + $0x40] sm:$0xff]
    %v93 = vld [vmem:[%s83 + $0x48] sm:$0xff]
    %vm99 = vcmask 1046528
    %v100 = vrot.slane %v63, 1
    %v101 = vrot.slane %v64, 1
    %v102 = vsel %vm99, %v100, %v101
    %v103 = vrot.slane %v65, 1
    %v104 = vsel %vm99, %v101, %v103
    %v105 = vrot.slane %v66, 1
    %v106 = vsel %vm99, %v103, %v105
    %v107 = vrot.slane %v67, 1
    %v108 = vsel %vm99, %v105, %v107
    %vm109 = vcmask 326656
    %v110 = vsel %vm109, %v102, 0
    %v112 = vsel %vm109, %v104, 0
    %v114 = vsel %vm109, %v106, 0
    %v116 = vsel %vm109, %v108, 0
    %118 = vmatprep.subr.mxu0 0.0
    %119 = vmatpush1.msra.mxu0 0.0
    %120 = vmatprep.subr.mxu0 0.0
    %121 = vmatpush1.msra.mxu0 0.0
    %122 = vmatprep.subr.mxu0 0.0
    %123 = vmatpush1.msra.mxu0 0.0
    %124 = vmatprep.subr.mxu0 0.0
    %125 = vmatpush1.msra.mxu0 0.0
    %126 = vmatprep.subr.mxu0 0.0
    %127 = vmatpush1.msra.mxu0 0.0
    %128 = vmatprep.subr.mxu0 0.0
    %129 = vmatpush1.msra.mxu0 0.0
    %130 = vmatprep.subr.mxu0 0.0
    %131 = vmatpush1.msra.mxu0 0.0
    %132 = vmatprep.subr.mxu0 0.0
    %133 = vmatpush1.msra.mxu0 0.0
    %134 = vmatprep.subr.mxu0 0.0
    %135 = vmatpush1.msra.mxu0 0.0
    %136 = vmatprep.subr.mxu0 0.0
    %137 = vmatpush1.msra.mxu0 0.0
    %138 = vmatprep.subr.mxu0 0.0
    %139 = vmatpush1.msra.mxu0 0.0
    %140 = vmatprep.subr.mxu0 %v93
    %141 = vmatpush1.msra.mxu0 %v92
    %142 = vmatprep.subr.mxu0 %v91
    %143 = vmatpush1.msra.mxu0 %v90
    %144 = vmatprep.subr.mxu0 %v89
    %145 = vmatpush1.msra.mxu0 %v88
    %146 = vmatprep.subr.mxu0 %v87
    %147 = vmatpush1.msra.mxu0 %v86
    %148 = vmatprep.subr.mxu0 %v85
    %149 = vmatpush1.msra.mxu0 %v84
    %150 = vmatprep.subr.mxu0 0.0
    %151 = vmatpush2.msra.mxu0 0.0
    %152 = vmatprep.subr.mxu0 0.0
    %153 = vmatpush2.msra.mxu0 0.0
    %154 = vmatprep.subr.mxu0 0.0
    %155 = vmatpush2.msra.mxu0 0.0
    %156 = vmatprep.subr.mxu0 0.0
    %157 = vmatpush2.msra.mxu0 0.0
    %158 = vmatprep.subr.mxu0 0.0
    %159 = vmatpush2.msra.mxu0 0.0
    %160 = vmatprep.subr.mxu0 0.0
    %161 = vmatpush2.msra.mxu0 0.0
    %162 = vmatprep.subr.mxu0 0.0
    %163 = vmatpush2.msra.mxu0 0.0
    %164 = vmatprep.subr.mxu0 0.0
    %165 = vmatpush2.msra.mxu0 0.0
    %166 = vmatprep.subr.mxu0 0.0
    %167 = vmatpush2.msra.mxu0 0.0
    %168 = vmatprep.subr.mxu0 0.0
    %169 = vmatpush2.msra.mxu0 0.0
    %170 = vmatprep.subr.mxu0 0.0
    %171 = vmatpush2.msra.mxu0 0.0
    %172 = vmatprep.subr.mxu0 0.0
    %173 = vmatpush2.msra.mxu0 0.0
    %174 = vmatprep.subr.mxu0 0.0
    %175 = vmatpush2.msra.mxu0 0.0
    %176 = vmatprep.subr.mxu0 0.0
    %177 = vmatpush2.msra.mxu0 0.0
    %178 = vmatprep.subr.mxu0 0.0
    %179 = vmatpush2.msra.mxu0 0.0
    %180 = vmatprep.subr.mxu0 0.0
    %181 = vmatpush2.msra.mxu0 0.0
    %182 = vmatprep.mubr.f32.mxu0 0.0
    %183 = vmatmul.mubr.f32.gmra.mxu0 %v110
    %v184 = vpop.f32.mrf.mxu0
    %v185 = vadd.f32 0.0, %v184
    %v186 = vpop.f32.mrf.mxu0
    %v187 = vadd.f32 0.0, %v186
    %188 = vmatprep.mubr.f32.mxu0 0.0
    %189 = vmatmul.mubr.f32.gmra.mxu0 %v112
    %v190 = vpop.f32.mrf.mxu0
    %v191 = vadd.f32 0.0, %v190
    %v192 = vpop.f32.mrf.mxu0
    %v193 = vadd.f32 0.0, %v192
    %194 = vmatprep.mubr.f32.mxu0 0.0
    %195 = vmatmul.mubr.f32.gmra.mxu0 %v114
    %v196 = vpop.f32.mrf.mxu0
    %v197 = vadd.f32 0.0, %v196
    %v198 = vpop.f32.mrf.mxu0
    %v199 = vadd.f32 0.0, %v198
    %200 = vmatprep.mubr.f32.mxu0 0.0
    %201 = vmatmul.mubr.f32.gmra.mxu0 %v116
    %v202 = vpop.f32.mrf.mxu0
    %v203 = vadd.f32 0.0, %v202
    %v204 = vpop.f32.mrf.mxu0
    %v205 = vadd.f32 0.0, %v204
    %206 = vdwg.mxu0
    %v212 = vrot.slane %v68, 1
    %v213 = vrot.slane %v69, 1
    %v214 = vsel %vm99, %v212, %v213
    %v215 = vrot.slane %v70, 1
    %v216 = vsel %vm99, %v213, %v215
    %v217 = vrot.slane %v71, 1
    %v218 = vsel %vm99, %v215, %v217
    %v219 = vrot.slane %v72, 1
    %v220 = vsel %vm99, %v217, %v219
    %v221 = vsel %vm109, %v214, 0
    %v223 = vsel %vm109, %v216, 0
    %v225 = vsel %vm109, %v218, 0
    %v227 = vsel %vm109, %v220, 0
    %229 = vmatprep.subr.mxu0 0.0
    %230 = vmatpush1.msra.mxu0 0.0
    %231 = vmatprep.subr.mxu0 0.0
    %232 = vmatpush1.msra.mxu0 0.0
    %233 = vmatprep.subr.mxu0 0.0
    %234 = vmatpush1.msra.mxu0 0.0
    %235 = vmatprep.subr.mxu0 0.0
    %236 = vmatpush1.msra.mxu0 0.0
    %237 = vmatprep.subr.mxu0 0.0
    %238 = vmatpush1.msra.mxu0 0.0
    %239 = vmatprep.subr.mxu0 0.0
    %240 = vmatpush1.msra.mxu0 0.0
    %241 = vmatprep.subr.mxu0 0.0
    %242 = vmatpush1.msra.mxu0 0.0
    %243 = vmatprep.subr.mxu0 0.0
    %244 = vmatpush1.msra.mxu0 0.0
    %245 = vmatprep.subr.mxu0 0.0
    %246 = vmatpush1.msra.mxu0 0.0
    %247 = vmatprep.subr.mxu0 0.0
    %248 = vmatpush1.msra.mxu0 0.0
    %249 = vmatprep.subr.mxu0 0.0
    %250 = vmatpush1.msra.mxu0 0.0
    %251 = vmatprep.subr.mxu0 %v93
    %252 = vmatpush1.msra.mxu0 %v92
    %253 = vmatprep.subr.mxu0 %v91
    %254 = vmatpush1.msra.mxu0 %v90
    %255 = vmatprep.subr.mxu0 %v89
    %256 = vmatpush1.msra.mxu0 %v88
    %257 = vmatprep.subr.mxu0 %v87
    %258 = vmatpush1.msra.mxu0 %v86
    %259 = vmatprep.subr.mxu0 %v85
    %260 = vmatpush1.msra.mxu0 %v84
    %261 = vmatprep.subr.mxu0 0.0
    %262 = vmatpush2.msra.mxu0 0.0
    %263 = vmatprep.subr.mxu0 0.0
    %264 = vmatpush2.msra.mxu0 0.0
    %265 = vmatprep.subr.mxu0 0.0
    %266 = vmatpush2.msra.mxu0 0.0
    %267 = vmatprep.subr.mxu0 0.0
    %268 = vmatpush2.msra.mxu0 0.0
    %269 = vmatprep.subr.mxu0 0.0
    %270 = vmatpush2.msra.mxu0 0.0
    %271 = vmatprep.subr.mxu0 0.0
    %272 = vmatpush2.msra.mxu0 0.0
    %273 = vmatprep.subr.mxu0 0.0
    %274 = vmatpush2.msra.mxu0 0.0
    %275 = vmatprep.subr.mxu0 0.0
    %276 = vmatpush2.msra.mxu0 0.0
    %277 = vmatprep.subr.mxu0 0.0
    %278 = vmatpush2.msra.mxu0 0.0
    %279 = vmatprep.subr.mxu0 0.0
    %280 = vmatpush2.msra.mxu0 0.0
    %281 = vmatprep.subr.mxu0 0.0
    %282 = vmatpush2.msra.mxu0 0.0
    %283 = vmatprep.subr.mxu0 0.0
    %284 = vmatpush2.msra.mxu0 0.0
    %285 = vmatprep.subr.mxu0 0.0
    %286 = vmatpush2.msra.mxu0 0.0
    %287 = vmatprep.subr.mxu0 0.0
    %288 = vmatpush2.msra.mxu0 0.0
    %289 = vmatprep.subr.mxu0 0.0
    %290 = vmatpush2.msra.mxu0 0.0
    %291 = vmatprep.subr.mxu0 0.0
    %292 = vmatpush2.msra.mxu0 0.0
    %293 = vmatprep.mubr.f32.mxu0 0.0
    %294 = vmatmul.mubr.f32.gmra.mxu0 %v221
    %v295 = vpop.f32.mrf.mxu0
    %v296 = vadd.f32 0.0, %v295
    %v297 = vpop.f32.mrf.mxu0
    %v298 = vadd.f32 0.0, %v297
    %299 = vmatprep.mubr.f32.mxu0 0.0
    %300 = vmatmul.mubr.f32.gmra.mxu0 %v223
    %v301 = vpop.f32.mrf.mxu0
    %v302 = vadd.f32 0.0, %v301
    %v303 = vpop.f32.mrf.mxu0
    %v304 = vadd.f32 0.0, %v303
    %305 = vmatprep.mubr.f32.mxu0 0.0
    %306 = vmatmul.mubr.f32.gmra.mxu0 %v225
    %v307 = vpop.f32.mrf.mxu0
    %v308 = vadd.f32 0.0, %v307
    %v309 = vpop.f32.mrf.mxu0
    %v310 = vadd.f32 0.0, %v309
    %311 = vmatprep.mubr.f32.mxu0 0.0
    %312 = vmatmul.mubr.f32.gmra.mxu0 %v227
    %v313 = vpop.f32.mrf.mxu0
    %v314 = vadd.f32 0.0, %v313
    %v315 = vpop.f32.mrf.mxu0
    %v316 = vadd.f32 0.0, %v315
    %317 = vdwg.mxu0
    %v318 = vsel %vm109, %v63, 0
    %v320 = vsel %vm109, %v64, 0
    %v322 = vsel %vm109, %v65, 0
    %v324 = vsel %vm109, %v66, 0
    %326 = vmatprep.subr.mxu0 0.0
    %327 = vmatpush1.msra.mxu0 0.0
    %328 = vmatprep.subr.mxu0 0.0
    %329 = vmatpush1.msra.mxu0 0.0
    %330 = vmatprep.subr.mxu0 0.0
    %331 = vmatpush1.msra.mxu0 0.0
    %332 = vmatprep.subr.mxu0 0.0
    %333 = vmatpush1.msra.mxu0 0.0
    %334 = vmatprep.subr.mxu0 0.0
    %335 = vmatpush1.msra.mxu0 0.0
    %336 = vmatprep.subr.mxu0 0.0
    %337 = vmatpush1.msra.mxu0 0.0
    %338 = vmatprep.subr.mxu0 0.0
    %339 = vmatpush1.msra.mxu0 0.0
    %340 = vmatprep.subr.mxu0 0.0
    %341 = vmatpush1.msra.mxu0 0.0
    %342 = vmatprep.subr.mxu0 0.0
    %343 = vmatpush1.msra.mxu0 0.0
    %344 = vmatprep.subr.mxu0 0.0
    %345 = vmatpush1.msra.mxu0 0.0
    %346 = vmatprep.subr.mxu0 0.0
    %347 = vmatpush1.msra.mxu0 0.0
    %348 = vmatprep.subr.mxu0 %v82
    %349 = vmatpush1.msra.mxu0 %v81
    %350 = vmatprep.subr.mxu0 %v80
    %351 = vmatpush1.msra.mxu0 %v79
    %352 = vmatprep.subr.mxu0 %v78
    %353 = vmatpush1.msra.mxu0 %v77
    %354 = vmatprep.subr.mxu0 %v76
    %355 = vmatpush1.msra.mxu0 %v75
    %356 = vmatprep.subr.mxu0 %v74
    %357 = vmatpush1.msra.mxu0 %v73
    %358 = vmatprep.subr.mxu0 0.0
    %359 = vmatpush2.msra.mxu0 0.0
    %360 = vmatprep.subr.mxu0 0.0
    %361 = vmatpush2.msra.mxu0 0.0
    %362 = vmatprep.subr.mxu0 0.0
    %363 = vmatpush2.msra.mxu0 0.0
    %364 = vmatprep.subr.mxu0 0.0
    %365 = vmatpush2.msra.mxu0 0.0
    %366 = vmatprep.subr.mxu0 0.0
    %367 = vmatpush2.msra.mxu0 0.0
    %368 = vmatprep.subr.mxu0 0.0
    %369 = vmatpush2.msra.mxu0 0.0
    %370 = vmatprep.subr.mxu0 0.0
    %371 = vmatpush2.msra.mxu0 0.0
    %372 = vmatprep.subr.mxu0 0.0
    %373 = vmatpush2.msra.mxu0 0.0
    %374 = vmatprep.subr.mxu0 0.0
    %375 = vmatpush2.msra.mxu0 0.0
    %376 = vmatprep.subr.mxu0 0.0
    %377 = vmatpush2.msra.mxu0 0.0
    %378 = vmatprep.subr.mxu0 0.0
    %379 = vmatpush2.msra.mxu0 0.0
    %380 = vmatprep.subr.mxu0 0.0
    %381 = vmatpush2.msra.mxu0 0.0
    %382 = vmatprep.subr.mxu0 0.0
    %383 = vmatpush2.msra.mxu0 0.0
    %384 = vmatprep.subr.mxu0 0.0
    %385 = vmatpush2.msra.mxu0 0.0
    %386 = vmatprep.subr.mxu0 0.0
    %387 = vmatpush2.msra.mxu0 0.0
    %388 = vmatprep.subr.mxu0 0.0
    %389 = vmatpush2.msra.mxu0 0.0
    %390 = vmatprep.mubr.f32.mxu0 0.0
    %391 = vmatmul.mubr.f32.gmra.mxu0 %v318
    %v392 = vpop.f32.mrf.mxu0
    %v393 = vadd.f32 %v185, %v392
    %v394 = vpop.f32.mrf.mxu0
    %v395 = vadd.f32 %v187, %v394
    %396 = vmatprep.mubr.f32.mxu0 0.0
    %397 = vmatmul.mubr.f32.gmra.mxu0 %v320
    %v398 = vpop.f32.mrf.mxu0
    %v399 = vadd.f32 %v191, %v398
    %v400 = vpop.f32.mrf.mxu0
    %v401 = vadd.f32 %v193, %v400
    %402 = vmatprep.mubr.f32.mxu0 0.0
    %403 = vmatmul.mubr.f32.gmra.mxu0 %v322
    %v404 = vpop.f32.mrf.mxu0
    %v405 = vadd.f32 %v197, %v404
    %v406 = vpop.f32.mrf.mxu0
    %v407 = vadd.f32 %v199, %v406
    %408 = vmatprep.mubr.f32.mxu0 0.0
    %409 = vmatmul.mubr.f32.gmra.mxu0 %v324
    %v410 = vpop.f32.mrf.mxu0
    %v411 = vadd.f32 %v203, %v410
    %v412 = vpop.f32.mrf.mxu0
    %v413 = vadd.f32 %v205, %v412
    %414 = vdwg.mxu0
    %v415 = vsel %vm109, %v68, 0
    %v417 = vsel %vm109, %v69, 0
    %v419 = vsel %vm109, %v70, 0
    %v421 = vsel %vm109, %v71, 0
    %423 = vmatprep.subr.mxu0 0.0
    %424 = vmatpush1.msra.mxu0 0.0
    %425 = vmatprep.subr.mxu0 0.0
    %426 = vmatpush1.msra.mxu0 0.0
    %427 = vmatprep.subr.mxu0 0.0
    %428 = vmatpush1.msra.mxu0 0.0
    %429 = vmatprep.subr.mxu0 0.0
    %430 = vmatpush1.msra.mxu0 0.0
    %431 = vmatprep.subr.mxu0 0.0
    %432 = vmatpush1.msra.mxu0 0.0
    %433 = vmatprep.subr.mxu0 0.0
    %434 = vmatpush1.msra.mxu0 0.0
    %435 = vmatprep.subr.mxu0 0.0
    %436 = vmatpush1.msra.mxu0 0.0
    %437 = vmatprep.subr.mxu0 0.0
    %438 = vmatpush1.msra.mxu0 0.0
    %439 = vmatprep.subr.mxu0 0.0
    %440 = vmatpush1.msra.mxu0 0.0
    %441 = vmatprep.subr.mxu0 0.0
    %442 = vmatpush1.msra.mxu0 0.0
    %443 = vmatprep.subr.mxu0 0.0
    %444 = vmatpush1.msra.mxu0 0.0
    %445 = vmatprep.subr.mxu0 %v82
    %446 = vmatpush1.msra.mxu0 %v81
    %447 = vmatprep.subr.mxu0 %v80
    %448 = vmatpush1.msra.mxu0 %v79
    %449 = vmatprep.subr.mxu0 %v78
    %450 = vmatpush1.msra.mxu0 %v77
    %451 = vmatprep.subr.mxu0 %v76
    %452 = vmatpush1.msra.mxu0 %v75
    %453 = vmatprep.subr.mxu0 %v74
    %454 = vmatpush1.msra.mxu0 %v73
    %455 = vmatprep.subr.mxu0 0.0
    %456 = vmatpush2.msra.mxu0 0.0
    %457 = vmatprep.subr.mxu0 0.0
    %458 = vmatpush2.msra.mxu0 0.0
    %459 = vmatprep.subr.mxu0 0.0
    %460 = vmatpush2.msra.mxu0 0.0
    %461 = vmatprep.subr.mxu0 0.0
    %462 = vmatpush2.msra.mxu0 0.0
    %463 = vmatprep.subr.mxu0 0.0
    %464 = vmatpush2.msra.mxu0 0.0
    %465 = vmatprep.subr.mxu0 0.0
    %466 = vmatpush2.msra.mxu0 0.0
    %467 = vmatprep.subr.mxu0 0.0
    %468 = vmatpush2.msra.mxu0 0.0
    %469 = vmatprep.subr.mxu0 0.0
    %470 = vmatpush2.msra.mxu0 0.0
    %471 = vmatprep.subr.mxu0 0.0
    %472 = vmatpush2.msra.mxu0 0.0
    %473 = vmatprep.subr.mxu0 0.0
    %474 = vmatpush2.msra.mxu0 0.0
    %475 = vmatprep.subr.mxu0 0.0
    %476 = vmatpush2.msra.mxu0 0.0
    %477 = vmatprep.subr.mxu0 0.0
    %478 = vmatpush2.msra.mxu0 0.0
    %479 = vmatprep.subr.mxu0 0.0
    %480 = vmatpush2.msra.mxu0 0.0
    %481 = vmatprep.subr.mxu0 0.0
    %482 = vmatpush2.msra.mxu0 0.0
    %483 = vmatprep.subr.mxu0 0.0
    %484 = vmatpush2.msra.mxu0 0.0
    %485 = vmatprep.subr.mxu0 0.0
    %486 = vmatpush2.msra.mxu0 0.0
    %487 = vmatprep.mubr.f32.mxu0 0.0
    %488 = vmatmul.mubr.f32.gmra.mxu0 %v415
    %v489 = vpop.f32.mrf.mxu0
    %v490 = vadd.f32 %v296, %v489
    %v491 = vpop.f32.mrf.mxu0
    %v492 = vadd.f32 %v298, %v491
    %493 = vmatprep.mubr.f32.mxu0 0.0
    %494 = vmatmul.mubr.f32.gmra.mxu0 %v417
    %v495 = vpop.f32.mrf.mxu0
    %v496 = vadd.f32 %v302, %v495
    %v497 = vpop.f32.mrf.mxu0
    %v498 = vadd.f32 %v304, %v497
    %499 = vmatprep.mubr.f32.mxu0 0.0
    %500 = vmatmul.mubr.f32.gmra.mxu0 %v419
    %v501 = vpop.f32.mrf.mxu0
    %v502 = vadd.f32 %v308, %v501
    %v503 = vpop.f32.mrf.mxu0
    %v504 = vadd.f32 %v310, %v503
    %505 = vmatprep.mubr.f32.mxu0 0.0
    %506 = vmatmul.mubr.f32.gmra.mxu0 %v421
    %v507 = vpop.f32.mrf.mxu0
    %v508 = vadd.f32 %v314, %v507
    %v509 = vpop.f32.mrf.mxu0
    %v510 = vadd.f32 %v316, %v509
    %511 = vdwg.mxu0
    %s512 = scalar_lea.vmem %s1, 160
    %v513 = vld [vmem:[%s512] sm:$0xff]
    %v514 = vld [vmem:[%s512 + $0x8] sm:$0xff]
    %v515 = vld [vmem:[%s512 + $0x10] sm:$0xff]
    %v516 = vld [vmem:[%s512 + $0x18] sm:$0xff]
    %v517 = vld [vmem:[%s512 + $0x20] sm:$0xff]
    %v518 = vld [vmem:[%s512 + $0x28] sm:$0xff]
    %v519 = vld [vmem:[%s512 + $0x30] sm:$0xff]
    %v520 = vld [vmem:[%s512 + $0x38] sm:$0xff]
    %v521 = vld [vmem:[%s512 + $0x40] sm:$0xff]
    %v522 = vld [vmem:[%s512 + $0x48] sm:$0xff]
    %vm523 = vcmask 1045504
    %v524 = vrot.slane %v63, 2
    %v525 = vrot.slane %v64, 2
    %v526 = vsel %vm523, %v524, %v525
    %v527 = vrot.slane %v65, 2
    %v528 = vsel %vm523, %v525, %v527
    %v529 = vrot.slane %v66, 2
    %v530 = vsel %vm523, %v527, %v529
    %v531 = vrot.slane %v67, 2
    %v532 = vsel %vm523, %v529, %v531
    %v533 = vsel %vm109, %v526, 0
    %v535 = vsel %vm109, %v528, 0
    %v537 = vsel %vm109, %v530, 0
    %v539 = vsel %vm109, %v532, 0
    %541 = vmatprep.subr.mxu0 0.0
    %542 = vmatpush1.msra.mxu0 0.0
    %543 = vmatprep.subr.mxu0 0.0
    %544 = vmatpush1.msra.mxu0 0.0
    %545 = vmatprep.subr.mxu0 0.0
    %546 = vmatpush1.msra.mxu0 0.0
    %547 = vmatprep.subr.mxu0 0.0
    %548 = vmatpush1.msra.mxu0 0.0
    %549 = vmatprep.subr.mxu0 0.0
    %550 = vmatpush1.msra.mxu0 0.0
    %551 = vmatprep.subr.mxu0 0.0
    %552 = vmatpush1.msra.mxu0 0.0
    %553 = vmatprep.subr.mxu0 0.0
    %554 = vmatpush1.msra.mxu0 0.0
    %555 = vmatprep.subr.mxu0 0.0
    %556 = vmatpush1.msra.mxu0 0.0
    %557 = vmatprep.subr.mxu0 0.0
    %558 = vmatpush1.msra.mxu0 0.0
    %559 = vmatprep.subr.mxu0 0.0
    %560 = vmatpush1.msra.mxu0 0.0
    %561 = vmatprep.subr.mxu0 0.0
    %562 = vmatpush1.msra.mxu0 0.0
    %563 = vmatprep.subr.mxu0 %v522
    %564 = vmatpush1.msra.mxu0 %v521
    %565 = vmatprep.subr.mxu0 %v520
    %566 = vmatpush1.msra.mxu0 %v519
    %567 = vmatprep.subr.mxu0 %v518
    %568 = vmatpush1.msra.mxu0 %v517
    %569 = vmatprep.subr.mxu0 %v516
    %570 = vmatpush1.msra.mxu0 %v515
    %571 = vmatprep.subr.mxu0 %v514
    %572 = vmatpush1.msra.mxu0 %v513
    %573 = vmatprep.subr.mxu0 0.0
    %574 = vmatpush2.msra.mxu0 0.0
    %575 = vmatprep.subr.mxu0 0.0
    %576 = vmatpush2.msra.mxu0 0.0
    %577 = vmatprep.subr.mxu0 0.0
    %578 = vmatpush2.msra.mxu0 0.0
    %579 = vmatprep.subr.mxu0 0.0
    %580 = vmatpush2.msra.mxu0 0.0
    %581 = vmatprep.subr.mxu0 0.0
    %582 = vmatpush2.msra.mxu0 0.0
    %583 = vmatprep.subr.mxu0 0.0
    %584 = vmatpush2.msra.mxu0 0.0
    %585 = vmatprep.subr.mxu0 0.0
    %586 = vmatpush2.msra.mxu0 0.0
    %587 = vmatprep.subr.mxu0 0.0
    %588 = vmatpush2.msra.mxu0 0.0
    %589 = vmatprep.subr.mxu0 0.0
    %590 = vmatpush2.msra.mxu0 0.0
    %591 = vmatprep.subr.mxu0 0.0
    %592 = vmatpush2.msra.mxu0 0.0
    %593 = vmatprep.subr.mxu0 0.0
    %594 = vmatpush2.msra.mxu0 0.0
    %595 = vmatprep.subr.mxu0 0.0
    %596 = vmatpush2.msra.mxu0 0.0
    %597 = vmatprep.subr.mxu0 0.0
    %598 = vmatpush2.msra.mxu0 0.0
    %599 = vmatprep.subr.mxu0 0.0
    %600 = vmatpush2.msra.mxu0 0.0
    %601 = vmatprep.subr.mxu0 0.0
    %602 = vmatpush2.msra.mxu0 0.0
    %603 = vmatprep.subr.mxu0 0.0
    %604 = vmatpush2.msra.mxu0 0.0
    %605 = vmatprep.mubr.f32.mxu0 0.0
    %606 = vmatmul.mubr.f32.gmra.mxu0 %v533
    %v607 = vpop.f32.mrf.mxu0
    %v608 = vadd.f32 0.0, %v607
    %v609 = vpop.f32.mrf.mxu0
    %v610 = vadd.f32 0.0, %v609
    %611 = vmatprep.mubr.f32.mxu0 0.0
    %612 = vmatmul.mubr.f32.gmra.mxu0 %v535
    %v613 = vpop.f32.mrf.mxu0
    %v614 = vadd.f32 0.0, %v613
    %v615 = vpop.f32.mrf.mxu0
    %v616 = vadd.f32 0.0, %v615
    %617 = vmatprep.mubr.f32.mxu0 0.0
    %618 = vmatmul.mubr.f32.gmra.mxu0 %v537
    %v619 = vpop.f32.mrf.mxu0
    %v620 = vadd.f32 0.0, %v619
    %v621 = vpop.f32.mrf.mxu0
    %v622 = vadd.f32 0.0, %v621
    %623 = vmatprep.mubr.f32.mxu0 0.0
    %624 = vmatmul.mubr.f32.gmra.mxu0 %v539
    %v625 = vpop.f32.mrf.mxu0
    %v626 = vadd.f32 0.0, %v625
    %v627 = vpop.f32.mrf.mxu0
    %v628 = vadd.f32 0.0, %v627
    %629 = vdwg.mxu0
    %v630 = vrot.slane %v68, 2
    %v631 = vrot.slane %v69, 2
    %v632 = vsel %vm523, %v630, %v631
    %v633 = vrot.slane %v70, 2
    %v634 = vsel %vm523, %v631, %v633
    %v635 = vrot.slane %v71, 2
    %v636 = vsel %vm523, %v633, %v635
    %v637 = vrot.slane %v72, 2
    %v638 = vsel %vm523, %v635, %v637
    %v639 = vsel %vm109, %v632, 0
    %v641 = vsel %vm109, %v634, 0
    %v643 = vsel %vm109, %v636, 0
    %v645 = vsel %vm109, %v638, 0
    %647 = vmatprep.subr.mxu0 0.0
    %648 = vmatpush1.msra.mxu0 0.0
    %649 = vmatprep.subr.mxu0 0.0
    %650 = vmatpush1.msra.mxu0 0.0
    %651 = vmatprep.subr.mxu0 0.0
    %652 = vmatpush1.msra.mxu0 0.0
    %653 = vmatprep.subr.mxu0 0.0
    %654 = vmatpush1.msra.mxu0 0.0
    %655 = vmatprep.subr.mxu0 0.0
    %656 = vmatpush1.msra.mxu0 0.0
    %657 = vmatprep.subr.mxu0 0.0
    %658 = vmatpush1.msra.mxu0 0.0
    %659 = vmatprep.subr.mxu0 0.0
    %660 = vmatpush1.msra.mxu0 0.0
    %661 = vmatprep.subr.mxu0 0.0
    %662 = vmatpush1.msra.mxu0 0.0
    %663 = vmatprep.subr.mxu0 0.0
    %664 = vmatpush1.msra.mxu0 0.0
    %665 = vmatprep.subr.mxu0 0.0
    %666 = vmatpush1.msra.mxu0 0.0
    %667 = vmatprep.subr.mxu0 0.0
    %668 = vmatpush1.msra.mxu0 0.0
    %669 = vmatprep.subr.mxu0 %v522
    %670 = vmatpush1.msra.mxu0 %v521
    %671 = vmatprep.subr.mxu0 %v520
    %672 = vmatpush1.msra.mxu0 %v519
    %673 = vmatprep.subr.mxu0 %v518
    %674 = vmatpush1.msra.mxu0 %v517
    %675 = vmatprep.subr.mxu0 %v516
    %676 = vmatpush1.msra.mxu0 %v515
    %677 = vmatprep.subr.mxu0 %v514
    %678 = vmatpush1.msra.mxu0 %v513
    %679 = vmatprep.subr.mxu0 0.0
    %680 = vmatpush2.msra.mxu0 0.0
    %681 = vmatprep.subr.mxu0 0.0
    %682 = vmatpush2.msra.mxu0 0.0
    %683 = vmatprep.subr.mxu0 0.0
    %684 = vmatpush2.msra.mxu0 0.0
    %685 = vmatprep.subr.mxu0 0.0
    %686 = vmatpush2.msra.mxu0 0.0
    %687 = vmatprep.subr.mxu0 0.0
    %688 = vmatpush2.msra.mxu0 0.0
    %689 = vmatprep.subr.mxu0 0.0
    %690 = vmatpush2.msra.mxu0 0.0
    %691 = vmatprep.subr.mxu0 0.0
    %692 = vmatpush2.msra.mxu0 0.0
    %693 = vmatprep.subr.mxu0 0.0
    %694 = vmatpush2.msra.mxu0 0.0
    %695 = vmatprep.subr.mxu0 0.0
    %696 = vmatpush2.msra.mxu0 0.0
    %697 = vmatprep.subr.mxu0 0.0
    %698 = vmatpush2.msra.mxu0 0.0
    %699 = vmatprep.subr.mxu0 0.0
    %700 = vmatpush2.msra.mxu0 0.0
    %701 = vmatprep.subr.mxu0 0.0
    %702 = vmatpush2.msra.mxu0 0.0
    %703 = vmatprep.subr.mxu0 0.0
    %704 = vmatpush2.msra.mxu0 0.0
    %705 = vmatprep.subr.mxu0 0.0
    %706 = vmatpush2.msra.mxu0 0.0
    %707 = vmatprep.subr.mxu0 0.0
    %708 = vmatpush2.msra.mxu0 0.0
    %709 = vmatprep.subr.mxu0 0.0
    %710 = vmatpush2.msra.mxu0 0.0
    %711 = vmatprep.mubr.f32.mxu0 0.0
    %712 = vmatmul.mubr.f32.gmra.mxu0 %v639
    %v713 = vpop.f32.mrf.mxu0
    %v714 = vadd.f32 0.0, %v713
    %v715 = vpop.f32.mrf.mxu0
    %v716 = vadd.f32 0.0, %v715
    %717 = vmatprep.mubr.f32.mxu0 0.0
    %718 = vmatmul.mubr.f32.gmra.mxu0 %v641
    %v719 = vpop.f32.mrf.mxu0
    %v720 = vadd.f32 0.0, %v719
    %v721 = vpop.f32.mrf.mxu0
    %v722 = vadd.f32 0.0, %v721
    %723 = vmatprep.mubr.f32.mxu0 0.0
    %724 = vmatmul.mubr.f32.gmra.mxu0 %v643
    %v725 = vpop.f32.mrf.mxu0
    %v726 = vadd.f32 0.0, %v725
    %v727 = vpop.f32.mrf.mxu0
    %v728 = vadd.f32 0.0, %v727
    %729 = vmatprep.mubr.f32.mxu0 0.0
    %730 = vmatmul.mubr.f32.gmra.mxu0 %v645
    %v731 = vpop.f32.mrf.mxu0
    %v732 = vadd.f32 0.0, %v731
    %v733 = vpop.f32.mrf.mxu0
    %v734 = vadd.f32 0.0, %v733
    %735 = vdwg.mxu0
    %v736 = vadd.f32 %v393, %v608
    %v737 = vadd.f32 %v395, %v610
    %v738 = vadd.f32 %v399, %v614
    %v739 = vadd.f32 %v401, %v616
    %v740 = vadd.f32 %v405, %v620
    %v741 = vadd.f32 %v407, %v622
    %v742 = vadd.f32 %v411, %v626
    %v743 = vadd.f32 %v413, %v628
    %v744 = vadd.f32 %v490, %v714
    %v745 = vadd.f32 %v492, %v716
    %v746 = vadd.f32 %v496, %v720
    %v747 = vadd.f32 %v498, %v722
    %v748 = vadd.f32 %v502, %v726
    %v749 = vadd.f32 %v504, %v728
    %v750 = vadd.f32 %v508, %v732
    %v751 = vadd.f32 %v510, %v734
    %s752 = scalar_lea.vmem %s1, 240
    %v753 = vld [vmem:[%s752] sm:$0xff]
    %v754 = vld [vmem:[%s752 + $0x8] sm:$0xff]
    %v755 = vld [vmem:[%s752 + $0x10] sm:$0xff]
    %v756 = vld [vmem:[%s752 + $0x18] sm:$0xff]
    %v757 = vld [vmem:[%s752 + $0x20] sm:$0xff]
    %v758 = vld [vmem:[%s752 + $0x28] sm:$0xff]
    %v759 = vld [vmem:[%s752 + $0x30] sm:$0xff]
    %v760 = vld [vmem:[%s752 + $0x38] sm:$0xff]
    %v761 = vld [vmem:[%s752 + $0x40] sm:$0xff]
    %v762 = vld [vmem:[%s752 + $0x48] sm:$0xff]
    %vm763 = vcmask 1044480
    %v764 = vrot.slane %v63, 3
    %v765 = vrot.slane %v64, 3
    %v766 = vsel %vm763, %v764, %v765
    %v767 = vrot.slane %v65, 3
    %v768 = vsel %vm763, %v765, %v767
    %v769 = vrot.slane %v66, 3
    %v770 = vsel %vm763, %v767, %v769
    %v771 = vrot.slane %v67, 3
    %v772 = vsel %vm763, %v769, %v771
    %v773 = vsel %vm109, %v766, 0
    %v775 = vsel %vm109, %v768, 0
    %v777 = vsel %vm109, %v770, 0
    %v779 = vsel %vm109, %v772, 0
    %781 = vmatprep.subr.mxu0 0.0
    %782 = vmatpush1.msra.mxu0 0.0
    %783 = vmatprep.subr.mxu0 0.0
    %784 = vmatpush1.msra.mxu0 0.0
    %785 = vmatprep.subr.mxu0 0.0
    %786 = vmatpush1.msra.mxu0 0.0
    %787 = vmatprep.subr.mxu0 0.0
    %788 = vmatpush1.msra.mxu0 0.0
    %789 = vmatprep.subr.mxu0 0.0
    %790 = vmatpush1.msra.mxu0 0.0
    %791 = vmatprep.subr.mxu0 0.0
    %792 = vmatpush1.msra.mxu0 0.0
    %793 = vmatprep.subr.mxu0 0.0
    %794 = vmatpush1.msra.mxu0 0.0
    %795 = vmatprep.subr.mxu0 0.0
    %796 = vmatpush1.msra.mxu0 0.0
    %797 = vmatprep.subr.mxu0 0.0
    %798 = vmatpush1.msra.mxu0 0.0
    %799 = vmatprep.subr.mxu0 0.0
    %800 = vmatpush1.msra.mxu0 0.0
    %801 = vmatprep.subr.mxu0 0.0
    %802 = vmatpush1.msra.mxu0 0.0
    %803 = vmatprep.subr.mxu0 %v762
    %804 = vmatpush1.msra.mxu0 %v761
    %805 = vmatprep.subr.mxu0 %v760
    %806 = vmatpush1.msra.mxu0 %v759
    %807 = vmatprep.subr.mxu0 %v758
    %808 = vmatpush1.msra.mxu0 %v757
    %809 = vmatprep.subr.mxu0 %v756
    %810 = vmatpush1.msra.mxu0 %v755
    %811 = vmatprep.subr.mxu0 %v754
    %812 = vmatpush1.msra.mxu0 %v753
    %813 = vmatprep.subr.mxu0 0.0
    %814 = vmatpush2.msra.mxu0 0.0
    %815 = vmatprep.subr.mxu0 0.0
    %816 = vmatpush2.msra.mxu0 0.0
    %817 = vmatprep.subr.mxu0 0.0
    %818 = vmatpush2.msra.mxu0 0.0
    %819 = vmatprep.subr.mxu0 0.0
    %820 = vmatpush2.msra.mxu0 0.0
    %821 = vmatprep.subr.mxu0 0.0
    %822 = vmatpush2.msra.mxu0 0.0
    %823 = vmatprep.subr.mxu0 0.0
    %824 = vmatpush2.msra.mxu0 0.0
    %825 = vmatprep.subr.mxu0 0.0
    %826 = vmatpush2.msra.mxu0 0.0
    %827 = vmatprep.subr.mxu0 0.0
    %828 = vmatpush2.msra.mxu0 0.0
    %829 = vmatprep.subr.mxu0 0.0
    %830 = vmatpush2.msra.mxu0 0.0
    %831 = vmatprep.subr.mxu0 0.0
    %832 = vmatpush2.msra.mxu0 0.0
    %833 = vmatprep.subr.mxu0 0.0
    %834 = vmatpush2.msra.mxu0 0.0
    %835 = vmatprep.subr.mxu0 0.0
    %836 = vmatpush2.msra.mxu0 0.0
    %837 = vmatprep.subr.mxu0 0.0
    %838 = vmatpush2.msra.mxu0 0.0
    %839 = vmatprep.subr.mxu0 0.0
    %840 = vmatpush2.msra.mxu0 0.0
    %841 = vmatprep.subr.mxu0 0.0
    %842 = vmatpush2.msra.mxu0 0.0
    %843 = vmatprep.subr.mxu0 0.0
    %844 = vmatpush2.msra.mxu0 0.0
    %845 = vmatprep.mubr.f32.mxu0 0.0
    %846 = vmatmul.mubr.f32.gmra.mxu0 %v773
    %v847 = vpop.f32.mrf.mxu0
    %v848 = vadd.f32 0.0, %v847
    %v849 = vpop.f32.mrf.mxu0
    %v850 = vadd.f32 0.0, %v849
    %851 = vmatprep.mubr.f32.mxu0 0.0
    %852 = vmatmul.mubr.f32.gmra.mxu0 %v775
    %v853 = vpop.f32.mrf.mxu0
    %v854 = vadd.f32 0.0, %v853
    %v855 = vpop.f32.mrf.mxu0
    %v856 = vadd.f32 0.0, %v855
    %857 = vmatprep.mubr.f32.mxu0 0.0
    %858 = vmatmul.mubr.f32.gmra.mxu0 %v777
    %v859 = vpop.f32.mrf.mxu0
    %v860 = vadd.f32 0.0, %v859
    %v861 = vpop.f32.mrf.mxu0
    %v862 = vadd.f32 0.0, %v861
    %863 = vmatprep.mubr.f32.mxu0 0.0
    %864 = vmatmul.mubr.f32.gmra.mxu0 %v779
    %v865 = vpop.f32.mrf.mxu0
    %v866 = vadd.f32 0.0, %v865
    %v867 = vpop.f32.mrf.mxu0
    %v868 = vadd.f32 0.0, %v867
    %869 = vdwg.mxu0
    %v870 = vrot.slane %v68, 3
    %v871 = vrot.slane %v69, 3
    %v872 = vsel %vm763, %v870, %v871
    %v873 = vrot.slane %v70, 3
    %v874 = vsel %vm763, %v871, %v873
    %v875 = vrot.slane %v71, 3
    %v876 = vsel %vm763, %v873, %v875
    %v877 = vrot.slane %v72, 3
    %v878 = vsel %vm763, %v875, %v877
    %v879 = vsel %vm109, %v872, 0
    %v881 = vsel %vm109, %v874, 0
    %v883 = vsel %vm109, %v876, 0
    %v885 = vsel %vm109, %v878, 0
    %887 = vmatprep.subr.mxu0 0.0
    %888 = vmatpush1.msra.mxu0 0.0
    %889 = vmatprep.subr.mxu0 0.0
    %890 = vmatpush1.msra.mxu0 0.0
    %891 = vmatprep.subr.mxu0 0.0
    %892 = vmatpush1.msra.mxu0 0.0
    %893 = vmatprep.subr.mxu0 0.0
    %894 = vmatpush1.msra.mxu0 0.0
    %895 = vmatprep.subr.mxu0 0.0
    %896 = vmatpush1.msra.mxu0 0.0
    %897 = vmatprep.subr.mxu0 0.0
    %898 = vmatpush1.msra.mxu0 0.0
    %899 = vmatprep.subr.mxu0 0.0
    %900 = vmatpush1.msra.mxu0 0.0
    %901 = vmatprep.subr.mxu0 0.0
    %902 = vmatpush1.msra.mxu0 0.0
    %903 = vmatprep.subr.mxu0 0.0
    %904 = vmatpush1.msra.mxu0 0.0
    %905 = vmatprep.subr.mxu0 0.0
    %906 = vmatpush1.msra.mxu0 0.0
    %907 = vmatprep.subr.mxu0 0.0
    %908 = vmatpush1.msra.mxu0 0.0
    %909 = vmatprep.subr.mxu0 %v762
    %910 = vmatpush1.msra.mxu0 %v761
    %911 = vmatprep.subr.mxu0 %v760
    %912 = vmatpush1.msra.mxu0 %v759
    %913 = vmatprep.subr.mxu0 %v758
    %914 = vmatpush1.msra.mxu0 %v757
    %915 = vmatprep.subr.mxu0 %v756
    %916 = vmatpush1.msra.mxu0 %v755
    %917 = vmatprep.subr.mxu0 %v754
    %918 = vmatpush1.msra.mxu0 %v753
    %919 = vmatprep.subr.mxu0 0.0
    %920 = vmatpush2.msra.mxu0 0.0
    %921 = vmatprep.subr.mxu0 0.0
    %922 = vmatpush2.msra.mxu0 0.0
    %923 = vmatprep.subr.mxu0 0.0
    %924 = vmatpush2.msra.mxu0 0.0
    %925 = vmatprep.subr.mxu0 0.0
    %926 = vmatpush2.msra.mxu0 0.0
    %927 = vmatprep.subr.mxu0 0.0
    %928 = vmatpush2.msra.mxu0 0.0
    %929 = vmatprep.subr.mxu0 0.0
    %930 = vmatpush2.msra.mxu0 0.0
    %931 = vmatprep.subr.mxu0 0.0
    %932 = vmatpush2.msra.mxu0 0.0
    %933 = vmatprep.subr.mxu0 0.0
    %934 = vmatpush2.msra.mxu0 0.0
    %935 = vmatprep.subr.mxu0 0.0
    %936 = vmatpush2.msra.mxu0 0.0
    %937 = vmatprep.subr.mxu0 0.0
    %938 = vmatpush2.msra.mxu0 0.0
    %939 = vmatprep.subr.mxu0 0.0
    %940 = vmatpush2.msra.mxu0 0.0
    %941 = vmatprep.subr.mxu0 0.0
    %942 = vmatpush2.msra.mxu0 0.0
    %943 = vmatprep.subr.mxu0 0.0
    %944 = vmatpush2.msra.mxu0 0.0
    %945 = vmatprep.subr.mxu0 0.0
    %946 = vmatpush2.msra.mxu0 0.0
    %947 = vmatprep.subr.mxu0 0.0
    %948 = vmatpush2.msra.mxu0 0.0
    %949 = vmatprep.subr.mxu0 0.0
    %950 = vmatpush2.msra.mxu0 0.0
    %951 = vmatprep.mubr.f32.mxu0 0.0
    %952 = vmatmul.mubr.f32.gmra.mxu0 %v879
    %v953 = vpop.f32.mrf.mxu0
    %v954 = vadd.f32 0.0, %v953
    %v955 = vpop.f32.mrf.mxu0
    %v956 = vadd.f32 0.0, %v955
    %957 = vmatprep.mubr.f32.mxu0 0.0
    %958 = vmatmul.mubr.f32.gmra.mxu0 %v881
    %v959 = vpop.f32.mrf.mxu0
    %v960 = vadd.f32 0.0, %v959
    %v961 = vpop.f32.mrf.mxu0
    %v962 = vadd.f32 0.0, %v961
    %963 = vmatprep.mubr.f32.mxu0 0.0
    %964 = vmatmul.mubr.f32.gmra.mxu0 %v883
    %v965 = vpop.f32.mrf.mxu0
    %v966 = vadd.f32 0.0, %v965
    %v967 = vpop.f32.mrf.mxu0
    %v968 = vadd.f32 0.0, %v967
    %969 = vmatprep.mubr.f32.mxu0 0.0
    %970 = vmatmul.mubr.f32.gmra.mxu0 %v885
    %v971 = vpop.f32.mrf.mxu0
    %v972 = vadd.f32 0.0, %v971
    %v973 = vpop.f32.mrf.mxu0
    %v974 = vadd.f32 0.0, %v973
    %975 = vdwg.mxu0
    %v976 = vadd.f32 %v736, %v848
    %v977 = vadd.f32 %v737, %v850
    %v978 = vadd.f32 %v738, %v854
    %v979 = vadd.f32 %v739, %v856
    %v980 = vadd.f32 %v740, %v860
    %v981 = vadd.f32 %v741, %v862
    %v982 = vadd.f32 %v742, %v866
    %v983 = vadd.f32 %v743, %v868
    %v984 = vadd.f32 %v744, %v954
    %v985 = vadd.f32 %v745, %v956
    %v986 = vadd.f32 %v746, %v960
    %v987 = vadd.f32 %v747, %v962
    %v988 = vadd.f32 %v748, %v966
    %v989 = vadd.f32 %v749, %v968
    %v990 = vadd.f32 %v750, %v972
    %v991 = vadd.f32 %v751, %v974
    %s992 = scalar_lea.vmem %s1, 320
    %v993 = vld [vmem:[%s992] sm:$0xff]
    %v994 = vld [vmem:[%s992 + $0x8] sm:$0xff]
    %v995 = vld [vmem:[%s992 + $0x10] sm:$0xff]
    %v996 = vld [vmem:[%s992 + $0x18] sm:$0xff]
    %v997 = vld [vmem:[%s992 + $0x20] sm:$0xff]
    %v998 = vld [vmem:[%s992 + $0x28] sm:$0xff]
    %v999 = vld [vmem:[%s992 + $0x30] sm:$0xff]
    %v1000 = vld [vmem:[%s992 + $0x38] sm:$0xff]
    %v1001 = vld [vmem:[%s992 + $0x40] sm:$0xff]
    %v1002 = vld [vmem:[%s992 + $0x48] sm:$0xff]
    %vm1003 = vcmask 1043456
    %v1004 = vrot.slane %v63, 4
    %v1005 = vrot.slane %v64, 4
    %v1006 = vsel %vm1003, %v1004, %v1005
    %v1007 = vrot.slane %v65, 4
    %v1008 = vsel %vm1003, %v1005, %v1007
    %v1009 = vrot.slane %v66, 4
    %v1010 = vsel %vm1003, %v1007, %v1009
    %v1011 = vrot.slane %v67, 4
    %v1012 = vsel %vm1003, %v1009, %v1011
    %v1013 = vsel %vm109, %v1006, 0
    %v1015 = vsel %vm109, %v1008, 0
    %v1017 = vsel %vm109, %v1010, 0
    %v1019 = vsel %vm109, %v1012, 0
    %1021 = vmatprep.subr.mxu0 0.0
    %1022 = vmatpush1.msra.mxu0 0.0
    %1023 = vmatprep.subr.mxu0 0.0
    %1024 = vmatpush1.msra.mxu0 0.0
    %1025 = vmatprep.subr.mxu0 0.0
    %1026 = vmatpush1.msra.mxu0 0.0
    %1027 = vmatprep.subr.mxu0 0.0
    %1028 = vmatpush1.msra.mxu0 0.0
    %1029 = vmatprep.subr.mxu0 0.0
    %1030 = vmatpush1.msra.mxu0 0.0
    %1031 = vmatprep.subr.mxu0 0.0
    %1032 = vmatpush1.msra.mxu0 0.0
    %1033 = vmatprep.subr.mxu0 0.0
    %1034 = vmatpush1.msra.mxu0 0.0
    %1035 = vmatprep.subr.mxu0 0.0
    %1036 = vmatpush1.msra.mxu0 0.0
    %1037 = vmatprep.subr.mxu0 0.0
    %1038 = vmatpush1.msra.mxu0 0.0
    %1039 = vmatprep.subr.mxu0 0.0
    %1040 = vmatpush1.msra.mxu0 0.0
    %1041 = vmatprep.subr.mxu0 0.0
    %1042 = vmatpush1.msra.mxu0 0.0
    %1043 = vmatprep.subr.mxu0 %v1002
    %1044 = vmatpush1.msra.mxu0 %v1001
    %1045 = vmatprep.subr.mxu0 %v1000
    %1046 = vmatpush1.msra.mxu0 %v999
    %1047 = vmatprep.subr.mxu0 %v998
    %1048 = vmatpush1.msra.mxu0 %v997
    %1049 = vmatprep.subr.mxu0 %v996
    %1050 = vmatpush1.msra.mxu0 %v995
    %1051 = vmatprep.subr.mxu0 %v994
    %1052 = vmatpush1.msra.mxu0 %v993
    %1053 = vmatprep.subr.mxu0 0.0
    %1054 = vmatpush2.msra.mxu0 0.0
    %1055 = vmatprep.subr.mxu0 0.0
    %1056 = vmatpush2.msra.mxu0 0.0
    %1057 = vmatprep.subr.mxu0 0.0
    %1058 = vmatpush2.msra.mxu0 0.0
    %1059 = vmatprep.subr.mxu0 0.0
    %1060 = vmatpush2.msra.mxu0 0.0
    %1061 = vmatprep.subr.mxu0 0.0
    %1062 = vmatpush2.msra.mxu0 0.0
    %1063 = vmatprep.subr.mxu0 0.0
    %1064 = vmatpush2.msra.mxu0 0.0
    %1065 = vmatprep.subr.mxu0 0.0
    %1066 = vmatpush2.msra.mxu0 0.0
    %1067 = vmatprep.subr.mxu0 0.0
    %1068 = vmatpush2.msra.mxu0 0.0
    %1069 = vmatprep.subr.mxu0 0.0
    %1070 = vmatpush2.msra.mxu0 0.0
    %1071 = vmatprep.subr.mxu0 0.0
    %1072 = vmatpush2.msra.mxu0 0.0
    %1073 = vmatprep.subr.mxu0 0.0
    %1074 = vmatpush2.msra.mxu0 0.0
    %1075 = vmatprep.subr.mxu0 0.0
    %1076 = vmatpush2.msra.mxu0 0.0
    %1077 = vmatprep.subr.mxu0 0.0
    %1078 = vmatpush2.msra.mxu0 0.0
    %1079 = vmatprep.subr.mxu0 0.0
    %1080 = vmatpush2.msra.mxu0 0.0
    %1081 = vmatprep.subr.mxu0 0.0
    %1082 = vmatpush2.msra.mxu0 0.0
    %1083 = vmatprep.subr.mxu0 0.0
    %1084 = vmatpush2.msra.mxu0 0.0
    %1085 = vmatprep.mubr.f32.mxu0 0.0
    %1086 = vmatmul.mubr.f32.gmra.mxu0 %v1013
    %v1087 = vpop.f32.mrf.mxu0
    %v1088 = vadd.f32 0.0, %v1087
    %v1089 = vpop.f32.mrf.mxu0
    %v1090 = vadd.f32 0.0, %v1089
    %1091 = vmatprep.mubr.f32.mxu0 0.0
    %1092 = vmatmul.mubr.f32.gmra.mxu0 %v1015
    %v1093 = vpop.f32.mrf.mxu0
    %v1094 = vadd.f32 0.0, %v1093
    %v1095 = vpop.f32.mrf.mxu0
    %v1096 = vadd.f32 0.0, %v1095
    %1097 = vmatprep.mubr.f32.mxu0 0.0
    %1098 = vmatmul.mubr.f32.gmra.mxu0 %v1017
    %v1099 = vpop.f32.mrf.mxu0
    %v1100 = vadd.f32 0.0, %v1099
    %v1101 = vpop.f32.mrf.mxu0
    %v1102 = vadd.f32 0.0, %v1101
    %1103 = vmatprep.mubr.f32.mxu0 0.0
    %1104 = vmatmul.mubr.f32.gmra.mxu0 %v1019
    %v1105 = vpop.f32.mrf.mxu0
    %v1106 = vadd.f32 0.0, %v1105
    %v1107 = vpop.f32.mrf.mxu0
    %v1108 = vadd.f32 0.0, %v1107
    %1109 = vdwg.mxu0
    %v1110 = vrot.slane %v68, 4
    %v1111 = vrot.slane %v69, 4
    %v1112 = vsel %vm1003, %v1110, %v1111
    %v1113 = vrot.slane %v70, 4
    %v1114 = vsel %vm1003, %v1111, %v1113
    %v1115 = vrot.slane %v71, 4
    %v1116 = vsel %vm1003, %v1113, %v1115
    %v1117 = vrot.slane %v72, 4
    %v1118 = vsel %vm1003, %v1115, %v1117
    %v1119 = vsel %vm109, %v1112, 0
    %v1121 = vsel %vm109, %v1114, 0
    %v1123 = vsel %vm109, %v1116, 0
    %v1125 = vsel %vm109, %v1118, 0
    %1127 = vmatprep.subr.mxu0 0.0
    %1128 = vmatpush1.msra.mxu0 0.0
    %1129 = vmatprep.subr.mxu0 0.0
    %1130 = vmatpush1.msra.mxu0 0.0
    %1131 = vmatprep.subr.mxu0 0.0
    %1132 = vmatpush1.msra.mxu0 0.0
    %1133 = vmatprep.subr.mxu0 0.0
    %1134 = vmatpush1.msra.mxu0 0.0
    %1135 = vmatprep.subr.mxu0 0.0
    %1136 = vmatpush1.msra.mxu0 0.0
    %1137 = vmatprep.subr.mxu0 0.0
    %1138 = vmatpush1.msra.mxu0 0.0
    %1139 = vmatprep.subr.mxu0 0.0
    %1140 = vmatpush1.msra.mxu0 0.0
    %1141 = vmatprep.subr.mxu0 0.0
    %1142 = vmatpush1.msra.mxu0 0.0
    %1143 = vmatprep.subr.mxu0 0.0
    %1144 = vmatpush1.msra.mxu0 0.0
    %1145 = vmatprep.subr.mxu0 0.0
    %1146 = vmatpush1.msra.mxu0 0.0
    %1147 = vmatprep.subr.mxu0 0.0
    %1148 = vmatpush1.msra.mxu0 0.0
    %1149 = vmatprep.subr.mxu0 %v1002
    %1150 = vmatpush1.msra.mxu0 %v1001
    %1151 = vmatprep.subr.mxu0 %v1000
    %1152 = vmatpush1.msra.mxu0 %v999
    %1153 = vmatprep.subr.mxu0 %v998
    %1154 = vmatpush1.msra.mxu0 %v997
    %1155 = vmatprep.subr.mxu0 %v996
    %1156 = vmatpush1.msra.mxu0 %v995
    %1157 = vmatprep.subr.mxu0 %v994
    %1158 = vmatpush1.msra.mxu0 %v993
    %1159 = vmatprep.subr.mxu0 0.0
    %1160 = vmatpush2.msra.mxu0 0.0
    %1161 = vmatprep.subr.mxu0 0.0
    %1162 = vmatpush2.msra.mxu0 0.0
    %1163 = vmatprep.subr.mxu0 0.0
    %1164 = vmatpush2.msra.mxu0 0.0
    %1165 = vmatprep.subr.mxu0 0.0
    %1166 = vmatpush2.msra.mxu0 0.0
    %1167 = vmatprep.subr.mxu0 0.0
    %1168 = vmatpush2.msra.mxu0 0.0
    %1169 = vmatprep.subr.mxu0 0.0
    %1170 = vmatpush2.msra.mxu0 0.0
    %1171 = vmatprep.subr.mxu0 0.0
    %1172 = vmatpush2.msra.mxu0 0.0
    %1173 = vmatprep.subr.mxu0 0.0
    %1174 = vmatpush2.msra.mxu0 0.0
    %1175 = vmatprep.subr.mxu0 0.0
    %1176 = vmatpush2.msra.mxu0 0.0
    %1177 = vmatprep.subr.mxu0 0.0
    %1178 = vmatpush2.msra.mxu0 0.0
    %1179 = vmatprep.subr.mxu0 0.0
    %1180 = vmatpush2.msra.mxu0 0.0
    %1181 = vmatprep.subr.mxu0 0.0
    %1182 = vmatpush2.msra.mxu0 0.0
    %1183 = vmatprep.subr.mxu0 0.0
    %1184 = vmatpush2.msra.mxu0 0.0
    %1185 = vmatprep.subr.mxu0 0.0
    %1186 = vmatpush2.msra.mxu0 0.0
    %1187 = vmatprep.subr.mxu0 0.0
    %1188 = vmatpush2.msra.mxu0 0.0
    %1189 = vmatprep.subr.mxu0 0.0
    %1190 = vmatpush2.msra.mxu0 0.0
    %1191 = vmatprep.mubr.f32.mxu0 0.0
    %1192 = vmatmul.mubr.f32.gmra.mxu0 %v1119
    %v1193 = vpop.f32.mrf.mxu0
    %v1194 = vadd.f32 0.0, %v1193
    %v1195 = vpop.f32.mrf.mxu0
    %v1196 = vadd.f32 0.0, %v1195
    %1197 = vmatprep.mubr.f32.mxu0 0.0
    %1198 = vmatmul.mubr.f32.gmra.mxu0 %v1121
    %v1199 = vpop.f32.mrf.mxu0
    %v1200 = vadd.f32 0.0, %v1199
    %v1201 = vpop.f32.mrf.mxu0
    %v1202 = vadd.f32 0.0, %v1201
    %1203 = vmatprep.mubr.f32.mxu0 0.0
    %1204 = vmatmul.mubr.f32.gmra.mxu0 %v1123
    %v1205 = vpop.f32.mrf.mxu0
    %v1206 = vadd.f32 0.0, %v1205
    %v1207 = vpop.f32.mrf.mxu0
    %v1208 = vadd.f32 0.0, %v1207
    %1209 = vmatprep.mubr.f32.mxu0 0.0
    %1210 = vmatmul.mubr.f32.gmra.mxu0 %v1125
    %v1211 = vpop.f32.mrf.mxu0
    %v1212 = vadd.f32 0.0, %v1211
    %v1213 = vpop.f32.mrf.mxu0
    %v1214 = vadd.f32 0.0, %v1213
    %1215 = vdwg.mxu0
    %v1216 = vadd.f32 %v976, %v1088
    %v1217 = vadd.f32 %v977, %v1090
    %v1218 = vadd.f32 %v978, %v1094
    %v1219 = vadd.f32 %v979, %v1096
    %v1220 = vadd.f32 %v980, %v1100
    %v1221 = vadd.f32 %v981, %v1102
    %v1222 = vadd.f32 %v982, %v1106
    %v1223 = vadd.f32 %v983, %v1108
    %v1224 = vadd.f32 %v984, %v1194
    %v1225 = vadd.f32 %v985, %v1196
    %v1226 = vadd.f32 %v986, %v1200
    %v1227 = vadd.f32 %v987, %v1202
    %v1228 = vadd.f32 %v988, %v1206
    %v1229 = vadd.f32 %v989, %v1208
    %v1230 = vadd.f32 %v990, %v1212
    %v1231 = vadd.f32 %v991, %v1214
    %s1232 = scalar_lea.vmem %s1, 400
    %v1233 = vld [vmem:[%s1232] sm:$0xff]
    %v1234 = vld [vmem:[%s1232 + $0x8] sm:$0xff]
    %v1235 = vld [vmem:[%s1232 + $0x10] sm:$0xff]
    %v1236 = vld [vmem:[%s1232 + $0x18] sm:$0xff]
    %v1237 = vld [vmem:[%s1232 + $0x20] sm:$0xff]
    %v1238 = vld [vmem:[%s1232 + $0x28] sm:$0xff]
    %v1239 = vld [vmem:[%s1232 + $0x30] sm:$0xff]
    %v1240 = vld [vmem:[%s1232 + $0x38] sm:$0xff]
    %v1241 = vld [vmem:[%s1232 + $0x40] sm:$0xff]
    %v1242 = vld [vmem:[%s1232 + $0x48] sm:$0xff]
    %vm1243 = vcmask 1042432
    %v1244 = vrot.slane %v63, 5
    %v1245 = vrot.slane %v64, 5
    %v1246 = vsel %vm1243, %v1244, %v1245
    %v1247 = vrot.slane %v65, 5
    %v1248 = vsel %vm1243, %v1245, %v1247
    %v1249 = vrot.slane %v66, 5
    %v1250 = vsel %vm1243, %v1247, %v1249
    %v1251 = vrot.slane %v67, 5
    %v1252 = vsel %vm1243, %v1249, %v1251
    %v1253 = vsel %vm109, %v1246, 0
    %v1255 = vsel %vm109, %v1248, 0
    %v1257 = vsel %vm109, %v1250, 0
    %v1259 = vsel %vm109, %v1252, 0
    %1261 = vmatprep.subr.mxu0 0.0
    %1262 = vmatpush1.msra.mxu0 0.0
    %1263 = vmatprep.subr.mxu0 0.0
    %1264 = vmatpush1.msra.mxu0 0.0
    %1265 = vmatprep.subr.mxu0 0.0
    %1266 = vmatpush1.msra.mxu0 0.0
    %1267 = vmatprep.subr.mxu0 0.0
    %1268 = vmatpush1.msra.mxu0 0.0
    %1269 = vmatprep.subr.mxu0 0.0
    %1270 = vmatpush1.msra.mxu0 0.0
    %1271 = vmatprep.subr.mxu0 0.0
    %1272 = vmatpush1.msra.mxu0 0.0
    %1273 = vmatprep.subr.mxu0 0.0
    %1274 = vmatpush1.msra.mxu0 0.0
    %1275 = vmatprep.subr.mxu0 0.0
    %1276 = vmatpush1.msra.mxu0 0.0
    %1277 = vmatprep.subr.mxu0 0.0
    %1278 = vmatpush1.msra.mxu0 0.0
    %1279 = vmatprep.subr.mxu0 0.0
    %1280 = vmatpush1.msra.mxu0 0.0
    %1281 = vmatprep.subr.mxu0 0.0
    %1282 = vmatpush1.msra.mxu0 0.0
    %1283 = vmatprep.subr.mxu0 %v1242
    %1284 = vmatpush1.msra.mxu0 %v1241
    %1285 = vmatprep.subr.mxu0 %v1240
    %1286 = vmatpush1.msra.mxu0 %v1239
    %1287 = vmatprep.subr.mxu0 %v1238
    %1288 = vmatpush1.msra.mxu0 %v1237
    %1289 = vmatprep.subr.mxu0 %v1236
    %1290 = vmatpush1.msra.mxu0 %v1235
    %1291 = vmatprep.subr.mxu0 %v1234
    %1292 = vmatpush1.msra.mxu0 %v1233
    %1293 = vmatprep.subr.mxu0 0.0
    %1294 = vmatpush2.msra.mxu0 0.0
    %1295 = vmatprep.subr.mxu0 0.0
    %1296 = vmatpush2.msra.mxu0 0.0
    %1297 = vmatprep.subr.mxu0 0.0
    %1298 = vmatpush2.msra.mxu0 0.0
    %1299 = vmatprep.subr.mxu0 0.0
    %1300 = vmatpush2.msra.mxu0 0.0
    %1301 = vmatprep.subr.mxu0 0.0
    %1302 = vmatpush2.msra.mxu0 0.0
    %1303 = vmatprep.subr.mxu0 0.0
    %1304 = vmatpush2.msra.mxu0 0.0
    %1305 = vmatprep.subr.mxu0 0.0
    %1306 = vmatpush2.msra.mxu0 0.0
    %1307 = vmatprep.subr.mxu0 0.0
    %1308 = vmatpush2.msra.mxu0 0.0
    %1309 = vmatprep.subr.mxu0 0.0
    %1310 = vmatpush2.msra.mxu0 0.0
    %1311 = vmatprep.subr.mxu0 0.0
    %1312 = vmatpush2.msra.mxu0 0.0
    %1313 = vmatprep.subr.mxu0 0.0
    %1314 = vmatpush2.msra.mxu0 0.0
    %1315 = vmatprep.subr.mxu0 0.0
    %1316 = vmatpush2.msra.mxu0 0.0
    %1317 = vmatprep.subr.mxu0 0.0
    %1318 = vmatpush2.msra.mxu0 0.0
    %1319 = vmatprep.subr.mxu0 0.0
    %1320 = vmatpush2.msra.mxu0 0.0
    %1321 = vmatprep.subr.mxu0 0.0
    %1322 = vmatpush2.msra.mxu0 0.0
    %1323 = vmatprep.subr.mxu0 0.0
    %1324 = vmatpush2.msra.mxu0 0.0
    %1325 = vmatprep.mubr.f32.mxu0 0.0
    %1326 = vmatmul.mubr.f32.gmra.mxu0 %v1253
    %v1327 = vpop.f32.mrf.mxu0
    %v1328 = vadd.f32 0.0, %v1327
    %v1329 = vpop.f32.mrf.mxu0
    %v1330 = vadd.f32 0.0, %v1329
    %1331 = vmatprep.mubr.f32.mxu0 0.0
    %1332 = vmatmul.mubr.f32.gmra.mxu0 %v1255
    %v1333 = vpop.f32.mrf.mxu0
    %v1334 = vadd.f32 0.0, %v1333
    %v1335 = vpop.f32.mrf.mxu0
    %v1336 = vadd.f32 0.0, %v1335
    %1337 = vmatprep.mubr.f32.mxu0 0.0
    %1338 = vmatmul.mubr.f32.gmra.mxu0 %v1257
    %v1339 = vpop.f32.mrf.mxu0
    %v1340 = vadd.f32 0.0, %v1339
    %v1341 = vpop.f32.mrf.mxu0
    %v1342 = vadd.f32 0.0, %v1341
    %1343 = vmatprep.mubr.f32.mxu0 0.0
    %1344 = vmatmul.mubr.f32.gmra.mxu0 %v1259
    %v1345 = vpop.f32.mrf.mxu0
    %v1346 = vadd.f32 0.0, %v1345
    %v1347 = vpop.f32.mrf.mxu0
    %v1348 = vadd.f32 0.0, %v1347
    %1349 = vdwg.mxu0
    %v1350 = vrot.slane %v68, 5
    %v1351 = vrot.slane %v69, 5
    %v1352 = vsel %vm1243, %v1350, %v1351
    %v1353 = vrot.slane %v70, 5
    %v1354 = vsel %vm1243, %v1351, %v1353
    %v1355 = vrot.slane %v71, 5
    %v1356 = vsel %vm1243, %v1353, %v1355
    %v1357 = vrot.slane %v72, 5
    %v1358 = vsel %vm1243, %v1355, %v1357
    %v1359 = vsel %vm109, %v1352, 0
    %v1361 = vsel %vm109, %v1354, 0
    %v1363 = vsel %vm109, %v1356, 0
    %v1365 = vsel %vm109, %v1358, 0
    %1367 = vmatprep.subr.mxu0 0.0
    %1368 = vmatpush1.msra.mxu0 0.0
    %1369 = vmatprep.subr.mxu0 0.0
    %1370 = vmatpush1.msra.mxu0 0.0
    %1371 = vmatprep.subr.mxu0 0.0
    %1372 = vmatpush1.msra.mxu0 0.0
    %1373 = vmatprep.subr.mxu0 0.0
    %1374 = vmatpush1.msra.mxu0 0.0
    %1375 = vmatprep.subr.mxu0 0.0
    %1376 = vmatpush1.msra.mxu0 0.0
    %1377 = vmatprep.subr.mxu0 0.0
    %1378 = vmatpush1.msra.mxu0 0.0
    %1379 = vmatprep.subr.mxu0 0.0
    %1380 = vmatpush1.msra.mxu0 0.0
    %1381 = vmatprep.subr.mxu0 0.0
    %1382 = vmatpush1.msra.mxu0 0.0
    %1383 = vmatprep.subr.mxu0 0.0
    %1384 = vmatpush1.msra.mxu0 0.0
    %1385 = vmatprep.subr.mxu0 0.0
    %1386 = vmatpush1.msra.mxu0 0.0
    %1387 = vmatprep.subr.mxu0 0.0
    %1388 = vmatpush1.msra.mxu0 0.0
    %1389 = vmatprep.subr.mxu0 %v1242
    %1390 = vmatpush1.msra.mxu0 %v1241
    %1391 = vmatprep.subr.mxu0 %v1240
    %1392 = vmatpush1.msra.mxu0 %v1239
    %1393 = vmatprep.subr.mxu0 %v1238
    %1394 = vmatpush1.msra.mxu0 %v1237
    %1395 = vmatprep.subr.mxu0 %v1236
    %1396 = vmatpush1.msra.mxu0 %v1235
    %1397 = vmatprep.subr.mxu0 %v1234
    %1398 = vmatpush1.msra.mxu0 %v1233
    %1399 = vmatprep.subr.mxu0 0.0
    %1400 = vmatpush2.msra.mxu0 0.0
    %1401 = vmatprep.subr.mxu0 0.0
    %1402 = vmatpush2.msra.mxu0 0.0
    %1403 = vmatprep.subr.mxu0 0.0
    %1404 = vmatpush2.msra.mxu0 0.0
    %1405 = vmatprep.subr.mxu0 0.0
    %1406 = vmatpush2.msra.mxu0 0.0
    %1407 = vmatprep.subr.mxu0 0.0
    %1408 = vmatpush2.msra.mxu0 0.0
    %1409 = vmatprep.subr.mxu0 0.0
    %1410 = vmatpush2.msra.mxu0 0.0
    %1411 = vmatprep.subr.mxu0 0.0
    %1412 = vmatpush2.msra.mxu0 0.0
    %1413 = vmatprep.subr.mxu0 0.0
    %1414 = vmatpush2.msra.mxu0 0.0
    %1415 = vmatprep.subr.mxu0 0.0
    %1416 = vmatpush2.msra.mxu0 0.0
    %1417 = vmatprep.subr.mxu0 0.0
    %1418 = vmatpush2.msra.mxu0 0.0
    %1419 = vmatprep.subr.mxu0 0.0
    %1420 = vmatpush2.msra.mxu0 0.0
    %1421 = vmatprep.subr.mxu0 0.0
    %1422 = vmatpush2.msra.mxu0 0.0
    %1423 = vmatprep.subr.mxu0 0.0
    %1424 = vmatpush2.msra.mxu0 0.0
    %1425 = vmatprep.subr.mxu0 0.0
    %1426 = vmatpush2.msra.mxu0 0.0
    %1427 = vmatprep.subr.mxu0 0.0
    %1428 = vmatpush2.msra.mxu0 0.0
    %1429 = vmatprep.subr.mxu0 0.0
    %1430 = vmatpush2.msra.mxu0 0.0
    %1431 = vmatprep.mubr.f32.mxu0 0.0
    %1432 = vmatmul.mubr.f32.gmra.mxu0 %v1359
    %v1433 = vpop.f32.mrf.mxu0
    %v1434 = vadd.f32 0.0, %v1433
    %v1435 = vpop.f32.mrf.mxu0
    %v1436 = vadd.f32 0.0, %v1435
    %1437 = vmatprep.mubr.f32.mxu0 0.0
    %1438 = vmatmul.mubr.f32.gmra.mxu0 %v1361
    %v1439 = vpop.f32.mrf.mxu0
    %v1440 = vadd.f32 0.0, %v1439
    %v1441 = vpop.f32.mrf.mxu0
    %v1442 = vadd.f32 0.0, %v1441
    %1443 = vmatprep.mubr.f32.mxu0 0.0
    %1444 = vmatmul.mubr.f32.gmra.mxu0 %v1363
    %v1445 = vpop.f32.mrf.mxu0
    %v1446 = vadd.f32 0.0, %v1445
    %v1447 = vpop.f32.mrf.mxu0
    %v1448 = vadd.f32 0.0, %v1447
    %1449 = vmatprep.mubr.f32.mxu0 0.0
    %1450 = vmatmul.mubr.f32.gmra.mxu0 %v1365
    %v1451 = vpop.f32.mrf.mxu0
    %v1452 = vadd.f32 0.0, %v1451
    %v1453 = vpop.f32.mrf.mxu0
    %v1454 = vadd.f32 0.0, %v1453
    %1455 = vdwg.mxu0
    %v1456 = vadd.f32 %v1216, %v1328
    %v1457 = vadd.f32 %v1217, %v1330
    %v1458 = vadd.f32 %v1218, %v1334
    %v1459 = vadd.f32 %v1219, %v1336
    %v1460 = vadd.f32 %v1220, %v1340
    %v1461 = vadd.f32 %v1221, %v1342
    %v1462 = vadd.f32 %v1222, %v1346
    %v1463 = vadd.f32 %v1223, %v1348
    %v1464 = vadd.f32 %v1224, %v1434
    %v1465 = vadd.f32 %v1225, %v1436
    %v1466 = vadd.f32 %v1226, %v1440
    %v1467 = vadd.f32 %v1227, %v1442
    %v1468 = vadd.f32 %v1228, %v1446
    %v1469 = vadd.f32 %v1229, %v1448
    %v1470 = vadd.f32 %v1230, %v1452
    %v1471 = vadd.f32 %v1231, %v1454
    %s1472 = scalar_lea.vmem %s1, 480
    %v1473 = vld [vmem:[%s1472] sm:$0xff]
    %v1474 = vld [vmem:[%s1472 + $0x8] sm:$0xff]
    %v1475 = vld [vmem:[%s1472 + $0x10] sm:$0xff]
    %v1476 = vld [vmem:[%s1472 + $0x18] sm:$0xff]
    %v1477 = vld [vmem:[%s1472 + $0x20] sm:$0xff]
    %v1478 = vld [vmem:[%s1472 + $0x28] sm:$0xff]
    %v1479 = vld [vmem:[%s1472 + $0x30] sm:$0xff]
    %v1480 = vld [vmem:[%s1472 + $0x38] sm:$0xff]
    %v1481 = vld [vmem:[%s1472 + $0x40] sm:$0xff]
    %v1482 = vld [vmem:[%s1472 + $0x48] sm:$0xff]
    %vm1483 = vcmask 1041408
    %v1484 = vrot.slane %v63, 6
    %v1485 = vrot.slane %v64, 6
    %v1486 = vsel %vm1483, %v1484, %v1485
    %v1487 = vrot.slane %v65, 6
    %v1488 = vsel %vm1483, %v1485, %v1487
    %v1489 = vrot.slane %v66, 6
    %v1490 = vsel %vm1483, %v1487, %v1489
    %v1491 = vrot.slane %v67, 6
    %v1492 = vsel %vm1483, %v1489, %v1491
    %v1493 = vsel %vm109, %v1486, 0
    %v1495 = vsel %vm109, %v1488, 0
    %v1497 = vsel %vm109, %v1490, 0
    %v1499 = vsel %vm109, %v1492, 0
    %1501 = vmatprep.subr.mxu0 0.0
    %1502 = vmatpush1.msra.mxu0 0.0
    %1503 = vmatprep.subr.mxu0 0.0
    %1504 = vmatpush1.msra.mxu0 0.0
    %1505 = vmatprep.subr.mxu0 0.0
    %1506 = vmatpush1.msra.mxu0 0.0
    %1507 = vmatprep.subr.mxu0 0.0
    %1508 = vmatpush1.msra.mxu0 0.0
    %1509 = vmatprep.subr.mxu0 0.0
    %1510 = vmatpush1.msra.mxu0 0.0
    %1511 = vmatprep.subr.mxu0 0.0
    %1512 = vmatpush1.msra.mxu0 0.0
    %1513 = vmatprep.subr.mxu0 0.0
    %1514 = vmatpush1.msra.mxu0 0.0
    %1515 = vmatprep.subr.mxu0 0.0
    %1516 = vmatpush1.msra.mxu0 0.0
    %1517 = vmatprep.subr.mxu0 0.0
    %1518 = vmatpush1.msra.mxu0 0.0
    %1519 = vmatprep.subr.mxu0 0.0
    %1520 = vmatpush1.msra.mxu0 0.0
    %1521 = vmatprep.subr.mxu0 0.0
    %1522 = vmatpush1.msra.mxu0 0.0
    %1523 = vmatprep.subr.mxu0 %v1482
    %1524 = vmatpush1.msra.mxu0 %v1481
    %1525 = vmatprep.subr.mxu0 %v1480
    %1526 = vmatpush1.msra.mxu0 %v1479
    %1527 = vmatprep.subr.mxu0 %v1478
    %1528 = vmatpush1.msra.mxu0 %v1477
    %1529 = vmatprep.subr.mxu0 %v1476
    %1530 = vmatpush1.msra.mxu0 %v1475
    %1531 = vmatprep.subr.mxu0 %v1474
    %1532 = vmatpush1.msra.mxu0 %v1473
    %1533 = vmatprep.subr.mxu0 0.0
    %1534 = vmatpush2.msra.mxu0 0.0
    %1535 = vmatprep.subr.mxu0 0.0
    %1536 = vmatpush2.msra.mxu0 0.0
    %1537 = vmatprep.subr.mxu0 0.0
    %1538 = vmatpush2.msra.mxu0 0.0
    %1539 = vmatprep.subr.mxu0 0.0
    %1540 = vmatpush2.msra.mxu0 0.0
    %1541 = vmatprep.subr.mxu0 0.0
    %1542 = vmatpush2.msra.mxu0 0.0
    %1543 = vmatprep.subr.mxu0 0.0
    %1544 = vmatpush2.msra.mxu0 0.0
    %1545 = vmatprep.subr.mxu0 0.0
    %1546 = vmatpush2.msra.mxu0 0.0
    %1547 = vmatprep.subr.mxu0 0.0
    %1548 = vmatpush2.msra.mxu0 0.0
    %1549 = vmatprep.subr.mxu0 0.0
    %1550 = vmatpush2.msra.mxu0 0.0
    %1551 = vmatprep.subr.mxu0 0.0
    %1552 = vmatpush2.msra.mxu0 0.0
    %1553 = vmatprep.subr.mxu0 0.0
    %1554 = vmatpush2.msra.mxu0 0.0
    %1555 = vmatprep.subr.mxu0 0.0
    %1556 = vmatpush2.msra.mxu0 0.0
    %1557 = vmatprep.subr.mxu0 0.0
    %1558 = vmatpush2.msra.mxu0 0.0
    %1559 = vmatprep.subr.mxu0 0.0
    %1560 = vmatpush2.msra.mxu0 0.0
    %1561 = vmatprep.subr.mxu0 0.0
    %1562 = vmatpush2.msra.mxu0 0.0
    %1563 = vmatprep.subr.mxu0 0.0
    %1564 = vmatpush2.msra.mxu0 0.0
    %1565 = vmatprep.mubr.f32.mxu0 0.0
    %1566 = vmatmul.mubr.f32.gmra.mxu0 %v1493
    %v1567 = vpop.f32.mrf.mxu0
    %v1568 = vadd.f32 0.0, %v1567
    %v1569 = vpop.f32.mrf.mxu0
    %v1570 = vadd.f32 0.0, %v1569
    %1571 = vmatprep.mubr.f32.mxu0 0.0
    %1572 = vmatmul.mubr.f32.gmra.mxu0 %v1495
    %v1573 = vpop.f32.mrf.mxu0
    %v1574 = vadd.f32 0.0, %v1573
    %v1575 = vpop.f32.mrf.mxu0
    %v1576 = vadd.f32 0.0, %v1575
    %1577 = vmatprep.mubr.f32.mxu0 0.0
    %1578 = vmatmul.mubr.f32.gmra.mxu0 %v1497
    %v1579 = vpop.f32.mrf.mxu0
    %v1580 = vadd.f32 0.0, %v1579
    %v1581 = vpop.f32.mrf.mxu0
    %v1582 = vadd.f32 0.0, %v1581
    %1583 = vmatprep.mubr.f32.mxu0 0.0
    %1584 = vmatmul.mubr.f32.gmra.mxu0 %v1499
    %v1585 = vpop.f32.mrf.mxu0
    %v1586 = vadd.f32 0.0, %v1585
    %v1587 = vpop.f32.mrf.mxu0
    %v1588 = vadd.f32 0.0, %v1587
    %1589 = vdwg.mxu0
    %v1590 = vrot.slane %v68, 6
    %v1591 = vrot.slane %v69, 6
    %v1592 = vsel %vm1483, %v1590, %v1591
    %v1593 = vrot.slane %v70, 6
    %v1594 = vsel %vm1483, %v1591, %v1593
    %v1595 = vrot.slane %v71, 6
    %v1596 = vsel %vm1483, %v1593, %v1595
    %v1597 = vrot.slane %v72, 6
    %v1598 = vsel %vm1483, %v1595, %v1597
    %v1599 = vsel %vm109, %v1592, 0
    %v1601 = vsel %vm109, %v1594, 0
    %v1603 = vsel %vm109, %v1596, 0
    %v1605 = vsel %vm109, %v1598, 0
    %1607 = vmatprep.subr.mxu0 0.0
    %1608 = vmatpush1.msra.mxu0 0.0
    %1609 = vmatprep.subr.mxu0 0.0
    %1610 = vmatpush1.msra.mxu0 0.0
    %1611 = vmatprep.subr.mxu0 0.0
    %1612 = vmatpush1.msra.mxu0 0.0
    %1613 = vmatprep.subr.mxu0 0.0
    %1614 = vmatpush1.msra.mxu0 0.0
    %1615 = vmatprep.subr.mxu0 0.0
    %1616 = vmatpush1.msra.mxu0 0.0
    %1617 = vmatprep.subr.mxu0 0.0
    %1618 = vmatpush1.msra.mxu0 0.0
    %1619 = vmatprep.subr.mxu0 0.0
    %1620 = vmatpush1.msra.mxu0 0.0
    %1621 = vmatprep.subr.mxu0 0.0
    %1622 = vmatpush1.msra.mxu0 0.0
    %1623 = vmatprep.subr.mxu0 0.0
    %1624 = vmatpush1.msra.mxu0 0.0
    %1625 = vmatprep.subr.mxu0 0.0
    %1626 = vmatpush1.msra.mxu0 0.0
    %1627 = vmatprep.subr.mxu0 0.0
    %1628 = vmatpush1.msra.mxu0 0.0
    %1629 = vmatprep.subr.mxu0 %v1482
    %1630 = vmatpush1.msra.mxu0 %v1481
    %1631 = vmatprep.subr.mxu0 %v1480
    %1632 = vmatpush1.msra.mxu0 %v1479
    %1633 = vmatprep.subr.mxu0 %v1478
    %1634 = vmatpush1.msra.mxu0 %v1477
    %1635 = vmatprep.subr.mxu0 %v1476
    %1636 = vmatpush1.msra.mxu0 %v1475
    %1637 = vmatprep.subr.mxu0 %v1474
    %1638 = vmatpush1.msra.mxu0 %v1473
    %1639 = vmatprep.subr.mxu0 0.0
    %1640 = vmatpush2.msra.mxu0 0.0
    %1641 = vmatprep.subr.mxu0 0.0
    %1642 = vmatpush2.msra.mxu0 0.0
    %1643 = vmatprep.subr.mxu0 0.0
    %1644 = vmatpush2.msra.mxu0 0.0
    %1645 = vmatprep.subr.mxu0 0.0
    %1646 = vmatpush2.msra.mxu0 0.0
    %1647 = vmatprep.subr.mxu0 0.0
    %1648 = vmatpush2.msra.mxu0 0.0
    %1649 = vmatprep.subr.mxu0 0.0
    %1650 = vmatpush2.msra.mxu0 0.0
    %1651 = vmatprep.subr.mxu0 0.0
    %1652 = vmatpush2.msra.mxu0 0.0
    %1653 = vmatprep.subr.mxu0 0.0
    %1654 = vmatpush2.msra.mxu0 0.0
    %1655 = vmatprep.subr.mxu0 0.0
    %1656 = vmatpush2.msra.mxu0 0.0
    %1657 = vmatprep.subr.mxu0 0.0
    %1658 = vmatpush2.msra.mxu0 0.0
    %1659 = vmatprep.subr.mxu0 0.0
    %1660 = vmatpush2.msra.mxu0 0.0
    %1661 = vmatprep.subr.mxu0 0.0
    %1662 = vmatpush2.msra.mxu0 0.0
    %1663 = vmatprep.subr.mxu0 0.0
    %1664 = vmatpush2.msra.mxu0 0.0
    %1665 = vmatprep.subr.mxu0 0.0
    %1666 = vmatpush2.msra.mxu0 0.0
    %1667 = vmatprep.subr.mxu0 0.0
    %1668 = vmatpush2.msra.mxu0 0.0
    %1669 = vmatprep.subr.mxu0 0.0
    %1670 = vmatpush2.msra.mxu0 0.0
    %1671 = vmatprep.mubr.f32.mxu0 0.0
    %1672 = vmatmul.mubr.f32.gmra.mxu0 %v1599
    %v1673 = vpop.f32.mrf.mxu0
    %v1674 = vadd.f32 0.0, %v1673
    %v1675 = vpop.f32.mrf.mxu0
    %v1676 = vadd.f32 0.0, %v1675
    %1677 = vmatprep.mubr.f32.mxu0 0.0
    %1678 = vmatmul.mubr.f32.gmra.mxu0 %v1601
    %v1679 = vpop.f32.mrf.mxu0
    %v1680 = vadd.f32 0.0, %v1679
    %v1681 = vpop.f32.mrf.mxu0
    %v1682 = vadd.f32 0.0, %v1681
    %1683 = vmatprep.mubr.f32.mxu0 0.0
    %1684 = vmatmul.mubr.f32.gmra.mxu0 %v1603
    %v1685 = vpop.f32.mrf.mxu0
    %v1686 = vadd.f32 0.0, %v1685
    %v1687 = vpop.f32.mrf.mxu0
    %v1688 = vadd.f32 0.0, %v1687
    %1689 = vmatprep.mubr.f32.mxu0 0.0
    %1690 = vmatmul.mubr.f32.gmra.mxu0 %v1605
    %v1691 = vpop.f32.mrf.mxu0
    %v1692 = vadd.f32 0.0, %v1691
    %v1693 = vpop.f32.mrf.mxu0
    %v1694 = vadd.f32 0.0, %v1693
    %1695 = vdwg.mxu0
    %v1696 = vadd.f32 %v1456, %v1568
    %v1697 = vadd.f32 %v1457, %v1570
    %v1698 = vadd.f32 %v1458, %v1574
    %v1699 = vadd.f32 %v1459, %v1576
    %v1700 = vadd.f32 %v1460, %v1580
    %v1701 = vadd.f32 %v1461, %v1582
    %v1702 = vadd.f32 %v1462, %v1586
    %v1703 = vadd.f32 %v1463, %v1588
    %v1704 = vadd.f32 %v1464, %v1674
    %v1705 = vadd.f32 %v1465, %v1676
    %v1706 = vadd.f32 %v1466, %v1680
    %v1707 = vadd.f32 %v1467, %v1682
    %v1708 = vadd.f32 %v1468, %v1686
    %v1709 = vadd.f32 %v1469, %v1688
    %v1710 = vadd.f32 %v1470, %v1692
    %v1711 = vadd.f32 %v1471, %v1694
    %s1712 = scalar_lea.vmem %s1, 560
    %v1713 = vld [vmem:[%s1712] sm:$0xff]
    %v1714 = vld [vmem:[%s1712 + $0x8] sm:$0xff]
    %v1715 = vld [vmem:[%s1712 + $0x10] sm:$0xff]
    %v1716 = vld [vmem:[%s1712 + $0x18] sm:$0xff]
    %v1717 = vld [vmem:[%s1712 + $0x20] sm:$0xff]
    %v1718 = vld [vmem:[%s1712 + $0x28] sm:$0xff]
    %v1719 = vld [vmem:[%s1712 + $0x30] sm:$0xff]
    %v1720 = vld [vmem:[%s1712 + $0x38] sm:$0xff]
    %v1721 = vld [vmem:[%s1712 + $0x40] sm:$0xff]
    %v1722 = vld [vmem:[%s1712 + $0x48] sm:$0xff]
    %vm1723 = vcmask 1040384
    %v1724 = vrot.slane %v63, 7
    %v1725 = vrot.slane %v64, 7
    %v1726 = vsel %vm1723, %v1724, %v1725
    %v1727 = vrot.slane %v65, 7
    %v1728 = vsel %vm1723, %v1725, %v1727
    %v1729 = vrot.slane %v66, 7
    %v1730 = vsel %vm1723, %v1727, %v1729
    %v1731 = vrot.slane %v67, 7
    %v1732 = vsel %vm1723, %v1729, %v1731
    %v1733 = vsel %vm109, %v1726, 0
    %v1735 = vsel %vm109, %v1728, 0
    %v1737 = vsel %vm109, %v1730, 0
    %v1739 = vsel %vm109, %v1732, 0
    %1741 = vmatprep.subr.mxu0 0.0
    %1742 = vmatpush1.msra.mxu0 0.0
    %1743 = vmatprep.subr.mxu0 0.0
    %1744 = vmatpush1.msra.mxu0 0.0
    %1745 = vmatprep.subr.mxu0 0.0
    %1746 = vmatpush1.msra.mxu0 0.0
    %1747 = vmatprep.subr.mxu0 0.0
    %1748 = vmatpush1.msra.mxu0 0.0
    %1749 = vmatprep.subr.mxu0 0.0
    %1750 = vmatpush1.msra.mxu0 0.0
    %1751 = vmatprep.subr.mxu0 0.0
    %1752 = vmatpush1.msra.mxu0 0.0
    %1753 = vmatprep.subr.mxu0 0.0
    %1754 = vmatpush1.msra.mxu0 0.0
    %1755 = vmatprep.subr.mxu0 0.0
    %1756 = vmatpush1.msra.mxu0 0.0
    %1757 = vmatprep.subr.mxu0 0.0
    %1758 = vmatpush1.msra.mxu0 0.0
    %1759 = vmatprep.subr.mxu0 0.0
    %1760 = vmatpush1.msra.mxu0 0.0
    %1761 = vmatprep.subr.mxu0 0.0
    %1762 = vmatpush1.msra.mxu0 0.0
    %1763 = vmatprep.subr.mxu0 %v1722
    %1764 = vmatpush1.msra.mxu0 %v1721
    %1765 = vmatprep.subr.mxu0 %v1720
    %1766 = vmatpush1.msra.mxu0 %v1719
    %1767 = vmatprep.subr.mxu0 %v1718
    %1768 = vmatpush1.msra.mxu0 %v1717
    %1769 = vmatprep.subr.mxu0 %v1716
    %1770 = vmatpush1.msra.mxu0 %v1715
    %1771 = vmatprep.subr.mxu0 %v1714
    %1772 = vmatpush1.msra.mxu0 %v1713
    %1773 = vmatprep.subr.mxu0 0.0
    %1774 = vmatpush2.msra.mxu0 0.0
    %1775 = vmatprep.subr.mxu0 0.0
    %1776 = vmatpush2.msra.mxu0 0.0
    %1777 = vmatprep.subr.mxu0 0.0
    %1778 = vmatpush2.msra.mxu0 0.0
    %1779 = vmatprep.subr.mxu0 0.0
    %1780 = vmatpush2.msra.mxu0 0.0
    %1781 = vmatprep.subr.mxu0 0.0
    %1782 = vmatpush2.msra.mxu0 0.0
    %1783 = vmatprep.subr.mxu0 0.0
    %1784 = vmatpush2.msra.mxu0 0.0
    %1785 = vmatprep.subr.mxu0 0.0
    %1786 = vmatpush2.msra.mxu0 0.0
    %1787 = vmatprep.subr.mxu0 0.0
    %1788 = vmatpush2.msra.mxu0 0.0
    %1789 = vmatprep.subr.mxu0 0.0
    %1790 = vmatpush2.msra.mxu0 0.0
    %1791 = vmatprep.subr.mxu0 0.0
    %1792 = vmatpush2.msra.mxu0 0.0
    %1793 = vmatprep.subr.mxu0 0.0
    %1794 = vmatpush2.msra.mxu0 0.0
    %1795 = vmatprep.subr.mxu0 0.0
    %1796 = vmatpush2.msra.mxu0 0.0
    %1797 = vmatprep.subr.mxu0 0.0
    %1798 = vmatpush2.msra.mxu0 0.0
    %1799 = vmatprep.subr.mxu0 0.0
    %1800 = vmatpush2.msra.mxu0 0.0
    %1801 = vmatprep.subr.mxu0 0.0
    %1802 = vmatpush2.msra.mxu0 0.0
    %1803 = vmatprep.subr.mxu0 0.0
    %1804 = vmatpush2.msra.mxu0 0.0
    %1805 = vmatprep.mubr.f32.mxu0 0.0
    %1806 = vmatmul.mubr.f32.gmra.mxu0 %v1733
    %v1807 = vpop.f32.mrf.mxu0
    %v1808 = vadd.f32 0.0, %v1807
    %v1809 = vpop.f32.mrf.mxu0
    %v1810 = vadd.f32 0.0, %v1809
    %1811 = vmatprep.mubr.f32.mxu0 0.0
    %1812 = vmatmul.mubr.f32.gmra.mxu0 %v1735
    %v1813 = vpop.f32.mrf.mxu0
    %v1814 = vadd.f32 0.0, %v1813
    %v1815 = vpop.f32.mrf.mxu0
    %v1816 = vadd.f32 0.0, %v1815
    %1817 = vmatprep.mubr.f32.mxu0 0.0
    %1818 = vmatmul.mubr.f32.gmra.mxu0 %v1737
    %v1819 = vpop.f32.mrf.mxu0
    %v1820 = vadd.f32 0.0, %v1819
    %v1821 = vpop.f32.mrf.mxu0
    %v1822 = vadd.f32 0.0, %v1821
    %1823 = vmatprep.mubr.f32.mxu0 0.0
    %1824 = vmatmul.mubr.f32.gmra.mxu0 %v1739
    %v1825 = vpop.f32.mrf.mxu0
    %v1826 = vadd.f32 0.0, %v1825
    %v1827 = vpop.f32.mrf.mxu0
    %v1828 = vadd.f32 0.0, %v1827
    %1829 = vdwg.mxu0
    %v1830 = vrot.slane %v68, 7
    %v1831 = vrot.slane %v69, 7
    %v1832 = vsel %vm1723, %v1830, %v1831
    %v1833 = vrot.slane %v70, 7
    %v1834 = vsel %vm1723, %v1831, %v1833
    %v1835 = vrot.slane %v71, 7
    %v1836 = vsel %vm1723, %v1833, %v1835
    %v1837 = vrot.slane %v72, 7
    %v1838 = vsel %vm1723, %v1835, %v1837
    %v1839 = vsel %vm109, %v1832, 0
    %v1841 = vsel %vm109, %v1834, 0
    %v1843 = vsel %vm109, %v1836, 0
    %v1845 = vsel %vm109, %v1838, 0
    %1847 = vmatprep.subr.mxu0 0.0
    %1848 = vmatpush1.msra.mxu0 0.0
    %1849 = vmatprep.subr.mxu0 0.0
    %1850 = vmatpush1.msra.mxu0 0.0
    %1851 = vmatprep.subr.mxu0 0.0
    %1852 = vmatpush1.msra.mxu0 0.0
    %1853 = vmatprep.subr.mxu0 0.0
    %1854 = vmatpush1.msra.mxu0 0.0
    %1855 = vmatprep.subr.mxu0 0.0
    %1856 = vmatpush1.msra.mxu0 0.0
    %1857 = vmatprep.subr.mxu0 0.0
    %1858 = vmatpush1.msra.mxu0 0.0
    %1859 = vmatprep.subr.mxu0 0.0
    %1860 = vmatpush1.msra.mxu0 0.0
    %1861 = vmatprep.subr.mxu0 0.0
    %1862 = vmatpush1.msra.mxu0 0.0
    %1863 = vmatprep.subr.mxu0 0.0
    %1864 = vmatpush1.msra.mxu0 0.0
    %1865 = vmatprep.subr.mxu0 0.0
    %1866 = vmatpush1.msra.mxu0 0.0
    %1867 = vmatprep.subr.mxu0 0.0
    %1868 = vmatpush1.msra.mxu0 0.0
    %1869 = vmatprep.subr.mxu0 %v1722
    %1870 = vmatpush1.msra.mxu0 %v1721
    %1871 = vmatprep.subr.mxu0 %v1720
    %1872 = vmatpush1.msra.mxu0 %v1719
    %1873 = vmatprep.subr.mxu0 %v1718
    %1874 = vmatpush1.msra.mxu0 %v1717
    %1875 = vmatprep.subr.mxu0 %v1716
    %1876 = vmatpush1.msra.mxu0 %v1715
    %1877 = vmatprep.subr.mxu0 %v1714
    %1878 = vmatpush1.msra.mxu0 %v1713
    %1879 = vmatprep.subr.mxu0 0.0
    %1880 = vmatpush2.msra.mxu0 0.0
    %1881 = vmatprep.subr.mxu0 0.0
    %1882 = vmatpush2.msra.mxu0 0.0
    %1883 = vmatprep.subr.mxu0 0.0
    %1884 = vmatpush2.msra.mxu0 0.0
    %1885 = vmatprep.subr.mxu0 0.0
    %1886 = vmatpush2.msra.mxu0 0.0
    %1887 = vmatprep.subr.mxu0 0.0
    %1888 = vmatpush2.msra.mxu0 0.0
    %1889 = vmatprep.subr.mxu0 0.0
    %1890 = vmatpush2.msra.mxu0 0.0
    %1891 = vmatprep.subr.mxu0 0.0
    %1892 = vmatpush2.msra.mxu0 0.0
    %1893 = vmatprep.subr.mxu0 0.0
    %1894 = vmatpush2.msra.mxu0 0.0
    %1895 = vmatprep.subr.mxu0 0.0
    %1896 = vmatpush2.msra.mxu0 0.0
    %1897 = vmatprep.subr.mxu0 0.0
    %1898 = vmatpush2.msra.mxu0 0.0
    %1899 = vmatprep.subr.mxu0 0.0
    %1900 = vmatpush2.msra.mxu0 0.0
    %1901 = vmatprep.subr.mxu0 0.0
    %1902 = vmatpush2.msra.mxu0 0.0
    %1903 = vmatprep.subr.mxu0 0.0
    %1904 = vmatpush2.msra.mxu0 0.0
    %1905 = vmatprep.subr.mxu0 0.0
    %1906 = vmatpush2.msra.mxu0 0.0
    %1907 = vmatprep.subr.mxu0 0.0
    %1908 = vmatpush2.msra.mxu0 0.0
    %1909 = vmatprep.subr.mxu0 0.0
    %1910 = vmatpush2.msra.mxu0 0.0
    %1911 = vmatprep.mubr.f32.mxu0 0.0
    %1912 = vmatmul.mubr.f32.gmra.mxu0 %v1839
    %v1913 = vpop.f32.mrf.mxu0
    %v1914 = vadd.f32 0.0, %v1913
    %v1915 = vpop.f32.mrf.mxu0
    %v1916 = vadd.f32 0.0, %v1915
    %1917 = vmatprep.mubr.f32.mxu0 0.0
    %1918 = vmatmul.mubr.f32.gmra.mxu0 %v1841
    %v1919 = vpop.f32.mrf.mxu0
    %v1920 = vadd.f32 0.0, %v1919
    %v1921 = vpop.f32.mrf.mxu0
    %v1922 = vadd.f32 0.0, %v1921
    %1923 = vmatprep.mubr.f32.mxu0 0.0
    %1924 = vmatmul.mubr.f32.gmra.mxu0 %v1843
    %v1925 = vpop.f32.mrf.mxu0
    %v1926 = vadd.f32 0.0, %v1925
    %v1927 = vpop.f32.mrf.mxu0
    %v1928 = vadd.f32 0.0, %v1927
    %1929 = vmatprep.mubr.f32.mxu0 0.0
    %1930 = vmatmul.mubr.f32.gmra.mxu0 %v1845
    %v1931 = vpop.f32.mrf.mxu0
    %v1932 = vadd.f32 0.0, %v1931
    %v1933 = vpop.f32.mrf.mxu0
    %v1934 = vadd.f32 0.0, %v1933
    %1935 = vdwg.mxu0
    %v1936 = vadd.f32 %v1696, %v1808
    %v1937 = vadd.f32 %v1697, %v1810
    %v1938 = vadd.f32 %v1698, %v1814
    %v1939 = vadd.f32 %v1699, %v1816
    %v1940 = vadd.f32 %v1700, %v1820
    %v1941 = vadd.f32 %v1701, %v1822
    %v1942 = vadd.f32 %v1702, %v1826
    %v1943 = vadd.f32 %v1703, %v1828
    %v1944 = vadd.f32 %v1704, %v1914
    %v1945 = vadd.f32 %v1705, %v1916
    %v1946 = vadd.f32 %v1706, %v1920
    %v1947 = vadd.f32 %v1707, %v1922
    %v1948 = vadd.f32 %v1708, %v1926
    %v1949 = vadd.f32 %v1709, %v1928
    %v1950 = vadd.f32 %v1710, %v1932
    %v1951 = vadd.f32 %v1711, %v1934
    %s1952 = scalar_lea.vmem %s1, 640
    %v1953 = vld [vmem:[%s1952] sm:$0xff]
    %v1954 = vld [vmem:[%s1952 + $0x8] sm:$0xff]
    %v1955 = vld [vmem:[%s1952 + $0x10] sm:$0xff]
    %v1956 = vld [vmem:[%s1952 + $0x18] sm:$0xff]
    %v1957 = vld [vmem:[%s1952 + $0x20] sm:$0xff]
    %v1958 = vld [vmem:[%s1952 + $0x28] sm:$0xff]
    %v1959 = vld [vmem:[%s1952 + $0x30] sm:$0xff]
    %v1960 = vld [vmem:[%s1952 + $0x38] sm:$0xff]
    %v1961 = vld [vmem:[%s1952 + $0x40] sm:$0xff]
    %v1962 = vld [vmem:[%s1952 + $0x48] sm:$0xff]
    %v1963 = vsel %vm109, %v67, 0
    %1965 = vmatprep.subr.mxu0 0.0
    %1966 = vmatpush1.msra.mxu0 0.0
    %1967 = vmatprep.subr.mxu0 0.0
    %1968 = vmatpush1.msra.mxu0 0.0
    %1969 = vmatprep.subr.mxu0 0.0
    %1970 = vmatpush1.msra.mxu0 0.0
    %1971 = vmatprep.subr.mxu0 0.0
    %1972 = vmatpush1.msra.mxu0 0.0
    %1973 = vmatprep.subr.mxu0 0.0
    %1974 = vmatpush1.msra.mxu0 0.0
    %1975 = vmatprep.subr.mxu0 0.0
    %1976 = vmatpush1.msra.mxu0 0.0
    %1977 = vmatprep.subr.mxu0 0.0
    %1978 = vmatpush1.msra.mxu0 0.0
    %1979 = vmatprep.subr.mxu0 0.0
    %1980 = vmatpush1.msra.mxu0 0.0
    %1981 = vmatprep.subr.mxu0 0.0
    %1982 = vmatpush1.msra.mxu0 0.0
    %1983 = vmatprep.subr.mxu0 0.0
    %1984 = vmatpush1.msra.mxu0 0.0
    %1985 = vmatprep.subr.mxu0 0.0
    %1986 = vmatpush1.msra.mxu0 0.0
    %1987 = vmatprep.subr.mxu0 %v1962
    %1988 = vmatpush1.msra.mxu0 %v1961
    %1989 = vmatprep.subr.mxu0 %v1960
    %1990 = vmatpush1.msra.mxu0 %v1959
    %1991 = vmatprep.subr.mxu0 %v1958
    %1992 = vmatpush1.msra.mxu0 %v1957
    %1993 = vmatprep.subr.mxu0 %v1956
    %1994 = vmatpush1.msra.mxu0 %v1955
    %1995 = vmatprep.subr.mxu0 %v1954
    %1996 = vmatpush1.msra.mxu0 %v1953
    %1997 = vmatprep.subr.mxu0 0.0
    %1998 = vmatpush2.msra.mxu0 0.0
    %1999 = vmatprep.subr.mxu0 0.0
    %2000 = vmatpush2.msra.mxu0 0.0
    %2001 = vmatprep.subr.mxu0 0.0
    %2002 = vmatpush2.msra.mxu0 0.0
    %2003 = vmatprep.subr.mxu0 0.0
    %2004 = vmatpush2.msra.mxu0 0.0
    %2005 = vmatprep.subr.mxu0 0.0
    %2006 = vmatpush2.msra.mxu0 0.0
    %2007 = vmatprep.subr.mxu0 0.0
    %2008 = vmatpush2.msra.mxu0 0.0
    %2009 = vmatprep.subr.mxu0 0.0
    %2010 = vmatpush2.msra.mxu0 0.0
    %2011 = vmatprep.subr.mxu0 0.0
    %2012 = vmatpush2.msra.mxu0 0.0
    %2013 = vmatprep.subr.mxu0 0.0
    %2014 = vmatpush2.msra.mxu0 0.0
    %2015 = vmatprep.subr.mxu0 0.0
    %2016 = vmatpush2.msra.mxu0 0.0
    %2017 = vmatprep.subr.mxu0 0.0
    %2018 = vmatpush2.msra.mxu0 0.0
    %2019 = vmatprep.subr.mxu0 0.0
    %2020 = vmatpush2.msra.mxu0 0.0
    %2021 = vmatprep.subr.mxu0 0.0
    %2022 = vmatpush2.msra.mxu0 0.0
    %2023 = vmatprep.subr.mxu0 0.0
    %2024 = vmatpush2.msra.mxu0 0.0
    %2025 = vmatprep.subr.mxu0 0.0
    %2026 = vmatpush2.msra.mxu0 0.0
    %2027 = vmatprep.subr.mxu0 0.0
    %2028 = vmatpush2.msra.mxu0 0.0
    %2029 = vmatprep.mubr.f32.mxu0 0.0
    %2030 = vmatmul.mubr.f32.gmra.mxu0 %v320
    %v2031 = vpop.f32.mrf.mxu0
    %v2032 = vadd.f32 0.0, %v2031
    %v2033 = vpop.f32.mrf.mxu0
    %v2034 = vadd.f32 0.0, %v2033
    %2035 = vmatprep.mubr.f32.mxu0 0.0
    %2036 = vmatmul.mubr.f32.gmra.mxu0 %v322
    %v2037 = vpop.f32.mrf.mxu0
    %v2038 = vadd.f32 0.0, %v2037
    %v2039 = vpop.f32.mrf.mxu0
    %v2040 = vadd.f32 0.0, %v2039
    %2041 = vmatprep.mubr.f32.mxu0 0.0
    %2042 = vmatmul.mubr.f32.gmra.mxu0 %v324
    %v2043 = vpop.f32.mrf.mxu0
    %v2044 = vadd.f32 0.0, %v2043
    %v2045 = vpop.f32.mrf.mxu0
    %v2046 = vadd.f32 0.0, %v2045
    %2047 = vmatprep.mubr.f32.mxu0 0.0
    %2048 = vmatmul.mubr.f32.gmra.mxu0 %v1963
    %v2049 = vpop.f32.mrf.mxu0
    %v2050 = vadd.f32 0.0, %v2049
    %v2051 = vpop.f32.mrf.mxu0
    %v2052 = vadd.f32 0.0, %v2051
    %2053 = vdwg.mxu0
    %v2054 = vsel %vm109, %v72, 0
    %2056 = vmatprep.subr.mxu0 0.0
    %2057 = vmatpush1.msra.mxu0 0.0
    %2058 = vmatprep.subr.mxu0 0.0
    %2059 = vmatpush1.msra.mxu0 0.0
    %2060 = vmatprep.subr.mxu0 0.0
    %2061 = vmatpush1.msra.mxu0 0.0
    %2062 = vmatprep.subr.mxu0 0.0
    %2063 = vmatpush1.msra.mxu0 0.0
    %2064 = vmatprep.subr.mxu0 0.0
    %2065 = vmatpush1.msra.mxu0 0.0
    %2066 = vmatprep.subr.mxu0 0.0
    %2067 = vmatpush1.msra.mxu0 0.0
    %2068 = vmatprep.subr.mxu0 0.0
    %2069 = vmatpush1.msra.mxu0 0.0
    %2070 = vmatprep.subr.mxu0 0.0
    %2071 = vmatpush1.msra.mxu0 0.0
    %2072 = vmatprep.subr.mxu0 0.0
    %2073 = vmatpush1.msra.mxu0 0.0
    %2074 = vmatprep.subr.mxu0 0.0
    %2075 = vmatpush1.msra.mxu0 0.0
    %2076 = vmatprep.subr.mxu0 0.0
    %2077 = vmatpush1.msra.mxu0 0.0
    %2078 = vmatprep.subr.mxu0 %v1962
    %2079 = vmatpush1.msra.mxu0 %v1961
    %2080 = vmatprep.subr.mxu0 %v1960
    %2081 = vmatpush1.msra.mxu0 %v1959
    %2082 = vmatprep.subr.mxu0 %v1958
    %2083 = vmatpush1.msra.mxu0 %v1957
    %2084 = vmatprep.subr.mxu0 %v1956
    %2085 = vmatpush1.msra.mxu0 %v1955
    %2086 = vmatprep.subr.mxu0 %v1954
    %2087 = vmatpush1.msra.mxu0 %v1953
    %2088 = vmatprep.subr.mxu0 0.0
    %2089 = vmatpush2.msra.mxu0 0.0
    %2090 = vmatprep.subr.mxu0 0.0
    %2091 = vmatpush2.msra.mxu0 0.0
    %2092 = vmatprep.subr.mxu0 0.0
    %2093 = vmatpush2.msra.mxu0 0.0
    %2094 = vmatprep.subr.mxu0 0.0
    %2095 = vmatpush2.msra.mxu0 0.0
    %2096 = vmatprep.subr.mxu0 0.0
    %2097 = vmatpush2.msra.mxu0 0.0
    %2098 = vmatprep.subr.mxu0 0.0
    %2099 = vmatpush2.msra.mxu0 0.0
    %2100 = vmatprep.subr.mxu0 0.0
    %2101 = vmatpush2.msra.mxu0 0.0
    %2102 = vmatprep.subr.mxu0 0.0
    %2103 = vmatpush2.msra.mxu0 0.0
    %2104 = vmatprep.subr.mxu0 0.0
    %2105 = vmatpush2.msra.mxu0 0.0
    %2106 = vmatprep.subr.mxu0 0.0
    %2107 = vmatpush2.msra.mxu0 0.0
    %2108 = vmatprep.subr.mxu0 0.0
    %2109 = vmatpush2.msra.mxu0 0.0
    %2110 = vmatprep.subr.mxu0 0.0
    %2111 = vmatpush2.msra.mxu0 0.0
    %2112 = vmatprep.subr.mxu0 0.0
    %2113 = vmatpush2.msra.mxu0 0.0
    %2114 = vmatprep.subr.mxu0 0.0
    %2115 = vmatpush2.msra.mxu0 0.0
    %2116 = vmatprep.subr.mxu0 0.0
    %2117 = vmatpush2.msra.mxu0 0.0
    %2118 = vmatprep.subr.mxu0 0.0
    %2119 = vmatpush2.msra.mxu0 0.0
    %2120 = vmatprep.mubr.f32.mxu0 0.0
    %2121 = vmatmul.mubr.f32.gmra.mxu0 %v417
    %v2122 = vpop.f32.mrf.mxu0
    %v2123 = vadd.f32 0.0, %v2122
    %v2124 = vpop.f32.mrf.mxu0
    %v2125 = vadd.f32 0.0, %v2124
    %2126 = vmatprep.mubr.f32.mxu0 0.0
    %2127 = vmatmul.mubr.f32.gmra.mxu0 %v419
    %v2128 = vpop.f32.mrf.mxu0
    %v2129 = vadd.f32 0.0, %v2128
    %v2130 = vpop.f32.mrf.mxu0
    %v2131 = vadd.f32 0.0, %v2130
    %2132 = vmatprep.mubr.f32.mxu0 0.0
    %2133 = vmatmul.mubr.f32.gmra.mxu0 %v421
    %v2134 = vpop.f32.mrf.mxu0
    %v2135 = vadd.f32 0.0, %v2134
    %v2136 = vpop.f32.mrf.mxu0
    %v2137 = vadd.f32 0.0, %v2136
    %2138 = vmatprep.mubr.f32.mxu0 0.0
    %2139 = vmatmul.mubr.f32.gmra.mxu0 %v2054
    %v2140 = vpop.f32.mrf.mxu0
    %v2141 = vadd.f32 0.0, %v2140
    %v2142 = vpop.f32.mrf.mxu0
    %v2143 = vadd.f32 0.0, %v2142
    %2144 = vdwg.mxu0
    %v2145 = vadd.f32 %v1936, %v2032
    %v2146 = vadd.f32 %v1937, %v2034
    %v2147 = vadd.f32 %v1938, %v2038
    %v2148 = vadd.f32 %v1939, %v2040
    %v2149 = vadd.f32 %v1940, %v2044
    %v2150 = vadd.f32 %v1941, %v2046
    %v2151 = vadd.f32 %v1942, %v2050
    %v2152 = vadd.f32 %v1943, %v2052
    %v2153 = vadd.f32 %v1944, %v2123
    %v2154 = vadd.f32 %v1945, %v2125
    %v2155 = vadd.f32 %v1946, %v2129
    %v2156 = vadd.f32 %v1947, %v2131
    %v2157 = vadd.f32 %v1948, %v2135
    %v2158 = vadd.f32 %v1949, %v2137
    %v2159 = vadd.f32 %v1950, %v2141
    %v2160 = vadd.f32 %v1951, %v2143
    %v2161 = vld [vmem:[%s2] sm:$0x3]
    %v2163 = vlaneseq
    %v2164 = vshrl.u32 %v2163, 7
    %v2165 = vsub.s32 0, %v2164
    %v2166 = vrot.slane %v2161, %v2165
    %v2167 = vlaneseq
    %v2168 = vshrl.u32 %v2167, 7
    %v2169 = vsub.s32 1, %v2168
    %v2170 = vrot.slane %v2161, %v2169
    %v2173 = vadd.f32 %v2145, %v2166
    %v2174 = vadd.f32 %v2146, %v2170
    %v2175 = vadd.f32 %v2147, %v2166
    %v2176 = vadd.f32 %v2148, %v2170
    %v2177 = vadd.f32 %v2149, %v2166
    %v2178 = vadd.f32 %v2150, %v2170
    %v2179 = vadd.f32 %v2151, %v2166
    %v2180 = vadd.f32 %v2152, %v2170
    %v2181 = vadd.f32 %v2153, %v2166
    %v2182 = vadd.f32 %v2154, %v2170
    %v2183 = vadd.f32 %v2155, %v2166
    %v2184 = vadd.f32 %v2156, %v2170
    %v2185 = vadd.f32 %v2157, %v2166
    %v2186 = vadd.f32 %v2158, %v2170
    %v2187 = vadd.f32 %v2159, %v2166
    %v2188 = vadd.f32 %v2160, %v2170
    %v2189 = vmax.f32 %v2173, 0.0
    %v2190 = vmax.f32 %v2174, 0.0
    %v2191 = vmax.f32 %v2175, 0.0
    %v2192 = vmax.f32 %v2176, 0.0
    %v2193 = vmax.f32 %v2177, 0.0
    %v2194 = vmax.f32 %v2178, 0.0
    %v2195 = vmax.f32 %v2179, 0.0
    %v2196 = vmax.f32 %v2180, 0.0
    %v2197 = vmax.f32 %v2181, 0.0
    %v2198 = vmax.f32 %v2182, 0.0
    %v2199 = vmax.f32 %v2183, 0.0
    %v2200 = vmax.f32 %v2184, 0.0
    %v2201 = vmax.f32 %v2185, 0.0
    %v2202 = vmax.f32 %v2186, 0.0
    %v2203 = vmax.f32 %v2187, 0.0
    %v2204 = vmax.f32 %v2188, 0.0
    %v2205 = vld [vmem:[%s3] sm:$0xff]
    %v2206 = vld [vmem:[%s3 + $0x8] sm:$0xff]
    %vm2207 = vcmask 261120
    %v2209 = vsel %vm2207, %v2205, 0
    %v2212 = vsel %vm2207, %v2206, 0
    %2214 = vmatprep.subr.mxu0 0.0
    %2215 = vmatpush1.msra.mxu0 0.0
    %2216 = vmatprep.subr.mxu0 0.0
    %2217 = vmatpush1.msra.mxu0 0.0
    %2218 = vmatprep.subr.mxu0 0.0
    %2219 = vmatpush1.msra.mxu0 0.0
    %2220 = vmatprep.subr.mxu0 0.0
    %2221 = vmatpush1.msra.mxu0 0.0
    %2222 = vmatprep.subr.mxu0 0.0
    %2223 = vmatpush1.msra.mxu0 0.0
    %2224 = vmatprep.subr.mxu0 0.0
    %2225 = vmatpush1.msra.mxu0 0.0
    %2226 = vmatprep.subr.mxu0 0.0
    %2227 = vmatpush1.msra.mxu0 0.0
    %2228 = vmatprep.subr.mxu0 0.0
    %2229 = vmatpush1.msra.mxu0 0.0
    %2230 = vmatprep.subr.mxu0 0.0
    %2231 = vmatpush1.msra.mxu0 0.0
    %2232 = vmatprep.subr.mxu0 0.0
    %2233 = vmatpush1.msra.mxu0 0.0
    %2234 = vmatprep.subr.mxu0 0.0
    %2235 = vmatpush1.msra.mxu0 0.0
    %2236 = vmatprep.subr.mxu0 0.0
    %2237 = vmatpush1.msra.mxu0 0.0
    %2238 = vmatprep.subr.mxu0 %v2196
    %2239 = vmatpush1.msra.mxu0 %v2195
    %2240 = vmatprep.subr.mxu0 %v2194
    %2241 = vmatpush1.msra.mxu0 %v2193
    %2242 = vmatprep.subr.mxu0 %v2192
    %2243 = vmatpush1.msra.mxu0 %v2191
    %2244 = vmatprep.subr.mxu0 %v2190
    %2245 = vmatpush1.msra.mxu0 %v2189
    %2246 = vmatprep.subr.mxu0 0.0
    %2247 = vmatpush2.msra.mxu0 0.0
    %2248 = vmatprep.subr.mxu0 0.0
    %2249 = vmatpush2.msra.mxu0 0.0
    %2250 = vmatprep.subr.mxu0 0.0
    %2251 = vmatpush2.msra.mxu0 0.0
    %2252 = vmatprep.subr.mxu0 0.0
    %2253 = vmatpush2.msra.mxu0 0.0
    %2254 = vmatprep.subr.mxu0 0.0
    %2255 = vmatpush2.msra.mxu0 0.0
    %2256 = vmatprep.subr.mxu0 0.0
    %2257 = vmatpush2.msra.mxu0 0.0
    %2258 = vmatprep.subr.mxu0 0.0
    %2259 = vmatpush2.msra.mxu0 0.0
    %2260 = vmatprep.subr.mxu0 0.0
    %2261 = vmatpush2.msra.mxu0 0.0
    %2262 = vmatprep.subr.mxu0 0.0
    %2263 = vmatpush2.msra.mxu0 0.0
    %2264 = vmatprep.subr.mxu0 0.0
    %2265 = vmatpush2.msra.mxu0 0.0
    %2266 = vmatprep.subr.mxu0 0.0
    %2267 = vmatpush2.msra.mxu0 0.0
    %2268 = vmatprep.subr.mxu0 0.0
    %2269 = vmatpush2.msra.mxu0 0.0
    %2270 = vmatprep.subr.mxu0 0.0
    %2271 = vmatpush2.msra.mxu0 0.0
    %2272 = vmatprep.subr.mxu0 0.0
    %2273 = vmatpush2.msra.mxu0 0.0
    %2274 = vmatprep.subr.mxu0 0.0
    %2275 = vmatpush2.msra.mxu0 0.0
    %2276 = vmatprep.subr.mxu0 0.0
    %2277 = vmatpush2.msra.mxu0 0.0
    %2278 = vmatprep.mubr.f32.mxu0 0.0
    %2279 = vmatmul.mubr.f32.gmra.mxu0 %v2209
    %v2280 = vpop.f32.mrf.mxu0
    %v2281 = vadd.f32 0.0, %v2280
    %v2282 = vpop.f32.mrf.mxu0
    %v2283 = vadd.f32 0.0, %v2282
    %2284 = vmatprep.mubr.f32.mxu0 0.0
    %2285 = vmatmul.mubr.f32.gmra.mxu0 %v2212
    %v2286 = vpop.f32.mrf.mxu0
    %v2287 = vadd.f32 0.0, %v2286
    %v2288 = vpop.f32.mrf.mxu0
    %v2289 = vadd.f32 0.0, %v2288
    %2290 = vdwg.mxu0
    %2291 = vmatprep.subr.mxu0 0.0
    %2292 = vmatpush1.msra.mxu0 0.0
    %2293 = vmatprep.subr.mxu0 0.0
    %2294 = vmatpush1.msra.mxu0 0.0
    %2295 = vmatprep.subr.mxu0 0.0
    %2296 = vmatpush1.msra.mxu0 0.0
    %2297 = vmatprep.subr.mxu0 0.0
    %2298 = vmatpush1.msra.mxu0 0.0
    %2299 = vmatprep.subr.mxu0 0.0
    %2300 = vmatpush1.msra.mxu0 0.0
    %2301 = vmatprep.subr.mxu0 0.0
    %2302 = vmatpush1.msra.mxu0 0.0
    %2303 = vmatprep.subr.mxu0 0.0
    %2304 = vmatpush1.msra.mxu0 0.0
    %2305 = vmatprep.subr.mxu0 0.0
    %2306 = vmatpush1.msra.mxu0 0.0
    %2307 = vmatprep.subr.mxu0 0.0
    %2308 = vmatpush1.msra.mxu0 0.0
    %2309 = vmatprep.subr.mxu0 0.0
    %2310 = vmatpush1.msra.mxu0 0.0
    %2311 = vmatprep.subr.mxu0 0.0
    %2312 = vmatpush1.msra.mxu0 0.0
    %2313 = vmatprep.subr.mxu0 0.0
    %2314 = vmatpush1.msra.mxu0 0.0
    %2315 = vmatprep.subr.mxu0 %v2204
    %2316 = vmatpush1.msra.mxu0 %v2203
    %2317 = vmatprep.subr.mxu0 %v2202
    %2318 = vmatpush1.msra.mxu0 %v2201
    %2319 = vmatprep.subr.mxu0 %v2200
    %2320 = vmatpush1.msra.mxu0 %v2199
    %2321 = vmatprep.subr.mxu0 %v2198
    %2322 = vmatpush1.msra.mxu0 %v2197
    %2323 = vmatprep.subr.mxu0 0.0
    %2324 = vmatpush2.msra.mxu0 0.0
    %2325 = vmatprep.subr.mxu0 0.0
    %2326 = vmatpush2.msra.mxu0 0.0
    %2327 = vmatprep.subr.mxu0 0.0
    %2328 = vmatpush2.msra.mxu0 0.0
    %2329 = vmatprep.subr.mxu0 0.0
    %2330 = vmatpush2.msra.mxu0 0.0
    %2331 = vmatprep.subr.mxu0 0.0
    %2332 = vmatpush2.msra.mxu0 0.0
    %2333 = vmatprep.subr.mxu0 0.0
    %2334 = vmatpush2.msra.mxu0 0.0
    %2335 = vmatprep.subr.mxu0 0.0
    %2336 = vmatpush2.msra.mxu0 0.0
    %2337 = vmatprep.subr.mxu0 0.0
    %2338 = vmatpush2.msra.mxu0 0.0
    %2339 = vmatprep.subr.mxu0 0.0
    %2340 = vmatpush2.msra.mxu0 0.0
    %2341 = vmatprep.subr.mxu0 0.0
    %2342 = vmatpush2.msra.mxu0 0.0
    %2343 = vmatprep.subr.mxu0 0.0
    %2344 = vmatpush2.msra.mxu0 0.0
    %2345 = vmatprep.subr.mxu0 0.0
    %2346 = vmatpush2.msra.mxu0 0.0
    %2347 = vmatprep.subr.mxu0 0.0
    %2348 = vmatpush2.msra.mxu0 0.0
    %2349 = vmatprep.subr.mxu0 0.0
    %2350 = vmatpush2.msra.mxu0 0.0
    %2351 = vmatprep.subr.mxu0 0.0
    %2352 = vmatpush2.msra.mxu0 0.0
    %2353 = vmatprep.subr.mxu0 0.0
    %2354 = vmatpush2.msra.mxu0 0.0
    %2355 = vmatprep.mubr.f32.mxu0 0.0
    %2356 = vmatmul.mubr.f32.gmra.mxu0 %v2209
    %v2357 = vpop.f32.mrf.mxu0
    %v2358 = vadd.f32 0.0, %v2357
    %v2359 = vpop.f32.mrf.mxu0
    %v2360 = vadd.f32 0.0, %v2359
    %2361 = vmatprep.mubr.f32.mxu0 0.0
    %2362 = vmatmul.mubr.f32.gmra.mxu0 %v2212
    %v2363 = vpop.f32.mrf.mxu0
    %v2364 = vadd.f32 0.0, %v2363
    %v2365 = vpop.f32.mrf.mxu0
    %v2366 = vadd.f32 0.0, %v2365
    %2367 = vdwg.mxu0
    %v2368 = vld [vmem:[%s4] sm:$0xff]
    %v2369 = vld [vmem:[%s4 + $0x8] sm:$0xff]
    %v2371 = vsel %vm2207, %v2368, 0
    %v2374 = vsel %vm2207, %v2369, 0
    %2376 = vmatprep.subr.mxu0 0.0
    %2377 = vmatpush1.msra.mxu0 0.0
    %2378 = vmatprep.subr.mxu0 0.0
    %2379 = vmatpush1.msra.mxu0 0.0
    %2380 = vmatprep.subr.mxu0 0.0
    %2381 = vmatpush1.msra.mxu0 0.0
    %2382 = vmatprep.subr.mxu0 0.0
    %2383 = vmatpush1.msra.mxu0 0.0
    %2384 = vmatprep.subr.mxu0 0.0
    %2385 = vmatpush1.msra.mxu0 0.0
    %2386 = vmatprep.subr.mxu0 0.0
    %2387 = vmatpush1.msra.mxu0 0.0
    %2388 = vmatprep.subr.mxu0 0.0
    %2389 = vmatpush1.msra.mxu0 0.0
    %2390 = vmatprep.subr.mxu0 0.0
    %2391 = vmatpush1.msra.mxu0 0.0
    %2392 = vmatprep.subr.mxu0 0.0
    %2393 = vmatpush1.msra.mxu0 0.0
    %2394 = vmatprep.subr.mxu0 0.0
    %2395 = vmatpush1.msra.mxu0 0.0
    %2396 = vmatprep.subr.mxu0 0.0
    %2397 = vmatpush1.msra.mxu0 0.0
    %2398 = vmatprep.subr.mxu0 0.0
    %2399 = vmatpush1.msra.mxu0 0.0
    %2400 = vmatprep.subr.mxu0 %v2196
    %2401 = vmatpush1.msra.mxu0 %v2195
    %2402 = vmatprep.subr.mxu0 %v2194
    %2403 = vmatpush1.msra.mxu0 %v2193
    %2404 = vmatprep.subr.mxu0 %v2192
    %2405 = vmatpush1.msra.mxu0 %v2191
    %2406 = vmatprep.subr.mxu0 %v2190
    %2407 = vmatpush1.msra.mxu0 %v2189
    %2408 = vmatprep.subr.mxu0 0.0
    %2409 = vmatpush2.msra.mxu0 0.0
    %2410 = vmatprep.subr.mxu0 0.0
    %2411 = vmatpush2.msra.mxu0 0.0
    %2412 = vmatprep.subr.mxu0 0.0
    %2413 = vmatpush2.msra.mxu0 0.0
    %2414 = vmatprep.subr.mxu0 0.0
    %2415 = vmatpush2.msra.mxu0 0.0
    %2416 = vmatprep.subr.mxu0 0.0
    %2417 = vmatpush2.msra.mxu0 0.0
    %2418 = vmatprep.subr.mxu0 0.0
    %2419 = vmatpush2.msra.mxu0 0.0
    %2420 = vmatprep.subr.mxu0 0.0
    %2421 = vmatpush2.msra.mxu0 0.0
    %2422 = vmatprep.subr.mxu0 0.0
    %2423 = vmatpush2.msra.mxu0 0.0
    %2424 = vmatprep.subr.mxu0 0.0
    %2425 = vmatpush2.msra.mxu0 0.0
    %2426 = vmatprep.subr.mxu0 0.0
    %2427 = vmatpush2.msra.mxu0 0.0
    %2428 = vmatprep.subr.mxu0 0.0
    %2429 = vmatpush2.msra.mxu0 0.0
    %2430 = vmatprep.subr.mxu0 0.0
    %2431 = vmatpush2.msra.mxu0 0.0
    %2432 = vmatprep.subr.mxu0 0.0
    %2433 = vmatpush2.msra.mxu0 0.0
    %2434 = vmatprep.subr.mxu0 0.0
    %2435 = vmatpush2.msra.mxu0 0.0
    %2436 = vmatprep.subr.mxu0 0.0
    %2437 = vmatpush2.msra.mxu0 0.0
    %2438 = vmatprep.subr.mxu0 0.0
    %2439 = vmatpush2.msra.mxu0 0.0
    %2440 = vmatprep.mubr.f32.mxu0 0.0
    %2441 = vmatmul.mubr.f32.gmra.mxu0 %v2371
    %v2442 = vpop.f32.mrf.mxu0
    %v2443 = vadd.f32 0.0, %v2442
    %v2444 = vpop.f32.mrf.mxu0
    %v2445 = vadd.f32 0.0, %v2444
    %2446 = vmatprep.mubr.f32.mxu0 0.0
    %2447 = vmatmul.mubr.f32.gmra.mxu0 %v2374
    %v2448 = vpop.f32.mrf.mxu0
    %v2449 = vadd.f32 0.0, %v2448
    %v2450 = vpop.f32.mrf.mxu0
    %v2451 = vadd.f32 0.0, %v2450
    %2452 = vdwg.mxu0
    %2453 = vmatprep.subr.mxu0 0.0
    %2454 = vmatpush1.msra.mxu0 0.0
    %2455 = vmatprep.subr.mxu0 0.0
    %2456 = vmatpush1.msra.mxu0 0.0
    %2457 = vmatprep.subr.mxu0 0.0
    %2458 = vmatpush1.msra.mxu0 0.0
    %2459 = vmatprep.subr.mxu0 0.0
    %2460 = vmatpush1.msra.mxu0 0.0
    %2461 = vmatprep.subr.mxu0 0.0
    %2462 = vmatpush1.msra.mxu0 0.0
    %2463 = vmatprep.subr.mxu0 0.0
    %2464 = vmatpush1.msra.mxu0 0.0
    %2465 = vmatprep.subr.mxu0 0.0
    %2466 = vmatpush1.msra.mxu0 0.0
    %2467 = vmatprep.subr.mxu0 0.0
    %2468 = vmatpush1.msra.mxu0 0.0
    %2469 = vmatprep.subr.mxu0 0.0
    %2470 = vmatpush1.msra.mxu0 0.0
    %2471 = vmatprep.subr.mxu0 0.0
    %2472 = vmatpush1.msra.mxu0 0.0
    %2473 = vmatprep.subr.mxu0 0.0
    %2474 = vmatpush1.msra.mxu0 0.0
    %2475 = vmatprep.subr.mxu0 0.0
    %2476 = vmatpush1.msra.mxu0 0.0
    %2477 = vmatprep.subr.mxu0 %v2204
    %2478 = vmatpush1.msra.mxu0 %v2203
    %2479 = vmatprep.subr.mxu0 %v2202
    %2480 = vmatpush1.msra.mxu0 %v2201
    %2481 = vmatprep.subr.mxu0 %v2200
    %2482 = vmatpush1.msra.mxu0 %v2199
    %2483 = vmatprep.subr.mxu0 %v2198
    %2484 = vmatpush1.msra.mxu0 %v2197
    %2485 = vmatprep.subr.mxu0 0.0
    %2486 = vmatpush2.msra.mxu0 0.0
    %2487 = vmatprep.subr.mxu0 0.0
    %2488 = vmatpush2.msra.mxu0 0.0
    %2489 = vmatprep.subr.mxu0 0.0
    %2490 = vmatpush2.msra.mxu0 0.0
    %2491 = vmatprep.subr.mxu0 0.0
    %2492 = vmatpush2.msra.mxu0 0.0
    %2493 = vmatprep.subr.mxu0 0.0
    %2494 = vmatpush2.msra.mxu0 0.0
    %2495 = vmatprep.subr.mxu0 0.0
    %2496 = vmatpush2.msra.mxu0 0.0
    %2497 = vmatprep.subr.mxu0 0.0
    %2498 = vmatpush2.msra.mxu0 0.0
    %2499 = vmatprep.subr.mxu0 0.0
    %2500 = vmatpush2.msra.mxu0 0.0
    %2501 = vmatprep.subr.mxu0 0.0
    %2502 = vmatpush2.msra.mxu0 0.0
    %2503 = vmatprep.subr.mxu0 0.0
    %2504 = vmatpush2.msra.mxu0 0.0
    %2505 = vmatprep.subr.mxu0 0.0
    %2506 = vmatpush2.msra.mxu0 0.0
    %2507 = vmatprep.subr.mxu0 0.0
    %2508 = vmatpush2.msra.mxu0 0.0
    %2509 = vmatprep.subr.mxu0 0.0
    %2510 = vmatpush2.msra.mxu0 0.0
    %2511 = vmatprep.subr.mxu0 0.0
    %2512 = vmatpush2.msra.mxu0 0.0
    %2513 = vmatprep.subr.mxu0 0.0
    %2514 = vmatpush2.msra.mxu0 0.0
    %2515 = vmatprep.subr.mxu0 0.0
    %2516 = vmatpush2.msra.mxu0 0.0
    %2517 = vmatprep.mubr.f32.mxu0 0.0
    %2518 = vmatmul.mubr.f32.gmra.mxu0 %v2371
    %v2519 = vpop.f32.mrf.mxu0
    %v2520 = vadd.f32 0.0, %v2519
    %v2521 = vpop.f32.mrf.mxu0
    %v2522 = vadd.f32 0.0, %v2521
    %2523 = vmatprep.mubr.f32.mxu0 0.0
    %2524 = vmatmul.mubr.f32.gmra.mxu0 %v2374
    %v2525 = vpop.f32.mrf.mxu0
    %v2526 = vadd.f32 0.0, %v2525
    %v2527 = vpop.f32.mrf.mxu0
    %v2528 = vadd.f32 0.0, %v2527
    %2529 = vdwg.mxu0
    %v2530 = vld [vmem:[%s5] sm:$0xff]
    %v2531 = vld [vmem:[%s5 + $0x8] sm:$0xff]
    %v2532 = vld [vmem:[%s5 + $0x10] sm:$0xff]
    %v2533 = vld [vmem:[%s5 + $0x18] sm:$0xff]
    %v2534 = vld [vmem:[%s5 + $0x20] sm:$0xff]
    %v2535 = vld [vmem:[%s5 + $0x28] sm:$0xff]
    %v2536 = vld [vmem:[%s5 + $0x30] sm:$0xff]
    %v2537 = vld [vmem:[%s5 + $0x38] sm:$0xff]
    %v2538 = vld [vmem:[%s5 + $0x40] sm:$0xff]
    %v2539 = vld [vmem:[%s5 + $0x48] sm:$0xff]
    %v2540 = vld [vmem:[%s5 + $0x50] sm:$0xff]
    %v2541 = vld [vmem:[%s5 + $0x58] sm:$0xff]
    %v2542 = vld [vmem:[%s5 + $0x60] sm:$0xff]
    %v2543 = vld [vmem:[%s5 + $0x68] sm:$0xff]
    %v2544 = vld [vmem:[%s5 + $0x70] sm:$0xff]
    %v2545 = vld [vmem:[%s5 + $0x78] sm:$0xff]
    %v2546 = vld [vmem:[%s5 + $0x80] sm:$0xff]
    %v2547 = vld [vmem:[%s5 + $0x88] sm:$0xff]
    %v2548 = vld [vmem:[%s5 + $0x90] sm:$0xff]
    %v2549 = vld [vmem:[%s5 + $0x98] sm:$0xff]
    %v2550 = vld [vmem:[%s5 + $0xa0] sm:$0xff]
    %v2551 = vld [vmem:[%s5 + $0xa8] sm:$0xff]
    %v2552 = vld [vmem:[%s5 + $0xb0] sm:$0xff]
    %v2553 = vld [vmem:[%s5 + $0xb8] sm:$0xff]
    %v2554 = vld [vmem:[%s5 + $0xc0] sm:$0xff]
    %v2555 = vld [vmem:[%s5 + $0xc8] sm:$0xff]
    %v2556 = vld [vmem:[%s5 + $0xd0] sm:$0xff]
    %v2557 = vld [vmem:[%s5 + $0xd8] sm:$0xff]
    %v2558 = vld [vmem:[%s5 + $0xe0] sm:$0xff]
    %v2559 = vld [vmem:[%s5 + $0xe8] sm:$0xff]
    %v2560 = vld [vmem:[%s5 + $0xf0] sm:$0xff]
    %v2561 = vld [vmem:[%s5 + $0xf8] sm:$0xff]
    %2562 = vmatprep.subr.mxu0 0.0
    %2563 = vmatpush1.msra.mxu0 %v2545
    %2564 = vmatprep.subr.mxu0 0.0
    %2565 = vmatpush1.msra.mxu0 %v2544
    %2566 = vmatprep.subr.mxu0 0.0
    %2567 = vmatpush1.msra.mxu0 %v2543
    %2568 = vmatprep.subr.mxu0 0.0
    %2569 = vmatpush1.msra.mxu0 %v2542
    %2570 = vmatprep.subr.mxu0 0.0
    %2571 = vmatpush1.msra.mxu0 %v2541
    %2572 = vmatprep.subr.mxu0 0.0
    %2573 = vmatpush1.msra.mxu0 %v2540
    %2574 = vmatprep.subr.mxu0 0.0
    %2575 = vmatpush1.msra.mxu0 %v2539
    %2576 = vmatprep.subr.mxu0 0.0
    %2577 = vmatpush1.msra.mxu0 %v2538
    %2578 = vmatprep.subr.mxu0 0.0
    %2579 = vmatpush1.msra.mxu0 %v2537
    %2580 = vmatprep.subr.mxu0 0.0
    %2581 = vmatpush1.msra.mxu0 %v2536
    %2582 = vmatprep.subr.mxu0 0.0
    %2583 = vmatpush1.msra.mxu0 %v2535
    %2584 = vmatprep.subr.mxu0 0.0
    %2585 = vmatpush1.msra.mxu0 %v2534
    %2586 = vmatprep.subr.mxu0 0.0
    %2587 = vmatpush1.msra.mxu0 %v2533
    %2588 = vmatprep.subr.mxu0 0.0
    %2589 = vmatpush1.msra.mxu0 %v2532
    %2590 = vmatprep.subr.mxu0 0.0
    %2591 = vmatpush1.msra.mxu0 %v2531
    %2592 = vmatprep.subr.mxu0 0.0
    %2593 = vmatpush1.msra.mxu0 %v2530
    %2594 = vmatprep.subr.mxu0 0.0
    %2595 = vmatpush2.msra.mxu0 %v2561
    %2596 = vmatprep.subr.mxu0 0.0
    %2597 = vmatpush2.msra.mxu0 %v2560
    %2598 = vmatprep.subr.mxu0 0.0
    %2599 = vmatpush2.msra.mxu0 %v2559
    %2600 = vmatprep.subr.mxu0 0.0
    %2601 = vmatpush2.msra.mxu0 %v2558
    %2602 = vmatprep.subr.mxu0 0.0
    %2603 = vmatpush2.msra.mxu0 %v2557
    %2604 = vmatprep.subr.mxu0 0.0
    %2605 = vmatpush2.msra.mxu0 %v2556
    %2606 = vmatprep.subr.mxu0 0.0
    %2607 = vmatpush2.msra.mxu0 %v2555
    %2608 = vmatprep.subr.mxu0 0.0
    %2609 = vmatpush2.msra.mxu0 %v2554
    %2610 = vmatprep.subr.mxu0 0.0
    %2611 = vmatpush2.msra.mxu0 %v2553
    %2612 = vmatprep.subr.mxu0 0.0
    %2613 = vmatpush2.msra.mxu0 %v2552
    %2614 = vmatprep.subr.mxu0 0.0
    %2615 = vmatpush2.msra.mxu0 %v2551
    %2616 = vmatprep.subr.mxu0 0.0
    %2617 = vmatpush2.msra.mxu0 %v2550
    %2618 = vmatprep.subr.mxu0 0.0
    %2619 = vmatpush2.msra.mxu0 %v2549
    %2620 = vmatprep.subr.mxu0 0.0
    %2621 = vmatpush2.msra.mxu0 %v2548
    %2622 = vmatprep.subr.mxu0 0.0
    %2623 = vmatpush2.msra.mxu0 %v2547
    %2624 = vmatprep.subr.mxu0 0.0
    %2625 = vmatpush2.msra.mxu0 %v2546
    %2626 = vmatprep.mubr.f32.mxu0 %v2283
    %2627 = vmatmul.mubr.f32.gmra.mxu0 %v2281
    %v2628 = vpop.f32.mrf.mxu0
    %v2629 = vadd.f32 0.0, %v2628
    %v2630 = vpop.f32.mrf.mxu0
    %2631 = vmatprep.mubr.f32.mxu0 %v2289
    %2632 = vmatmul.mubr.f32.gmra.mxu0 %v2287
    %v2633 = vpop.f32.mrf.mxu0
    %v2634 = vadd.f32 0.0, %v2633
    %v2635 = vpop.f32.mrf.mxu0
    %2636 = vdwg.mxu0
    %2637 = vmatprep.subr.mxu0 0.0
    %2638 = vmatpush1.msra.mxu0 %v2545
    %2639 = vmatprep.subr.mxu0 0.0
    %2640 = vmatpush1.msra.mxu0 %v2544
    %2641 = vmatprep.subr.mxu0 0.0
    %2642 = vmatpush1.msra.mxu0 %v2543
    %2643 = vmatprep.subr.mxu0 0.0
    %2644 = vmatpush1.msra.mxu0 %v2542
    %2645 = vmatprep.subr.mxu0 0.0
    %2646 = vmatpush1.msra.mxu0 %v2541
    %2647 = vmatprep.subr.mxu0 0.0
    %2648 = vmatpush1.msra.mxu0 %v2540
    %2649 = vmatprep.subr.mxu0 0.0
    %2650 = vmatpush1.msra.mxu0 %v2539
    %2651 = vmatprep.subr.mxu0 0.0
    %2652 = vmatpush1.msra.mxu0 %v2538
    %2653 = vmatprep.subr.mxu0 0.0
    %2654 = vmatpush1.msra.mxu0 %v2537
    %2655 = vmatprep.subr.mxu0 0.0
    %2656 = vmatpush1.msra.mxu0 %v2536
    %2657 = vmatprep.subr.mxu0 0.0
    %2658 = vmatpush1.msra.mxu0 %v2535
    %2659 = vmatprep.subr.mxu0 0.0
    %2660 = vmatpush1.msra.mxu0 %v2534
    %2661 = vmatprep.subr.mxu0 0.0
    %2662 = vmatpush1.msra.mxu0 %v2533
    %2663 = vmatprep.subr.mxu0 0.0
    %2664 = vmatpush1.msra.mxu0 %v2532
    %2665 = vmatprep.subr.mxu0 0.0
    %2666 = vmatpush1.msra.mxu0 %v2531
    %2667 = vmatprep.subr.mxu0 0.0
    %2668 = vmatpush1.msra.mxu0 %v2530
    %2669 = vmatprep.subr.mxu0 0.0
    %2670 = vmatpush2.msra.mxu0 %v2561
    %2671 = vmatprep.subr.mxu0 0.0
    %2672 = vmatpush2.msra.mxu0 %v2560
    %2673 = vmatprep.subr.mxu0 0.0
    %2674 = vmatpush2.msra.mxu0 %v2559
    %2675 = vmatprep.subr.mxu0 0.0
    %2676 = vmatpush2.msra.mxu0 %v2558
    %2677 = vmatprep.subr.mxu0 0.0
    %2678 = vmatpush2.msra.mxu0 %v2557
    %2679 = vmatprep.subr.mxu0 0.0
    %2680 = vmatpush2.msra.mxu0 %v2556
    %2681 = vmatprep.subr.mxu0 0.0
    %2682 = vmatpush2.msra.mxu0 %v2555
    %2683 = vmatprep.subr.mxu0 0.0
    %2684 = vmatpush2.msra.mxu0 %v2554
    %2685 = vmatprep.subr.mxu0 0.0
    %2686 = vmatpush2.msra.mxu0 %v2553
    %2687 = vmatprep.subr.mxu0 0.0
    %2688 = vmatpush2.msra.mxu0 %v2552
    %2689 = vmatprep.subr.mxu0 0.0
    %2690 = vmatpush2.msra.mxu0 %v2551
    %2691 = vmatprep.subr.mxu0 0.0
    %2692 = vmatpush2.msra.mxu0 %v2550
    %2693 = vmatprep.subr.mxu0 0.0
    %2694 = vmatpush2.msra.mxu0 %v2549
    %2695 = vmatprep.subr.mxu0 0.0
    %2696 = vmatpush2.msra.mxu0 %v2548
    %2697 = vmatprep.subr.mxu0 0.0
    %2698 = vmatpush2.msra.mxu0 %v2547
    %2699 = vmatprep.subr.mxu0 0.0
    %2700 = vmatpush2.msra.mxu0 %v2546
    %2701 = vmatprep.mubr.f32.mxu0 %v2360
    %2702 = vmatmul.mubr.f32.gmra.mxu0 %v2358
    %v2703 = vpop.f32.mrf.mxu0
    %v2704 = vadd.f32 0.0, %v2703
    %v2705 = vpop.f32.mrf.mxu0
    %2706 = vmatprep.mubr.f32.mxu0 %v2366
    %2707 = vmatmul.mubr.f32.gmra.mxu0 %v2364
    %v2708 = vpop.f32.mrf.mxu0
    %v2709 = vadd.f32 0.0, %v2708
    %v2710 = vpop.f32.mrf.mxu0
    %2711 = vdwg.mxu0
    %v2712 = vld [vmem:[%s6] sm:$0xff]
    %v2713 = vld [vmem:[%s6 + $0x8] sm:$0xff]
    %v2714 = vld [vmem:[%s6 + $0x10] sm:$0xff]
    %v2715 = vld [vmem:[%s6 + $0x18] sm:$0xff]
    %v2716 = vld [vmem:[%s6 + $0x20] sm:$0xff]
    %v2717 = vld [vmem:[%s6 + $0x28] sm:$0xff]
    %v2718 = vld [vmem:[%s6 + $0x30] sm:$0xff]
    %v2719 = vld [vmem:[%s6 + $0x38] sm:$0xff]
    %v2720 = vld [vmem:[%s6 + $0x40] sm:$0xff]
    %v2721 = vld [vmem:[%s6 + $0x48] sm:$0xff]
    %v2722 = vld [vmem:[%s6 + $0x50] sm:$0xff]
    %v2723 = vld [vmem:[%s6 + $0x58] sm:$0xff]
    %v2724 = vld [vmem:[%s6 + $0x60] sm:$0xff]
    %v2725 = vld [vmem:[%s6 + $0x68] sm:$0xff]
    %v2726 = vld [vmem:[%s6 + $0x70] sm:$0xff]
    %v2727 = vld [vmem:[%s6 + $0x78] sm:$0xff]
    %v2728 = vld [vmem:[%s6 + $0x80] sm:$0xff]
    %v2729 = vld [vmem:[%s6 + $0x88] sm:$0xff]
    %v2730 = vld [vmem:[%s6 + $0x90] sm:$0xff]
    %v2731 = vld [vmem:[%s6 + $0x98] sm:$0xff]
    %v2732 = vld [vmem:[%s6 + $0xa0] sm:$0xff]
    %v2733 = vld [vmem:[%s6 + $0xa8] sm:$0xff]
    %v2734 = vld [vmem:[%s6 + $0xb0] sm:$0xff]
    %v2735 = vld [vmem:[%s6 + $0xb8] sm:$0xff]
    %v2736 = vld [vmem:[%s6 + $0xc0] sm:$0xff]
    %v2737 = vld [vmem:[%s6 + $0xc8] sm:$0xff]
    %v2738 = vld [vmem:[%s6 + $0xd0] sm:$0xff]
    %v2739 = vld [vmem:[%s6 + $0xd8] sm:$0xff]
    %v2740 = vld [vmem:[%s6 + $0xe0] sm:$0xff]
    %v2741 = vld [vmem:[%s6 + $0xe8] sm:$0xff]
    %v2742 = vld [vmem:[%s6 + $0xf0] sm:$0xff]
    %v2743 = vld [vmem:[%s6 + $0xf8] sm:$0xff]
    %2744 = vmatprep.subr.mxu0 0.0
    %2745 = vmatpush1.msra.mxu0 %v2727
    %2746 = vmatprep.subr.mxu0 0.0
    %2747 = vmatpush1.msra.mxu0 %v2726
    %2748 = vmatprep.subr.mxu0 0.0
    %2749 = vmatpush1.msra.mxu0 %v2725
    %2750 = vmatprep.subr.mxu0 0.0
    %2751 = vmatpush1.msra.mxu0 %v2724
    %2752 = vmatprep.subr.mxu0 0.0
    %2753 = vmatpush1.msra.mxu0 %v2723
    %2754 = vmatprep.subr.mxu0 0.0
    %2755 = vmatpush1.msra.mxu0 %v2722
    %2756 = vmatprep.subr.mxu0 0.0
    %2757 = vmatpush1.msra.mxu0 %v2721
    %2758 = vmatprep.subr.mxu0 0.0
    %2759 = vmatpush1.msra.mxu0 %v2720
    %2760 = vmatprep.subr.mxu0 0.0
    %2761 = vmatpush1.msra.mxu0 %v2719
    %2762 = vmatprep.subr.mxu0 0.0
    %2763 = vmatpush1.msra.mxu0 %v2718
    %2764 = vmatprep.subr.mxu0 0.0
    %2765 = vmatpush1.msra.mxu0 %v2717
    %2766 = vmatprep.subr.mxu0 0.0
    %2767 = vmatpush1.msra.mxu0 %v2716
    %2768 = vmatprep.subr.mxu0 0.0
    %2769 = vmatpush1.msra.mxu0 %v2715
    %2770 = vmatprep.subr.mxu0 0.0
    %2771 = vmatpush1.msra.mxu0 %v2714
    %2772 = vmatprep.subr.mxu0 0.0
    %2773 = vmatpush1.msra.mxu0 %v2713
    %2774 = vmatprep.subr.mxu0 0.0
    %2775 = vmatpush1.msra.mxu0 %v2712
    %2776 = vmatprep.subr.mxu0 0.0
    %2777 = vmatpush2.msra.mxu0 %v2743
    %2778 = vmatprep.subr.mxu0 0.0
    %2779 = vmatpush2.msra.mxu0 %v2742
    %2780 = vmatprep.subr.mxu0 0.0
    %2781 = vmatpush2.msra.mxu0 %v2741
    %2782 = vmatprep.subr.mxu0 0.0
    %2783 = vmatpush2.msra.mxu0 %v2740
    %2784 = vmatprep.subr.mxu0 0.0
    %2785 = vmatpush2.msra.mxu0 %v2739
    %2786 = vmatprep.subr.mxu0 0.0
    %2787 = vmatpush2.msra.mxu0 %v2738
    %2788 = vmatprep.subr.mxu0 0.0
    %2789 = vmatpush2.msra.mxu0 %v2737
    %2790 = vmatprep.subr.mxu0 0.0
    %2791 = vmatpush2.msra.mxu0 %v2736
    %2792 = vmatprep.subr.mxu0 0.0
    %2793 = vmatpush2.msra.mxu0 %v2735
    %2794 = vmatprep.subr.mxu0 0.0
    %2795 = vmatpush2.msra.mxu0 %v2734
    %2796 = vmatprep.subr.mxu0 0.0
    %2797 = vmatpush2.msra.mxu0 %v2733
    %2798 = vmatprep.subr.mxu0 0.0
    %2799 = vmatpush2.msra.mxu0 %v2732
    %2800 = vmatprep.subr.mxu0 0.0
    %2801 = vmatpush2.msra.mxu0 %v2731
    %2802 = vmatprep.subr.mxu0 0.0
    %2803 = vmatpush2.msra.mxu0 %v2730
    %2804 = vmatprep.subr.mxu0 0.0
    %2805 = vmatpush2.msra.mxu0 %v2729
    %2806 = vmatprep.subr.mxu0 0.0
    %2807 = vmatpush2.msra.mxu0 %v2728
    %2808 = vmatprep.mubr.f32.mxu0 %v2283
    %2809 = vmatmul.mubr.f32.gmra.mxu0 %v2281
    %v2810 = vpop.f32.mrf.mxu0
    %v2811 = vadd.f32 0.0, %v2810
    %v2812 = vpop.f32.mrf.mxu0
    %2813 = vmatprep.mubr.f32.mxu0 %v2289
    %2814 = vmatmul.mubr.f32.gmra.mxu0 %v2287
    %v2815 = vpop.f32.mrf.mxu0
    %v2816 = vadd.f32 0.0, %v2815
    %v2817 = vpop.f32.mrf.mxu0
    %2818 = vdwg.mxu0
    %2819 = vmatprep.subr.mxu0 0.0
    %2820 = vmatpush1.msra.mxu0 %v2727
    %2821 = vmatprep.subr.mxu0 0.0
    %2822 = vmatpush1.msra.mxu0 %v2726
    %2823 = vmatprep.subr.mxu0 0.0
    %2824 = vmatpush1.msra.mxu0 %v2725
    %2825 = vmatprep.subr.mxu0 0.0
    %2826 = vmatpush1.msra.mxu0 %v2724
    %2827 = vmatprep.subr.mxu0 0.0
    %2828 = vmatpush1.msra.mxu0 %v2723
    %2829 = vmatprep.subr.mxu0 0.0
    %2830 = vmatpush1.msra.mxu0 %v2722
    %2831 = vmatprep.subr.mxu0 0.0
    %2832 = vmatpush1.msra.mxu0 %v2721
    %2833 = vmatprep.subr.mxu0 0.0
    %2834 = vmatpush1.msra.mxu0 %v2720
    %2835 = vmatprep.subr.mxu0 0.0
    %2836 = vmatpush1.msra.mxu0 %v2719
    %2837 = vmatprep.subr.mxu0 0.0
    %2838 = vmatpush1.msra.mxu0 %v2718
    %2839 = vmatprep.subr.mxu0 0.0
    %2840 = vmatpush1.msra.mxu0 %v2717
    %2841 = vmatprep.subr.mxu0 0.0
    %2842 = vmatpush1.msra.mxu0 %v2716
    %2843 = vmatprep.subr.mxu0 0.0
    %2844 = vmatpush1.msra.mxu0 %v2715
    %2845 = vmatprep.subr.mxu0 0.0
    %2846 = vmatpush1.msra.mxu0 %v2714
    %2847 = vmatprep.subr.mxu0 0.0
    %2848 = vmatpush1.msra.mxu0 %v2713
    %2849 = vmatprep.subr.mxu0 0.0
    %2850 = vmatpush1.msra.mxu0 %v2712
    %2851 = vmatprep.subr.mxu0 0.0
    %2852 = vmatpush2.msra.mxu0 %v2743
    %2853 = vmatprep.subr.mxu0 0.0
    %2854 = vmatpush2.msra.mxu0 %v2742
    %2855 = vmatprep.subr.mxu0 0.0
    %2856 = vmatpush2.msra.mxu0 %v2741
    %2857 = vmatprep.subr.mxu0 0.0
    %2858 = vmatpush2.msra.mxu0 %v2740
    %2859 = vmatprep.subr.mxu0 0.0
    %2860 = vmatpush2.msra.mxu0 %v2739
    %2861 = vmatprep.subr.mxu0 0.0
    %2862 = vmatpush2.msra.mxu0 %v2738
    %2863 = vmatprep.subr.mxu0 0.0
    %2864 = vmatpush2.msra.mxu0 %v2737
    %2865 = vmatprep.subr.mxu0 0.0
    %2866 = vmatpush2.msra.mxu0 %v2736
    %2867 = vmatprep.subr.mxu0 0.0
    %2868 = vmatpush2.msra.mxu0 %v2735
    %2869 = vmatprep.subr.mxu0 0.0
    %2870 = vmatpush2.msra.mxu0 %v2734
    %2871 = vmatprep.subr.mxu0 0.0
    %2872 = vmatpush2.msra.mxu0 %v2733
    %2873 = vmatprep.subr.mxu0 0.0
    %2874 = vmatpush2.msra.mxu0 %v2732
    %2875 = vmatprep.subr.mxu0 0.0
    %2876 = vmatpush2.msra.mxu0 %v2731
    %2877 = vmatprep.subr.mxu0 0.0
    %2878 = vmatpush2.msra.mxu0 %v2730
    %2879 = vmatprep.subr.mxu0 0.0
    %2880 = vmatpush2.msra.mxu0 %v2729
    %2881 = vmatprep.subr.mxu0 0.0
    %2882 = vmatpush2.msra.mxu0 %v2728
    %2883 = vmatprep.mubr.f32.mxu0 %v2360
    %2884 = vmatmul.mubr.f32.gmra.mxu0 %v2358
    %v2885 = vpop.f32.mrf.mxu0
    %v2886 = vadd.f32 0.0, %v2885
    %v2887 = vpop.f32.mrf.mxu0
    %2888 = vmatprep.mubr.f32.mxu0 %v2366
    %2889 = vmatmul.mubr.f32.gmra.mxu0 %v2364
    %v2890 = vpop.f32.mrf.mxu0
    %v2891 = vadd.f32 0.0, %v2890
    %v2892 = vpop.f32.mrf.mxu0
    %2893 = vdwg.mxu0
    %v2894 = vld [vmem:[%s5] sm:$0xff]
    %v2895 = vld [vmem:[%s5 + $0x8] sm:$0xff]
    %v2896 = vld [vmem:[%s5 + $0x10] sm:$0xff]
    %v2897 = vld [vmem:[%s5 + $0x18] sm:$0xff]
    %v2898 = vld [vmem:[%s5 + $0x20] sm:$0xff]
    %v2899 = vld [vmem:[%s5 + $0x28] sm:$0xff]
    %v2900 = vld [vmem:[%s5 + $0x30] sm:$0xff]
    %v2901 = vld [vmem:[%s5 + $0x38] sm:$0xff]
    %v2902 = vld [vmem:[%s5 + $0x40] sm:$0xff]
    %v2903 = vld [vmem:[%s5 + $0x48] sm:$0xff]
    %v2904 = vld [vmem:[%s5 + $0x50] sm:$0xff]
    %v2905 = vld [vmem:[%s5 + $0x58] sm:$0xff]
    %v2906 = vld [vmem:[%s5 + $0x60] sm:$0xff]
    %v2907 = vld [vmem:[%s5 + $0x68] sm:$0xff]
    %v2908 = vld [vmem:[%s5 + $0x70] sm:$0xff]
    %v2909 = vld [vmem:[%s5 + $0x78] sm:$0xff]
    %v2910 = vld [vmem:[%s5 + $0x80] sm:$0xff]
    %v2911 = vld [vmem:[%s5 + $0x88] sm:$0xff]
    %v2912 = vld [vmem:[%s5 + $0x90] sm:$0xff]
    %v2913 = vld [vmem:[%s5 + $0x98] sm:$0xff]
    %v2914 = vld [vmem:[%s5 + $0xa0] sm:$0xff]
    %v2915 = vld [vmem:[%s5 + $0xa8] sm:$0xff]
    %v2916 = vld [vmem:[%s5 + $0xb0] sm:$0xff]
    %v2917 = vld [vmem:[%s5 + $0xb8] sm:$0xff]
    %v2918 = vld [vmem:[%s5 + $0xc0] sm:$0xff]
    %v2919 = vld [vmem:[%s5 + $0xc8] sm:$0xff]
    %v2920 = vld [vmem:[%s5 + $0xd0] sm:$0xff]
    %v2921 = vld [vmem:[%s5 + $0xd8] sm:$0xff]
    %v2922 = vld [vmem:[%s5 + $0xe0] sm:$0xff]
    %v2923 = vld [vmem:[%s5 + $0xe8] sm:$0xff]
    %v2924 = vld [vmem:[%s5 + $0xf0] sm:$0xff]
    %v2925 = vld [vmem:[%s5 + $0xf8] sm:$0xff]
    %2926 = vmatprep.subr.mxu0 0.0
    %2927 = vmatpush1.msra.mxu0 %v2909
    %2928 = vmatprep.subr.mxu0 0.0
    %2929 = vmatpush1.msra.mxu0 %v2908
    %2930 = vmatprep.subr.mxu0 0.0
    %2931 = vmatpush1.msra.mxu0 %v2907
    %2932 = vmatprep.subr.mxu0 0.0
    %2933 = vmatpush1.msra.mxu0 %v2906
    %2934 = vmatprep.subr.mxu0 0.0
    %2935 = vmatpush1.msra.mxu0 %v2905
    %2936 = vmatprep.subr.mxu0 0.0
    %2937 = vmatpush1.msra.mxu0 %v2904
    %2938 = vmatprep.subr.mxu0 0.0
    %2939 = vmatpush1.msra.mxu0 %v2903
    %2940 = vmatprep.subr.mxu0 0.0
    %2941 = vmatpush1.msra.mxu0 %v2902
    %2942 = vmatprep.subr.mxu0 0.0
    %2943 = vmatpush1.msra.mxu0 %v2901
    %2944 = vmatprep.subr.mxu0 0.0
    %2945 = vmatpush1.msra.mxu0 %v2900
    %2946 = vmatprep.subr.mxu0 0.0
    %2947 = vmatpush1.msra.mxu0 %v2899
    %2948 = vmatprep.subr.mxu0 0.0
    %2949 = vmatpush1.msra.mxu0 %v2898
    %2950 = vmatprep.subr.mxu0 0.0
    %2951 = vmatpush1.msra.mxu0 %v2897
    %2952 = vmatprep.subr.mxu0 0.0
    %2953 = vmatpush1.msra.mxu0 %v2896
    %2954 = vmatprep.subr.mxu0 0.0
    %2955 = vmatpush1.msra.mxu0 %v2895
    %2956 = vmatprep.subr.mxu0 0.0
    %2957 = vmatpush1.msra.mxu0 %v2894
    %2958 = vmatprep.subr.mxu0 0.0
    %2959 = vmatpush2.msra.mxu0 %v2925
    %2960 = vmatprep.subr.mxu0 0.0
    %2961 = vmatpush2.msra.mxu0 %v2924
    %2962 = vmatprep.subr.mxu0 0.0
    %2963 = vmatpush2.msra.mxu0 %v2923
    %2964 = vmatprep.subr.mxu0 0.0
    %2965 = vmatpush2.msra.mxu0 %v2922
    %2966 = vmatprep.subr.mxu0 0.0
    %2967 = vmatpush2.msra.mxu0 %v2921
    %2968 = vmatprep.subr.mxu0 0.0
    %2969 = vmatpush2.msra.mxu0 %v2920
    %2970 = vmatprep.subr.mxu0 0.0
    %2971 = vmatpush2.msra.mxu0 %v2919
    %2972 = vmatprep.subr.mxu0 0.0
    %2973 = vmatpush2.msra.mxu0 %v2918
    %2974 = vmatprep.subr.mxu0 0.0
    %2975 = vmatpush2.msra.mxu0 %v2917
    %2976 = vmatprep.subr.mxu0 0.0
    %2977 = vmatpush2.msra.mxu0 %v2916
    %2978 = vmatprep.subr.mxu0 0.0
    %2979 = vmatpush2.msra.mxu0 %v2915
    %2980 = vmatprep.subr.mxu0 0.0
    %2981 = vmatpush2.msra.mxu0 %v2914
    %2982 = vmatprep.subr.mxu0 0.0
    %2983 = vmatpush2.msra.mxu0 %v2913
    %2984 = vmatprep.subr.mxu0 0.0
    %2985 = vmatpush2.msra.mxu0 %v2912
    %2986 = vmatprep.subr.mxu0 0.0
    %2987 = vmatpush2.msra.mxu0 %v2911
    %2988 = vmatprep.subr.mxu0 0.0
    %2989 = vmatpush2.msra.mxu0 %v2910
    %2990 = vmatprep.mubr.f32.mxu0 %v2445
    %2991 = vmatmul.mubr.f32.gmra.mxu0 %v2443
    %v2992 = vpop.f32.mrf.mxu0
    %v2993 = vadd.f32 0.0, %v2992
    %v2994 = vpop.f32.mrf.mxu0
    %2995 = vmatprep.mubr.f32.mxu0 %v2451
    %2996 = vmatmul.mubr.f32.gmra.mxu0 %v2449
    %v2997 = vpop.f32.mrf.mxu0
    %v2998 = vadd.f32 0.0, %v2997
    %v2999 = vpop.f32.mrf.mxu0
    %3000 = vdwg.mxu0
    %3001 = vmatprep.subr.mxu0 0.0
    %3002 = vmatpush1.msra.mxu0 %v2909
    %3003 = vmatprep.subr.mxu0 0.0
    %3004 = vmatpush1.msra.mxu0 %v2908
    %3005 = vmatprep.subr.mxu0 0.0
    %3006 = vmatpush1.msra.mxu0 %v2907
    %3007 = vmatprep.subr.mxu0 0.0
    %3008 = vmatpush1.msra.mxu0 %v2906
    %3009 = vmatprep.subr.mxu0 0.0
    %3010 = vmatpush1.msra.mxu0 %v2905
    %3011 = vmatprep.subr.mxu0 0.0
    %3012 = vmatpush1.msra.mxu0 %v2904
    %3013 = vmatprep.subr.mxu0 0.0
    %3014 = vmatpush1.msra.mxu0 %v2903
    %3015 = vmatprep.subr.mxu0 0.0
    %3016 = vmatpush1.msra.mxu0 %v2902
    %3017 = vmatprep.subr.mxu0 0.0
    %3018 = vmatpush1.msra.mxu0 %v2901
    %3019 = vmatprep.subr.mxu0 0.0
    %3020 = vmatpush1.msra.mxu0 %v2900
    %3021 = vmatprep.subr.mxu0 0.0
    %3022 = vmatpush1.msra.mxu0 %v2899
    %3023 = vmatprep.subr.mxu0 0.0
    %3024 = vmatpush1.msra.mxu0 %v2898
    %3025 = vmatprep.subr.mxu0 0.0
    %3026 = vmatpush1.msra.mxu0 %v2897
    %3027 = vmatprep.subr.mxu0 0.0
    %3028 = vmatpush1.msra.mxu0 %v2896
    %3029 = vmatprep.subr.mxu0 0.0
    %3030 = vmatpush1.msra.mxu0 %v2895
    %3031 = vmatprep.subr.mxu0 0.0
    %3032 = vmatpush1.msra.mxu0 %v2894
    %3033 = vmatprep.subr.mxu0 0.0
    %3034 = vmatpush2.msra.mxu0 %v2925
    %3035 = vmatprep.subr.mxu0 0.0
    %3036 = vmatpush2.msra.mxu0 %v2924
    %3037 = vmatprep.subr.mxu0 0.0
    %3038 = vmatpush2.msra.mxu0 %v2923
    %3039 = vmatprep.subr.mxu0 0.0
    %3040 = vmatpush2.msra.mxu0 %v2922
    %3041 = vmatprep.subr.mxu0 0.0
    %3042 = vmatpush2.msra.mxu0 %v2921
    %3043 = vmatprep.subr.mxu0 0.0
    %3044 = vmatpush2.msra.mxu0 %v2920
    %3045 = vmatprep.subr.mxu0 0.0
    %3046 = vmatpush2.msra.mxu0 %v2919
    %3047 = vmatprep.subr.mxu0 0.0
    %3048 = vmatpush2.msra.mxu0 %v2918
    %3049 = vmatprep.subr.mxu0 0.0
    %3050 = vmatpush2.msra.mxu0 %v2917
    %3051 = vmatprep.subr.mxu0 0.0
    %3052 = vmatpush2.msra.mxu0 %v2916
    %3053 = vmatprep.subr.mxu0 0.0
    %3054 = vmatpush2.msra.mxu0 %v2915
    %3055 = vmatprep.subr.mxu0 0.0
    %3056 = vmatpush2.msra.mxu0 %v2914
    %3057 = vmatprep.subr.mxu0 0.0
    %3058 = vmatpush2.msra.mxu0 %v2913
    %3059 = vmatprep.subr.mxu0 0.0
    %3060 = vmatpush2.msra.mxu0 %v2912
    %3061 = vmatprep.subr.mxu0 0.0
    %3062 = vmatpush2.msra.mxu0 %v2911
    %3063 = vmatprep.subr.mxu0 0.0
    %3064 = vmatpush2.msra.mxu0 %v2910
    %3065 = vmatprep.mubr.f32.mxu0 %v2522
    %3066 = vmatmul.mubr.f32.gmra.mxu0 %v2520
    %v3067 = vpop.f32.mrf.mxu0
    %v3068 = vadd.f32 0.0, %v3067
    %v3069 = vpop.f32.mrf.mxu0
    %3070 = vmatprep.mubr.f32.mxu0 %v2528
    %3071 = vmatmul.mubr.f32.gmra.mxu0 %v2526
    %v3072 = vpop.f32.mrf.mxu0
    %v3073 = vadd.f32 0.0, %v3072
    %v3074 = vpop.f32.mrf.mxu0
    %3075 = vdwg.mxu0
    %v3076 = vld [vmem:[%s6] sm:$0xff]
    %v3077 = vld [vmem:[%s6 + $0x8] sm:$0xff]
    %v3078 = vld [vmem:[%s6 + $0x10] sm:$0xff]
    %v3079 = vld [vmem:[%s6 + $0x18] sm:$0xff]
    %v3080 = vld [vmem:[%s6 + $0x20] sm:$0xff]
    %v3081 = vld [vmem:[%s6 + $0x28] sm:$0xff]
    %v3082 = vld [vmem:[%s6 + $0x30] sm:$0xff]
    %v3083 = vld [vmem:[%s6 + $0x38] sm:$0xff]
    %v3084 = vld [vmem:[%s6 + $0x40] sm:$0xff]
    %v3085 = vld [vmem:[%s6 + $0x48] sm:$0xff]
    %v3086 = vld [vmem:[%s6 + $0x50] sm:$0xff]
    %v3087 = vld [vmem:[%s6 + $0x58] sm:$0xff]
    %v3088 = vld [vmem:[%s6 + $0x60] sm:$0xff]
    %v3089 = vld [vmem:[%s6 + $0x68] sm:$0xff]
    %v3090 = vld [vmem:[%s6 + $0x70] sm:$0xff]
    %v3091 = vld [vmem:[%s6 + $0x78] sm:$0xff]
    %v3092 = vld [vmem:[%s6 + $0x80] sm:$0xff]
    %v3093 = vld [vmem:[%s6 + $0x88] sm:$0xff]
    %v3094 = vld [vmem:[%s6 + $0x90] sm:$0xff]
    %v3095 = vld [vmem:[%s6 + $0x98] sm:$0xff]
    %v3096 = vld [vmem:[%s6 + $0xa0] sm:$0xff]
    %v3097 = vld [vmem:[%s6 + $0xa8] sm:$0xff]
    %v3098 = vld [vmem:[%s6 + $0xb0] sm:$0xff]
    %v3099 = vld [vmem:[%s6 + $0xb8] sm:$0xff]
    %v3100 = vld [vmem:[%s6 + $0xc0] sm:$0xff]
    %v3101 = vld [vmem:[%s6 + $0xc8] sm:$0xff]
    %v3102 = vld [vmem:[%s6 + $0xd0] sm:$0xff]
    %v3103 = vld [vmem:[%s6 + $0xd8] sm:$0xff]
    %v3104 = vld [vmem:[%s6 + $0xe0] sm:$0xff]
    %v3105 = vld [vmem:[%s6 + $0xe8] sm:$0xff]
    %v3106 = vld [vmem:[%s6 + $0xf0] sm:$0xff]
    %v3107 = vld [vmem:[%s6 + $0xf8] sm:$0xff]
    %3108 = vmatprep.subr.mxu0 0.0
    %3109 = vmatpush1.msra.mxu0 %v3091
    %3110 = vmatprep.subr.mxu0 0.0
    %3111 = vmatpush1.msra.mxu0 %v3090
    %3112 = vmatprep.subr.mxu0 0.0
    %3113 = vmatpush1.msra.mxu0 %v3089
    %3114 = vmatprep.subr.mxu0 0.0
    %3115 = vmatpush1.msra.mxu0 %v3088
    %3116 = vmatprep.subr.mxu0 0.0
    %3117 = vmatpush1.msra.mxu0 %v3087
    %3118 = vmatprep.subr.mxu0 0.0
    %3119 = vmatpush1.msra.mxu0 %v3086
    %3120 = vmatprep.subr.mxu0 0.0
    %3121 = vmatpush1.msra.mxu0 %v3085
    %3122 = vmatprep.subr.mxu0 0.0
    %3123 = vmatpush1.msra.mxu0 %v3084
    %3124 = vmatprep.subr.mxu0 0.0
    %3125 = vmatpush1.msra.mxu0 %v3083
    %3126 = vmatprep.subr.mxu0 0.0
    %3127 = vmatpush1.msra.mxu0 %v3082
    %3128 = vmatprep.subr.mxu0 0.0
    %3129 = vmatpush1.msra.mxu0 %v3081
    %3130 = vmatprep.subr.mxu0 0.0
    %3131 = vmatpush1.msra.mxu0 %v3080
    %3132 = vmatprep.subr.mxu0 0.0
    %3133 = vmatpush1.msra.mxu0 %v3079
    %3134 = vmatprep.subr.mxu0 0.0
    %3135 = vmatpush1.msra.mxu0 %v3078
    %3136 = vmatprep.subr.mxu0 0.0
    %3137 = vmatpush1.msra.mxu0 %v3077
    %3138 = vmatprep.subr.mxu0 0.0
    %3139 = vmatpush1.msra.mxu0 %v3076
    %3140 = vmatprep.subr.mxu0 0.0
    %3141 = vmatpush2.msra.mxu0 %v3107
    %3142 = vmatprep.subr.mxu0 0.0
    %3143 = vmatpush2.msra.mxu0 %v3106
    %3144 = vmatprep.subr.mxu0 0.0
    %3145 = vmatpush2.msra.mxu0 %v3105
    %3146 = vmatprep.subr.mxu0 0.0
    %3147 = vmatpush2.msra.mxu0 %v3104
    %3148 = vmatprep.subr.mxu0 0.0
    %3149 = vmatpush2.msra.mxu0 %v3103
    %3150 = vmatprep.subr.mxu0 0.0
    %3151 = vmatpush2.msra.mxu0 %v3102
    %3152 = vmatprep.subr.mxu0 0.0
    %3153 = vmatpush2.msra.mxu0 %v3101
    %3154 = vmatprep.subr.mxu0 0.0
    %3155 = vmatpush2.msra.mxu0 %v3100
    %3156 = vmatprep.subr.mxu0 0.0
    %3157 = vmatpush2.msra.mxu0 %v3099
    %3158 = vmatprep.subr.mxu0 0.0
    %3159 = vmatpush2.msra.mxu0 %v3098
    %3160 = vmatprep.subr.mxu0 0.0
    %3161 = vmatpush2.msra.mxu0 %v3097
    %3162 = vmatprep.subr.mxu0 0.0
    %3163 = vmatpush2.msra.mxu0 %v3096
    %3164 = vmatprep.subr.mxu0 0.0
    %3165 = vmatpush2.msra.mxu0 %v3095
    %3166 = vmatprep.subr.mxu0 0.0
    %3167 = vmatpush2.msra.mxu0 %v3094
    %3168 = vmatprep.subr.mxu0 0.0
    %3169 = vmatpush2.msra.mxu0 %v3093
    %3170 = vmatprep.subr.mxu0 0.0
    %3171 = vmatpush2.msra.mxu0 %v3092
    %3172 = vmatprep.mubr.f32.mxu0 %v2445
    %3173 = vmatmul.mubr.f32.gmra.mxu0 %v2443
    %v3174 = vpop.f32.mrf.mxu0
    %v3175 = vadd.f32 0.0, %v3174
    %v3176 = vpop.f32.mrf.mxu0
    %3177 = vmatprep.mubr.f32.mxu0 %v2451
    %3178 = vmatmul.mubr.f32.gmra.mxu0 %v2449
    %v3179 = vpop.f32.mrf.mxu0
    %v3180 = vadd.f32 0.0, %v3179
    %v3181 = vpop.f32.mrf.mxu0
    %3182 = vdwg.mxu0
    %3183 = vmatprep.subr.mxu0 0.0
    %3184 = vmatpush1.msra.mxu0 %v3091
    %3185 = vmatprep.subr.mxu0 0.0
    %3186 = vmatpush1.msra.mxu0 %v3090
    %3187 = vmatprep.subr.mxu0 0.0
    %3188 = vmatpush1.msra.mxu0 %v3089
    %3189 = vmatprep.subr.mxu0 0.0
    %3190 = vmatpush1.msra.mxu0 %v3088
    %3191 = vmatprep.subr.mxu0 0.0
    %3192 = vmatpush1.msra.mxu0 %v3087
    %3193 = vmatprep.subr.mxu0 0.0
    %3194 = vmatpush1.msra.mxu0 %v3086
    %3195 = vmatprep.subr.mxu0 0.0
    %3196 = vmatpush1.msra.mxu0 %v3085
    %3197 = vmatprep.subr.mxu0 0.0
    %3198 = vmatpush1.msra.mxu0 %v3084
    %3199 = vmatprep.subr.mxu0 0.0
    %3200 = vmatpush1.msra.mxu0 %v3083
    %3201 = vmatprep.subr.mxu0 0.0
    %3202 = vmatpush1.msra.mxu0 %v3082
    %3203 = vmatprep.subr.mxu0 0.0
    %3204 = vmatpush1.msra.mxu0 %v3081
    %3205 = vmatprep.subr.mxu0 0.0
    %3206 = vmatpush1.msra.mxu0 %v3080
    %3207 = vmatprep.subr.mxu0 0.0
    %3208 = vmatpush1.msra.mxu0 %v3079
    %3209 = vmatprep.subr.mxu0 0.0
    %3210 = vmatpush1.msra.mxu0 %v3078
    %3211 = vmatprep.subr.mxu0 0.0
    %3212 = vmatpush1.msra.mxu0 %v3077
    %3213 = vmatprep.subr.mxu0 0.0
    %3214 = vmatpush1.msra.mxu0 %v3076
    %3215 = vmatprep.subr.mxu0 0.0
    %3216 = vmatpush2.msra.mxu0 %v3107
    %3217 = vmatprep.subr.mxu0 0.0
    %3218 = vmatpush2.msra.mxu0 %v3106
    %3219 = vmatprep.subr.mxu0 0.0
    %3220 = vmatpush2.msra.mxu0 %v3105
    %3221 = vmatprep.subr.mxu0 0.0
    %3222 = vmatpush2.msra.mxu0 %v3104
    %3223 = vmatprep.subr.mxu0 0.0
    %3224 = vmatpush2.msra.mxu0 %v3103
    %3225 = vmatprep.subr.mxu0 0.0
    %3226 = vmatpush2.msra.mxu0 %v3102
    %3227 = vmatprep.subr.mxu0 0.0
    %3228 = vmatpush2.msra.mxu0 %v3101
    %3229 = vmatprep.subr.mxu0 0.0
    %3230 = vmatpush2.msra.mxu0 %v3100
    %3231 = vmatprep.subr.mxu0 0.0
    %3232 = vmatpush2.msra.mxu0 %v3099
    %3233 = vmatprep.subr.mxu0 0.0
    %3234 = vmatpush2.msra.mxu0 %v3098
    %3235 = vmatprep.subr.mxu0 0.0
    %3236 = vmatpush2.msra.mxu0 %v3097
    %3237 = vmatprep.subr.mxu0 0.0
    %3238 = vmatpush2.msra.mxu0 %v3096
    %3239 = vmatprep.subr.mxu0 0.0
    %3240 = vmatpush2.msra.mxu0 %v3095
    %3241 = vmatprep.subr.mxu0 0.0
    %3242 = vmatpush2.msra.mxu0 %v3094
    %3243 = vmatprep.subr.mxu0 0.0
    %3244 = vmatpush2.msra.mxu0 %v3093
    %3245 = vmatprep.subr.mxu0 0.0
    %3246 = vmatpush2.msra.mxu0 %v3092
    %3247 = vmatprep.mubr.f32.mxu0 %v2522
    %3248 = vmatmul.mubr.f32.gmra.mxu0 %v2520
    %v3249 = vpop.f32.mrf.mxu0
    %v3250 = vadd.f32 0.0, %v3249
    %v3251 = vpop.f32.mrf.mxu0
    %3252 = vmatprep.mubr.f32.mxu0 %v2528
    %3253 = vmatmul.mubr.f32.gmra.mxu0 %v2526
    %v3254 = vpop.f32.mrf.mxu0
    %v3255 = vadd.f32 0.0, %v3254
    %v3256 = vpop.f32.mrf.mxu0
    %3257 = vdwg.mxu0
    %v3258 = vmax.f32 %v2629, %v2811
    %v3259 = vmax.f32 %v2634, %v2816
    %v3260 = vmax.f32 %v2704, %v2886
    %v3261 = vmax.f32 %v2709, %v2891
    %v3262 = vmax.f32 %v2993, %v3175
    %v3263 = vmax.f32 %v2998, %v3180
    %v3264 = vmax.f32 %v3068, %v3250
    %v3265 = vmax.f32 %v3073, %v3255
    %v3266 = vmax.f32 %v3258, %v3262
    %v3267 = vmax.f32 %v3259, %v3263
    %v3268 = vmax.f32 %v3260, %v3264
    %v3269 = vmax.f32 %v3261, %v3265
    %v3270 = vld [vmem:[%s7] sm:$0xff]
    %v3271 = vld [vmem:[%s7 + $0x8] sm:$0xff]
    %v3272 = vld [vmem:[%s7 + $0x10] sm:$0xff]
    %v3273 = vld [vmem:[%s7 + $0x18] sm:$0xff]
    %v3274 = vld [vmem:[%s7 + $0x20] sm:$0xff]
    %v3275 = vld [vmem:[%s7 + $0x28] sm:$0xff]
    %v3276 = vld [vmem:[%s7 + $0x30] sm:$0xff]
    %v3277 = vld [vmem:[%s7 + $0x38] sm:$0xff]
    %v3278 = vld [vmem:[%s7 + $0x40] sm:$0xff]
    %v3279 = vld [vmem:[%s7 + $0x48] sm:$0xff]
    %v3280 = vld [vmem:[%s7 + $0x50] sm:$0xff]
    %v3281 = vld [vmem:[%s7 + $0x58] sm:$0xff]
    %v3282 = vld [vmem:[%s7 + $0x60] sm:$0xff]
    %v3283 = vld [vmem:[%s7 + $0x68] sm:$0xff]
    %v3284 = vld [vmem:[%s7 + $0x70] sm:$0xff]
    %v3285 = vld [vmem:[%s7 + $0x78] sm:$0xff]
    %v3286 = vld [vmem:[%s7 + $0x80] sm:$0xff]
    %v3287 = vld [vmem:[%s7 + $0x88] sm:$0xff]
    %v3288 = vld [vmem:[%s7 + $0x90] sm:$0xff]
    %v3289 = vld [vmem:[%s7 + $0x98] sm:$0xff]
    %v3290 = vld [vmem:[%s7 + $0xa0] sm:$0xff]
    %v3291 = vld [vmem:[%s7 + $0xa8] sm:$0xff]
    %v3292 = vld [vmem:[%s7 + $0xb0] sm:$0xff]
    %v3293 = vld [vmem:[%s7 + $0xb8] sm:$0xff]
    %v3294 = vld [vmem:[%s7 + $0xc0] sm:$0xff]
    %v3295 = vld [vmem:[%s7 + $0xc8] sm:$0xff]
    %v3296 = vld [vmem:[%s7 + $0xd0] sm:$0xff]
    %v3297 = vld [vmem:[%s7 + $0xd8] sm:$0xff]
    %v3298 = vld [vmem:[%s7 + $0xe0] sm:$0xff]
    %v3299 = vld [vmem:[%s7 + $0xe8] sm:$0xff]
    %v3300 = vld [vmem:[%s7 + $0xf0] sm:$0xff]
    %v3301 = vld [vmem:[%s7 + $0xf8] sm:$0xff]
    %s3302 = scalar_lea.vmem %s7, 256
    %v3303 = vld [vmem:[%s3302] sm:$0xff]
    %v3304 = vld [vmem:[%s3302 + $0x8] sm:$0xff]
    %v3305 = vld [vmem:[%s3302 + $0x10] sm:$0xff]
    %v3306 = vld [vmem:[%s3302 + $0x18] sm:$0xff]
    %v3307 = vld [vmem:[%s3302 + $0x20] sm:$0xff]
    %v3308 = vld [vmem:[%s3302 + $0x28] sm:$0xff]
    %v3309 = vld [vmem:[%s3302 + $0x30] sm:$0xff]
    %v3310 = vld [vmem:[%s3302 + $0x38] sm:$0xff]
    %v3311 = vld [vmem:[%s3302 + $0x40] sm:$0xff]
    %v3312 = vld [vmem:[%s3302 + $0x48] sm:$0xff]
    %v3313 = vld [vmem:[%s3302 + $0x50] sm:$0xff]
    %v3314 = vld [vmem:[%s3302 + $0x58] sm:$0xff]
    %v3315 = vld [vmem:[%s3302 + $0x60] sm:$0xff]
    %v3316 = vld [vmem:[%s3302 + $0x68] sm:$0xff]
    %v3317 = vld [vmem:[%s3302 + $0x70] sm:$0xff]
    %v3318 = vld [vmem:[%s3302 + $0x78] sm:$0xff]
    %v3319 = vld [vmem:[%s3302 + $0x80] sm:$0xff]
    %v3320 = vld [vmem:[%s3302 + $0x88] sm:$0xff]
    %v3321 = vld [vmem:[%s3302 + $0x90] sm:$0xff]
    %v3322 = vld [vmem:[%s3302 + $0x98] sm:$0xff]
    %v3323 = vld [vmem:[%s3302 + $0xa0] sm:$0xff]
    %v3324 = vld [vmem:[%s3302 + $0xa8] sm:$0xff]
    %v3325 = vld [vmem:[%s3302 + $0xb0] sm:$0xff]
    %v3326 = vld [vmem:[%s3302 + $0xb8] sm:$0xff]
    %v3327 = vld [vmem:[%s3302 + $0xc0] sm:$0xff]
    %v3328 = vld [vmem:[%s3302 + $0xc8] sm:$0xff]
    %v3329 = vld [vmem:[%s3302 + $0xd0] sm:$0xff]
    %v3330 = vld [vmem:[%s3302 + $0xd8] sm:$0xff]
    %v3331 = vld [vmem:[%s3302 + $0xe0] sm:$0xff]
    %v3332 = vld [vmem:[%s3302 + $0xe8] sm:$0xff]
    %v3333 = vld [vmem:[%s3302 + $0xf0] sm:$0xff]
    %v3334 = vld [vmem:[%s3302 + $0xf8] sm:$0xff]
    %v3337 = vrot.slane %v3266, 1
    %v3338 = vrot.slane %v3267, 1
    %v3339 = vsel %vm99, %v3337, %v3338
    %3342 = vmatprep.subr.mxu0 %v3334
    %3343 = vmatpush1.msra.mxu0 %v3333
    %3344 = vmatprep.subr.mxu0 %v3332
    %3345 = vmatpush1.msra.mxu0 %v3331
    %3346 = vmatprep.subr.mxu0 %v3330
    %3347 = vmatpush1.msra.mxu0 %v3329
    %3348 = vmatprep.subr.mxu0 %v3328
    %3349 = vmatpush1.msra.mxu0 %v3327
    %3350 = vmatprep.subr.mxu0 %v3326
    %3351 = vmatpush1.msra.mxu0 %v3325
    %3352 = vmatprep.subr.mxu0 %v3324
    %3353 = vmatpush1.msra.mxu0 %v3323
    %3354 = vmatprep.subr.mxu0 %v3322
    %3355 = vmatpush1.msra.mxu0 %v3321
    %3356 = vmatprep.subr.mxu0 %v3320
    %3357 = vmatpush1.msra.mxu0 %v3319
    %3358 = vmatprep.subr.mxu0 %v3318
    %3359 = vmatpush1.msra.mxu0 %v3317
    %3360 = vmatprep.subr.mxu0 %v3316
    %3361 = vmatpush1.msra.mxu0 %v3315
    %3362 = vmatprep.subr.mxu0 %v3314
    %3363 = vmatpush1.msra.mxu0 %v3313
    %3364 = vmatprep.subr.mxu0 %v3312
    %3365 = vmatpush1.msra.mxu0 %v3311
    %3366 = vmatprep.subr.mxu0 %v3310
    %3367 = vmatpush1.msra.mxu0 %v3309
    %3368 = vmatprep.subr.mxu0 %v3308
    %3369 = vmatpush1.msra.mxu0 %v3307
    %3370 = vmatprep.subr.mxu0 %v3306
    %3371 = vmatpush1.msra.mxu0 %v3305
    %3372 = vmatprep.subr.mxu0 %v3304
    %3373 = vmatpush1.msra.mxu0 %v3303
    %3374 = vmatprep.subr.mxu0 0.0
    %3375 = vmatpush2.msra.mxu0 0.0
    %3376 = vmatprep.subr.mxu0 0.0
    %3377 = vmatpush2.msra.mxu0 0.0
    %3378 = vmatprep.subr.mxu0 0.0
    %3379 = vmatpush2.msra.mxu0 0.0
    %3380 = vmatprep.subr.mxu0 0.0
    %3381 = vmatpush2.msra.mxu0 0.0
    %3382 = vmatprep.subr.mxu0 0.0
    %3383 = vmatpush2.msra.mxu0 0.0
    %3384 = vmatprep.subr.mxu0 0.0
    %3385 = vmatpush2.msra.mxu0 0.0
    %3386 = vmatprep.subr.mxu0 0.0
    %3387 = vmatpush2.msra.mxu0 0.0
    %3388 = vmatprep.subr.mxu0 0.0
    %3389 = vmatpush2.msra.mxu0 0.0
    %3390 = vmatprep.subr.mxu0 0.0
    %3391 = vmatpush2.msra.mxu0 0.0
    %3392 = vmatprep.subr.mxu0 0.0
    %3393 = vmatpush2.msra.mxu0 0.0
    %3394 = vmatprep.subr.mxu0 0.0
    %3395 = vmatpush2.msra.mxu0 0.0
    %3396 = vmatprep.subr.mxu0 0.0
    %3397 = vmatpush2.msra.mxu0 0.0
    %3398 = vmatprep.subr.mxu0 0.0
    %3399 = vmatpush2.msra.mxu0 0.0
    %3400 = vmatprep.subr.mxu0 0.0
    %3401 = vmatpush2.msra.mxu0 0.0
    %3402 = vmatprep.subr.mxu0 0.0
    %3403 = vmatpush2.msra.mxu0 0.0
    %3404 = vmatprep.subr.mxu0 0.0
    %3405 = vmatpush2.msra.mxu0 0.0
    %3406 = vmatprep.mubr.f32.mxu0 0.0
    %3407 = vmatmul.mubr.f32.gmra.mxu0 %v3339
    %v3408 = vpop.f32.mrf.mxu0
    %v3409 = vadd.f32 0.0, %v3408
    %v3410 = vpop.f32.mrf.mxu0
    %v3411 = vadd.f32 0.0, %v3410
    %3412 = vmatprep.mubr.f32.mxu0 0.0
    %3413 = vmatmul.mubr.f32.gmra.mxu0 %v3338
    %v3414 = vpop.f32.mrf.mxu0
    %v3415 = vadd.f32 0.0, %v3414
    %v3416 = vpop.f32.mrf.mxu0
    %v3417 = vadd.f32 0.0, %v3416
    %3418 = vdwg.mxu0
    %v3421 = vrot.slane %v3268, 1
    %v3422 = vrot.slane %v3269, 1
    %v3423 = vsel %vm99, %v3421, %v3422
    %3426 = vmatprep.subr.mxu0 %v3334
    %3427 = vmatpush1.msra.mxu0 %v3333
    %3428 = vmatprep.subr.mxu0 %v3332
    %3429 = vmatpush1.msra.mxu0 %v3331
    %3430 = vmatprep.subr.mxu0 %v3330
    %3431 = vmatpush1.msra.mxu0 %v3329
    %3432 = vmatprep.subr.mxu0 %v3328
    %3433 = vmatpush1.msra.mxu0 %v3327
    %3434 = vmatprep.subr.mxu0 %v3326
    %3435 = vmatpush1.msra.mxu0 %v3325
    %3436 = vmatprep.subr.mxu0 %v3324
    %3437 = vmatpush1.msra.mxu0 %v3323
    %3438 = vmatprep.subr.mxu0 %v3322
    %3439 = vmatpush1.msra.mxu0 %v3321
    %3440 = vmatprep.subr.mxu0 %v3320
    %3441 = vmatpush1.msra.mxu0 %v3319
    %3442 = vmatprep.subr.mxu0 %v3318
    %3443 = vmatpush1.msra.mxu0 %v3317
    %3444 = vmatprep.subr.mxu0 %v3316
    %3445 = vmatpush1.msra.mxu0 %v3315
    %3446 = vmatprep.subr.mxu0 %v3314
    %3447 = vmatpush1.msra.mxu0 %v3313
    %3448 = vmatprep.subr.mxu0 %v3312
    %3449 = vmatpush1.msra.mxu0 %v3311
    %3450 = vmatprep.subr.mxu0 %v3310
    %3451 = vmatpush1.msra.mxu0 %v3309
    %3452 = vmatprep.subr.mxu0 %v3308
    %3453 = vmatpush1.msra.mxu0 %v3307
    %3454 = vmatprep.subr.mxu0 %v3306
    %3455 = vmatpush1.msra.mxu0 %v3305
    %3456 = vmatprep.subr.mxu0 %v3304
    %3457 = vmatpush1.msra.mxu0 %v3303
    %3458 = vmatprep.subr.mxu0 0.0
    %3459 = vmatpush2.msra.mxu0 0.0
    %3460 = vmatprep.subr.mxu0 0.0
    %3461 = vmatpush2.msra.mxu0 0.0
    %3462 = vmatprep.subr.mxu0 0.0
    %3463 = vmatpush2.msra.mxu0 0.0
    %3464 = vmatprep.subr.mxu0 0.0
    %3465 = vmatpush2.msra.mxu0 0.0
    %3466 = vmatprep.subr.mxu0 0.0
    %3467 = vmatpush2.msra.mxu0 0.0
    %3468 = vmatprep.subr.mxu0 0.0
    %3469 = vmatpush2.msra.mxu0 0.0
    %3470 = vmatprep.subr.mxu0 0.0
    %3471 = vmatpush2.msra.mxu0 0.0
    %3472 = vmatprep.subr.mxu0 0.0
    %3473 = vmatpush2.msra.mxu0 0.0
    %3474 = vmatprep.subr.mxu0 0.0
    %3475 = vmatpush2.msra.mxu0 0.0
    %3476 = vmatprep.subr.mxu0 0.0
    %3477 = vmatpush2.msra.mxu0 0.0
    %3478 = vmatprep.subr.mxu0 0.0
    %3479 = vmatpush2.msra.mxu0 0.0
    %3480 = vmatprep.subr.mxu0 0.0
    %3481 = vmatpush2.msra.mxu0 0.0
    %3482 = vmatprep.subr.mxu0 0.0
    %3483 = vmatpush2.msra.mxu0 0.0
    %3484 = vmatprep.subr.mxu0 0.0
    %3485 = vmatpush2.msra.mxu0 0.0
    %3486 = vmatprep.subr.mxu0 0.0
    %3487 = vmatpush2.msra.mxu0 0.0
    %3488 = vmatprep.subr.mxu0 0.0
    %3489 = vmatpush2.msra.mxu0 0.0
    %3490 = vmatprep.mubr.f32.mxu0 0.0
    %3491 = vmatmul.mubr.f32.gmra.mxu0 %v3423
    %v3492 = vpop.f32.mrf.mxu0
    %v3493 = vadd.f32 0.0, %v3492
    %v3494 = vpop.f32.mrf.mxu0
    %v3495 = vadd.f32 0.0, %v3494
    %3496 = vmatprep.mubr.f32.mxu0 0.0
    %3497 = vmatmul.mubr.f32.gmra.mxu0 %v3422
    %v3498 = vpop.f32.mrf.mxu0
    %v3499 = vadd.f32 0.0, %v3498
    %v3500 = vpop.f32.mrf.mxu0
    %v3501 = vadd.f32 0.0, %v3500
    %3502 = vdwg.mxu0
    %3503 = vmatprep.subr.mxu0 %v3301
    %3504 = vmatpush1.msra.mxu0 %v3300
    %3505 = vmatprep.subr.mxu0 %v3299
    %3506 = vmatpush1.msra.mxu0 %v3298
    %3507 = vmatprep.subr.mxu0 %v3297
    %3508 = vmatpush1.msra.mxu0 %v3296
    %3509 = vmatprep.subr.mxu0 %v3295
    %3510 = vmatpush1.msra.mxu0 %v3294
    %3511 = vmatprep.subr.mxu0 %v3293
    %3512 = vmatpush1.msra.mxu0 %v3292
    %3513 = vmatprep.subr.mxu0 %v3291
    %3514 = vmatpush1.msra.mxu0 %v3290
    %3515 = vmatprep.subr.mxu0 %v3289
    %3516 = vmatpush1.msra.mxu0 %v3288
    %3517 = vmatprep.subr.mxu0 %v3287
    %3518 = vmatpush1.msra.mxu0 %v3286
    %3519 = vmatprep.subr.mxu0 %v3285
    %3520 = vmatpush1.msra.mxu0 %v3284
    %3521 = vmatprep.subr.mxu0 %v3283
    %3522 = vmatpush1.msra.mxu0 %v3282
    %3523 = vmatprep.subr.mxu0 %v3281
    %3524 = vmatpush1.msra.mxu0 %v3280
    %3525 = vmatprep.subr.mxu0 %v3279
    %3526 = vmatpush1.msra.mxu0 %v3278
    %3527 = vmatprep.subr.mxu0 %v3277
    %3528 = vmatpush1.msra.mxu0 %v3276
    %3529 = vmatprep.subr.mxu0 %v3275
    %3530 = vmatpush1.msra.mxu0 %v3274
    %3531 = vmatprep.subr.mxu0 %v3273
    %3532 = vmatpush1.msra.mxu0 %v3272
    %3533 = vmatprep.subr.mxu0 %v3271
    %3534 = vmatpush1.msra.mxu0 %v3270
    %3535 = vmatprep.subr.mxu0 0.0
    %3536 = vmatpush2.msra.mxu0 0.0
    %3537 = vmatprep.subr.mxu0 0.0
    %3538 = vmatpush2.msra.mxu0 0.0
    %3539 = vmatprep.subr.mxu0 0.0
    %3540 = vmatpush2.msra.mxu0 0.0
    %3541 = vmatprep.subr.mxu0 0.0
    %3542 = vmatpush2.msra.mxu0 0.0
    %3543 = vmatprep.subr.mxu0 0.0
    %3544 = vmatpush2.msra.mxu0 0.0
    %3545 = vmatprep.subr.mxu0 0.0
    %3546 = vmatpush2.msra.mxu0 0.0
    %3547 = vmatprep.subr.mxu0 0.0
    %3548 = vmatpush2.msra.mxu0 0.0
    %3549 = vmatprep.subr.mxu0 0.0
    %3550 = vmatpush2.msra.mxu0 0.0
    %3551 = vmatprep.subr.mxu0 0.0
    %3552 = vmatpush2.msra.mxu0 0.0
    %3553 = vmatprep.subr.mxu0 0.0
    %3554 = vmatpush2.msra.mxu0 0.0
    %3555 = vmatprep.subr.mxu0 0.0
    %3556 = vmatpush2.msra.mxu0 0.0
    %3557 = vmatprep.subr.mxu0 0.0
    %3558 = vmatpush2.msra.mxu0 0.0
    %3559 = vmatprep.subr.mxu0 0.0
    %3560 = vmatpush2.msra.mxu0 0.0
    %3561 = vmatprep.subr.mxu0 0.0
    %3562 = vmatpush2.msra.mxu0 0.0
    %3563 = vmatprep.subr.mxu0 0.0
    %3564 = vmatpush2.msra.mxu0 0.0
    %3565 = vmatprep.subr.mxu0 0.0
    %3566 = vmatpush2.msra.mxu0 0.0
    %3567 = vmatprep.mubr.f32.mxu0 0.0
    %3568 = vmatmul.mubr.f32.gmra.mxu0 %v3266
    %v3569 = vpop.f32.mrf.mxu0
    %v3570 = vadd.f32 %v3409, %v3569
    %v3571 = vpop.f32.mrf.mxu0
    %v3572 = vadd.f32 %v3411, %v3571
    %3573 = vmatprep.mubr.f32.mxu0 0.0
    %3574 = vmatmul.mubr.f32.gmra.mxu0 %v3267
    %v3575 = vpop.f32.mrf.mxu0
    %v3576 = vadd.f32 %v3415, %v3575
    %v3577 = vpop.f32.mrf.mxu0
    %v3578 = vadd.f32 %v3417, %v3577
    %3579 = vdwg.mxu0
    %3580 = vmatprep.subr.mxu0 %v3301
    %3581 = vmatpush1.msra.mxu0 %v3300
    %3582 = vmatprep.subr.mxu0 %v3299
    %3583 = vmatpush1.msra.mxu0 %v3298
    %3584 = vmatprep.subr.mxu0 %v3297
    %3585 = vmatpush1.msra.mxu0 %v3296
    %3586 = vmatprep.subr.mxu0 %v3295
    %3587 = vmatpush1.msra.mxu0 %v3294
    %3588 = vmatprep.subr.mxu0 %v3293
    %3589 = vmatpush1.msra.mxu0 %v3292
    %3590 = vmatprep.subr.mxu0 %v3291
    %3591 = vmatpush1.msra.mxu0 %v3290
    %3592 = vmatprep.subr.mxu0 %v3289
    %3593 = vmatpush1.msra.mxu0 %v3288
    %3594 = vmatprep.subr.mxu0 %v3287
    %3595 = vmatpush1.msra.mxu0 %v3286
    %3596 = vmatprep.subr.mxu0 %v3285
    %3597 = vmatpush1.msra.mxu0 %v3284
    %3598 = vmatprep.subr.mxu0 %v3283
    %3599 = vmatpush1.msra.mxu0 %v3282
    %3600 = vmatprep.subr.mxu0 %v3281
    %3601 = vmatpush1.msra.mxu0 %v3280
    %3602 = vmatprep.subr.mxu0 %v3279
    %3603 = vmatpush1.msra.mxu0 %v3278
    %3604 = vmatprep.subr.mxu0 %v3277
    %3605 = vmatpush1.msra.mxu0 %v3276
    %3606 = vmatprep.subr.mxu0 %v3275
    %3607 = vmatpush1.msra.mxu0 %v3274
    %3608 = vmatprep.subr.mxu0 %v3273
    %3609 = vmatpush1.msra.mxu0 %v3272
    %3610 = vmatprep.subr.mxu0 %v3271
    %3611 = vmatpush1.msra.mxu0 %v3270
    %3612 = vmatprep.subr.mxu0 0.0
    %3613 = vmatpush2.msra.mxu0 0.0
    %3614 = vmatprep.subr.mxu0 0.0
    %3615 = vmatpush2.msra.mxu0 0.0
    %3616 = vmatprep.subr.mxu0 0.0
    %3617 = vmatpush2.msra.mxu0 0.0
    %3618 = vmatprep.subr.mxu0 0.0
    %3619 = vmatpush2.msra.mxu0 0.0
    %3620 = vmatprep.subr.mxu0 0.0
    %3621 = vmatpush2.msra.mxu0 0.0
    %3622 = vmatprep.subr.mxu0 0.0
    %3623 = vmatpush2.msra.mxu0 0.0
    %3624 = vmatprep.subr.mxu0 0.0
    %3625 = vmatpush2.msra.mxu0 0.0
    %3626 = vmatprep.subr.mxu0 0.0
    %3627 = vmatpush2.msra.mxu0 0.0
    %3628 = vmatprep.subr.mxu0 0.0
    %3629 = vmatpush2.msra.mxu0 0.0
    %3630 = vmatprep.subr.mxu0 0.0
    %3631 = vmatpush2.msra.mxu0 0.0
    %3632 = vmatprep.subr.mxu0 0.0
    %3633 = vmatpush2.msra.mxu0 0.0
    %3634 = vmatprep.subr.mxu0 0.0
    %3635 = vmatpush2.msra.mxu0 0.0
    %3636 = vmatprep.subr.mxu0 0.0
    %3637 = vmatpush2.msra.mxu0 0.0
    %3638 = vmatprep.subr.mxu0 0.0
    %3639 = vmatpush2.msra.mxu0 0.0
    %3640 = vmatprep.subr.mxu0 0.0
    %3641 = vmatpush2.msra.mxu0 0.0
    %3642 = vmatprep.subr.mxu0 0.0
    %3643 = vmatpush2.msra.mxu0 0.0
    %3644 = vmatprep.mubr.f32.mxu0 0.0
    %3645 = vmatmul.mubr.f32.gmra.mxu0 %v3268
    %v3646 = vpop.f32.mrf.mxu0
    %v3647 = vadd.f32 %v3493, %v3646
    %v3648 = vpop.f32.mrf.mxu0
    %v3649 = vadd.f32 %v3495, %v3648
    %3650 = vmatprep.mubr.f32.mxu0 0.0
    %3651 = vmatmul.mubr.f32.gmra.mxu0 %v3269
    %v3652 = vpop.f32.mrf.mxu0
    %v3653 = vadd.f32 %v3499, %v3652
    %v3654 = vpop.f32.mrf.mxu0
    %v3655 = vadd.f32 %v3501, %v3654
    %3656 = vdwg.mxu0
    %s3657 = scalar_lea.vmem %s7, 512
    %v3658 = vld [vmem:[%s3657] sm:$0xff]
    %v3659 = vld [vmem:[%s3657 + $0x8] sm:$0xff]
    %v3660 = vld [vmem:[%s3657 + $0x10] sm:$0xff]
    %v3661 = vld [vmem:[%s3657 + $0x18] sm:$0xff]
    %v3662 = vld [vmem:[%s3657 + $0x20] sm:$0xff]
    %v3663 = vld [vmem:[%s3657 + $0x28] sm:$0xff]
    %v3664 = vld [vmem:[%s3657 + $0x30] sm:$0xff]
    %v3665 = vld [vmem:[%s3657 + $0x38] sm:$0xff]
    %v3666 = vld [vmem:[%s3657 + $0x40] sm:$0xff]
    %v3667 = vld [vmem:[%s3657 + $0x48] sm:$0xff]
    %v3668 = vld [vmem:[%s3657 + $0x50] sm:$0xff]
    %v3669 = vld [vmem:[%s3657 + $0x58] sm:$0xff]
    %v3670 = vld [vmem:[%s3657 + $0x60] sm:$0xff]
    %v3671 = vld [vmem:[%s3657 + $0x68] sm:$0xff]
    %v3672 = vld [vmem:[%s3657 + $0x70] sm:$0xff]
    %v3673 = vld [vmem:[%s3657 + $0x78] sm:$0xff]
    %v3674 = vld [vmem:[%s3657 + $0x80] sm:$0xff]
    %v3675 = vld [vmem:[%s3657 + $0x88] sm:$0xff]
    %v3676 = vld [vmem:[%s3657 + $0x90] sm:$0xff]
    %v3677 = vld [vmem:[%s3657 + $0x98] sm:$0xff]
    %v3678 = vld [vmem:[%s3657 + $0xa0] sm:$0xff]
    %v3679 = vld [vmem:[%s3657 + $0xa8] sm:$0xff]
    %v3680 = vld [vmem:[%s3657 + $0xb0] sm:$0xff]
    %v3681 = vld [vmem:[%s3657 + $0xb8] sm:$0xff]
    %v3682 = vld [vmem:[%s3657 + $0xc0] sm:$0xff]
    %v3683 = vld [vmem:[%s3657 + $0xc8] sm:$0xff]
    %v3684 = vld [vmem:[%s3657 + $0xd0] sm:$0xff]
    %v3685 = vld [vmem:[%s3657 + $0xd8] sm:$0xff]
    %v3686 = vld [vmem:[%s3657 + $0xe0] sm:$0xff]
    %v3687 = vld [vmem:[%s3657 + $0xe8] sm:$0xff]
    %v3688 = vld [vmem:[%s3657 + $0xf0] sm:$0xff]
    %v3689 = vld [vmem:[%s3657 + $0xf8] sm:$0xff]
    %v3690 = vrot.slane %v3266, 2
    %v3691 = vrot.slane %v3267, 2
    %v3692 = vsel %vm523, %v3690, %v3691
    %3695 = vmatprep.subr.mxu0 %v3689
    %3696 = vmatpush1.msra.mxu0 %v3688
    %3697 = vmatprep.subr.mxu0 %v3687
    %3698 = vmatpush1.msra.mxu0 %v3686
    %3699 = vmatprep.subr.mxu0 %v3685
    %3700 = vmatpush1.msra.mxu0 %v3684
    %3701 = vmatprep.subr.mxu0 %v3683
    %3702 = vmatpush1.msra.mxu0 %v3682
    %3703 = vmatprep.subr.mxu0 %v3681
    %3704 = vmatpush1.msra.mxu0 %v3680
    %3705 = vmatprep.subr.mxu0 %v3679
    %3706 = vmatpush1.msra.mxu0 %v3678
    %3707 = vmatprep.subr.mxu0 %v3677
    %3708 = vmatpush1.msra.mxu0 %v3676
    %3709 = vmatprep.subr.mxu0 %v3675
    %3710 = vmatpush1.msra.mxu0 %v3674
    %3711 = vmatprep.subr.mxu0 %v3673
    %3712 = vmatpush1.msra.mxu0 %v3672
    %3713 = vmatprep.subr.mxu0 %v3671
    %3714 = vmatpush1.msra.mxu0 %v3670
    %3715 = vmatprep.subr.mxu0 %v3669
    %3716 = vmatpush1.msra.mxu0 %v3668
    %3717 = vmatprep.subr.mxu0 %v3667
    %3718 = vmatpush1.msra.mxu0 %v3666
    %3719 = vmatprep.subr.mxu0 %v3665
    %3720 = vmatpush1.msra.mxu0 %v3664
    %3721 = vmatprep.subr.mxu0 %v3663
    %3722 = vmatpush1.msra.mxu0 %v3662
    %3723 = vmatprep.subr.mxu0 %v3661
    %3724 = vmatpush1.msra.mxu0 %v3660
    %3725 = vmatprep.subr.mxu0 %v3659
    %3726 = vmatpush1.msra.mxu0 %v3658
    %3727 = vmatprep.subr.mxu0 0.0
    %3728 = vmatpush2.msra.mxu0 0.0
    %3729 = vmatprep.subr.mxu0 0.0
    %3730 = vmatpush2.msra.mxu0 0.0
    %3731 = vmatprep.subr.mxu0 0.0
    %3732 = vmatpush2.msra.mxu0 0.0
    %3733 = vmatprep.subr.mxu0 0.0
    %3734 = vmatpush2.msra.mxu0 0.0
    %3735 = vmatprep.subr.mxu0 0.0
    %3736 = vmatpush2.msra.mxu0 0.0
    %3737 = vmatprep.subr.mxu0 0.0
    %3738 = vmatpush2.msra.mxu0 0.0
    %3739 = vmatprep.subr.mxu0 0.0
    %3740 = vmatpush2.msra.mxu0 0.0
    %3741 = vmatprep.subr.mxu0 0.0
    %3742 = vmatpush2.msra.mxu0 0.0
    %3743 = vmatprep.subr.mxu0 0.0
    %3744 = vmatpush2.msra.mxu0 0.0
    %3745 = vmatprep.subr.mxu0 0.0
    %3746 = vmatpush2.msra.mxu0 0.0
    %3747 = vmatprep.subr.mxu0 0.0
    %3748 = vmatpush2.msra.mxu0 0.0
    %3749 = vmatprep.subr.mxu0 0.0
    %3750 = vmatpush2.msra.mxu0 0.0
    %3751 = vmatprep.subr.mxu0 0.0
    %3752 = vmatpush2.msra.mxu0 0.0
    %3753 = vmatprep.subr.mxu0 0.0
    %3754 = vmatpush2.msra.mxu0 0.0
    %3755 = vmatprep.subr.mxu0 0.0
    %3756 = vmatpush2.msra.mxu0 0.0
    %3757 = vmatprep.subr.mxu0 0.0
    %3758 = vmatpush2.msra.mxu0 0.0
    %3759 = vmatprep.mubr.f32.mxu0 0.0
    %3760 = vmatmul.mubr.f32.gmra.mxu0 %v3692
    %v3761 = vpop.f32.mrf.mxu0
    %v3762 = vadd.f32 0.0, %v3761
    %v3763 = vpop.f32.mrf.mxu0
    %v3764 = vadd.f32 0.0, %v3763
    %3765 = vmatprep.mubr.f32.mxu0 0.0
    %3766 = vmatmul.mubr.f32.gmra.mxu0 %v3691
    %v3767 = vpop.f32.mrf.mxu0
    %v3768 = vadd.f32 0.0, %v3767
    %v3769 = vpop.f32.mrf.mxu0
    %v3770 = vadd.f32 0.0, %v3769
    %3771 = vdwg.mxu0
    %v3772 = vrot.slane %v3268, 2
    %v3773 = vrot.slane %v3269, 2
    %v3774 = vsel %vm523, %v3772, %v3773
    %3777 = vmatprep.subr.mxu0 %v3689
    %3778 = vmatpush1.msra.mxu0 %v3688
    %3779 = vmatprep.subr.mxu0 %v3687
    %3780 = vmatpush1.msra.mxu0 %v3686
    %3781 = vmatprep.subr.mxu0 %v3685
    %3782 = vmatpush1.msra.mxu0 %v3684
    %3783 = vmatprep.subr.mxu0 %v3683
    %3784 = vmatpush1.msra.mxu0 %v3682
    %3785 = vmatprep.subr.mxu0 %v3681
    %3786 = vmatpush1.msra.mxu0 %v3680
    %3787 = vmatprep.subr.mxu0 %v3679
    %3788 = vmatpush1.msra.mxu0 %v3678
    %3789 = vmatprep.subr.mxu0 %v3677
    %3790 = vmatpush1.msra.mxu0 %v3676
    %3791 = vmatprep.subr.mxu0 %v3675
    %3792 = vmatpush1.msra.mxu0 %v3674
    %3793 = vmatprep.subr.mxu0 %v3673
    %3794 = vmatpush1.msra.mxu0 %v3672
    %3795 = vmatprep.subr.mxu0 %v3671
    %3796 = vmatpush1.msra.mxu0 %v3670
    %3797 = vmatprep.subr.mxu0 %v3669
    %3798 = vmatpush1.msra.mxu0 %v3668
    %3799 = vmatprep.subr.mxu0 %v3667
    %3800 = vmatpush1.msra.mxu0 %v3666
    %3801 = vmatprep.subr.mxu0 %v3665
    %3802 = vmatpush1.msra.mxu0 %v3664
    %3803 = vmatprep.subr.mxu0 %v3663
    %3804 = vmatpush1.msra.mxu0 %v3662
    %3805 = vmatprep.subr.mxu0 %v3661
    %3806 = vmatpush1.msra.mxu0 %v3660
    %3807 = vmatprep.subr.mxu0 %v3659
    %3808 = vmatpush1.msra.mxu0 %v3658
    %3809 = vmatprep.subr.mxu0 0.0
    %3810 = vmatpush2.msra.mxu0 0.0
    %3811 = vmatprep.subr.mxu0 0.0
    %3812 = vmatpush2.msra.mxu0 0.0
    %3813 = vmatprep.subr.mxu0 0.0
    %3814 = vmatpush2.msra.mxu0 0.0
    %3815 = vmatprep.subr.mxu0 0.0
    %3816 = vmatpush2.msra.mxu0 0.0
    %3817 = vmatprep.subr.mxu0 0.0
    %3818 = vmatpush2.msra.mxu0 0.0
    %3819 = vmatprep.subr.mxu0 0.0
    %3820 = vmatpush2.msra.mxu0 0.0
    %3821 = vmatprep.subr.mxu0 0.0
    %3822 = vmatpush2.msra.mxu0 0.0
    %3823 = vmatprep.subr.mxu0 0.0
    %3824 = vmatpush2.msra.mxu0 0.0
    %3825 = vmatprep.subr.mxu0 0.0
    %3826 = vmatpush2.msra.mxu0 0.0
    %3827 = vmatprep.subr.mxu0 0.0
    %3828 = vmatpush2.msra.mxu0 0.0
    %3829 = vmatprep.subr.mxu0 0.0
    %3830 = vmatpush2.msra.mxu0 0.0
    %3831 = vmatprep.subr.mxu0 0.0
    %3832 = vmatpush2.msra.mxu0 0.0
    %3833 = vmatprep.subr.mxu0 0.0
    %3834 = vmatpush2.msra.mxu0 0.0
    %3835 = vmatprep.subr.mxu0 0.0
    %3836 = vmatpush2.msra.mxu0 0.0
    %3837 = vmatprep.subr.mxu0 0.0
    %3838 = vmatpush2.msra.mxu0 0.0
    %3839 = vmatprep.subr.mxu0 0.0
    %3840 = vmatpush2.msra.mxu0 0.0
    %3841 = vmatprep.mubr.f32.mxu0 0.0
    %3842 = vmatmul.mubr.f32.gmra.mxu0 %v3774
    %v3843 = vpop.f32.mrf.mxu0
    %v3844 = vadd.f32 0.0, %v3843
    %v3845 = vpop.f32.mrf.mxu0
    %v3846 = vadd.f32 0.0, %v3845
    %3847 = vmatprep.mubr.f32.mxu0 0.0
    %3848 = vmatmul.mubr.f32.gmra.mxu0 %v3773
    %v3849 = vpop.f32.mrf.mxu0
    %v3850 = vadd.f32 0.0, %v3849
    %v3851 = vpop.f32.mrf.mxu0
    %v3852 = vadd.f32 0.0, %v3851
    %3853 = vdwg.mxu0
    %v3854 = vadd.f32 %v3570, %v3762
    %v3855 = vadd.f32 %v3572, %v3764
    %v3856 = vadd.f32 %v3576, %v3768
    %v3857 = vadd.f32 %v3578, %v3770
    %v3858 = vadd.f32 %v3647, %v3844
    %v3859 = vadd.f32 %v3649, %v3846
    %v3860 = vadd.f32 %v3653, %v3850
    %v3861 = vadd.f32 %v3655, %v3852
    %s3862 = scalar_lea.vmem %s7, 768
    %v3863 = vld [vmem:[%s3862] sm:$0xff]
    %v3864 = vld [vmem:[%s3862 + $0x8] sm:$0xff]
    %v3865 = vld [vmem:[%s3862 + $0x10] sm:$0xff]
    %v3866 = vld [vmem:[%s3862 + $0x18] sm:$0xff]
    %v3867 = vld [vmem:[%s3862 + $0x20] sm:$0xff]
    %v3868 = vld [vmem:[%s3862 + $0x28] sm:$0xff]
    %v3869 = vld [vmem:[%s3862 + $0x30] sm:$0xff]
    %v3870 = vld [vmem:[%s3862 + $0x38] sm:$0xff]
    %v3871 = vld [vmem:[%s3862 + $0x40] sm:$0xff]
    %v3872 = vld [vmem:[%s3862 + $0x48] sm:$0xff]
    %v3873 = vld [vmem:[%s3862 + $0x50] sm:$0xff]
    %v3874 = vld [vmem:[%s3862 + $0x58] sm:$0xff]
    %v3875 = vld [vmem:[%s3862 + $0x60] sm:$0xff]
    %v3876 = vld [vmem:[%s3862 + $0x68] sm:$0xff]
    %v3877 = vld [vmem:[%s3862 + $0x70] sm:$0xff]
    %v3878 = vld [vmem:[%s3862 + $0x78] sm:$0xff]
    %v3879 = vld [vmem:[%s3862 + $0x80] sm:$0xff]
    %v3880 = vld [vmem:[%s3862 + $0x88] sm:$0xff]
    %v3881 = vld [vmem:[%s3862 + $0x90] sm:$0xff]
    %v3882 = vld [vmem:[%s3862 + $0x98] sm:$0xff]
    %v3883 = vld [vmem:[%s3862 + $0xa0] sm:$0xff]
    %v3884 = vld [vmem:[%s3862 + $0xa8] sm:$0xff]
    %v3885 = vld [vmem:[%s3862 + $0xb0] sm:$0xff]
    %v3886 = vld [vmem:[%s3862 + $0xb8] sm:$0xff]
    %v3887 = vld [vmem:[%s3862 + $0xc0] sm:$0xff]
    %v3888 = vld [vmem:[%s3862 + $0xc8] sm:$0xff]
    %v3889 = vld [vmem:[%s3862 + $0xd0] sm:$0xff]
    %v3890 = vld [vmem:[%s3862 + $0xd8] sm:$0xff]
    %v3891 = vld [vmem:[%s3862 + $0xe0] sm:$0xff]
    %v3892 = vld [vmem:[%s3862 + $0xe8] sm:$0xff]
    %v3893 = vld [vmem:[%s3862 + $0xf0] sm:$0xff]
    %v3894 = vld [vmem:[%s3862 + $0xf8] sm:$0xff]
    %v3895 = vrot.slane %v3266, 3
    %v3896 = vrot.slane %v3267, 3
    %v3897 = vsel %vm763, %v3895, %v3896
    %3900 = vmatprep.subr.mxu0 %v3894
    %3901 = vmatpush1.msra.mxu0 %v3893
    %3902 = vmatprep.subr.mxu0 %v3892
    %3903 = vmatpush1.msra.mxu0 %v3891
    %3904 = vmatprep.subr.mxu0 %v3890
    %3905 = vmatpush1.msra.mxu0 %v3889
    %3906 = vmatprep.subr.mxu0 %v3888
    %3907 = vmatpush1.msra.mxu0 %v3887
    %3908 = vmatprep.subr.mxu0 %v3886
    %3909 = vmatpush1.msra.mxu0 %v3885
    %3910 = vmatprep.subr.mxu0 %v3884
    %3911 = vmatpush1.msra.mxu0 %v3883
    %3912 = vmatprep.subr.mxu0 %v3882
    %3913 = vmatpush1.msra.mxu0 %v3881
    %3914 = vmatprep.subr.mxu0 %v3880
    %3915 = vmatpush1.msra.mxu0 %v3879
    %3916 = vmatprep.subr.mxu0 %v3878
    %3917 = vmatpush1.msra.mxu0 %v3877
    %3918 = vmatprep.subr.mxu0 %v3876
    %3919 = vmatpush1.msra.mxu0 %v3875
    %3920 = vmatprep.subr.mxu0 %v3874
    %3921 = vmatpush1.msra.mxu0 %v3873
    %3922 = vmatprep.subr.mxu0 %v3872
    %3923 = vmatpush1.msra.mxu0 %v3871
    %3924 = vmatprep.subr.mxu0 %v3870
    %3925 = vmatpush1.msra.mxu0 %v3869
    %3926 = vmatprep.subr.mxu0 %v3868
    %3927 = vmatpush1.msra.mxu0 %v3867
    %3928 = vmatprep.subr.mxu0 %v3866
    %3929 = vmatpush1.msra.mxu0 %v3865
    %3930 = vmatprep.subr.mxu0 %v3864
    %3931 = vmatpush1.msra.mxu0 %v3863
    %3932 = vmatprep.subr.mxu0 0.0
    %3933 = vmatpush2.msra.mxu0 0.0
    %3934 = vmatprep.subr.mxu0 0.0
    %3935 = vmatpush2.msra.mxu0 0.0
    %3936 = vmatprep.subr.mxu0 0.0
    %3937 = vmatpush2.msra.mxu0 0.0
    %3938 = vmatprep.subr.mxu0 0.0
    %3939 = vmatpush2.msra.mxu0 0.0
    %3940 = vmatprep.subr.mxu0 0.0
    %3941 = vmatpush2.msra.mxu0 0.0
    %3942 = vmatprep.subr.mxu0 0.0
    %3943 = vmatpush2.msra.mxu0 0.0
    %3944 = vmatprep.subr.mxu0 0.0
    %3945 = vmatpush2.msra.mxu0 0.0
    %3946 = vmatprep.subr.mxu0 0.0
    %3947 = vmatpush2.msra.mxu0 0.0
    %3948 = vmatprep.subr.mxu0 0.0
    %3949 = vmatpush2.msra.mxu0 0.0
    %3950 = vmatprep.subr.mxu0 0.0
    %3951 = vmatpush2.msra.mxu0 0.0
    %3952 = vmatprep.subr.mxu0 0.0
    %3953 = vmatpush2.msra.mxu0 0.0
    %3954 = vmatprep.subr.mxu0 0.0
    %3955 = vmatpush2.msra.mxu0 0.0
    %3956 = vmatprep.subr.mxu0 0.0
    %3957 = vmatpush2.msra.mxu0 0.0
    %3958 = vmatprep.subr.mxu0 0.0
    %3959 = vmatpush2.msra.mxu0 0.0
    %3960 = vmatprep.subr.mxu0 0.0
    %3961 = vmatpush2.msra.mxu0 0.0
    %3962 = vmatprep.subr.mxu0 0.0
    %3963 = vmatpush2.msra.mxu0 0.0
    %3964 = vmatprep.mubr.f32.mxu0 0.0
    %3965 = vmatmul.mubr.f32.gmra.mxu0 %v3897
    %v3966 = vpop.f32.mrf.mxu0
    %v3967 = vadd.f32 0.0, %v3966
    %v3968 = vpop.f32.mrf.mxu0
    %v3969 = vadd.f32 0.0, %v3968
    %3970 = vmatprep.mubr.f32.mxu0 0.0
    %3971 = vmatmul.mubr.f32.gmra.mxu0 %v3896
    %v3972 = vpop.f32.mrf.mxu0
    %v3973 = vadd.f32 0.0, %v3972
    %v3974 = vpop.f32.mrf.mxu0
    %v3975 = vadd.f32 0.0, %v3974
    %3976 = vdwg.mxu0
    %v3977 = vrot.slane %v3268, 3
    %v3978 = vrot.slane %v3269, 3
    %v3979 = vsel %vm763, %v3977, %v3978
    %3982 = vmatprep.subr.mxu0 %v3894
    %3983 = vmatpush1.msra.mxu0 %v3893
    %3984 = vmatprep.subr.mxu0 %v3892
    %3985 = vmatpush1.msra.mxu0 %v3891
    %3986 = vmatprep.subr.mxu0 %v3890
    %3987 = vmatpush1.msra.mxu0 %v3889
    %3988 = vmatprep.subr.mxu0 %v3888
    %3989 = vmatpush1.msra.mxu0 %v3887
    %3990 = vmatprep.subr.mxu0 %v3886
    %3991 = vmatpush1.msra.mxu0 %v3885
    %3992 = vmatprep.subr.mxu0 %v3884
    %3993 = vmatpush1.msra.mxu0 %v3883
    %3994 = vmatprep.subr.mxu0 %v3882
    %3995 = vmatpush1.msra.mxu0 %v3881
    %3996 = vmatprep.subr.mxu0 %v3880
    %3997 = vmatpush1.msra.mxu0 %v3879
    %3998 = vmatprep.subr.mxu0 %v3878
    %3999 = vmatpush1.msra.mxu0 %v3877
    %4000 = vmatprep.subr.mxu0 %v3876
    %4001 = vmatpush1.msra.mxu0 %v3875
    %4002 = vmatprep.subr.mxu0 %v3874
    %4003 = vmatpush1.msra.mxu0 %v3873
    %4004 = vmatprep.subr.mxu0 %v3872
    %4005 = vmatpush1.msra.mxu0 %v3871
    %4006 = vmatprep.subr.mxu0 %v3870
    %4007 = vmatpush1.msra.mxu0 %v3869
    %4008 = vmatprep.subr.mxu0 %v3868
    %4009 = vmatpush1.msra.mxu0 %v3867
    %4010 = vmatprep.subr.mxu0 %v3866
    %4011 = vmatpush1.msra.mxu0 %v3865
    %4012 = vmatprep.subr.mxu0 %v3864
    %4013 = vmatpush1.msra.mxu0 %v3863
    %4014 = vmatprep.subr.mxu0 0.0
    %4015 = vmatpush2.msra.mxu0 0.0
    %4016 = vmatprep.subr.mxu0 0.0
    %4017 = vmatpush2.msra.mxu0 0.0
    %4018 = vmatprep.subr.mxu0 0.0
    %4019 = vmatpush2.msra.mxu0 0.0
    %4020 = vmatprep.subr.mxu0 0.0
    %4021 = vmatpush2.msra.mxu0 0.0
    %4022 = vmatprep.subr.mxu0 0.0
    %4023 = vmatpush2.msra.mxu0 0.0
    %4024 = vmatprep.subr.mxu0 0.0
    %4025 = vmatpush2.msra.mxu0 0.0
    %4026 = vmatprep.subr.mxu0 0.0
    %4027 = vmatpush2.msra.mxu0 0.0
    %4028 = vmatprep.subr.mxu0 0.0
    %4029 = vmatpush2.msra.mxu0 0.0
    %4030 = vmatprep.subr.mxu0 0.0
    %4031 = vmatpush2.msra.mxu0 0.0
    %4032 = vmatprep.subr.mxu0 0.0
    %4033 = vmatpush2.msra.mxu0 0.0
    %4034 = vmatprep.subr.mxu0 0.0
    %4035 = vmatpush2.msra.mxu0 0.0
    %4036 = vmatprep.subr.mxu0 0.0
    %4037 = vmatpush2.msra.mxu0 0.0
    %4038 = vmatprep.subr.mxu0 0.0
    %4039 = vmatpush2.msra.mxu0 0.0
    %4040 = vmatprep.subr.mxu0 0.0
    %4041 = vmatpush2.msra.mxu0 0.0
    %4042 = vmatprep.subr.mxu0 0.0
    %4043 = vmatpush2.msra.mxu0 0.0
    %4044 = vmatprep.subr.mxu0 0.0
    %4045 = vmatpush2.msra.mxu0 0.0
    %4046 = vmatprep.mubr.f32.mxu0 0.0
    %4047 = vmatmul.mubr.f32.gmra.mxu0 %v3979
    %v4048 = vpop.f32.mrf.mxu0
    %v4049 = vadd.f32 0.0, %v4048
    %v4050 = vpop.f32.mrf.mxu0
    %v4051 = vadd.f32 0.0, %v4050
    %4052 = vmatprep.mubr.f32.mxu0 0.0
    %4053 = vmatmul.mubr.f32.gmra.mxu0 %v3978
    %v4054 = vpop.f32.mrf.mxu0
    %v4055 = vadd.f32 0.0, %v4054
    %v4056 = vpop.f32.mrf.mxu0
    %v4057 = vadd.f32 0.0, %v4056
    %4058 = vdwg.mxu0
    %v4059 = vadd.f32 %v3854, %v3967
    %v4060 = vadd.f32 %v3855, %v3969
    %v4061 = vadd.f32 %v3856, %v3973
    %v4062 = vadd.f32 %v3857, %v3975
    %v4063 = vadd.f32 %v3858, %v4049
    %v4064 = vadd.f32 %v3859, %v4051
    %v4065 = vadd.f32 %v3860, %v4055
    %v4066 = vadd.f32 %v3861, %v4057
    %s4067 = scalar_lea.vmem %s7, 1024
    %v4068 = vld [vmem:[%s4067] sm:$0xff]
    %v4069 = vld [vmem:[%s4067 + $0x8] sm:$0xff]
    %v4070 = vld [vmem:[%s4067 + $0x10] sm:$0xff]
    %v4071 = vld [vmem:[%s4067 + $0x18] sm:$0xff]
    %v4072 = vld [vmem:[%s4067 + $0x20] sm:$0xff]
    %v4073 = vld [vmem:[%s4067 + $0x28] sm:$0xff]
    %v4074 = vld [vmem:[%s4067 + $0x30] sm:$0xff]
    %v4075 = vld [vmem:[%s4067 + $0x38] sm:$0xff]
    %v4076 = vld [vmem:[%s4067 + $0x40] sm:$0xff]
    %v4077 = vld [vmem:[%s4067 + $0x48] sm:$0xff]
    %v4078 = vld [vmem:[%s4067 + $0x50] sm:$0xff]
    %v4079 = vld [vmem:[%s4067 + $0x58] sm:$0xff]
    %v4080 = vld [vmem:[%s4067 + $0x60] sm:$0xff]
    %v4081 = vld [vmem:[%s4067 + $0x68] sm:$0xff]
    %v4082 = vld [vmem:[%s4067 + $0x70] sm:$0xff]
    %v4083 = vld [vmem:[%s4067 + $0x78] sm:$0xff]
    %v4084 = vld [vmem:[%s4067 + $0x80] sm:$0xff]
    %v4085 = vld [vmem:[%s4067 + $0x88] sm:$0xff]
    %v4086 = vld [vmem:[%s4067 + $0x90] sm:$0xff]
    %v4087 = vld [vmem:[%s4067 + $0x98] sm:$0xff]
    %v4088 = vld [vmem:[%s4067 + $0xa0] sm:$0xff]
    %v4089 = vld [vmem:[%s4067 + $0xa8] sm:$0xff]
    %v4090 = vld [vmem:[%s4067 + $0xb0] sm:$0xff]
    %v4091 = vld [vmem:[%s4067 + $0xb8] sm:$0xff]
    %v4092 = vld [vmem:[%s4067 + $0xc0] sm:$0xff]
    %v4093 = vld [vmem:[%s4067 + $0xc8] sm:$0xff]
    %v4094 = vld [vmem:[%s4067 + $0xd0] sm:$0xff]
    %v4095 = vld [vmem:[%s4067 + $0xd8] sm:$0xff]
    %v4096 = vld [vmem:[%s4067 + $0xe0] sm:$0xff]
    %v4097 = vld [vmem:[%s4067 + $0xe8] sm:$0xff]
    %v4098 = vld [vmem:[%s4067 + $0xf0] sm:$0xff]
    %v4099 = vld [vmem:[%s4067 + $0xf8] sm:$0xff]
    %v4100 = vrot.slane %v3266, 4
    %v4101 = vrot.slane %v3267, 4
    %v4102 = vsel %vm1003, %v4100, %v4101
    %4105 = vmatprep.subr.mxu0 %v4099
    %4106 = vmatpush1.msra.mxu0 %v4098
    %4107 = vmatprep.subr.mxu0 %v4097
    %4108 = vmatpush1.msra.mxu0 %v4096
    %4109 = vmatprep.subr.mxu0 %v4095
    %4110 = vmatpush1.msra.mxu0 %v4094
    %4111 = vmatprep.subr.mxu0 %v4093
    %4112 = vmatpush1.msra.mxu0 %v4092
    %4113 = vmatprep.subr.mxu0 %v4091
    %4114 = vmatpush1.msra.mxu0 %v4090
    %4115 = vmatprep.subr.mxu0 %v4089
    %4116 = vmatpush1.msra.mxu0 %v4088
    %4117 = vmatprep.subr.mxu0 %v4087
    %4118 = vmatpush1.msra.mxu0 %v4086
    %4119 = vmatprep.subr.mxu0 %v4085
    %4120 = vmatpush1.msra.mxu0 %v4084
    %4121 = vmatprep.subr.mxu0 %v4083
    %4122 = vmatpush1.msra.mxu0 %v4082
    %4123 = vmatprep.subr.mxu0 %v4081
    %4124 = vmatpush1.msra.mxu0 %v4080
    %4125 = vmatprep.subr.mxu0 %v4079
    %4126 = vmatpush1.msra.mxu0 %v4078
    %4127 = vmatprep.subr.mxu0 %v4077
    %4128 = vmatpush1.msra.mxu0 %v4076
    %4129 = vmatprep.subr.mxu0 %v4075
    %4130 = vmatpush1.msra.mxu0 %v4074
    %4131 = vmatprep.subr.mxu0 %v4073
    %4132 = vmatpush1.msra.mxu0 %v4072
    %4133 = vmatprep.subr.mxu0 %v4071
    %4134 = vmatpush1.msra.mxu0 %v4070
    %4135 = vmatprep.subr.mxu0 %v4069
    %4136 = vmatpush1.msra.mxu0 %v4068
    %4137 = vmatprep.subr.mxu0 0.0
    %4138 = vmatpush2.msra.mxu0 0.0
    %4139 = vmatprep.subr.mxu0 0.0
    %4140 = vmatpush2.msra.mxu0 0.0
    %4141 = vmatprep.subr.mxu0 0.0
    %4142 = vmatpush2.msra.mxu0 0.0
    %4143 = vmatprep.subr.mxu0 0.0
    %4144 = vmatpush2.msra.mxu0 0.0
    %4145 = vmatprep.subr.mxu0 0.0
    %4146 = vmatpush2.msra.mxu0 0.0
    %4147 = vmatprep.subr.mxu0 0.0
    %4148 = vmatpush2.msra.mxu0 0.0
    %4149 = vmatprep.subr.mxu0 0.0
    %4150 = vmatpush2.msra.mxu0 0.0
    %4151 = vmatprep.subr.mxu0 0.0
    %4152 = vmatpush2.msra.mxu0 0.0
    %4153 = vmatprep.subr.mxu0 0.0
    %4154 = vmatpush2.msra.mxu0 0.0
    %4155 = vmatprep.subr.mxu0 0.0
    %4156 = vmatpush2.msra.mxu0 0.0
    %4157 = vmatprep.subr.mxu0 0.0
    %4158 = vmatpush2.msra.mxu0 0.0
    %4159 = vmatprep.subr.mxu0 0.0
    %4160 = vmatpush2.msra.mxu0 0.0
    %4161 = vmatprep.subr.mxu0 0.0
    %4162 = vmatpush2.msra.mxu0 0.0
    %4163 = vmatprep.subr.mxu0 0.0
    %4164 = vmatpush2.msra.mxu0 0.0
    %4165 = vmatprep.subr.mxu0 0.0
    %4166 = vmatpush2.msra.mxu0 0.0
    %4167 = vmatprep.subr.mxu0 0.0
    %4168 = vmatpush2.msra.mxu0 0.0
    %4169 = vmatprep.mubr.f32.mxu0 0.0
    %4170 = vmatmul.mubr.f32.gmra.mxu0 %v4102
    %v4171 = vpop.f32.mrf.mxu0
    %v4172 = vadd.f32 0.0, %v4171
    %v4173 = vpop.f32.mrf.mxu0
    %v4174 = vadd.f32 0.0, %v4173
    %4175 = vmatprep.mubr.f32.mxu0 0.0
    %4176 = vmatmul.mubr.f32.gmra.mxu0 %v4101
    %v4177 = vpop.f32.mrf.mxu0
    %v4178 = vadd.f32 0.0, %v4177
    %v4179 = vpop.f32.mrf.mxu0
    %v4180 = vadd.f32 0.0, %v4179
    %4181 = vdwg.mxu0
    %v4182 = vrot.slane %v3268, 4
    %v4183 = vrot.slane %v3269, 4
    %v4184 = vsel %vm1003, %v4182, %v4183
    %4187 = vmatprep.subr.mxu0 %v4099
    %4188 = vmatpush1.msra.mxu0 %v4098
    %4189 = vmatprep.subr.mxu0 %v4097
    %4190 = vmatpush1.msra.mxu0 %v4096
    %4191 = vmatprep.subr.mxu0 %v4095
    %4192 = vmatpush1.msra.mxu0 %v4094
    %4193 = vmatprep.subr.mxu0 %v4093
    %4194 = vmatpush1.msra.mxu0 %v4092
    %4195 = vmatprep.subr.mxu0 %v4091
    %4196 = vmatpush1.msra.mxu0 %v4090
    %4197 = vmatprep.subr.mxu0 %v4089
    %4198 = vmatpush1.msra.mxu0 %v4088
    %4199 = vmatprep.subr.mxu0 %v4087
    %4200 = vmatpush1.msra.mxu0 %v4086
    %4201 = vmatprep.subr.mxu0 %v4085
    %4202 = vmatpush1.msra.mxu0 %v4084
    %4203 = vmatprep.subr.mxu0 %v4083
    %4204 = vmatpush1.msra.mxu0 %v4082
    %4205 = vmatprep.subr.mxu0 %v4081
    %4206 = vmatpush1.msra.mxu0 %v4080
    %4207 = vmatprep.subr.mxu0 %v4079
    %4208 = vmatpush1.msra.mxu0 %v4078
    %4209 = vmatprep.subr.mxu0 %v4077
    %4210 = vmatpush1.msra.mxu0 %v4076
    %4211 = vmatprep.subr.mxu0 %v4075
    %4212 = vmatpush1.msra.mxu0 %v4074
    %4213 = vmatprep.subr.mxu0 %v4073
    %4214 = vmatpush1.msra.mxu0 %v4072
    %4215 = vmatprep.subr.mxu0 %v4071
    %4216 = vmatpush1.msra.mxu0 %v4070
    %4217 = vmatprep.subr.mxu0 %v4069
    %4218 = vmatpush1.msra.mxu0 %v4068
    %4219 = vmatprep.subr.mxu0 0.0
    %4220 = vmatpush2.msra.mxu0 0.0
    %4221 = vmatprep.subr.mxu0 0.0
    %4222 = vmatpush2.msra.mxu0 0.0
    %4223 = vmatprep.subr.mxu0 0.0
    %4224 = vmatpush2.msra.mxu0 0.0
    %4225 = vmatprep.subr.mxu0 0.0
    %4226 = vmatpush2.msra.mxu0 0.0
    %4227 = vmatprep.subr.mxu0 0.0
    %4228 = vmatpush2.msra.mxu0 0.0
    %4229 = vmatprep.subr.mxu0 0.0
    %4230 = vmatpush2.msra.mxu0 0.0
    %4231 = vmatprep.subr.mxu0 0.0
    %4232 = vmatpush2.msra.mxu0 0.0
    %4233 = vmatprep.subr.mxu0 0.0
    %4234 = vmatpush2.msra.mxu0 0.0
    %4235 = vmatprep.subr.mxu0 0.0
    %4236 = vmatpush2.msra.mxu0 0.0
    %4237 = vmatprep.subr.mxu0 0.0
    %4238 = vmatpush2.msra.mxu0 0.0
    %4239 = vmatprep.subr.mxu0 0.0
    %4240 = vmatpush2.msra.mxu0 0.0
    %4241 = vmatprep.subr.mxu0 0.0
    %4242 = vmatpush2.msra.mxu0 0.0
    %4243 = vmatprep.subr.mxu0 0.0
    %4244 = vmatpush2.msra.mxu0 0.0
    %4245 = vmatprep.subr.mxu0 0.0
    %4246 = vmatpush2.msra.mxu0 0.0
    %4247 = vmatprep.subr.mxu0 0.0
    %4248 = vmatpush2.msra.mxu0 0.0
    %4249 = vmatprep.subr.mxu0 0.0
    %4250 = vmatpush2.msra.mxu0 0.0
    %4251 = vmatprep.mubr.f32.mxu0 0.0
    %4252 = vmatmul.mubr.f32.gmra.mxu0 %v4184
    %v4253 = vpop.f32.mrf.mxu0
    %v4254 = vadd.f32 0.0, %v4253
    %v4255 = vpop.f32.mrf.mxu0
    %v4256 = vadd.f32 0.0, %v4255
    %4257 = vmatprep.mubr.f32.mxu0 0.0
    %4258 = vmatmul.mubr.f32.gmra.mxu0 %v4183
    %v4259 = vpop.f32.mrf.mxu0
    %v4260 = vadd.f32 0.0, %v4259
    %v4261 = vpop.f32.mrf.mxu0
    %v4262 = vadd.f32 0.0, %v4261
    %4263 = vdwg.mxu0
    %v4264 = vadd.f32 %v4059, %v4172
    %v4265 = vadd.f32 %v4060, %v4174
    %v4266 = vadd.f32 %v4061, %v4178
    %v4267 = vadd.f32 %v4062, %v4180
    %v4268 = vadd.f32 %v4063, %v4254
    %v4269 = vadd.f32 %v4064, %v4256
    %v4270 = vadd.f32 %v4065, %v4260
    %v4271 = vadd.f32 %v4066, %v4262
    %v4272 = vld [vmem:[%s8] sm:$0x3]
    %v4274 = vlaneseq
    %v4275 = vshrl.u32 %v4274, 7
    %v4276 = vsub.s32 0, %v4275
    %v4277 = vrot.slane %v4272, %v4276
    %v4278 = vlaneseq
    %v4279 = vshrl.u32 %v4278, 7
    %v4280 = vsub.s32 1, %v4279
    %v4281 = vrot.slane %v4272, %v4280
    %v4284 = vadd.f32 %v4264, %v4277
    %v4285 = vadd.f32 %v4265, %v4281
    %v4286 = vadd.f32 %v4266, %v4277
    %v4287 = vadd.f32 %v4267, %v4281
    %v4288 = vadd.f32 %v4268, %v4277
    %v4289 = vadd.f32 %v4269, %v4281
    %v4290 = vadd.f32 %v4270, %v4277
    %v4291 = vadd.f32 %v4271, %v4281
    %v4292 = vmax.f32 %v4284, 0.0
    %v4293 = vmax.f32 %v4285, 0.0
    %v4294 = vmax.f32 %v4286, 0.0
    %v4295 = vmax.f32 %v4287, 0.0
    %v4296 = vmax.f32 %v4288, 0.0
    %v4297 = vmax.f32 %v4289, 0.0
    %v4298 = vmax.f32 %v4290, 0.0
    %v4299 = vmax.f32 %v4291, 0.0
    %v4300 = vld [vmem:[%s9] sm:$0x3f]
    %vm4301 = vcmask 97280
    %v4303 = vsel %vm4301, %v4300, 0
    %v4306 = vsel %vm1003, %v4294, 0
    %v4309 = vsel %vm1003, %v4295, 0
    %4311 = vmatprep.subr.mxu0 0.0
    %4312 = vmatpush1.msra.mxu0 0.0
    %4313 = vmatprep.subr.mxu0 0.0
    %4314 = vmatpush1.msra.mxu0 0.0
    %4315 = vmatprep.subr.mxu0 0.0
    %4316 = vmatpush1.msra.mxu0 0.0
    %4317 = vmatprep.subr.mxu0 0.0
    %4318 = vmatpush1.msra.mxu0 0.0
    %4319 = vmatprep.subr.mxu0 0.0
    %4320 = vmatpush1.msra.mxu0 0.0
    %4321 = vmatprep.subr.mxu0 0.0
    %4322 = vmatpush1.msra.mxu0 0.0
    %4323 = vmatprep.subr.mxu0 0.0
    %4324 = vmatpush1.msra.mxu0 0.0
    %4325 = vmatprep.subr.mxu0 0.0
    %4326 = vmatpush1.msra.mxu0 0.0
    %4327 = vmatprep.subr.mxu0 0.0
    %4328 = vmatpush1.msra.mxu0 0.0
    %4329 = vmatprep.subr.mxu0 0.0
    %4330 = vmatpush1.msra.mxu0 0.0
    %4331 = vmatprep.subr.mxu0 0.0
    %4332 = vmatpush1.msra.mxu0 0.0
    %4333 = vmatprep.subr.mxu0 0.0
    %4334 = vmatpush1.msra.mxu0 0.0
    %4335 = vmatprep.subr.mxu0 0.0
    %4336 = vmatpush1.msra.mxu0 0.0
    %4337 = vmatprep.subr.mxu0 0.0
    %4338 = vmatpush1.msra.mxu0 0.0
    %4339 = vmatprep.subr.mxu0 %v4309
    %4340 = vmatpush1.msra.mxu0 %v4306
    %4341 = vmatprep.subr.mxu0 %v4293
    %4342 = vmatpush1.msra.mxu0 %v4292
    %4343 = vmatprep.subr.mxu0 0.0
    %4344 = vmatpush2.msra.mxu0 0.0
    %4345 = vmatprep.subr.mxu0 0.0
    %4346 = vmatpush2.msra.mxu0 0.0
    %4347 = vmatprep.subr.mxu0 0.0
    %4348 = vmatpush2.msra.mxu0 0.0
    %4349 = vmatprep.subr.mxu0 0.0
    %4350 = vmatpush2.msra.mxu0 0.0
    %4351 = vmatprep.subr.mxu0 0.0
    %4352 = vmatpush2.msra.mxu0 0.0
    %4353 = vmatprep.subr.mxu0 0.0
    %4354 = vmatpush2.msra.mxu0 0.0
    %4355 = vmatprep.subr.mxu0 0.0
    %4356 = vmatpush2.msra.mxu0 0.0
    %4357 = vmatprep.subr.mxu0 0.0
    %4358 = vmatpush2.msra.mxu0 0.0
    %4359 = vmatprep.subr.mxu0 0.0
    %4360 = vmatpush2.msra.mxu0 0.0
    %4361 = vmatprep.subr.mxu0 0.0
    %4362 = vmatpush2.msra.mxu0 0.0
    %4363 = vmatprep.subr.mxu0 0.0
    %4364 = vmatpush2.msra.mxu0 0.0
    %4365 = vmatprep.subr.mxu0 0.0
    %4366 = vmatpush2.msra.mxu0 0.0
    %4367 = vmatprep.subr.mxu0 0.0
    %4368 = vmatpush2.msra.mxu0 0.0
    %4369 = vmatprep.subr.mxu0 0.0
    %4370 = vmatpush2.msra.mxu0 0.0
    %4371 = vmatprep.subr.mxu0 0.0
    %4372 = vmatpush2.msra.mxu0 0.0
    %4373 = vmatprep.subr.mxu0 0.0
    %4374 = vmatpush2.msra.mxu0 0.0
    %4375 = vmatprep.mubr.f32.mxu0 0.0
    %4376 = vmatmul.mubr.f32.gmra.mxu0 %v4303
    %v4377 = vpop.f32.mrf.mxu0
    %v4378 = vadd.f32 0.0, %v4377
    %v4379 = vpop.f32.mrf.mxu0
    %v4380 = vadd.f32 0.0, %v4379
    %4381 = vdwg.mxu0
    %v4383 = vsel %vm1003, %v4298, 0
    %v4386 = vsel %vm1003, %v4299, 0
    %4388 = vmatprep.subr.mxu0 0.0
    %4389 = vmatpush1.msra.mxu0 0.0
    %4390 = vmatprep.subr.mxu0 0.0
    %4391 = vmatpush1.msra.mxu0 0.0
    %4392 = vmatprep.subr.mxu0 0.0
    %4393 = vmatpush1.msra.mxu0 0.0
    %4394 = vmatprep.subr.mxu0 0.0
    %4395 = vmatpush1.msra.mxu0 0.0
    %4396 = vmatprep.subr.mxu0 0.0
    %4397 = vmatpush1.msra.mxu0 0.0
    %4398 = vmatprep.subr.mxu0 0.0
    %4399 = vmatpush1.msra.mxu0 0.0
    %4400 = vmatprep.subr.mxu0 0.0
    %4401 = vmatpush1.msra.mxu0 0.0
    %4402 = vmatprep.subr.mxu0 0.0
    %4403 = vmatpush1.msra.mxu0 0.0
    %4404 = vmatprep.subr.mxu0 0.0
    %4405 = vmatpush1.msra.mxu0 0.0
    %4406 = vmatprep.subr.mxu0 0.0
    %4407 = vmatpush1.msra.mxu0 0.0
    %4408 = vmatprep.subr.mxu0 0.0
    %4409 = vmatpush1.msra.mxu0 0.0
    %4410 = vmatprep.subr.mxu0 0.0
    %4411 = vmatpush1.msra.mxu0 0.0
    %4412 = vmatprep.subr.mxu0 0.0
    %4413 = vmatpush1.msra.mxu0 0.0
    %4414 = vmatprep.subr.mxu0 0.0
    %4415 = vmatpush1.msra.mxu0 0.0
    %4416 = vmatprep.subr.mxu0 %v4386
    %4417 = vmatpush1.msra.mxu0 %v4383
    %4418 = vmatprep.subr.mxu0 %v4297
    %4419 = vmatpush1.msra.mxu0 %v4296
    %4420 = vmatprep.subr.mxu0 0.0
    %4421 = vmatpush2.msra.mxu0 0.0
    %4422 = vmatprep.subr.mxu0 0.0
    %4423 = vmatpush2.msra.mxu0 0.0
    %4424 = vmatprep.subr.mxu0 0.0
    %4425 = vmatpush2.msra.mxu0 0.0
    %4426 = vmatprep.subr.mxu0 0.0
    %4427 = vmatpush2.msra.mxu0 0.0
    %4428 = vmatprep.subr.mxu0 0.0
    %4429 = vmatpush2.msra.mxu0 0.0
    %4430 = vmatprep.subr.mxu0 0.0
    %4431 = vmatpush2.msra.mxu0 0.0
    %4432 = vmatprep.subr.mxu0 0.0
    %4433 = vmatpush2.msra.mxu0 0.0
    %4434 = vmatprep.subr.mxu0 0.0
    %4435 = vmatpush2.msra.mxu0 0.0
    %4436 = vmatprep.subr.mxu0 0.0
    %4437 = vmatpush2.msra.mxu0 0.0
    %4438 = vmatprep.subr.mxu0 0.0
    %4439 = vmatpush2.msra.mxu0 0.0
    %4440 = vmatprep.subr.mxu0 0.0
    %4441 = vmatpush2.msra.mxu0 0.0
    %4442 = vmatprep.subr.mxu0 0.0
    %4443 = vmatpush2.msra.mxu0 0.0
    %4444 = vmatprep.subr.mxu0 0.0
    %4445 = vmatpush2.msra.mxu0 0.0
    %4446 = vmatprep.subr.mxu0 0.0
    %4447 = vmatpush2.msra.mxu0 0.0
    %4448 = vmatprep.subr.mxu0 0.0
    %4449 = vmatpush2.msra.mxu0 0.0
    %4450 = vmatprep.subr.mxu0 0.0
    %4451 = vmatpush2.msra.mxu0 0.0
    %4452 = vmatprep.mubr.f32.mxu0 0.0
    %4453 = vmatmul.mubr.f32.gmra.mxu0 %v4303
    %v4454 = vpop.f32.mrf.mxu0
    %v4455 = vadd.f32 0.0, %v4454
    %v4456 = vpop.f32.mrf.mxu0
    %v4457 = vadd.f32 0.0, %v4456
    %4458 = vdwg.mxu0
    %v4459 = vld [vmem:[%s10] sm:$0x3f]
    %v4461 = vsel %vm4301, %v4459, 0
    %4463 = vmatprep.subr.mxu0 0.0
    %4464 = vmatpush1.msra.mxu0 0.0
    %4465 = vmatprep.subr.mxu0 0.0
    %4466 = vmatpush1.msra.mxu0 0.0
    %4467 = vmatprep.subr.mxu0 0.0
    %4468 = vmatpush1.msra.mxu0 0.0
    %4469 = vmatprep.subr.mxu0 0.0
    %4470 = vmatpush1.msra.mxu0 0.0
    %4471 = vmatprep.subr.mxu0 0.0
    %4472 = vmatpush1.msra.mxu0 0.0
    %4473 = vmatprep.subr.mxu0 0.0
    %4474 = vmatpush1.msra.mxu0 0.0
    %4475 = vmatprep.subr.mxu0 0.0
    %4476 = vmatpush1.msra.mxu0 0.0
    %4477 = vmatprep.subr.mxu0 0.0
    %4478 = vmatpush1.msra.mxu0 0.0
    %4479 = vmatprep.subr.mxu0 0.0
    %4480 = vmatpush1.msra.mxu0 0.0
    %4481 = vmatprep.subr.mxu0 0.0
    %4482 = vmatpush1.msra.mxu0 0.0
    %4483 = vmatprep.subr.mxu0 0.0
    %4484 = vmatpush1.msra.mxu0 0.0
    %4485 = vmatprep.subr.mxu0 0.0
    %4486 = vmatpush1.msra.mxu0 0.0
    %4487 = vmatprep.subr.mxu0 0.0
    %4488 = vmatpush1.msra.mxu0 0.0
    %4489 = vmatprep.subr.mxu0 0.0
    %4490 = vmatpush1.msra.mxu0 0.0
    %4491 = vmatprep.subr.mxu0 %v4309
    %4492 = vmatpush1.msra.mxu0 %v4306
    %4493 = vmatprep.subr.mxu0 %v4293
    %4494 = vmatpush1.msra.mxu0 %v4292
    %4495 = vmatprep.subr.mxu0 0.0
    %4496 = vmatpush2.msra.mxu0 0.0
    %4497 = vmatprep.subr.mxu0 0.0
    %4498 = vmatpush2.msra.mxu0 0.0
    %4499 = vmatprep.subr.mxu0 0.0
    %4500 = vmatpush2.msra.mxu0 0.0
    %4501 = vmatprep.subr.mxu0 0.0
    %4502 = vmatpush2.msra.mxu0 0.0
    %4503 = vmatprep.subr.mxu0 0.0
    %4504 = vmatpush2.msra.mxu0 0.0
    %4505 = vmatprep.subr.mxu0 0.0
    %4506 = vmatpush2.msra.mxu0 0.0
    %4507 = vmatprep.subr.mxu0 0.0
    %4508 = vmatpush2.msra.mxu0 0.0
    %4509 = vmatprep.subr.mxu0 0.0
    %4510 = vmatpush2.msra.mxu0 0.0
    %4511 = vmatprep.subr.mxu0 0.0
    %4512 = vmatpush2.msra.mxu0 0.0
    %4513 = vmatprep.subr.mxu0 0.0
    %4514 = vmatpush2.msra.mxu0 0.0
    %4515 = vmatprep.subr.mxu0 0.0
    %4516 = vmatpush2.msra.mxu0 0.0
    %4517 = vmatprep.subr.mxu0 0.0
    %4518 = vmatpush2.msra.mxu0 0.0
    %4519 = vmatprep.subr.mxu0 0.0
    %4520 = vmatpush2.msra.mxu0 0.0
    %4521 = vmatprep.subr.mxu0 0.0
    %4522 = vmatpush2.msra.mxu0 0.0
    %4523 = vmatprep.subr.mxu0 0.0
    %4524 = vmatpush2.msra.mxu0 0.0
    %4525 = vmatprep.subr.mxu0 0.0
    %4526 = vmatpush2.msra.mxu0 0.0
    %4527 = vmatprep.mubr.f32.mxu0 0.0
    %4528 = vmatmul.mubr.f32.gmra.mxu0 %v4461
    %v4529 = vpop.f32.mrf.mxu0
    %v4530 = vadd.f32 0.0, %v4529
    %v4531 = vpop.f32.mrf.mxu0
    %v4532 = vadd.f32 0.0, %v4531
    %4533 = vdwg.mxu0
    %4534 = vmatprep.subr.mxu0 0.0
    %4535 = vmatpush1.msra.mxu0 0.0
    %4536 = vmatprep.subr.mxu0 0.0
    %4537 = vmatpush1.msra.mxu0 0.0
    %4538 = vmatprep.subr.mxu0 0.0
    %4539 = vmatpush1.msra.mxu0 0.0
    %4540 = vmatprep.subr.mxu0 0.0
    %4541 = vmatpush1.msra.mxu0 0.0
    %4542 = vmatprep.subr.mxu0 0.0
    %4543 = vmatpush1.msra.mxu0 0.0
    %4544 = vmatprep.subr.mxu0 0.0
    %4545 = vmatpush1.msra.mxu0 0.0
    %4546 = vmatprep.subr.mxu0 0.0
    %4547 = vmatpush1.msra.mxu0 0.0
    %4548 = vmatprep.subr.mxu0 0.0
    %4549 = vmatpush1.msra.mxu0 0.0
    %4550 = vmatprep.subr.mxu0 0.0
    %4551 = vmatpush1.msra.mxu0 0.0
    %4552 = vmatprep.subr.mxu0 0.0
    %4553 = vmatpush1.msra.mxu0 0.0
    %4554 = vmatprep.subr.mxu0 0.0
    %4555 = vmatpush1.msra.mxu0 0.0
    %4556 = vmatprep.subr.mxu0 0.0
    %4557 = vmatpush1.msra.mxu0 0.0
    %4558 = vmatprep.subr.mxu0 0.0
    %4559 = vmatpush1.msra.mxu0 0.0
    %4560 = vmatprep.subr.mxu0 0.0
    %4561 = vmatpush1.msra.mxu0 0.0
    %4562 = vmatprep.subr.mxu0 %v4386
    %4563 = vmatpush1.msra.mxu0 %v4383
    %4564 = vmatprep.subr.mxu0 %v4297
    %4565 = vmatpush1.msra.mxu0 %v4296
    %4566 = vmatprep.subr.mxu0 0.0
    %4567 = vmatpush2.msra.mxu0 0.0
    %4568 = vmatprep.subr.mxu0 0.0
    %4569 = vmatpush2.msra.mxu0 0.0
    %4570 = vmatprep.subr.mxu0 0.0
    %4571 = vmatpush2.msra.mxu0 0.0
    %4572 = vmatprep.subr.mxu0 0.0
    %4573 = vmatpush2.msra.mxu0 0.0
    %4574 = vmatprep.subr.mxu0 0.0
    %4575 = vmatpush2.msra.mxu0 0.0
    %4576 = vmatprep.subr.mxu0 0.0
    %4577 = vmatpush2.msra.mxu0 0.0
    %4578 = vmatprep.subr.mxu0 0.0
    %4579 = vmatpush2.msra.mxu0 0.0
    %4580 = vmatprep.subr.mxu0 0.0
    %4581 = vmatpush2.msra.mxu0 0.0
    %4582 = vmatprep.subr.mxu0 0.0
    %4583 = vmatpush2.msra.mxu0 0.0
    %4584 = vmatprep.subr.mxu0 0.0
    %4585 = vmatpush2.msra.mxu0 0.0
    %4586 = vmatprep.subr.mxu0 0.0
    %4587 = vmatpush2.msra.mxu0 0.0
    %4588 = vmatprep.subr.mxu0 0.0
    %4589 = vmatpush2.msra.mxu0 0.0
    %4590 = vmatprep.subr.mxu0 0.0
    %4591 = vmatpush2.msra.mxu0 0.0
    %4592 = vmatprep.subr.mxu0 0.0
    %4593 = vmatpush2.msra.mxu0 0.0
    %4594 = vmatprep.subr.mxu0 0.0
    %4595 = vmatpush2.msra.mxu0 0.0
    %4596 = vmatprep.subr.mxu0 0.0
    %4597 = vmatpush2.msra.mxu0 0.0
    %4598 = vmatprep.mubr.f32.mxu0 0.0
    %4599 = vmatmul.mubr.f32.gmra.mxu0 %v4461
    %v4600 = vpop.f32.mrf.mxu0
    %v4601 = vadd.f32 0.0, %v4600
    %v4602 = vpop.f32.mrf.mxu0
    %v4603 = vadd.f32 0.0, %v4602
    %4604 = vdwg.mxu0
    %v4605 = vld [vmem:[%s11] sm:$0xff]
    %v4606 = vld [vmem:[%s11 + $0x8] sm:$0xff]
    %v4607 = vld [vmem:[%s11 + $0x10] sm:$0xff]
    %v4608 = vld [vmem:[%s11 + $0x18] sm:$0xff]
    %v4609 = vld [vmem:[%s11 + $0x20] sm:$0xff]
    %v4610 = vld [vmem:[%s11 + $0x28] sm:$0xff]
    %v4611 = vld [vmem:[%s11 + $0x30] sm:$0xff]
    %v4612 = vld [vmem:[%s11 + $0x38] sm:$0xff]
    %v4613 = vld [vmem:[%s11 + $0x40] sm:$0xff]
    %v4614 = vld [vmem:[%s11 + $0x48] sm:$0xff]
    %v4615 = vld [vmem:[%s11 + $0x50] sm:$0xff]
    %v4616 = vld [vmem:[%s11 + $0x58] sm:$0xff]
    %v4617 = vld [vmem:[%s11 + $0x60] sm:$0xff]
    %v4618 = vld [vmem:[%s11 + $0x68] sm:$0xff]
    %v4619 = vld [vmem:[%s11 + $0x70] sm:$0xff]
    %v4620 = vld [vmem:[%s11 + $0x78] sm:$0xff]
    %v4621 = vld [vmem:[%s11 + $0x80] sm:$0xff]
    %v4622 = vld [vmem:[%s11 + $0x88] sm:$0xff]
    %v4623 = vld [vmem:[%s11 + $0x90] sm:$0xff]
    %v4624 = vld [vmem:[%s11 + $0x98] sm:$0xff]
    %v4625 = vld [vmem:[%s11 + $0xa0] sm:$0xff]
    %v4626 = vld [vmem:[%s11 + $0xa8] sm:$0xff]
    %v4627 = vld [vmem:[%s11 + $0xb0] sm:$0xff]
    %v4628 = vld [vmem:[%s11 + $0xb8] sm:$0xff]
    %vm4629 = vcmask 523264
    %v4631 = vsel %vm4629, %v4380, 0
    %4633 = vmatprep.subr.mxu0 0.0
    %4634 = vmatpush1.msra.mxu0 %v4620
    %4635 = vmatprep.subr.mxu0 0.0
    %4636 = vmatpush1.msra.mxu0 %v4619
    %4637 = vmatprep.subr.mxu0 0.0
    %4638 = vmatpush1.msra.mxu0 %v4618
    %4639 = vmatprep.subr.mxu0 0.0
    %4640 = vmatpush1.msra.mxu0 %v4617
    %4641 = vmatprep.subr.mxu0 0.0
    %4642 = vmatpush1.msra.mxu0 %v4616
    %4643 = vmatprep.subr.mxu0 0.0
    %4644 = vmatpush1.msra.mxu0 %v4615
    %4645 = vmatprep.subr.mxu0 0.0
    %4646 = vmatpush1.msra.mxu0 %v4614
    %4647 = vmatprep.subr.mxu0 0.0
    %4648 = vmatpush1.msra.mxu0 %v4613
    %4649 = vmatprep.subr.mxu0 0.0
    %4650 = vmatpush1.msra.mxu0 %v4612
    %4651 = vmatprep.subr.mxu0 0.0
    %4652 = vmatpush1.msra.mxu0 %v4611
    %4653 = vmatprep.subr.mxu0 0.0
    %4654 = vmatpush1.msra.mxu0 %v4610
    %4655 = vmatprep.subr.mxu0 0.0
    %4656 = vmatpush1.msra.mxu0 %v4609
    %4657 = vmatprep.subr.mxu0 0.0
    %4658 = vmatpush1.msra.mxu0 %v4608
    %4659 = vmatprep.subr.mxu0 0.0
    %4660 = vmatpush1.msra.mxu0 %v4607
    %4661 = vmatprep.subr.mxu0 0.0
    %4662 = vmatpush1.msra.mxu0 %v4606
    %4663 = vmatprep.subr.mxu0 0.0
    %4664 = vmatpush1.msra.mxu0 %v4605
    %4665 = vmatprep.subr.mxu0 0.0
    %4666 = vmatpush2.msra.mxu0 0.0
    %4667 = vmatprep.subr.mxu0 0.0
    %4668 = vmatpush2.msra.mxu0 0.0
    %4669 = vmatprep.subr.mxu0 0.0
    %4670 = vmatpush2.msra.mxu0 0.0
    %4671 = vmatprep.subr.mxu0 0.0
    %4672 = vmatpush2.msra.mxu0 0.0
    %4673 = vmatprep.subr.mxu0 0.0
    %4674 = vmatpush2.msra.mxu0 0.0
    %4675 = vmatprep.subr.mxu0 0.0
    %4676 = vmatpush2.msra.mxu0 0.0
    %4677 = vmatprep.subr.mxu0 0.0
    %4678 = vmatpush2.msra.mxu0 0.0
    %4679 = vmatprep.subr.mxu0 0.0
    %4680 = vmatpush2.msra.mxu0 0.0
    %4681 = vmatprep.subr.mxu0 0.0
    %4682 = vmatpush2.msra.mxu0 %v4628
    %4683 = vmatprep.subr.mxu0 0.0
    %4684 = vmatpush2.msra.mxu0 %v4627
    %4685 = vmatprep.subr.mxu0 0.0
    %4686 = vmatpush2.msra.mxu0 %v4626
    %4687 = vmatprep.subr.mxu0 0.0
    %4688 = vmatpush2.msra.mxu0 %v4625
    %4689 = vmatprep.subr.mxu0 0.0
    %4690 = vmatpush2.msra.mxu0 %v4624
    %4691 = vmatprep.subr.mxu0 0.0
    %4692 = vmatpush2.msra.mxu0 %v4623
    %4693 = vmatprep.subr.mxu0 0.0
    %4694 = vmatpush2.msra.mxu0 %v4622
    %4695 = vmatprep.subr.mxu0 0.0
    %4696 = vmatpush2.msra.mxu0 %v4621
    %4697 = vmatprep.mubr.f32.mxu0 %v4631
    %4698 = vmatmul.mubr.f32.gmra.mxu0 %v4378
    %v4699 = vpop.f32.mrf.mxu0
    %v4700 = vadd.f32 0.0, %v4699
    %v4701 = vpop.f32.mrf.mxu0
    %4702 = vdwg.mxu0
    %v4704 = vsel %vm4629, %v4457, 0
    %4706 = vmatprep.subr.mxu0 0.0
    %4707 = vmatpush1.msra.mxu0 %v4620
    %4708 = vmatprep.subr.mxu0 0.0
    %4709 = vmatpush1.msra.mxu0 %v4619
    %4710 = vmatprep.subr.mxu0 0.0
    %4711 = vmatpush1.msra.mxu0 %v4618
    %4712 = vmatprep.subr.mxu0 0.0
    %4713 = vmatpush1.msra.mxu0 %v4617
    %4714 = vmatprep.subr.mxu0 0.0
    %4715 = vmatpush1.msra.mxu0 %v4616
    %4716 = vmatprep.subr.mxu0 0.0
    %4717 = vmatpush1.msra.mxu0 %v4615
    %4718 = vmatprep.subr.mxu0 0.0
    %4719 = vmatpush1.msra.mxu0 %v4614
    %4720 = vmatprep.subr.mxu0 0.0
    %4721 = vmatpush1.msra.mxu0 %v4613
    %4722 = vmatprep.subr.mxu0 0.0
    %4723 = vmatpush1.msra.mxu0 %v4612
    %4724 = vmatprep.subr.mxu0 0.0
    %4725 = vmatpush1.msra.mxu0 %v4611
    %4726 = vmatprep.subr.mxu0 0.0
    %4727 = vmatpush1.msra.mxu0 %v4610
    %4728 = vmatprep.subr.mxu0 0.0
    %4729 = vmatpush1.msra.mxu0 %v4609
    %4730 = vmatprep.subr.mxu0 0.0
    %4731 = vmatpush1.msra.mxu0 %v4608
    %4732 = vmatprep.subr.mxu0 0.0
    %4733 = vmatpush1.msra.mxu0 %v4607
    %4734 = vmatprep.subr.mxu0 0.0
    %4735 = vmatpush1.msra.mxu0 %v4606
    %4736 = vmatprep.subr.mxu0 0.0
    %4737 = vmatpush1.msra.mxu0 %v4605
    %4738 = vmatprep.subr.mxu0 0.0
    %4739 = vmatpush2.msra.mxu0 0.0
    %4740 = vmatprep.subr.mxu0 0.0
    %4741 = vmatpush2.msra.mxu0 0.0
    %4742 = vmatprep.subr.mxu0 0.0
    %4743 = vmatpush2.msra.mxu0 0.0
    %4744 = vmatprep.subr.mxu0 0.0
    %4745 = vmatpush2.msra.mxu0 0.0
    %4746 = vmatprep.subr.mxu0 0.0
    %4747 = vmatpush2.msra.mxu0 0.0
    %4748 = vmatprep.subr.mxu0 0.0
    %4749 = vmatpush2.msra.mxu0 0.0
    %4750 = vmatprep.subr.mxu0 0.0
    %4751 = vmatpush2.msra.mxu0 0.0
    %4752 = vmatprep.subr.mxu0 0.0
    %4753 = vmatpush2.msra.mxu0 0.0
    %4754 = vmatprep.subr.mxu0 0.0
    %4755 = vmatpush2.msra.mxu0 %v4628
    %4756 = vmatprep.subr.mxu0 0.0
    %4757 = vmatpush2.msra.mxu0 %v4627
    %4758 = vmatprep.subr.mxu0 0.0
    %4759 = vmatpush2.msra.mxu0 %v4626
    %4760 = vmatprep.subr.mxu0 0.0
    %4761 = vmatpush2.msra.mxu0 %v4625
    %4762 = vmatprep.subr.mxu0 0.0
    %4763 = vmatpush2.msra.mxu0 %v4624
    %4764 = vmatprep.subr.mxu0 0.0
    %4765 = vmatpush2.msra.mxu0 %v4623
    %4766 = vmatprep.subr.mxu0 0.0
    %4767 = vmatpush2.msra.mxu0 %v4622
    %4768 = vmatprep.subr.mxu0 0.0
    %4769 = vmatpush2.msra.mxu0 %v4621
    %4770 = vmatprep.mubr.f32.mxu0 %v4704
    %4771 = vmatmul.mubr.f32.gmra.mxu0 %v4455
    %v4772 = vpop.f32.mrf.mxu0
    %v4773 = vadd.f32 0.0, %v4772
    %v4774 = vpop.f32.mrf.mxu0
    %4775 = vdwg.mxu0
    %v4776 = vld [vmem:[%s12] sm:$0xff]
    %v4777 = vld [vmem:[%s12 + $0x8] sm:$0xff]
    %v4778 = vld [vmem:[%s12 + $0x10] sm:$0xff]
    %v4779 = vld [vmem:[%s12 + $0x18] sm:$0xff]
    %v4780 = vld [vmem:[%s12 + $0x20] sm:$0xff]
    %v4781 = vld [vmem:[%s12 + $0x28] sm:$0xff]
    %v4782 = vld [vmem:[%s12 + $0x30] sm:$0xff]
    %v4783 = vld [vmem:[%s12 + $0x38] sm:$0xff]
    %v4784 = vld [vmem:[%s12 + $0x40] sm:$0xff]
    %v4785 = vld [vmem:[%s12 + $0x48] sm:$0xff]
    %v4786 = vld [vmem:[%s12 + $0x50] sm:$0xff]
    %v4787 = vld [vmem:[%s12 + $0x58] sm:$0xff]
    %v4788 = vld [vmem:[%s12 + $0x60] sm:$0xff]
    %v4789 = vld [vmem:[%s12 + $0x68] sm:$0xff]
    %v4790 = vld [vmem:[%s12 + $0x70] sm:$0xff]
    %v4791 = vld [vmem:[%s12 + $0x78] sm:$0xff]
    %v4792 = vld [vmem:[%s12 + $0x80] sm:$0xff]
    %v4793 = vld [vmem:[%s12 + $0x88] sm:$0xff]
    %v4794 = vld [vmem:[%s12 + $0x90] sm:$0xff]
    %v4795 = vld [vmem:[%s12 + $0x98] sm:$0xff]
    %v4796 = vld [vmem:[%s12 + $0xa0] sm:$0xff]
    %v4797 = vld [vmem:[%s12 + $0xa8] sm:$0xff]
    %v4798 = vld [vmem:[%s12 + $0xb0] sm:$0xff]
    %v4799 = vld [vmem:[%s12 + $0xb8] sm:$0xff]
    %4800 = vmatprep.subr.mxu0 0.0
    %4801 = vmatpush1.msra.mxu0 %v4791
    %4802 = vmatprep.subr.mxu0 0.0
    %4803 = vmatpush1.msra.mxu0 %v4790
    %4804 = vmatprep.subr.mxu0 0.0
    %4805 = vmatpush1.msra.mxu0 %v4789
    %4806 = vmatprep.subr.mxu0 0.0
    %4807 = vmatpush1.msra.mxu0 %v4788
    %4808 = vmatprep.subr.mxu0 0.0
    %4809 = vmatpush1.msra.mxu0 %v4787
    %4810 = vmatprep.subr.mxu0 0.0
    %4811 = vmatpush1.msra.mxu0 %v4786
    %4812 = vmatprep.subr.mxu0 0.0
    %4813 = vmatpush1.msra.mxu0 %v4785
    %4814 = vmatprep.subr.mxu0 0.0
    %4815 = vmatpush1.msra.mxu0 %v4784
    %4816 = vmatprep.subr.mxu0 0.0
    %4817 = vmatpush1.msra.mxu0 %v4783
    %4818 = vmatprep.subr.mxu0 0.0
    %4819 = vmatpush1.msra.mxu0 %v4782
    %4820 = vmatprep.subr.mxu0 0.0
    %4821 = vmatpush1.msra.mxu0 %v4781
    %4822 = vmatprep.subr.mxu0 0.0
    %4823 = vmatpush1.msra.mxu0 %v4780
    %4824 = vmatprep.subr.mxu0 0.0
    %4825 = vmatpush1.msra.mxu0 %v4779
    %4826 = vmatprep.subr.mxu0 0.0
    %4827 = vmatpush1.msra.mxu0 %v4778
    %4828 = vmatprep.subr.mxu0 0.0
    %4829 = vmatpush1.msra.mxu0 %v4777
    %4830 = vmatprep.subr.mxu0 0.0
    %4831 = vmatpush1.msra.mxu0 %v4776
    %4832 = vmatprep.subr.mxu0 0.0
    %4833 = vmatpush2.msra.mxu0 0.0
    %4834 = vmatprep.subr.mxu0 0.0
    %4835 = vmatpush2.msra.mxu0 0.0
    %4836 = vmatprep.subr.mxu0 0.0
    %4837 = vmatpush2.msra.mxu0 0.0
    %4838 = vmatprep.subr.mxu0 0.0
    %4839 = vmatpush2.msra.mxu0 0.0
    %4840 = vmatprep.subr.mxu0 0.0
    %4841 = vmatpush2.msra.mxu0 0.0
    %4842 = vmatprep.subr.mxu0 0.0
    %4843 = vmatpush2.msra.mxu0 0.0
    %4844 = vmatprep.subr.mxu0 0.0
    %4845 = vmatpush2.msra.mxu0 0.0
    %4846 = vmatprep.subr.mxu0 0.0
    %4847 = vmatpush2.msra.mxu0 0.0
    %4848 = vmatprep.subr.mxu0 0.0
    %4849 = vmatpush2.msra.mxu0 %v4799
    %4850 = vmatprep.subr.mxu0 0.0
    %4851 = vmatpush2.msra.mxu0 %v4798
    %4852 = vmatprep.subr.mxu0 0.0
    %4853 = vmatpush2.msra.mxu0 %v4797
    %4854 = vmatprep.subr.mxu0 0.0
    %4855 = vmatpush2.msra.mxu0 %v4796
    %4856 = vmatprep.subr.mxu0 0.0
    %4857 = vmatpush2.msra.mxu0 %v4795
    %4858 = vmatprep.subr.mxu0 0.0
    %4859 = vmatpush2.msra.mxu0 %v4794
    %4860 = vmatprep.subr.mxu0 0.0
    %4861 = vmatpush2.msra.mxu0 %v4793
    %4862 = vmatprep.subr.mxu0 0.0
    %4863 = vmatpush2.msra.mxu0 %v4792
    %4864 = vmatprep.mubr.f32.mxu0 %v4631
    %4865 = vmatmul.mubr.f32.gmra.mxu0 %v4378
    %v4866 = vpop.f32.mrf.mxu0
    %v4867 = vadd.f32 0.0, %v4866
    %v4868 = vpop.f32.mrf.mxu0
    %4869 = vdwg.mxu0
    %4870 = vmatprep.subr.mxu0 0.0
    %4871 = vmatpush1.msra.mxu0 %v4791
    %4872 = vmatprep.subr.mxu0 0.0
    %4873 = vmatpush1.msra.mxu0 %v4790
    %4874 = vmatprep.subr.mxu0 0.0
    %4875 = vmatpush1.msra.mxu0 %v4789
    %4876 = vmatprep.subr.mxu0 0.0
    %4877 = vmatpush1.msra.mxu0 %v4788
    %4878 = vmatprep.subr.mxu0 0.0
    %4879 = vmatpush1.msra.mxu0 %v4787
    %4880 = vmatprep.subr.mxu0 0.0
    %4881 = vmatpush1.msra.mxu0 %v4786
    %4882 = vmatprep.subr.mxu0 0.0
    %4883 = vmatpush1.msra.mxu0 %v4785
    %4884 = vmatprep.subr.mxu0 0.0
    %4885 = vmatpush1.msra.mxu0 %v4784
    %4886 = vmatprep.subr.mxu0 0.0
    %4887 = vmatpush1.msra.mxu0 %v4783
    %4888 = vmatprep.subr.mxu0 0.0
    %4889 = vmatpush1.msra.mxu0 %v4782
    %4890 = vmatprep.subr.mxu0 0.0
    %4891 = vmatpush1.msra.mxu0 %v4781
    %4892 = vmatprep.subr.mxu0 0.0
    %4893 = vmatpush1.msra.mxu0 %v4780
    %4894 = vmatprep.subr.mxu0 0.0
    %4895 = vmatpush1.msra.mxu0 %v4779
    %4896 = vmatprep.subr.mxu0 0.0
    %4897 = vmatpush1.msra.mxu0 %v4778
    %4898 = vmatprep.subr.mxu0 0.0
    %4899 = vmatpush1.msra.mxu0 %v4777
    %4900 = vmatprep.subr.mxu0 0.0
    %4901 = vmatpush1.msra.mxu0 %v4776
    %4902 = vmatprep.subr.mxu0 0.0
    %4903 = vmatpush2.msra.mxu0 0.0
    %4904 = vmatprep.subr.mxu0 0.0
    %4905 = vmatpush2.msra.mxu0 0.0
    %4906 = vmatprep.subr.mxu0 0.0
    %4907 = vmatpush2.msra.mxu0 0.0
    %4908 = vmatprep.subr.mxu0 0.0
    %4909 = vmatpush2.msra.mxu0 0.0
    %4910 = vmatprep.subr.mxu0 0.0
    %4911 = vmatpush2.msra.mxu0 0.0
    %4912 = vmatprep.subr.mxu0 0.0
    %4913 = vmatpush2.msra.mxu0 0.0
    %4914 = vmatprep.subr.mxu0 0.0
    %4915 = vmatpush2.msra.mxu0 0.0
    %4916 = vmatprep.subr.mxu0 0.0
    %4917 = vmatpush2.msra.mxu0 0.0
    %4918 = vmatprep.subr.mxu0 0.0
    %4919 = vmatpush2.msra.mxu0 %v4799
    %4920 = vmatprep.subr.mxu0 0.0
    %4921 = vmatpush2.msra.mxu0 %v4798
    %4922 = vmatprep.subr.mxu0 0.0
    %4923 = vmatpush2.msra.mxu0 %v4797
    %4924 = vmatprep.subr.mxu0 0.0
    %4925 = vmatpush2.msra.mxu0 %v4796
    %4926 = vmatprep.subr.mxu0 0.0
    %4927 = vmatpush2.msra.mxu0 %v4795
    %4928 = vmatprep.subr.mxu0 0.0
    %4929 = vmatpush2.msra.mxu0 %v4794
    %4930 = vmatprep.subr.mxu0 0.0
    %4931 = vmatpush2.msra.mxu0 %v4793
    %4932 = vmatprep.subr.mxu0 0.0
    %4933 = vmatpush2.msra.mxu0 %v4792
    %4934 = vmatprep.mubr.f32.mxu0 %v4704
    %4935 = vmatmul.mubr.f32.gmra.mxu0 %v4455
    %v4936 = vpop.f32.mrf.mxu0
    %v4937 = vadd.f32 0.0, %v4936
    %v4938 = vpop.f32.mrf.mxu0
    %4939 = vdwg.mxu0
    %v4940 = vld [vmem:[%s11] sm:$0xff]
    %v4941 = vld [vmem:[%s11 + $0x8] sm:$0xff]
    %v4942 = vld [vmem:[%s11 + $0x10] sm:$0xff]
    %v4943 = vld [vmem:[%s11 + $0x18] sm:$0xff]
    %v4944 = vld [vmem:[%s11 + $0x20] sm:$0xff]
    %v4945 = vld [vmem:[%s11 + $0x28] sm:$0xff]
    %v4946 = vld [vmem:[%s11 + $0x30] sm:$0xff]
    %v4947 = vld [vmem:[%s11 + $0x38] sm:$0xff]
    %v4948 = vld [vmem:[%s11 + $0x40] sm:$0xff]
    %v4949 = vld [vmem:[%s11 + $0x48] sm:$0xff]
    %v4950 = vld [vmem:[%s11 + $0x50] sm:$0xff]
    %v4951 = vld [vmem:[%s11 + $0x58] sm:$0xff]
    %v4952 = vld [vmem:[%s11 + $0x60] sm:$0xff]
    %v4953 = vld [vmem:[%s11 + $0x68] sm:$0xff]
    %v4954 = vld [vmem:[%s11 + $0x70] sm:$0xff]
    %v4955 = vld [vmem:[%s11 + $0x78] sm:$0xff]
    %v4956 = vld [vmem:[%s11 + $0x80] sm:$0xff]
    %v4957 = vld [vmem:[%s11 + $0x88] sm:$0xff]
    %v4958 = vld [vmem:[%s11 + $0x90] sm:$0xff]
    %v4959 = vld [vmem:[%s11 + $0x98] sm:$0xff]
    %v4960 = vld [vmem:[%s11 + $0xa0] sm:$0xff]
    %v4961 = vld [vmem:[%s11 + $0xa8] sm:$0xff]
    %v4962 = vld [vmem:[%s11 + $0xb0] sm:$0xff]
    %v4963 = vld [vmem:[%s11 + $0xb8] sm:$0xff]
    %v4965 = vsel %vm4629, %v4532, 0
    %4967 = vmatprep.subr.mxu0 0.0
    %4968 = vmatpush1.msra.mxu0 %v4955
    %4969 = vmatprep.subr.mxu0 0.0
    %4970 = vmatpush1.msra.mxu0 %v4954
    %4971 = vmatprep.subr.mxu0 0.0
    %4972 = vmatpush1.msra.mxu0 %v4953
    %4973 = vmatprep.subr.mxu0 0.0
    %4974 = vmatpush1.msra.mxu0 %v4952
    %4975 = vmatprep.subr.mxu0 0.0
    %4976 = vmatpush1.msra.mxu0 %v4951
    %4977 = vmatprep.subr.mxu0 0.0
    %4978 = vmatpush1.msra.mxu0 %v4950
    %4979 = vmatprep.subr.mxu0 0.0
    %4980 = vmatpush1.msra.mxu0 %v4949
    %4981 = vmatprep.subr.mxu0 0.0
    %4982 = vmatpush1.msra.mxu0 %v4948
    %4983 = vmatprep.subr.mxu0 0.0
    %4984 = vmatpush1.msra.mxu0 %v4947
    %4985 = vmatprep.subr.mxu0 0.0
    %4986 = vmatpush1.msra.mxu0 %v4946
    %4987 = vmatprep.subr.mxu0 0.0
    %4988 = vmatpush1.msra.mxu0 %v4945
    %4989 = vmatprep.subr.mxu0 0.0
    %4990 = vmatpush1.msra.mxu0 %v4944
    %4991 = vmatprep.subr.mxu0 0.0
    %4992 = vmatpush1.msra.mxu0 %v4943
    %4993 = vmatprep.subr.mxu0 0.0
    %4994 = vmatpush1.msra.mxu0 %v4942
    %4995 = vmatprep.subr.mxu0 0.0
    %4996 = vmatpush1.msra.mxu0 %v4941
    %4997 = vmatprep.subr.mxu0 0.0
    %4998 = vmatpush1.msra.mxu0 %v4940
    %4999 = vmatprep.subr.mxu0 0.0
    %5000 = vmatpush2.msra.mxu0 0.0
    %5001 = vmatprep.subr.mxu0 0.0
    %5002 = vmatpush2.msra.mxu0 0.0
    %5003 = vmatprep.subr.mxu0 0.0
    %5004 = vmatpush2.msra.mxu0 0.0
    %5005 = vmatprep.subr.mxu0 0.0
    %5006 = vmatpush2.msra.mxu0 0.0
    %5007 = vmatprep.subr.mxu0 0.0
    %5008 = vmatpush2.msra.mxu0 0.0
    %5009 = vmatprep.subr.mxu0 0.0
    %5010 = vmatpush2.msra.mxu0 0.0
    %5011 = vmatprep.subr.mxu0 0.0
    %5012 = vmatpush2.msra.mxu0 0.0
    %5013 = vmatprep.subr.mxu0 0.0
    %5014 = vmatpush2.msra.mxu0 0.0
    %5015 = vmatprep.subr.mxu0 0.0
    %5016 = vmatpush2.msra.mxu0 %v4963
    %5017 = vmatprep.subr.mxu0 0.0
    %5018 = vmatpush2.msra.mxu0 %v4962
    %5019 = vmatprep.subr.mxu0 0.0
    %5020 = vmatpush2.msra.mxu0 %v4961
    %5021 = vmatprep.subr.mxu0 0.0
    %5022 = vmatpush2.msra.mxu0 %v4960
    %5023 = vmatprep.subr.mxu0 0.0
    %5024 = vmatpush2.msra.mxu0 %v4959
    %5025 = vmatprep.subr.mxu0 0.0
    %5026 = vmatpush2.msra.mxu0 %v4958
    %5027 = vmatprep.subr.mxu0 0.0
    %5028 = vmatpush2.msra.mxu0 %v4957
    %5029 = vmatprep.subr.mxu0 0.0
    %5030 = vmatpush2.msra.mxu0 %v4956
    %5031 = vmatprep.mubr.f32.mxu0 %v4965
    %5032 = vmatmul.mubr.f32.gmra.mxu0 %v4530
    %v5033 = vpop.f32.mrf.mxu0
    %v5034 = vadd.f32 0.0, %v5033
    %v5035 = vpop.f32.mrf.mxu0
    %5036 = vdwg.mxu0
    %v5038 = vsel %vm4629, %v4603, 0
    %5040 = vmatprep.subr.mxu0 0.0
    %5041 = vmatpush1.msra.mxu0 %v4955
    %5042 = vmatprep.subr.mxu0 0.0
    %5043 = vmatpush1.msra.mxu0 %v4954
    %5044 = vmatprep.subr.mxu0 0.0
    %5045 = vmatpush1.msra.mxu0 %v4953
    %5046 = vmatprep.subr.mxu0 0.0
    %5047 = vmatpush1.msra.mxu0 %v4952
    %5048 = vmatprep.subr.mxu0 0.0
    %5049 = vmatpush1.msra.mxu0 %v4951
    %5050 = vmatprep.subr.mxu0 0.0
    %5051 = vmatpush1.msra.mxu0 %v4950
    %5052 = vmatprep.subr.mxu0 0.0
    %5053 = vmatpush1.msra.mxu0 %v4949
    %5054 = vmatprep.subr.mxu0 0.0
    %5055 = vmatpush1.msra.mxu0 %v4948
    %5056 = vmatprep.subr.mxu0 0.0
    %5057 = vmatpush1.msra.mxu0 %v4947
    %5058 = vmatprep.subr.mxu0 0.0
    %5059 = vmatpush1.msra.mxu0 %v4946
    %5060 = vmatprep.subr.mxu0 0.0
    %5061 = vmatpush1.msra.mxu0 %v4945
    %5062 = vmatprep.subr.mxu0 0.0
    %5063 = vmatpush1.msra.mxu0 %v4944
    %5064 = vmatprep.subr.mxu0 0.0
    %5065 = vmatpush1.msra.mxu0 %v4943
    %5066 = vmatprep.subr.mxu0 0.0
    %5067 = vmatpush1.msra.mxu0 %v4942
    %5068 = vmatprep.subr.mxu0 0.0
    %5069 = vmatpush1.msra.mxu0 %v4941
    %5070 = vmatprep.subr.mxu0 0.0
    %5071 = vmatpush1.msra.mxu0 %v4940
    %5072 = vmatprep.subr.mxu0 0.0
    %5073 = vmatpush2.msra.mxu0 0.0
    %5074 = vmatprep.subr.mxu0 0.0
    %5075 = vmatpush2.msra.mxu0 0.0
    %5076 = vmatprep.subr.mxu0 0.0
    %5077 = vmatpush2.msra.mxu0 0.0
    %5078 = vmatprep.subr.mxu0 0.0
    %5079 = vmatpush2.msra.mxu0 0.0
    %5080 = vmatprep.subr.mxu0 0.0
    %5081 = vmatpush2.msra.mxu0 0.0
    %5082 = vmatprep.subr.mxu0 0.0
    %5083 = vmatpush2.msra.mxu0 0.0
    %5084 = vmatprep.subr.mxu0 0.0
    %5085 = vmatpush2.msra.mxu0 0.0
    %5086 = vmatprep.subr.mxu0 0.0
    %5087 = vmatpush2.msra.mxu0 0.0
    %5088 = vmatprep.subr.mxu0 0.0
    %5089 = vmatpush2.msra.mxu0 %v4963
    %5090 = vmatprep.subr.mxu0 0.0
    %5091 = vmatpush2.msra.mxu0 %v4962
    %5092 = vmatprep.subr.mxu0 0.0
    %5093 = vmatpush2.msra.mxu0 %v4961
    %5094 = vmatprep.subr.mxu0 0.0
    %5095 = vmatpush2.msra.mxu0 %v4960
    %5096 = vmatprep.subr.mxu0 0.0
    %5097 = vmatpush2.msra.mxu0 %v4959
    %5098 = vmatprep.subr.mxu0 0.0
    %5099 = vmatpush2.msra.mxu0 %v4958
    %5100 = vmatprep.subr.mxu0 0.0
    %5101 = vmatpush2.msra.mxu0 %v4957
    %5102 = vmatprep.subr.mxu0 0.0
    %5103 = vmatpush2.msra.mxu0 %v4956
    %5104 = vmatprep.mubr.f32.mxu0 %v5038
    %5105 = vmatmul.mubr.f32.gmra.mxu0 %v4601
    %v5106 = vpop.f32.mrf.mxu0
    %v5107 = vadd.f32 0.0, %v5106
    %v5108 = vpop.f32.mrf.mxu0
    %5109 = vdwg.mxu0
    %v5110 = vld [vmem:[%s12] sm:$0xff]
    %v5111 = vld [vmem:[%s12 + $0x8] sm:$0xff]
    %v5112 = vld [vmem:[%s12 + $0x10] sm:$0xff]
    %v5113 = vld [vmem:[%s12 + $0x18] sm:$0xff]
    %v5114 = vld [vmem:[%s12 + $0x20] sm:$0xff]
    %v5115 = vld [vmem:[%s12 + $0x28] sm:$0xff]
    %v5116 = vld [vmem:[%s12 + $0x30] sm:$0xff]
    %v5117 = vld [vmem:[%s12 + $0x38] sm:$0xff]
    %v5118 = vld [vmem:[%s12 + $0x40] sm:$0xff]
    %v5119 = vld [vmem:[%s12 + $0x48] sm:$0xff]
    %v5120 = vld [vmem:[%s12 + $0x50] sm:$0xff]
    %v5121 = vld [vmem:[%s12 + $0x58] sm:$0xff]
    %v5122 = vld [vmem:[%s12 + $0x60] sm:$0xff]
    %v5123 = vld [vmem:[%s12 + $0x68] sm:$0xff]
    %v5124 = vld [vmem:[%s12 + $0x70] sm:$0xff]
    %v5125 = vld [vmem:[%s12 + $0x78] sm:$0xff]
    %v5126 = vld [vmem:[%s12 + $0x80] sm:$0xff]
    %v5127 = vld [vmem:[%s12 + $0x88] sm:$0xff]
    %v5128 = vld [vmem:[%s12 + $0x90] sm:$0xff]
    %v5129 = vld [vmem:[%s12 + $0x98] sm:$0xff]
    %v5130 = vld [vmem:[%s12 + $0xa0] sm:$0xff]
    %v5131 = vld [vmem:[%s12 + $0xa8] sm:$0xff]
    %v5132 = vld [vmem:[%s12 + $0xb0] sm:$0xff]
    %v5133 = vld [vmem:[%s12 + $0xb8] sm:$0xff]
    %5134 = vmatprep.subr.mxu0 0.0
    %5135 = vmatpush1.msra.mxu0 %v5125
    %5136 = vmatprep.subr.mxu0 0.0
    %5137 = vmatpush1.msra.mxu0 %v5124
    %5138 = vmatprep.subr.mxu0 0.0
    %5139 = vmatpush1.msra.mxu0 %v5123
    %5140 = vmatprep.subr.mxu0 0.0
    %5141 = vmatpush1.msra.mxu0 %v5122
    %5142 = vmatprep.subr.mxu0 0.0
    %5143 = vmatpush1.msra.mxu0 %v5121
    %5144 = vmatprep.subr.mxu0 0.0
    %5145 = vmatpush1.msra.mxu0 %v5120
    %5146 = vmatprep.subr.mxu0 0.0
    %5147 = vmatpush1.msra.mxu0 %v5119
    %5148 = vmatprep.subr.mxu0 0.0
    %5149 = vmatpush1.msra.mxu0 %v5118
    %5150 = vmatprep.subr.mxu0 0.0
    %5151 = vmatpush1.msra.mxu0 %v5117
    %5152 = vmatprep.subr.mxu0 0.0
    %5153 = vmatpush1.msra.mxu0 %v5116
    %5154 = vmatprep.subr.mxu0 0.0
    %5155 = vmatpush1.msra.mxu0 %v5115
    %5156 = vmatprep.subr.mxu0 0.0
    %5157 = vmatpush1.msra.mxu0 %v5114
    %5158 = vmatprep.subr.mxu0 0.0
    %5159 = vmatpush1.msra.mxu0 %v5113
    %5160 = vmatprep.subr.mxu0 0.0
    %5161 = vmatpush1.msra.mxu0 %v5112
    %5162 = vmatprep.subr.mxu0 0.0
    %5163 = vmatpush1.msra.mxu0 %v5111
    %5164 = vmatprep.subr.mxu0 0.0
    %5165 = vmatpush1.msra.mxu0 %v5110
    %5166 = vmatprep.subr.mxu0 0.0
    %5167 = vmatpush2.msra.mxu0 0.0
    %5168 = vmatprep.subr.mxu0 0.0
    %5169 = vmatpush2.msra.mxu0 0.0
    %5170 = vmatprep.subr.mxu0 0.0
    %5171 = vmatpush2.msra.mxu0 0.0
    %5172 = vmatprep.subr.mxu0 0.0
    %5173 = vmatpush2.msra.mxu0 0.0
    %5174 = vmatprep.subr.mxu0 0.0
    %5175 = vmatpush2.msra.mxu0 0.0
    %5176 = vmatprep.subr.mxu0 0.0
    %5177 = vmatpush2.msra.mxu0 0.0
    %5178 = vmatprep.subr.mxu0 0.0
    %5179 = vmatpush2.msra.mxu0 0.0
    %5180 = vmatprep.subr.mxu0 0.0
    %5181 = vmatpush2.msra.mxu0 0.0
    %5182 = vmatprep.subr.mxu0 0.0
    %5183 = vmatpush2.msra.mxu0 %v5133
    %5184 = vmatprep.subr.mxu0 0.0
    %5185 = vmatpush2.msra.mxu0 %v5132
    %5186 = vmatprep.subr.mxu0 0.0
    %5187 = vmatpush2.msra.mxu0 %v5131
    %5188 = vmatprep.subr.mxu0 0.0
    %5189 = vmatpush2.msra.mxu0 %v5130
    %5190 = vmatprep.subr.mxu0 0.0
    %5191 = vmatpush2.msra.mxu0 %v5129
    %5192 = vmatprep.subr.mxu0 0.0
    %5193 = vmatpush2.msra.mxu0 %v5128
    %5194 = vmatprep.subr.mxu0 0.0
    %5195 = vmatpush2.msra.mxu0 %v5127
    %5196 = vmatprep.subr.mxu0 0.0
    %5197 = vmatpush2.msra.mxu0 %v5126
    %5198 = vmatprep.mubr.f32.mxu0 %v4965
    %5199 = vmatmul.mubr.f32.gmra.mxu0 %v4530
    %v5200 = vpop.f32.mrf.mxu0
    %v5201 = vadd.f32 0.0, %v5200
    %v5202 = vpop.f32.mrf.mxu0
    %5203 = vdwg.mxu0
    %5204 = vmatprep.subr.mxu0 0.0
    %5205 = vmatpush1.msra.mxu0 %v5125
    %5206 = vmatprep.subr.mxu0 0.0
    %5207 = vmatpush1.msra.mxu0 %v5124
    %5208 = vmatprep.subr.mxu0 0.0
    %5209 = vmatpush1.msra.mxu0 %v5123
    %5210 = vmatprep.subr.mxu0 0.0
    %5211 = vmatpush1.msra.mxu0 %v5122
    %5212 = vmatprep.subr.mxu0 0.0
    %5213 = vmatpush1.msra.mxu0 %v5121
    %5214 = vmatprep.subr.mxu0 0.0
    %5215 = vmatpush1.msra.mxu0 %v5120
    %5216 = vmatprep.subr.mxu0 0.0
    %5217 = vmatpush1.msra.mxu0 %v5119
    %5218 = vmatprep.subr.mxu0 0.0
    %5219 = vmatpush1.msra.mxu0 %v5118
    %5220 = vmatprep.subr.mxu0 0.0
    %5221 = vmatpush1.msra.mxu0 %v5117
    %5222 = vmatprep.subr.mxu0 0.0
    %5223 = vmatpush1.msra.mxu0 %v5116
    %5224 = vmatprep.subr.mxu0 0.0
    %5225 = vmatpush1.msra.mxu0 %v5115
    %5226 = vmatprep.subr.mxu0 0.0
    %5227 = vmatpush1.msra.mxu0 %v5114
    %5228 = vmatprep.subr.mxu0 0.0
    %5229 = vmatpush1.msra.mxu0 %v5113
    %5230 = vmatprep.subr.mxu0 0.0
    %5231 = vmatpush1.msra.mxu0 %v5112
    %5232 = vmatprep.subr.mxu0 0.0
    %5233 = vmatpush1.msra.mxu0 %v5111
    %5234 = vmatprep.subr.mxu0 0.0
    %5235 = vmatpush1.msra.mxu0 %v5110
    %5236 = vmatprep.subr.mxu0 0.0
    %5237 = vmatpush2.msra.mxu0 0.0
    %5238 = vmatprep.subr.mxu0 0.0
    %5239 = vmatpush2.msra.mxu0 0.0
    %5240 = vmatprep.subr.mxu0 0.0
    %5241 = vmatpush2.msra.mxu0 0.0
    %5242 = vmatprep.subr.mxu0 0.0
    %5243 = vmatpush2.msra.mxu0 0.0
    %5244 = vmatprep.subr.mxu0 0.0
    %5245 = vmatpush2.msra.mxu0 0.0
    %5246 = vmatprep.subr.mxu0 0.0
    %5247 = vmatpush2.msra.mxu0 0.0
    %5248 = vmatprep.subr.mxu0 0.0
    %5249 = vmatpush2.msra.mxu0 0.0
    %5250 = vmatprep.subr.mxu0 0.0
    %5251 = vmatpush2.msra.mxu0 0.0
    %5252 = vmatprep.subr.mxu0 0.0
    %5253 = vmatpush2.msra.mxu0 %v5133
    %5254 = vmatprep.subr.mxu0 0.0
    %5255 = vmatpush2.msra.mxu0 %v5132
    %5256 = vmatprep.subr.mxu0 0.0
    %5257 = vmatpush2.msra.mxu0 %v5131
    %5258 = vmatprep.subr.mxu0 0.0
    %5259 = vmatpush2.msra.mxu0 %v5130
    %5260 = vmatprep.subr.mxu0 0.0
    %5261 = vmatpush2.msra.mxu0 %v5129
    %5262 = vmatprep.subr.mxu0 0.0
    %5263 = vmatpush2.msra.mxu0 %v5128
    %5264 = vmatprep.subr.mxu0 0.0
    %5265 = vmatpush2.msra.mxu0 %v5127
    %5266 = vmatprep.subr.mxu0 0.0
    %5267 = vmatpush2.msra.mxu0 %v5126
    %5268 = vmatprep.mubr.f32.mxu0 %v5038
    %5269 = vmatmul.mubr.f32.gmra.mxu0 %v4601
    %v5270 = vpop.f32.mrf.mxu0
    %v5271 = vadd.f32 0.0, %v5270
    %v5272 = vpop.f32.mrf.mxu0
    %5273 = vdwg.mxu0
    %v5274 = vmax.f32 %v4700, %v4867
    %v5275 = vmax.f32 %v4773, %v4937
    %v5276 = vmax.f32 %v5034, %v5201
    %v5277 = vmax.f32 %v5107, %v5271
    %v5278 = vmax.f32 %v5274, %v5276
    %v5279 = vmax.f32 %v5275, %v5277
    %v5280 = vld [vmem:[%s13] sm:$0xff]
    %v5281 = vld [vmem:[%s13 + $0x8] sm:$0xff]
    %v5282 = vld [vmem:[%s13 + $0x10] sm:$0xff]
    %v5283 = vld [vmem:[%s13 + $0x18] sm:$0xff]
    %v5284 = vld [vmem:[%s13 + $0x20] sm:$0xff]
    %v5285 = vld [vmem:[%s13 + $0x28] sm:$0xff]
    %v5286 = vld [vmem:[%s13 + $0x30] sm:$0xff]
    %v5287 = vld [vmem:[%s13 + $0x38] sm:$0xff]
    %v5288 = vld [vmem:[%s13 + $0x40] sm:$0xff]
    %v5289 = vld [vmem:[%s13 + $0x48] sm:$0xff]
    %v5290 = vld [vmem:[%s13 + $0x50] sm:$0xff]
    %v5291 = vld [vmem:[%s13 + $0x58] sm:$0xff]
    %s5292 = scalar_lea.vmem %s13, 96
    %v5293 = vld [vmem:[%s5292] sm:$0xff]
    %v5294 = vld [vmem:[%s5292 + $0x8] sm:$0xff]
    %v5295 = vld [vmem:[%s5292 + $0x10] sm:$0xff]
    %v5296 = vld [vmem:[%s5292 + $0x18] sm:$0xff]
    %v5297 = vld [vmem:[%s5292 + $0x20] sm:$0xff]
    %v5298 = vld [vmem:[%s5292 + $0x28] sm:$0xff]
    %v5299 = vld [vmem:[%s5292 + $0x30] sm:$0xff]
    %v5300 = vld [vmem:[%s5292 + $0x38] sm:$0xff]
    %v5301 = vld [vmem:[%s5292 + $0x40] sm:$0xff]
    %v5302 = vld [vmem:[%s5292 + $0x48] sm:$0xff]
    %v5303 = vld [vmem:[%s5292 + $0x50] sm:$0xff]
    %v5304 = vld [vmem:[%s5292 + $0x58] sm:$0xff]
    %v5306 = vrot.slane %v5278, 1
    %vm5307 = vcmask 785408
    %v5308 = vsel %vm5307, %v5306, 0
    %5310 = vmatprep.subr.mxu0 0.0
    %5311 = vmatpush1.msra.mxu0 0.0
    %5312 = vmatprep.subr.mxu0 0.0
    %5313 = vmatpush1.msra.mxu0 0.0
    %5314 = vmatprep.subr.mxu0 0.0
    %5315 = vmatpush1.msra.mxu0 0.0
    %5316 = vmatprep.subr.mxu0 0.0
    %5317 = vmatpush1.msra.mxu0 0.0
    %5318 = vmatprep.subr.mxu0 0.0
    %5319 = vmatpush1.msra.mxu0 %v5304
    %5320 = vmatprep.subr.mxu0 0.0
    %5321 = vmatpush1.msra.mxu0 %v5303
    %5322 = vmatprep.subr.mxu0 0.0
    %5323 = vmatpush1.msra.mxu0 %v5302
    %5324 = vmatprep.subr.mxu0 0.0
    %5325 = vmatpush1.msra.mxu0 %v5301
    %5326 = vmatprep.subr.mxu0 0.0
    %5327 = vmatpush1.msra.mxu0 %v5300
    %5328 = vmatprep.subr.mxu0 0.0
    %5329 = vmatpush1.msra.mxu0 %v5299
    %5330 = vmatprep.subr.mxu0 0.0
    %5331 = vmatpush1.msra.mxu0 %v5298
    %5332 = vmatprep.subr.mxu0 0.0
    %5333 = vmatpush1.msra.mxu0 %v5297
    %5334 = vmatprep.subr.mxu0 0.0
    %5335 = vmatpush1.msra.mxu0 %v5296
    %5336 = vmatprep.subr.mxu0 0.0
    %5337 = vmatpush1.msra.mxu0 %v5295
    %5338 = vmatprep.subr.mxu0 0.0
    %5339 = vmatpush1.msra.mxu0 %v5294
    %5340 = vmatprep.subr.mxu0 0.0
    %5341 = vmatpush1.msra.mxu0 %v5293
    %5342 = vmatprep.subr.mxu0 0.0
    %5343 = vmatpush2.msra.mxu0 0.0
    %5344 = vmatprep.subr.mxu0 0.0
    %5345 = vmatpush2.msra.mxu0 0.0
    %5346 = vmatprep.subr.mxu0 0.0
    %5347 = vmatpush2.msra.mxu0 0.0
    %5348 = vmatprep.subr.mxu0 0.0
    %5349 = vmatpush2.msra.mxu0 0.0
    %5350 = vmatprep.subr.mxu0 0.0
    %5351 = vmatpush2.msra.mxu0 0.0
    %5352 = vmatprep.subr.mxu0 0.0
    %5353 = vmatpush2.msra.mxu0 0.0
    %5354 = vmatprep.subr.mxu0 0.0
    %5355 = vmatpush2.msra.mxu0 0.0
    %5356 = vmatprep.subr.mxu0 0.0
    %5357 = vmatpush2.msra.mxu0 0.0
    %5358 = vmatprep.subr.mxu0 0.0
    %5359 = vmatpush2.msra.mxu0 0.0
    %5360 = vmatprep.subr.mxu0 0.0
    %5361 = vmatpush2.msra.mxu0 0.0
    %5362 = vmatprep.subr.mxu0 0.0
    %5363 = vmatpush2.msra.mxu0 0.0
    %5364 = vmatprep.subr.mxu0 0.0
    %5365 = vmatpush2.msra.mxu0 0.0
    %5366 = vmatprep.subr.mxu0 0.0
    %5367 = vmatpush2.msra.mxu0 0.0
    %5368 = vmatprep.subr.mxu0 0.0
    %5369 = vmatpush2.msra.mxu0 0.0
    %5370 = vmatprep.subr.mxu0 0.0
    %5371 = vmatpush2.msra.mxu0 0.0
    %5372 = vmatprep.subr.mxu0 0.0
    %5373 = vmatpush2.msra.mxu0 0.0
    %5374 = vmatprep.mubr.f32.mxu0 0.0
    %5375 = vmatmul.mubr.f32.gmra.mxu0 %v5308
    %v5376 = vpop.f32.mrf.mxu0
    %v5377 = vadd.f32 0.0, %v5376
    %v5378 = vpop.f32.mrf.mxu0
    %5379 = vdwg.mxu0
    %v5381 = vrot.slane %v5279, 1
    %v5382 = vsel %vm5307, %v5381, 0
    %5384 = vmatprep.subr.mxu0 0.0
    %5385 = vmatpush1.msra.mxu0 0.0
    %5386 = vmatprep.subr.mxu0 0.0
    %5387 = vmatpush1.msra.mxu0 0.0
    %5388 = vmatprep.subr.mxu0 0.0
    %5389 = vmatpush1.msra.mxu0 0.0
    %5390 = vmatprep.subr.mxu0 0.0
    %5391 = vmatpush1.msra.mxu0 0.0
    %5392 = vmatprep.subr.mxu0 0.0
    %5393 = vmatpush1.msra.mxu0 %v5304
    %5394 = vmatprep.subr.mxu0 0.0
    %5395 = vmatpush1.msra.mxu0 %v5303
    %5396 = vmatprep.subr.mxu0 0.0
    %5397 = vmatpush1.msra.mxu0 %v5302
    %5398 = vmatprep.subr.mxu0 0.0
    %5399 = vmatpush1.msra.mxu0 %v5301
    %5400 = vmatprep.subr.mxu0 0.0
    %5401 = vmatpush1.msra.mxu0 %v5300
    %5402 = vmatprep.subr.mxu0 0.0
    %5403 = vmatpush1.msra.mxu0 %v5299
    %5404 = vmatprep.subr.mxu0 0.0
    %5405 = vmatpush1.msra.mxu0 %v5298
    %5406 = vmatprep.subr.mxu0 0.0
    %5407 = vmatpush1.msra.mxu0 %v5297
    %5408 = vmatprep.subr.mxu0 0.0
    %5409 = vmatpush1.msra.mxu0 %v5296
    %5410 = vmatprep.subr.mxu0 0.0
    %5411 = vmatpush1.msra.mxu0 %v5295
    %5412 = vmatprep.subr.mxu0 0.0
    %5413 = vmatpush1.msra.mxu0 %v5294
    %5414 = vmatprep.subr.mxu0 0.0
    %5415 = vmatpush1.msra.mxu0 %v5293
    %5416 = vmatprep.subr.mxu0 0.0
    %5417 = vmatpush2.msra.mxu0 0.0
    %5418 = vmatprep.subr.mxu0 0.0
    %5419 = vmatpush2.msra.mxu0 0.0
    %5420 = vmatprep.subr.mxu0 0.0
    %5421 = vmatpush2.msra.mxu0 0.0
    %5422 = vmatprep.subr.mxu0 0.0
    %5423 = vmatpush2.msra.mxu0 0.0
    %5424 = vmatprep.subr.mxu0 0.0
    %5425 = vmatpush2.msra.mxu0 0.0
    %5426 = vmatprep.subr.mxu0 0.0
    %5427 = vmatpush2.msra.mxu0 0.0
    %5428 = vmatprep.subr.mxu0 0.0
    %5429 = vmatpush2.msra.mxu0 0.0
    %5430 = vmatprep.subr.mxu0 0.0
    %5431 = vmatpush2.msra.mxu0 0.0
    %5432 = vmatprep.subr.mxu0 0.0
    %5433 = vmatpush2.msra.mxu0 0.0
    %5434 = vmatprep.subr.mxu0 0.0
    %5435 = vmatpush2.msra.mxu0 0.0
    %5436 = vmatprep.subr.mxu0 0.0
    %5437 = vmatpush2.msra.mxu0 0.0
    %5438 = vmatprep.subr.mxu0 0.0
    %5439 = vmatpush2.msra.mxu0 0.0
    %5440 = vmatprep.subr.mxu0 0.0
    %5441 = vmatpush2.msra.mxu0 0.0
    %5442 = vmatprep.subr.mxu0 0.0
    %5443 = vmatpush2.msra.mxu0 0.0
    %5444 = vmatprep.subr.mxu0 0.0
    %5445 = vmatpush2.msra.mxu0 0.0
    %5446 = vmatprep.subr.mxu0 0.0
    %5447 = vmatpush2.msra.mxu0 0.0
    %5448 = vmatprep.mubr.f32.mxu0 0.0
    %5449 = vmatmul.mubr.f32.gmra.mxu0 %v5382
    %v5450 = vpop.f32.mrf.mxu0
    %v5451 = vadd.f32 0.0, %v5450
    %v5452 = vpop.f32.mrf.mxu0
    %5453 = vdwg.mxu0
    %v5454 = vsel %vm5307, %v5278, 0
    %5456 = vmatprep.subr.mxu0 0.0
    %5457 = vmatpush1.msra.mxu0 0.0
    %5458 = vmatprep.subr.mxu0 0.0
    %5459 = vmatpush1.msra.mxu0 0.0
    %5460 = vmatprep.subr.mxu0 0.0
    %5461 = vmatpush1.msra.mxu0 0.0
    %5462 = vmatprep.subr.mxu0 0.0
    %5463 = vmatpush1.msra.mxu0 0.0
    %5464 = vmatprep.subr.mxu0 0.0
    %5465 = vmatpush1.msra.mxu0 %v5291
    %5466 = vmatprep.subr.mxu0 0.0
    %5467 = vmatpush1.msra.mxu0 %v5290
    %5468 = vmatprep.subr.mxu0 0.0
    %5469 = vmatpush1.msra.mxu0 %v5289
    %5470 = vmatprep.subr.mxu0 0.0
    %5471 = vmatpush1.msra.mxu0 %v5288
    %5472 = vmatprep.subr.mxu0 0.0
    %5473 = vmatpush1.msra.mxu0 %v5287
    %5474 = vmatprep.subr.mxu0 0.0
    %5475 = vmatpush1.msra.mxu0 %v5286
    %5476 = vmatprep.subr.mxu0 0.0
    %5477 = vmatpush1.msra.mxu0 %v5285
    %5478 = vmatprep.subr.mxu0 0.0
    %5479 = vmatpush1.msra.mxu0 %v5284
    %5480 = vmatprep.subr.mxu0 0.0
    %5481 = vmatpush1.msra.mxu0 %v5283
    %5482 = vmatprep.subr.mxu0 0.0
    %5483 = vmatpush1.msra.mxu0 %v5282
    %5484 = vmatprep.subr.mxu0 0.0
    %5485 = vmatpush1.msra.mxu0 %v5281
    %5486 = vmatprep.subr.mxu0 0.0
    %5487 = vmatpush1.msra.mxu0 %v5280
    %5488 = vmatprep.subr.mxu0 0.0
    %5489 = vmatpush2.msra.mxu0 0.0
    %5490 = vmatprep.subr.mxu0 0.0
    %5491 = vmatpush2.msra.mxu0 0.0
    %5492 = vmatprep.subr.mxu0 0.0
    %5493 = vmatpush2.msra.mxu0 0.0
    %5494 = vmatprep.subr.mxu0 0.0
    %5495 = vmatpush2.msra.mxu0 0.0
    %5496 = vmatprep.subr.mxu0 0.0
    %5497 = vmatpush2.msra.mxu0 0.0
    %5498 = vmatprep.subr.mxu0 0.0
    %5499 = vmatpush2.msra.mxu0 0.0
    %5500 = vmatprep.subr.mxu0 0.0
    %5501 = vmatpush2.msra.mxu0 0.0
    %5502 = vmatprep.subr.mxu0 0.0
    %5503 = vmatpush2.msra.mxu0 0.0
    %5504 = vmatprep.subr.mxu0 0.0
    %5505 = vmatpush2.msra.mxu0 0.0
    %5506 = vmatprep.subr.mxu0 0.0
    %5507 = vmatpush2.msra.mxu0 0.0
    %5508 = vmatprep.subr.mxu0 0.0
    %5509 = vmatpush2.msra.mxu0 0.0
    %5510 = vmatprep.subr.mxu0 0.0
    %5511 = vmatpush2.msra.mxu0 0.0
    %5512 = vmatprep.subr.mxu0 0.0
    %5513 = vmatpush2.msra.mxu0 0.0
    %5514 = vmatprep.subr.mxu0 0.0
    %5515 = vmatpush2.msra.mxu0 0.0
    %5516 = vmatprep.subr.mxu0 0.0
    %5517 = vmatpush2.msra.mxu0 0.0
    %5518 = vmatprep.subr.mxu0 0.0
    %5519 = vmatpush2.msra.mxu0 0.0
    %5520 = vmatprep.mubr.f32.mxu0 0.0
    %5521 = vmatmul.mubr.f32.gmra.mxu0 %v5454
    %v5522 = vpop.f32.mrf.mxu0
    %v5523 = vadd.f32 %v5377, %v5522
    %v5524 = vpop.f32.mrf.mxu0
    %5525 = vdwg.mxu0
    %v5526 = vsel %vm5307, %v5279, 0
    %5528 = vmatprep.subr.mxu0 0.0
    %5529 = vmatpush1.msra.mxu0 0.0
    %5530 = vmatprep.subr.mxu0 0.0
    %5531 = vmatpush1.msra.mxu0 0.0
    %5532 = vmatprep.subr.mxu0 0.0
    %5533 = vmatpush1.msra.mxu0 0.0
    %5534 = vmatprep.subr.mxu0 0.0
    %5535 = vmatpush1.msra.mxu0 0.0
    %5536 = vmatprep.subr.mxu0 0.0
    %5537 = vmatpush1.msra.mxu0 %v5291
    %5538 = vmatprep.subr.mxu0 0.0
    %5539 = vmatpush1.msra.mxu0 %v5290
    %5540 = vmatprep.subr.mxu0 0.0
    %5541 = vmatpush1.msra.mxu0 %v5289
    %5542 = vmatprep.subr.mxu0 0.0
    %5543 = vmatpush1.msra.mxu0 %v5288
    %5544 = vmatprep.subr.mxu0 0.0
    %5545 = vmatpush1.msra.mxu0 %v5287
    %5546 = vmatprep.subr.mxu0 0.0
    %5547 = vmatpush1.msra.mxu0 %v5286
    %5548 = vmatprep.subr.mxu0 0.0
    %5549 = vmatpush1.msra.mxu0 %v5285
    %5550 = vmatprep.subr.mxu0 0.0
    %5551 = vmatpush1.msra.mxu0 %v5284
    %5552 = vmatprep.subr.mxu0 0.0
    %5553 = vmatpush1.msra.mxu0 %v5283
    %5554 = vmatprep.subr.mxu0 0.0
    %5555 = vmatpush1.msra.mxu0 %v5282
    %5556 = vmatprep.subr.mxu0 0.0
    %5557 = vmatpush1.msra.mxu0 %v5281
    %5558 = vmatprep.subr.mxu0 0.0
    %5559 = vmatpush1.msra.mxu0 %v5280
    %5560 = vmatprep.subr.mxu0 0.0
    %5561 = vmatpush2.msra.mxu0 0.0
    %5562 = vmatprep.subr.mxu0 0.0
    %5563 = vmatpush2.msra.mxu0 0.0
    %5564 = vmatprep.subr.mxu0 0.0
    %5565 = vmatpush2.msra.mxu0 0.0
    %5566 = vmatprep.subr.mxu0 0.0
    %5567 = vmatpush2.msra.mxu0 0.0
    %5568 = vmatprep.subr.mxu0 0.0
    %5569 = vmatpush2.msra.mxu0 0.0
    %5570 = vmatprep.subr.mxu0 0.0
    %5571 = vmatpush2.msra.mxu0 0.0
    %5572 = vmatprep.subr.mxu0 0.0
    %5573 = vmatpush2.msra.mxu0 0.0
    %5574 = vmatprep.subr.mxu0 0.0
    %5575 = vmatpush2.msra.mxu0 0.0
    %5576 = vmatprep.subr.mxu0 0.0
    %5577 = vmatpush2.msra.mxu0 0.0
    %5578 = vmatprep.subr.mxu0 0.0
    %5579 = vmatpush2.msra.mxu0 0.0
    %5580 = vmatprep.subr.mxu0 0.0
    %5581 = vmatpush2.msra.mxu0 0.0
    %5582 = vmatprep.subr.mxu0 0.0
    %5583 = vmatpush2.msra.mxu0 0.0
    %5584 = vmatprep.subr.mxu0 0.0
    %5585 = vmatpush2.msra.mxu0 0.0
    %5586 = vmatprep.subr.mxu0 0.0
    %5587 = vmatpush2.msra.mxu0 0.0
    %5588 = vmatprep.subr.mxu0 0.0
    %5589 = vmatpush2.msra.mxu0 0.0
    %5590 = vmatprep.subr.mxu0 0.0
    %5591 = vmatpush2.msra.mxu0 0.0
    %5592 = vmatprep.mubr.f32.mxu0 0.0
    %5593 = vmatmul.mubr.f32.gmra.mxu0 %v5526
    %v5594 = vpop.f32.mrf.mxu0
    %v5595 = vadd.f32 %v5451, %v5594
    %v5596 = vpop.f32.mrf.mxu0
    %5597 = vdwg.mxu0
    %s5598 = scalar_lea.vmem %s13, 192
    %v5599 = vld [vmem:[%s5598] sm:$0xff]
    %v5600 = vld [vmem:[%s5598 + $0x8] sm:$0xff]
    %v5601 = vld [vmem:[%s5598 + $0x10] sm:$0xff]
    %v5602 = vld [vmem:[%s5598 + $0x18] sm:$0xff]
    %v5603 = vld [vmem:[%s5598 + $0x20] sm:$0xff]
    %v5604 = vld [vmem:[%s5598 + $0x28] sm:$0xff]
    %v5605 = vld [vmem:[%s5598 + $0x30] sm:$0xff]
    %v5606 = vld [vmem:[%s5598 + $0x38] sm:$0xff]
    %v5607 = vld [vmem:[%s5598 + $0x40] sm:$0xff]
    %v5608 = vld [vmem:[%s5598 + $0x48] sm:$0xff]
    %v5609 = vld [vmem:[%s5598 + $0x50] sm:$0xff]
    %v5610 = vld [vmem:[%s5598 + $0x58] sm:$0xff]
    %v5611 = vrot.slane %v5278, 2
    %v5612 = vsel %vm5307, %v5611, 0
    %5614 = vmatprep.subr.mxu0 0.0
    %5615 = vmatpush1.msra.mxu0 0.0
    %5616 = vmatprep.subr.mxu0 0.0
    %5617 = vmatpush1.msra.mxu0 0.0
    %5618 = vmatprep.subr.mxu0 0.0
    %5619 = vmatpush1.msra.mxu0 0.0
    %5620 = vmatprep.subr.mxu0 0.0
    %5621 = vmatpush1.msra.mxu0 0.0
    %5622 = vmatprep.subr.mxu0 0.0
    %5623 = vmatpush1.msra.mxu0 %v5610
    %5624 = vmatprep.subr.mxu0 0.0
    %5625 = vmatpush1.msra.mxu0 %v5609
    %5626 = vmatprep.subr.mxu0 0.0
    %5627 = vmatpush1.msra.mxu0 %v5608
    %5628 = vmatprep.subr.mxu0 0.0
    %5629 = vmatpush1.msra.mxu0 %v5607
    %5630 = vmatprep.subr.mxu0 0.0
    %5631 = vmatpush1.msra.mxu0 %v5606
    %5632 = vmatprep.subr.mxu0 0.0
    %5633 = vmatpush1.msra.mxu0 %v5605
    %5634 = vmatprep.subr.mxu0 0.0
    %5635 = vmatpush1.msra.mxu0 %v5604
    %5636 = vmatprep.subr.mxu0 0.0
    %5637 = vmatpush1.msra.mxu0 %v5603
    %5638 = vmatprep.subr.mxu0 0.0
    %5639 = vmatpush1.msra.mxu0 %v5602
    %5640 = vmatprep.subr.mxu0 0.0
    %5641 = vmatpush1.msra.mxu0 %v5601
    %5642 = vmatprep.subr.mxu0 0.0
    %5643 = vmatpush1.msra.mxu0 %v5600
    %5644 = vmatprep.subr.mxu0 0.0
    %5645 = vmatpush1.msra.mxu0 %v5599
    %5646 = vmatprep.subr.mxu0 0.0
    %5647 = vmatpush2.msra.mxu0 0.0
    %5648 = vmatprep.subr.mxu0 0.0
    %5649 = vmatpush2.msra.mxu0 0.0
    %5650 = vmatprep.subr.mxu0 0.0
    %5651 = vmatpush2.msra.mxu0 0.0
    %5652 = vmatprep.subr.mxu0 0.0
    %5653 = vmatpush2.msra.mxu0 0.0
    %5654 = vmatprep.subr.mxu0 0.0
    %5655 = vmatpush2.msra.mxu0 0.0
    %5656 = vmatprep.subr.mxu0 0.0
    %5657 = vmatpush2.msra.mxu0 0.0
    %5658 = vmatprep.subr.mxu0 0.0
    %5659 = vmatpush2.msra.mxu0 0.0
    %5660 = vmatprep.subr.mxu0 0.0
    %5661 = vmatpush2.msra.mxu0 0.0
    %5662 = vmatprep.subr.mxu0 0.0
    %5663 = vmatpush2.msra.mxu0 0.0
    %5664 = vmatprep.subr.mxu0 0.0
    %5665 = vmatpush2.msra.mxu0 0.0
    %5666 = vmatprep.subr.mxu0 0.0
    %5667 = vmatpush2.msra.mxu0 0.0
    %5668 = vmatprep.subr.mxu0 0.0
    %5669 = vmatpush2.msra.mxu0 0.0
    %5670 = vmatprep.subr.mxu0 0.0
    %5671 = vmatpush2.msra.mxu0 0.0
    %5672 = vmatprep.subr.mxu0 0.0
    %5673 = vmatpush2.msra.mxu0 0.0
    %5674 = vmatprep.subr.mxu0 0.0
    %5675 = vmatpush2.msra.mxu0 0.0
    %5676 = vmatprep.subr.mxu0 0.0
    %5677 = vmatpush2.msra.mxu0 0.0
    %5678 = vmatprep.mubr.f32.mxu0 0.0
    %5679 = vmatmul.mubr.f32.gmra.mxu0 %v5612
    %v5680 = vpop.f32.mrf.mxu0
    %v5681 = vadd.f32 0.0, %v5680
    %v5682 = vpop.f32.mrf.mxu0
    %5683 = vdwg.mxu0
    %v5684 = vrot.slane %v5279, 2
    %v5685 = vsel %vm5307, %v5684, 0
    %5687 = vmatprep.subr.mxu0 0.0
    %5688 = vmatpush1.msra.mxu0 0.0
    %5689 = vmatprep.subr.mxu0 0.0
    %5690 = vmatpush1.msra.mxu0 0.0
    %5691 = vmatprep.subr.mxu0 0.0
    %5692 = vmatpush1.msra.mxu0 0.0
    %5693 = vmatprep.subr.mxu0 0.0
    %5694 = vmatpush1.msra.mxu0 0.0
    %5695 = vmatprep.subr.mxu0 0.0
    %5696 = vmatpush1.msra.mxu0 %v5610
    %5697 = vmatprep.subr.mxu0 0.0
    %5698 = vmatpush1.msra.mxu0 %v5609
    %5699 = vmatprep.subr.mxu0 0.0
    %5700 = vmatpush1.msra.mxu0 %v5608
    %5701 = vmatprep.subr.mxu0 0.0
    %5702 = vmatpush1.msra.mxu0 %v5607
    %5703 = vmatprep.subr.mxu0 0.0
    %5704 = vmatpush1.msra.mxu0 %v5606
    %5705 = vmatprep.subr.mxu0 0.0
    %5706 = vmatpush1.msra.mxu0 %v5605
    %5707 = vmatprep.subr.mxu0 0.0
    %5708 = vmatpush1.msra.mxu0 %v5604
    %5709 = vmatprep.subr.mxu0 0.0
    %5710 = vmatpush1.msra.mxu0 %v5603
    %5711 = vmatprep.subr.mxu0 0.0
    %5712 = vmatpush1.msra.mxu0 %v5602
    %5713 = vmatprep.subr.mxu0 0.0
    %5714 = vmatpush1.msra.mxu0 %v5601
    %5715 = vmatprep.subr.mxu0 0.0
    %5716 = vmatpush1.msra.mxu0 %v5600
    %5717 = vmatprep.subr.mxu0 0.0
    %5718 = vmatpush1.msra.mxu0 %v5599
    %5719 = vmatprep.subr.mxu0 0.0
    %5720 = vmatpush2.msra.mxu0 0.0
    %5721 = vmatprep.subr.mxu0 0.0
    %5722 = vmatpush2.msra.mxu0 0.0
    %5723 = vmatprep.subr.mxu0 0.0
    %5724 = vmatpush2.msra.mxu0 0.0
    %5725 = vmatprep.subr.mxu0 0.0
    %5726 = vmatpush2.msra.mxu0 0.0
    %5727 = vmatprep.subr.mxu0 0.0
    %5728 = vmatpush2.msra.mxu0 0.0
    %5729 = vmatprep.subr.mxu0 0.0
    %5730 = vmatpush2.msra.mxu0 0.0
    %5731 = vmatprep.subr.mxu0 0.0
    %5732 = vmatpush2.msra.mxu0 0.0
    %5733 = vmatprep.subr.mxu0 0.0
    %5734 = vmatpush2.msra.mxu0 0.0
    %5735 = vmatprep.subr.mxu0 0.0
    %5736 = vmatpush2.msra.mxu0 0.0
    %5737 = vmatprep.subr.mxu0 0.0
    %5738 = vmatpush2.msra.mxu0 0.0
    %5739 = vmatprep.subr.mxu0 0.0
    %5740 = vmatpush2.msra.mxu0 0.0
    %5741 = vmatprep.subr.mxu0 0.0
    %5742 = vmatpush2.msra.mxu0 0.0
    %5743 = vmatprep.subr.mxu0 0.0
    %5744 = vmatpush2.msra.mxu0 0.0
    %5745 = vmatprep.subr.mxu0 0.0
    %5746 = vmatpush2.msra.mxu0 0.0
    %5747 = vmatprep.subr.mxu0 0.0
    %5748 = vmatpush2.msra.mxu0 0.0
    %5749 = vmatprep.subr.mxu0 0.0
    %5750 = vmatpush2.msra.mxu0 0.0
    %5751 = vmatprep.mubr.f32.mxu0 0.0
    %5752 = vmatmul.mubr.f32.gmra.mxu0 %v5685
    %v5753 = vpop.f32.mrf.mxu0
    %v5754 = vadd.f32 0.0, %v5753
    %v5755 = vpop.f32.mrf.mxu0
    %5756 = vdwg.mxu0
    %v5757 = vadd.f32 %v5523, %v5681
    %v5758 = vadd.f32 %v5595, %v5754
    %v5759 = vld [vmem:[%s14] sm:$0x1]
    %v5761 = vlaneseq
    %v5762 = vshrl.u32 %v5761, 7
    %v5763 = vsub.s32 0, %v5762
    %v5764 = vrot.slane %v5759, %v5763
    %v5766 = vadd.f32 %v5757, %v5764
    %v5767 = vadd.f32 %v5758, %v5764
    %v5768 = vmax.f32 %v5766, 0.0
    %v5769 = vmax.f32 %v5767, 0.0
    %v5770 = vsel %vm1003, %v5768, 0.0
    %v5771 = vrot.slane %v5770, 4
    %v5772 = vadd.f32 %v5770, %v5771
    %v5773 = vrot.slane %v5772, 2
    %v5774 = vadd.f32 %v5772, %v5773
    %v5775 = vrot.slane %v5774, 1
    %v5776 = vadd.f32 %v5774, %v5775
    %v5777 = vsel %vm1003, %v5769, 0.0
    %v5778 = vrot.slane %v5777, 4
    %v5779 = vadd.f32 %v5777, %v5778
    %v5780 = vrot.slane %v5779, 2
    %v5781 = vadd.f32 %v5779, %v5780
    %v5782 = vrot.slane %v5781, 1
    %v5783 = vadd.f32 %v5781, %v5782
    %v5784 = vrcp.pop 4.0
    %v5785 = vmul.f32 %v5776, %v5784
    %v5786 = vmul.f32 %v5783, %v5784
    %v5787 = vld [vmem:[%s15] sm:$0xff]
    %v5788 = vld [vmem:[%s15 + $0x8] sm:$0xff]
    %v5789 = vld [vmem:[%s15 + $0x10] sm:$0xff]
    %v5790 = vld [vmem:[%s15 + $0x18] sm:$0xff]
    %v5791 = vld [vmem:[%s15 + $0x20] sm:$0xff]
    %v5792 = vld [vmem:[%s15 + $0x28] sm:$0xff]
    %v5793 = vld [vmem:[%s15 + $0x30] sm:$0xff]
    %v5794 = vld [vmem:[%s15 + $0x38] sm:$0xff]
    %v5795 = vld [vmem:[%s15 + $0x40] sm:$0xff]
    %v5796 = vld [vmem:[%s15 + $0x48] sm:$0xff]
    %v5797 = vld [vmem:[%s15 + $0x50] sm:$0xff]
    %v5798 = vld [vmem:[%s15 + $0x58] sm:$0xff]
    %v5799 = vld [vmem:[%s15 + $0x60] sm:$0xff]
    %v5800 = vld [vmem:[%s15 + $0x68] sm:$0xff]
    %v5801 = vld [vmem:[%s15 + $0x70] sm:$0xff]
    %v5802 = vld [vmem:[%s15 + $0x78] sm:$0xff]
    %v5803 = vld [vmem:[%s16] sm:$0x1]
    %v5805 = vlaneseq
    %v5806 = vshrl.u32 %v5805, 7
    %v5807 = vsub.s32 0, %v5806
    %v5808 = vrot.slane %v5803, %v5807
    %vm5812 = vcmask 1041409
    %v5813 = vsel %vm5812, %v5786, %v5785
    %5815 = vmatprep.subr.mxu0 0.0
    %5816 = vmatpush1.msra.mxu0 %v5802
    %5817 = vmatprep.subr.mxu0 0.0
    %5818 = vmatpush1.msra.mxu0 %v5801
    %5819 = vmatprep.subr.mxu0 0.0
    %5820 = vmatpush1.msra.mxu0 %v5800
    %5821 = vmatprep.subr.mxu0 0.0
    %5822 = vmatpush1.msra.mxu0 %v5799
    %5823 = vmatprep.subr.mxu0 0.0
    %5824 = vmatpush1.msra.mxu0 %v5798
    %5825 = vmatprep.subr.mxu0 0.0
    %5826 = vmatpush1.msra.mxu0 %v5797
    %5827 = vmatprep.subr.mxu0 0.0
    %5828 = vmatpush1.msra.mxu0 %v5796
    %5829 = vmatprep.subr.mxu0 0.0
    %5830 = vmatpush1.msra.mxu0 %v5795
    %5831 = vmatprep.subr.mxu0 0.0
    %5832 = vmatpush1.msra.mxu0 %v5794
    %5833 = vmatprep.subr.mxu0 0.0
    %5834 = vmatpush1.msra.mxu0 %v5793
    %5835 = vmatprep.subr.mxu0 0.0
    %5836 = vmatpush1.msra.mxu0 %v5792
    %5837 = vmatprep.subr.mxu0 0.0
    %5838 = vmatpush1.msra.mxu0 %v5791
    %5839 = vmatprep.subr.mxu0 0.0
    %5840 = vmatpush1.msra.mxu0 %v5790
    %5841 = vmatprep.subr.mxu0 0.0
    %5842 = vmatpush1.msra.mxu0 %v5789
    %5843 = vmatprep.subr.mxu0 0.0
    %5844 = vmatpush1.msra.mxu0 %v5788
    %5845 = vmatprep.subr.mxu0 0.0
    %5846 = vmatpush1.msra.mxu0 %v5787
    %5847 = vmatprep.subr.mxu0 0.0
    %5848 = vmatpush2.msra.mxu0 0.0
    %5849 = vmatprep.subr.mxu0 0.0
    %5850 = vmatpush2.msra.mxu0 0.0
    %5851 = vmatprep.subr.mxu0 0.0
    %5852 = vmatpush2.msra.mxu0 0.0
    %5853 = vmatprep.subr.mxu0 0.0
    %5854 = vmatpush2.msra.mxu0 0.0
    %5855 = vmatprep.subr.mxu0 0.0
    %5856 = vmatpush2.msra.mxu0 0.0
    %5857 = vmatprep.subr.mxu0 0.0
    %5858 = vmatpush2.msra.mxu0 0.0
    %5859 = vmatprep.subr.mxu0 0.0
    %5860 = vmatpush2.msra.mxu0 0.0
    %5861 = vmatprep.subr.mxu0 0.0
    %5862 = vmatpush2.msra.mxu0 0.0
    %5863 = vmatprep.subr.mxu0 0.0
    %5864 = vmatpush2.msra.mxu0 0.0
    %5865 = vmatprep.subr.mxu0 0.0
    %5866 = vmatpush2.msra.mxu0 0.0
    %5867 = vmatprep.subr.mxu0 0.0
    %5868 = vmatpush2.msra.mxu0 0.0
    %5869 = vmatprep.subr.mxu0 0.0
    %5870 = vmatpush2.msra.mxu0 0.0
    %5871 = vmatprep.subr.mxu0 0.0
    %5872 = vmatpush2.msra.mxu0 0.0
    %5873 = vmatprep.subr.mxu0 0.0
    %5874 = vmatpush2.msra.mxu0 0.0
    %5875 = vmatprep.subr.mxu0 0.0
    %5876 = vmatpush2.msra.mxu0 0.0
    %5877 = vmatprep.subr.mxu0 0.0
    %5878 = vmatpush2.msra.mxu0 0.0
    %5879 = vmatprep.mubr.f32.mxu0 0.0
    %5880 = vmatmul.mubr.f32.gmra.mxu0 %v5813
    %v5881 = vpop.f32.mrf.mxu0
    %v5882 = vadd.f32 %v5808, %v5881
    %v5883 = vpop.f32.mrf.mxu0
    %5884 = vdwg.mxu0
    %v5885 = vmax.f32 %v5882, 0.0
    %v5886 = vld [vmem:[%s17] sm:$0xff]
    %v5887 = vld [vmem:[%s17 + $0x8] sm:$0xff]
    %v5888 = vld [vmem:[%s18] sm:$0x1]
    %v5890 = vlaneseq
    %v5891 = vshrl.u32 %v5890, 7
    %v5892 = vsub.s32 0, %v5891
    %v5893 = vrot.slane %v5888, %v5892
    %vm5895 = vcmask 130048
    %v5897 = vsel %vm5895, %v5885, 0
    %5899 = vmatprep.subr.mxu0 0.0
    %5900 = vmatpush1.msra.mxu0 0.0
    %5901 = vmatprep.subr.mxu0 0.0
    %5902 = vmatpush1.msra.mxu0 0.0
    %5903 = vmatprep.subr.mxu0 0.0
    %5904 = vmatpush1.msra.mxu0 0.0
    %5905 = vmatprep.subr.mxu0 0.0
    %5906 = vmatpush1.msra.mxu0 0.0
    %5907 = vmatprep.subr.mxu0 0.0
    %5908 = vmatpush1.msra.mxu0 0.0
    %5909 = vmatprep.subr.mxu0 0.0
    %5910 = vmatpush1.msra.mxu0 0.0
    %5911 = vmatprep.subr.mxu0 0.0
    %5912 = vmatpush1.msra.mxu0 0.0
    %5913 = vmatprep.subr.mxu0 0.0
    %5914 = vmatpush1.msra.mxu0 0.0
    %5915 = vmatprep.subr.mxu0 0.0
    %5916 = vmatpush1.msra.mxu0 0.0
    %5917 = vmatprep.subr.mxu0 0.0
    %5918 = vmatpush1.msra.mxu0 0.0
    %5919 = vmatprep.subr.mxu0 0.0
    %5920 = vmatpush1.msra.mxu0 0.0
    %5921 = vmatprep.subr.mxu0 0.0
    %5922 = vmatpush1.msra.mxu0 0.0
    %5923 = vmatprep.subr.mxu0 0.0
    %5924 = vmatpush1.msra.mxu0 0.0
    %5925 = vmatprep.subr.mxu0 0.0
    %5926 = vmatpush1.msra.mxu0 0.0
    %5927 = vmatprep.subr.mxu0 0.0
    %5928 = vmatpush1.msra.mxu0 %v5887
    %5929 = vmatprep.subr.mxu0 0.0
    %5930 = vmatpush1.msra.mxu0 %v5886
    %5931 = vmatprep.subr.mxu0 0.0
    %5932 = vmatpush2.msra.mxu0 0.0
    %5933 = vmatprep.subr.mxu0 0.0
    %5934 = vmatpush2.msra.mxu0 0.0
    %5935 = vmatprep.subr.mxu0 0.0
    %5936 = vmatpush2.msra.mxu0 0.0
    %5937 = vmatprep.subr.mxu0 0.0
    %5938 = vmatpush2.msra.mxu0 0.0
    %5939 = vmatprep.subr.mxu0 0.0
    %5940 = vmatpush2.msra.mxu0 0.0
    %5941 = vmatprep.subr.mxu0 0.0
    %5942 = vmatpush2.msra.mxu0 0.0
    %5943 = vmatprep.subr.mxu0 0.0
    %5944 = vmatpush2.msra.mxu0 0.0
    %5945 = vmatprep.subr.mxu0 0.0
    %5946 = vmatpush2.msra.mxu0 0.0
    %5947 = vmatprep.subr.mxu0 0.0
    %5948 = vmatpush2.msra.mxu0 0.0
    %5949 = vmatprep.subr.mxu0 0.0
    %5950 = vmatpush2.msra.mxu0 0.0
    %5951 = vmatprep.subr.mxu0 0.0
    %5952 = vmatpush2.msra.mxu0 0.0
    %5953 = vmatprep.subr.mxu0 0.0
    %5954 = vmatpush2.msra.mxu0 0.0
    %5955 = vmatprep.subr.mxu0 0.0
    %5956 = vmatpush2.msra.mxu0 0.0
    %5957 = vmatprep.subr.mxu0 0.0
    %5958 = vmatpush2.msra.mxu0 0.0
    %5959 = vmatprep.subr.mxu0 0.0
    %5960 = vmatpush2.msra.mxu0 0.0
    %5961 = vmatprep.subr.mxu0 0.0
    %5962 = vmatpush2.msra.mxu0 0.0
    %5963 = vmatprep.mubr.f32.mxu0 0.0
    %5964 = vmatmul.mubr.f32.gmra.mxu0 %v5897
    %v5965 = vpop.f32.mrf.mxu0
    %v5966 = vadd.f32 %v5893, %v5965
    %v5967 = vpop.f32.mrf.mxu0
    %5968 = vdwg.mxu0
    %vm5969 = vcmask 66560
    %5970 = vst.msk [vmem:[#allocation2] sm:$0x3] %vm5969, %v5966
    // Predicated region
    $region78: #{simple_cnn_forward.1} parent=1 // pred_check
      _
    $region79: #{simple_cnn_forward.1} parent=1 // pred_check_branch
      %5972 = sbr.rel (0) target = $region81
    $region80: #{simple_cnn_forward.1} parent=1 // pred_region
      %s5974 = ssub.s32 32, 32
      %5975 = vsyncadd [#allocation3], %s5974
      %s5977 = sshll.u32 [#allocation2], 4
      %s5978 = int_to_ptr.vmem [resolvable:$true] %s5977
      %5980 = dma.vmem_to_hbm [thread:$0]  %s5978, 32, %s19, [#allocation3]
    $region81: #{simple_cnn_forward.1} parent=1 // pred_fallthru
      _
    // Predicated region
    $region82: #{simple_cnn_forward.1} parent=1 // pred_check
      _
    $region83: #{simple_cnn_forward.1} parent=1 // pred_check_branch
      %5982 = sbr.rel (0) target = $region85
    $region84: #{simple_cnn_forward.1} parent=1 // pred_region
      %5983 = dma.done [#allocation3], 32
    $region85: #{simple_cnn_forward.1} parent=1 // pred_fallthru
      _
    %5984 = vsyncpa [#allocation3], 1

</llo_original>
